<compile_context>
chip_gen: v6e
topology: v6e:2x2x1
jax: 0.10.0
libtpu: 0.0.40
codegen_flags: <defaults>
</compile_context>

<pallas_src>
import functools
import math

import jax
import jax.numpy as jnp
from jax.experimental import pallas as pl
from jax.experimental.pallas import tpu as pltpu


# -----------------------------------------------------------------------------
# helpers
# -----------------------------------------------------------------------------
def _cparams(sem):
    return pltpu.CompilerParams(
        dimension_semantics=sem,
        vmem_limit_bytes=32 * 1024 * 1024,
    )


def _pick_tile(m, pref=256):
    """Largest divisor of m that is <= pref and a multiple of 8 (else m)."""
    if m <= pref:
        return m
    for t in range(pref, 7, -8):
        if m % t == 0:
            return t
    return m


def _pick_chunk(length, pref=512):
    """L-chunk for the scan: divides L, multiple of 8, bounded VMEM."""
    if length <= pref:
        return length
    for t in range(pref, 7, -8):
        if length % t == 0:
            return t
    return length


def _softplus(v):
    # guarded softplus (same formula in kernel and reference)
    return jnp.where(v > 20.0, v, jnp.log(1.0 + jnp.exp(v)))


# -----------------------------------------------------------------------------
# kernel 1: in_proj  (bf16 matmul, f32 accumulate), fused split into (x, z)
# -----------------------------------------------------------------------------
def _inproj_kernel(x_ref, wx_ref, wz_ref, xh_ref, z_ref):
    xb = x_ref[...].astype(jnp.bfloat16)
    xh_ref[...] = jnp.dot(xb, wx_ref[...].astype(jnp.bfloat16),
                          preferred_element_type=jnp.float32)
    z_ref[...] = jnp.dot(xb, wz_ref[...].astype(jnp.bfloat16),
                         preferred_element_type=jnp.float32)


def in_proj(x2d, w_x, w_z):
    m, c = x2d.shape
    dh = w_x.shape[1]
    tm = _pick_tile(m)
    return pl.pallas_call(
        _inproj_kernel,
        grid=(m // tm,),
        in_specs=[pl.BlockSpec((tm, c), lambda i: (i, 0)),
                  pl.BlockSpec((c, dh), lambda i: (0, 0)),
                  pl.BlockSpec((c, dh), lambda i: (0, 0))],
        out_specs=(pl.BlockSpec((tm, dh), lambda i: (i, 0)),
                   pl.BlockSpec((tm, dh), lambda i: (i, 0))),
        out_shape=(jax.ShapeDtypeStruct((m, dh), jnp.float32),
                   jax.ShapeDtypeStruct((m, dh), jnp.float32)),
        compiler_params=_cparams(("parallel",)),
    )(x2d, w_x, w_z)


# -----------------------------------------------------------------------------
# kernel 2: depthwise kxk conv + bias + SiLU
# -----------------------------------------------------------------------------
def _dwconv_silu_kernel(x_ref, w_ref, b_ref, o_ref, *, k):
    h, w, c = o_ref.shape[1], o_ref.shape[2], o_ref.shape[3]
    acc = jnp.zeros((h, w, c), jnp.float32)
    for di in range(k):
        for dj in range(k):
            acc = acc + x_ref[0, di:di + h, dj:dj + w, :] * w_ref[di, dj:dj + 1, :]
    acc = acc + b_ref[...]
    o_ref[0] = acc * jax.nn.sigmoid(acc)


def dwconv_silu(x, w, b):
    bn, h, wd, c = x.shape
    k = w.shape[0]
    p = (k - 1) // 2
    xp = jnp.pad(x, ((0, 0), (p, p), (p, p), (0, 0)))
    return pl.pallas_call(
        functools.partial(_dwconv_silu_kernel, k=k),
        grid=(bn,),
        in_specs=[pl.BlockSpec((1, h + 2 * p, wd + 2 * p, c), lambda i: (i, 0, 0, 0)),
                  pl.BlockSpec((k, k, c), lambda i: (0, 0, 0)),
                  pl.BlockSpec((1, c), lambda i: (0, 0))],
        out_specs=pl.BlockSpec((1, h, wd, c), lambda i: (i, 0, 0, 0)),
        out_shape=jax.ShapeDtypeStruct((bn, h, wd, c), jnp.float32),
        compiler_params=_cparams(("parallel",)),
    )(xp, w, b.reshape(1, c))


# -----------------------------------------------------------------------------
# kernel 3: fused per-direction projections
#   dt  = softplus(x @ W_dt_eff + dt_bias)        (W_dt_eff = xw_dt @ dt_w)
#   B,C = x @ xw_B,  x @ xw_C
#   also emits dt * x (pre-computed so the serial scan never touches u)
# -----------------------------------------------------------------------------
def _proj_kernel(xs_ref, wdt_ref, wb_ref, wc_ref, dtb_ref,
                 dlt_ref, dltu_ref, bs_ref, cs_ref):
    x = xs_ref[...]                                   # (TM, D) f32
    xb = x.astype(jnp.bfloat16)
    dt = jnp.dot(xb, wdt_ref[...].astype(jnp.bfloat16),
                 preferred_element_type=jnp.float32) + dtb_ref[...]
    dlt = _softplus(dt)
    dlt_ref[...] = dlt
    dltu_ref[...] = dlt * x
    bs_ref[...] = jnp.dot(xb, wb_ref[...].astype(jnp.bfloat16),
                          preferred_element_type=jnp.float32)
    cs_ref[...] = jnp.dot(xb, wc_ref[...].astype(jnp.bfloat16),
                          preferred_element_type=jnp.float32)


def proj_fused(xs_k, w_dteff, w_b, w_c, dt_b):
    k, m, dh = xs_k.shape
    n = w_b.shape[2]
    tm = _pick_tile(m)
    return pl.pallas_call(
        _proj_kernel,
        grid=(k, m // tm),
        in_specs=[
            pl.BlockSpec((None, tm, dh), lambda g, i: (g, i, 0)),
            pl.BlockSpec((None, dh, dh), lambda g, i: (g, 0, 0)),
            pl.BlockSpec((None, dh, n), lambda g, i: (g, 0, 0)),
            pl.BlockSpec((None, dh, n), lambda g, i: (g, 0, 0)),
            pl.BlockSpec((None, 1, dh), lambda g, i: (g, 0, 0)),
        ],
        out_specs=(
            pl.BlockSpec((None, tm, dh), lambda g, i: (g, i, 0)),
            pl.BlockSpec((None, tm, dh), lambda g, i: (g, i, 0)),
            pl.BlockSpec((None, tm, n), lambda g, i: (g, i, 0)),
            pl.BlockSpec((None, tm, n), lambda g, i: (g, i, 0)),
        ),
        out_shape=(
            jax.ShapeDtypeStruct((k, m, dh), jnp.float32),
            jax.ShapeDtypeStruct((k, m, dh), jnp.float32),
            jax.ShapeDtypeStruct((k, m, n), jnp.float32),
            jax.ShapeDtypeStruct((k, m, n), jnp.float32),
        ),
        compiler_params=_cparams(("parallel", "parallel")),
    )(xs_k, w_dteff, w_b, w_c, dt_b)


# -----------------------------------------------------------------------------
# kernel 4: selective scan
#   grid = (B, K, L-chunks);  state (N, D) carried in VMEM scratch across
#   chunks (chunk axis is "arbitrary");  per step everything is VPU/XLU:
#   the B outer product is formed in-kernel (no D-fold HBM broadcast) and
#   the C-contraction is a sublane reduce (no MXU on the serial path).
# -----------------------------------------------------------------------------
def _scan_kernel(dlt_ref, dltu_ref, a_ref, bs_ref, cs_ref, o_ref, state_ref, *, t_unroll):
    n = a_ref.shape[0]

    @pl.when(pl.program_id(2) == 0)
    def _():
        state_ref[...] = jnp.zeros(state_ref.shape, state_ref.dtype)

    a = a_ref[...]                                         # (N, D)
    # identity mask used to move a (1, N) lane-vector onto the sublanes
    eye = (jax.lax.broadcasted_iota(jnp.int32, (n, n), 0)
           == jax.lax.broadcasted_iota(jnp.int32, (n, n), 1)).astype(jnp.float32)

    cl = dlt_ref.shape[0]

    def blk_body(blk, carry):
        base = pl.multiple_of(blk * t_unroll, t_unroll)
        dlt_blk = dlt_ref[pl.ds(base, t_unroll), :]        # (T, D)
        dltu_blk = dltu_ref[pl.ds(base, t_unroll), :]      # (T, D)
        b_blk = bs_ref[pl.ds(base, t_unroll), :]           # (T, N)
        c_blk = cs_ref[pl.ds(base, t_unroll), :]           # (T, N)
        st = state_ref[...]                                # (N, D)
        for i in range(t_unroll):
            da = jnp.exp(dlt_blk[i:i + 1, :] * a)                            # (N, D)
            b_col = jnp.sum(b_blk[i:i + 1, :] * eye, axis=1, keepdims=True)  # (N, 1)
            c_col = jnp.sum(c_blk[i:i + 1, :] * eye, axis=1, keepdims=True)  # (N, 1)
            st = da * st + b_col * dltu_blk[i:i + 1, :]                      # (N, D)
            y = jnp.sum(c_col * st, axis=0, keepdims=True)                   # (1, D)
            o_ref[pl.ds(base + i, 1), :] = y
        state_ref[...] = st
        return carry

    jax.lax.fori_loop(0, cl // t_unroll, blk_body, 0)


def selective_scan(dlt, dltu, a_knd, bs, cs):
    bn, k, length, dh = dlt.shape
    n = a_knd.shape[1]
    cl = _pick_chunk(length)
    nc = length // cl
    t_unroll = 8 if cl % 8 == 0 else (4 if cl % 4 == 0 else 1)
    return pl.pallas_call(
        functools.partial(_scan_kernel, t_unroll=t_unroll),
        grid=(bn, k, nc),
        in_specs=[
            pl.BlockSpec((None, None, cl, dh), lambda b, g, c: (b, g, c, 0)),
            pl.BlockSpec((None, None, cl, dh), lambda b, g, c: (b, g, c, 0)),
            pl.BlockSpec((None, n, dh), lambda b, g, c: (g, 0, 0)),
            pl.BlockSpec((None, None, cl, n), lambda b, g, c: (b, g, c, 0)),
            pl.BlockSpec((None, None, cl, n), lambda b, g, c: (b, g, c, 0)),
        ],
        out_specs=pl.BlockSpec((None, None, cl, dh), lambda b, g, c: (b, g, c, 0)),
        out_shape=jax.ShapeDtypeStruct((bn, k, length, dh), jnp.float32),
        scratch_shapes=[pltpu.VMEM((n, dh), jnp.float32)],
        compiler_params=_cparams(("parallel", "parallel", "arbitrary")),
    )(dlt, dltu, a_knd, bs, cs)


# -----------------------------------------------------------------------------
# kernel 5: fused (+D*u skip) + LayerNorm + SiLU(z) gate + out_proj
# -----------------------------------------------------------------------------
def _out_kernel(y_ref, xc_ref, ds_ref, z_ref, g_ref, b_ref, w_ref, o_ref):
    y = y_ref[...] + xc_ref[...] * ds_ref[...]
    mu = jnp.mean(y, axis=-1, keepdims=True)
    yc = y - mu
    var = jnp.mean(yc * yc, axis=-1, keepdims=True)
    yn = yc * jax.lax.rsqrt(var + 1e-5) * g_ref[...] + b_ref[...]
    z = z_ref[...]
    gated = yn * (z * jax.nn.sigmoid(z))
    o_ref[...] = jnp.dot(gated.astype(jnp.bfloat16),
                         w_ref[...].astype(jnp.bfloat16),
                         preferred_element_type=jnp.float32)


def out_fused(ysum, xc_flat, dsum, z, ln_w, ln_b, w_out):
    m, dh = ysum.shape
    cm = w_out.shape[1]
    tm = _pick_tile(m)
    return pl.pallas_call(
        _out_kernel,
        grid=(m // tm,),
        in_specs=[pl.BlockSpec((tm, dh), lambda i: (i, 0)),
                  pl.BlockSpec((tm, dh), lambda i: (i, 0)),
                  pl.BlockSpec((1, dh), lambda i: (0, 0)),
                  pl.BlockSpec((tm, dh), lambda i: (i, 0)),
                  pl.BlockSpec((1, dh), lambda i: (0, 0)),
                  pl.BlockSpec((1, dh), lambda i: (0, 0)),
                  pl.BlockSpec((dh, cm), lambda i: (0, 0))],
        out_specs=pl.BlockSpec((tm, cm), lambda i: (i, 0)),
        out_shape=jax.ShapeDtypeStruct((m, cm), jnp.float32),
        compiler_params=_cparams(("parallel",)),
    )(ysum, xc_flat, dsum, z, ln_w, ln_b, w_out)


# -----------------------------------------------------------------------------
# SS2D forward (Pallas path)
# -----------------------------------------------------------------------------
def ss2d_forward(p, x):
    bn, h, w, cm = x.shape
    dh = p["conv_w"].shape[-1]                 # d_inner
    n = p["A_logs"].shape[-1]                  # d_state
    k = p["A_logs"].shape[0]                   # 4 directions
    length = h * w
    m = bn * length

    w_in = p["in_proj_w"]                      # (C, 2*D)
    xh, z = in_proj(x.reshape(m, cm), w_in[:, :dh], w_in[:, dh:])
    xc = dwconv_silu(xh.reshape(bn, h, w, dh), p["conv_w"], p["conv_b"])

    # 4 scan directions (pure data movement, host JAX)
    d0 = xc.reshape(bn, length, dh)
    d1 = jnp.transpose(xc, (0, 2, 1, 3)).reshape(bn, length, dh)
    xs = jnp.stack([d0, d1, jnp.flip(d0, 1), jnp.flip(d1, 1)], axis=0)  # (K,B,L,D)
    xs_k = xs.reshape(k, m, dh)

    # fold dt_proj (rank = dt_rank, 1..4) into one (D, D) matrix host-side
    w_dteff = jnp.einsum("kdr,kre->kde", p["xw_dt"], p["dt_w"])
    dlt, dltu, bs, cs = proj_fused(xs_k, w_dteff, p["xw_B"], p["xw_C"],
                                   p["dt_b"].reshape(k, 1, dh))

    def to_bk(a):
        return jnp.transpose(a.reshape(k, bn, length, a.shape[-1]), (1, 0, 2, 3))

    a_knd = jnp.transpose(-jnp.exp(p["A_logs"]), (0, 2, 1))             # (K, N, D)
    y_scan = selective_scan(to_bk(dlt), to_bk(dltu), a_knd, to_bk(bs), to_bk(cs))

    # inverse reordering of the four directions (host JAX data movement)
    def wh_to_hw(a):
        return jnp.transpose(a.reshape(bn, w, h, dh), (0, 2, 1, 3)).reshape(bn, length, dh)

    ysum = (y_scan[:, 0] + jnp.flip(y_scan[:, 2], axis=1)
            + wh_to_hw(y_scan[:, 1]) + wh_to_hw(jnp.flip(y_scan[:, 3], axis=1)))

    # the per-direction D*u skips, once un-permuted, all reduce to (sum_k D_k)*xc
    dsum = jnp.sum(p["Ds"], axis=0).reshape(1, dh)
    out = out_fused(ysum.reshape(m, dh), d0.reshape(m, dh), dsum, z,
                    p["out_norm_w"].reshape(1, dh), p["out_norm_b"].reshape(1, dh),
                    p["out_proj_w"])
    return out.reshape(bn, h, w, cm)


# -----------------------------------------------------------------------------
# pure-JAX reference (f32) for correctness checking
# -----------------------------------------------------------------------------
def ss2d_reference(p, x):
    bn, h, w, cm = x.shape
    dh = p["conv_w"].shape[-1]
    k = p["A_logs"].shape[0]
    length = h * w

    xz = x.reshape(bn * length, cm) @ p["in_proj_w"]
    xh, z = xz[:, :dh], xz[:, dh:]
    kw = p["conv_w"].reshape(p["conv_w"].shape[0], p["conv_w"].shape[1], 1, dh)
    xc = jax.lax.conv_general_dilated(
        xh.reshape(bn, h, w, dh), kw, (1, 1), "SAME",
        dimension_numbers=("NHWC", "HWIO", "NHWC"),
        feature_group_count=dh) + p["conv_b"]
    xc = xc * jax.nn.sigmoid(xc)

    d0 = xc.reshape(bn, length, dh)
    d1 = jnp.transpose(xc, (0, 2, 1, 3)).reshape(bn, length, dh)
    xs = jnp.stack([d0, d1, jnp.flip(d0, 1), jnp.flip(d1, 1)], axis=1)   # (B,K,L,D)

    ys = []
    for gi in range(k):
        u = xs[:, gi]                                                    # (B, L, D)
        dt = (u @ p["xw_dt"][gi]) @ p["dt_w"][gi] + p["dt_b"][gi]
        bv = u @ p["xw_B"][gi]
        cv = u @ p["xw_C"][gi]
        dlt = _softplus(dt)
        a = -jnp.exp(p["A_logs"][gi])                                    # (D, N)

        def step(state, inp, a=a):
            u_t, dlt_t, b_t, c_t = inp
            da = jnp.exp(dlt_t[:, None] * a)
            dbu = (dlt_t * u_t)[:, None] * b_t[None, :]
            state = da * state + dbu
            return state, state @ c_t

        def scan_one(u_b, dlt_b, b_b, c_b):
            _, y_b = jax.lax.scan(step, jnp.zeros((dh, a.shape[1]), jnp.float32),
                                  (u_b, dlt_b, b_b, c_b))
            return y_b

        ys.append(jax.vmap(scan_one)(u, dlt, bv, cv) + u * p["Ds"][gi])

    def wh_to_hw(arr):
        return jnp.transpose(arr.reshape(bn, w, h, dh), (0, 2, 1, 3)).reshape(bn, length, dh)

    y = (ys[0] + jnp.flip(ys[2], axis=1) + wh_to_hw(ys[1]) + wh_to_hw(jnp.flip(ys[3], axis=1)))
    mu = jnp.mean(y, axis=-1, keepdims=True)
    var = jnp.mean((y - mu) ** 2, axis=-1, keepdims=True)
    yn = (y - mu) * jax.lax.rsqrt(var + 1e-5) * p["out_norm_w"] + p["out_norm_b"]
    zz = z.reshape(bn, length, dh)
    out = (yn * (zz * jax.nn.sigmoid(zz))).reshape(bn * length, dh) @ p["out_proj_w"]
    return out.reshape(bn, h, w, cm)


# -----------------------------------------------------------------------------
# deterministic parameter construction (mirrors the PyTorch module's init)
# -----------------------------------------------------------------------------
def init_ss2d_params(key, d_model, d_state=16, d_conv=3, expand=2,
                     dt_min=1e-3, dt_max=0.1, dt_init_floor=1e-4):
    k = 4
    d_inner = expand * d_model
    dt_rank = int(math.ceil(d_model / 16))
    ks = jax.random.split(key, 8)

    def uni(kk, shape, scale):
        return jax.random.uniform(kk, shape, jnp.float32, -scale, scale)

    xw = uni(ks[3], (k, d_inner, dt_rank + 2 * d_state), 1.0 / math.sqrt(d_inner))
    dt = jnp.exp(jax.random.uniform(ks[5], (k, d_inner))
                 * (math.log(dt_max) - math.log(dt_min)) + math.log(dt_min))
    dt = jnp.maximum(dt, dt_init_floor)
    dt_b = dt + jnp.log(-jnp.expm1(-dt))
    a_logs = jnp.log(jnp.broadcast_to(
        jnp.arange(1, d_state + 1, dtype=jnp.float32), (k, d_inner, d_state)))

    return dict(
        in_proj_w=uni(ks[0], (d_model, 2 * d_inner), 1.0 / math.sqrt(d_model)),
        conv_w=uni(ks[1], (d_conv, d_conv, d_inner), 1.0 / d_conv),
        conv_b=uni(ks[2], (d_inner,), 1.0 / d_conv),
        xw_dt=xw[:, :, :dt_rank],
        xw_B=xw[:, :, dt_rank:dt_rank + d_state],
        xw_C=xw[:, :, dt_rank + d_state:],
        dt_w=uni(ks[4], (k, dt_rank, d_inner), dt_rank ** -0.5),
        dt_b=dt_b,
        A_logs=a_logs,
        Ds=jnp.ones((k, d_inner), jnp.float32),
        out_norm_w=jnp.ones((d_inner,), jnp.float32),
        out_norm_b=jnp.zeros((d_inner,), jnp.float32),
        out_proj_w=uni(ks[6], (d_inner, d_model), 1.0 / math.sqrt(d_inner)),
    )


# -----------------------------------------------------------------------------
if __name__ == "__main__":
    key = jax.random.PRNGKey(0)
    kp, kx = jax.random.split(key)

    d_model = 32
    bn, h, w = 2, 16, 16
    params = init_ss2d_params(kp, d_model)
    x = jax.random.normal(kx, (bn, h, w, d_model), jnp.float32)

    fwd = jax.jit(ss2d_forward)
    out = jax.block_until_ready(fwd(params, x))

    assert out.shape == (bn, h, w, d_model), out.shape
    assert bool(jnp.isfinite(out).all())

    ref = jax.block_until_ready(jax.jit(ss2d_reference)(params, x))
    rel = float(jnp.linalg.norm(out - ref) / (jnp.linalg.norm(ref) + 1e-6))
    assert rel < 0.1, f"mismatch vs reference: rel_l2={rel:.4f}"

    print("KERNEL_OK")
</pallas_src>

<mosaic_0001>
module attributes {stable_mosaic.version = 11 : i64} {
  func.func @_inproj_kernel(%arg0: i32, %arg1: memref<256x32xf32, #tpu.memory_space<vmem>>, %arg2: memref<32x64xf32, #tpu.memory_space<vmem>>, %arg3: memref<32x64xf32, #tpu.memory_space<vmem>>, %arg4: memref<256x64xf32, #tpu.memory_space<vmem>>, %arg5: memref<256x64xf32, #tpu.memory_space<vmem>>) attributes {dimension_semantics = [#tpu.dimension_semantics<parallel>], iteration_bounds = array<i64: 2>, scalar_prefetch = 0 : i64, scratch_operands = 0 : i64, tpu.core_type = #tpu.core_type<tc>, window_params = [{transform_indices = @transform_0, window_bounds = array<i64: 256, 32>}, {pipeline_mode = #tpu.pipeline_mode<synchronous>, transform_indices = @transform_1, window_bounds = array<i64: 32, 64>}, {pipeline_mode = #tpu.pipeline_mode<synchronous>, transform_indices = @transform_2, window_bounds = array<i64: 32, 64>}, {transform_indices = @transform_3, window_bounds = array<i64: 256, 64>}, {transform_indices = @transform_4, window_bounds = array<i64: 256, 64>}]} {
    %c0 = arith.constant 0 : index
    %c0_0 = arith.constant 0 : index
    %0 = vector.load %arg1[%c0, %c0_0] : memref<256x32xf32, #tpu.memory_space<vmem>>, vector<256x32xf32>
    %1 = arith.truncf %0 : vector<256x32xf32> to vector<256x32xbf16>
    %c0_1 = arith.constant 0 : index
    %c0_2 = arith.constant 0 : index
    %2 = vector.load %arg2[%c0_1, %c0_2] : memref<32x64xf32, #tpu.memory_space<vmem>>, vector<32x64xf32>
    %3 = arith.truncf %2 : vector<32x64xf32> to vector<32x64xbf16>
    %cst = arith.constant dense<0.000000e+00> : vector<256x64xf32>
    %4 = tpu.matmul %1, %3, %cst {dimension_numbers = #tpu.dot_dimension_numbers<[1], [0], [0], [1], [0, 0, 1, 1], [], []>} : vector<256x32xbf16>, vector<32x64xbf16>, vector<256x64xf32> -> vector<256x64xf32>
    %c0_3 = arith.constant 0 : index
    %c0_4 = arith.constant 0 : index
    %5 = vector.load %arg4[%c0_3, %c0_4] : memref<256x64xf32, #tpu.memory_space<vmem>>, vector<256x64xf32>
    tpu.vector_store %arg4[%c0_3, %c0_4], %4 {strides = array<i32>} : memref<256x64xf32, #tpu.memory_space<vmem>>, vector<256x64xf32>,
    %c0_5 = arith.constant 0 : index
    %c0_6 = arith.constant 0 : index
    %6 = vector.load %arg3[%c0_5, %c0_6] : memref<32x64xf32, #tpu.memory_space<vmem>>, vector<32x64xf32>
    %7 = arith.truncf %6 : vector<32x64xf32> to vector<32x64xbf16>
    %cst_7 = arith.constant dense<0.000000e+00> : vector<256x64xf32>
    %8 = tpu.matmul %1, %7, %cst_7 {dimension_numbers = #tpu.dot_dimension_numbers<[1], [0], [0], [1], [0, 0, 1, 1], [], []>} : vector<256x32xbf16>, vector<32x64xbf16>, vector<256x64xf32> -> vector<256x64xf32>
    %c0_8 = arith.constant 0 : index
    %c0_9 = arith.constant 0 : index
    %9 = vector.load %arg5[%c0_8, %c0_9] : memref<256x64xf32, #tpu.memory_space<vmem>>, vector<256x64xf32>
    tpu.vector_store %arg5[%c0_8, %c0_9], %8 {strides = array<i32>} : memref<256x64xf32, #tpu.memory_space<vmem>>, vector<256x64xf32>,
    return
  }
  func.func @transform_0(%arg0: i32) -> (i32, i32) {
    %c0_i32 = arith.constant 0 : i32
    %c0_i32_0 = arith.constant 0 : i32
    return %arg0, %c0_i32 : i32, i32
  }
  func.func @transform_1(%arg0: i32) -> (i32, i32) {
    %c0_i32 = arith.constant 0 : i32
    %c0_i32_0 = arith.constant 0 : i32
    %c0_i32_1 = arith.constant 0 : i32
    return %c0_i32, %c0_i32_0 : i32, i32
  }
  func.func @transform_2(%arg0: i32) -> (i32, i32) {
    %c0_i32 = arith.constant 0 : i32
    %c0_i32_0 = arith.constant 0 : i32
    %c0_i32_1 = arith.constant 0 : i32
    return %c0_i32, %c0_i32_0 : i32, i32
  }
  func.func @transform_3(%arg0: i32) -> (i32, i32) {
    %c0_i32 = arith.constant 0 : i32
    %c0_i32_0 = arith.constant 0 : i32
    return %arg0, %c0_i32 : i32, i32
  }
  func.func @transform_4(%arg0: i32) -> (i32, i32) {
    %c0_i32 = arith.constant 0 : i32
    %c0_i32_0 = arith.constant 0 : i32
    return %arg0, %c0_i32 : i32, i32
  }
}

module attributes {stable_mosaic.version = 11 : i64} {
  func.func @_dwconv_silu_kernel(%arg0: i32, %arg1: memref<1x18x18x64xf32, #tpu.memory_space<vmem>>, %arg2: memref<3x3x64xf32, #tpu.memory_space<vmem>>, %arg3: memref<1x64xf32, #tpu.memory_space<vmem>>, %arg4: memref<1x16x16x64xf32, #tpu.memory_space<vmem>>) attributes {dimension_semantics = [#tpu.dimension_semantics<parallel>], iteration_bounds = array<i64: 2>, scalar_prefetch = 0 : i64, scratch_operands = 0 : i64, tpu.core_type = #tpu.core_type<tc>, window_params = [{transform_indices = @transform_0, window_bounds = array<i64: 1, 18, 18, 64>}, {pipeline_mode = #tpu.pipeline_mode<synchronous>, transform_indices = @transform_1, window_bounds = array<i64: 3, 3, 64>}, {pipeline_mode = #tpu.pipeline_mode<synchronous>, transform_indices = @transform_2, window_bounds = array<i64: 1, 64>}, {transform_indices = @transform_3, window_bounds = array<i64: 1, 16, 16, 64>}]} {
    %cst = arith.constant 0.000000e+00 : f32
    %0 = vector.broadcast %cst : f32 to vector<16x16x64xf32>
    %c0 = arith.constant 0 : index
    %c0_0 = arith.constant 0 : index
    %c0_1 = arith.constant 0 : index
    %c0_2 = arith.constant 0 : index
    %1 = vector.load %arg1[%c0, %c0_0, %c0_1, %c0_2] : memref<1x18x18x64xf32, #tpu.memory_space<vmem>>, vector<1x16x16x64xf32>
    %2 = vector.shape_cast %1 : vector<1x16x16x64xf32> to vector<16x16x64xf32>
    %c0_3 = arith.constant 0 : index
    %c0_4 = arith.constant 0 : index
    %c0_5 = arith.constant 0 : index
    %3 = vector.load %arg2[%c0_3, %c0_4, %c0_5] : memref<3x3x64xf32, #tpu.memory_space<vmem>>, vector<1x1x64xf32>
    %4 = vector.shape_cast %3 : vector<1x1x64xf32> to vector<1x64xf32>
    %5 = vector.shape_cast %4 : vector<1x64xf32> to vector<1x1x64xf32>
    %6 = vector.broadcast %5 : vector<1x1x64xf32> to vector<16x16x64xf32>
    %7 = arith.mulf %2, %6 : vector<16x16x64xf32>
    %8 = arith.addf %0, %7 : vector<16x16x64xf32>
    %c0_6 = arith.constant 0 : index
    %c0_7 = arith.constant 0 : index
    %c1 = arith.constant 1 : index
    %c0_8 = arith.constant 0 : index
    %9 = vector.load %arg1[%c0_6, %c0_7, %c1, %c0_8] : memref<1x18x18x64xf32, #tpu.memory_space<vmem>>, vector<1x16x16x64xf32>
    %10 = vector.shape_cast %9 : vector<1x16x16x64xf32> to vector<16x16x64xf32>
    %c0_9 = arith.constant 0 : index
    %c1_10 = arith.constant 1 : index
    %c0_11 = arith.constant 0 : index
    %11 = vector.load %arg2[%c0_9, %c1_10, %c0_11] : memref<3x3x64xf32, #tpu.memory_space<vmem>>, vector<1x1x64xf32>
    %12 = vector.shape_cast %11 : vector<1x1x64xf32> to vector<1x64xf32>
    %13 = vector.shape_cast %12 : vector<1x64xf32> to vector<1x1x64xf32>
    %14 = vector.broadcast %13 : vector<1x1x64xf32> to vector<16x16x64xf32>
    %15 = arith.mulf %10, %14 : vector<16x16x64xf32>
    %16 = arith.addf %8, %15 : vector<16x16x64xf32>
    %c0_12 = arith.constant 0 : index
    %c0_13 = arith.constant 0 : index
    %c2 = arith.constant 2 : index
    %c0_14 = arith.constant 0 : index
    %17 = vector.load %arg1[%c0_12, %c0_13, %c2, %c0_14] : memref<1x18x18x64xf32, #tpu.memory_space<vmem>>, vector<1x16x16x64xf32>
    %18 = vector.shape_cast %17 : vector<1x16x16x64xf32> to vector<16x16x64xf32>
    %c0_15 = arith.constant 0 : index
    %c2_16 = arith.constant 2 : index
    %c0_17 = arith.constant 0 : index
    %19 = vector.load %arg2[%c0_15, %c2_16, %c0_17] : memref<3x3x64xf32, #tpu.memory_space<vmem>>, vector<1x1x64xf32>
    %20 = vector.shape_cast %19 : vector<1x1x64xf32> to vector<1x64xf32>
    %21 = vector.shape_cast %20 : vector<1x64xf32> to vector<1x1x64xf32>
    %22 = vector.broadcast %21 : vector<1x1x64xf32> to vector<16x16x64xf32>
    %23 = arith.mulf %18, %22 : vector<16x16x64xf32>
    %24 = arith.addf %16, %23 : vector<16x16x64xf32>
    %c0_18 = arith.constant 0 : index
    %c1_19 = arith.constant 1 : index
    %c0_20 = arith.constant 0 : index
    %c0_21 = arith.constant 0 : index
    %25 = vector.load %arg1[%c0_18, %c1_19, %c0_20, %c0_21] : memref<1x18x18x64xf32, #tpu.memory_space<vmem>>, vector<1x16x16x64xf32>
    %26 = vector.shape_cast %25 : vector<1x16x16x64xf32> to vector<16x16x64xf32>
    %c1_22 = arith.constant 1 : index
    %c0_23 = arith.constant 0 : index
    %c0_24 = arith.constant 0 : index
    %27 = vector.load %arg2[%c1_22, %c0_23, %c0_24] : memref<3x3x64xf32, #tpu.memory_space<vmem>>, vector<1x1x64xf32>
    %28 = vector.shape_cast %27 : vector<1x1x64xf32> to vector<1x64xf32>
    %29 = vector.shape_cast %28 : vector<1x64xf32> to vector<1x1x64xf32>
    %30 = vector.broadcast %29 : vector<1x1x64xf32> to vector<16x16x64xf32>
    %31 = arith.mulf %26, %30 : vector<16x16x64xf32>
    %32 = arith.addf %24, %31 : vector<16x16x64xf32>
    %c0_25 = arith.constant 0 : index
    %c1_26 = arith.constant 1 : index
    %c1_27 = arith.constant 1 : index
    %c0_28 = arith.constant 0 : index
    %33 = vector.load %arg1[%c0_25, %c1_26, %c1_27, %c0_28] : memref<1x18x18x64xf32, #tpu.memory_space<vmem>>, vector<1x16x16x64xf32>
    %34 = vector.shape_cast %33 : vector<1x16x16x64xf32> to vector<16x16x64xf32>
    %c1_29 = arith.constant 1 : index
    %c1_30 = arith.constant 1 : index
    %c0_31 = arith.constant 0 : index
    %35 = vector.load %arg2[%c1_29, %c1_30, %c0_31] : memref<3x3x64xf32, #tpu.memory_space<vmem>>, vector<1x1x64xf32>
    %36 = vector.shape_cast %35 : vector<1x1x64xf32> to vector<1x64xf32>
    %37 = vector.shape_cast %36 : vector<1x64xf32> to vector<1x1x64xf32>
    %38 = vector.broadcast %37 : vector<1x1x64xf32> to vector<16x16x64xf32>
    %39 = arith.mulf %34, %38 : vector<16x16x64xf32>
    %40 = arith.addf %32, %39 : vector<16x16x64xf32>
    %c0_32 = arith.constant 0 : index
    %c1_33 = arith.constant 1 : index
    %c2_34 = arith.constant 2 : index
    %c0_35 = arith.constant 0 : index
    %41 = vector.load %arg1[%c0_32, %c1_33, %c2_34, %c0_35] : memref<1x18x18x64xf32, #tpu.memory_space<vmem>>, vector<1x16x16x64xf32>
    %42 = vector.shape_cast %41 : vector<1x16x16x64xf32> to vector<16x16x64xf32>
    %c1_36 = arith.constant 1 : index
    %c2_37 = arith.constant 2 : index
    %c0_38 = arith.constant 0 : index
    %43 = vector.load %arg2[%c1_36, %c2_37, %c0_38] : memref<3x3x64xf32, #tpu.memory_space<vmem>>, vector<1x1x64xf32>
    %44 = vector.shape_cast %43 : vector<1x1x64xf32> to vector<1x64xf32>
    %45 = vector.shape_cast %44 : vector<1x64xf32> to vector<1x1x64xf32>
    %46 = vector.broadcast %45 : vector<1x1x64xf32> to vector<16x16x64xf32>
    %47 = arith.mulf %42, %46 : vector<16x16x64xf32>
    %48 = arith.addf %40, %47 : vector<16x16x64xf32>
    %c0_39 = arith.constant 0 : index
    %c2_40 = arith.constant 2 : index
    %c0_41 = arith.constant 0 : index
    %c0_42 = arith.constant 0 : index
    %49 = vector.load %arg1[%c0_39, %c2_40, %c0_41, %c0_42] : memref<1x18x18x64xf32, #tpu.memory_space<vmem>>, vector<1x16x16x64xf32>
    %50 = vector.shape_cast %49 : vector<1x16x16x64xf32> to vector<16x16x64xf32>
    %c2_43 = arith.constant 2 : index
    %c0_44 = arith.constant 0 : index
    %c0_45 = arith.constant 0 : index
    %51 = vector.load %arg2[%c2_43, %c0_44, %c0_45] : memref<3x3x64xf32, #tpu.memory_space<vmem>>, vector<1x1x64xf32>
    %52 = vector.shape_cast %51 : vector<1x1x64xf32> to vector<1x64xf32>
    %53 = vector.shape_cast %52 : vector<1x64xf32> to vector<1x1x64xf32>
    %54 = vector.broadcast %53 : vector<1x1x64xf32> to vector<16x16x64xf32>
    %55 = arith.mulf %50, %54 : vector<16x16x64xf32>
    %56 = arith.addf %48, %55 : vector<16x16x64xf32>
    %c0_46 = arith.constant 0 : index
    %c2_47 = arith.constant 2 : index
    %c1_48 = arith.constant 1 : index
    %c0_49 = arith.constant 0 : index
    %57 = vector.load %arg1[%c0_46, %c2_47, %c1_48, %c0_49] : memref<1x18x18x64xf32, #tpu.memory_space<vmem>>, vector<1x16x16x64xf32>
    %58 = vector.shape_cast %57 : vector<1x16x16x64xf32> to vector<16x16x64xf32>
    %c2_50 = arith.constant 2 : index
    %c1_51 = arith.constant 1 : index
    %c0_52 = arith.constant 0 : index
    %59 = vector.load %arg2[%c2_50, %c1_51, %c0_52] : memref<3x3x64xf32, #tpu.memory_space<vmem>>, vector<1x1x64xf32>
    %60 = vector.shape_cast %59 : vector<1x1x64xf32> to vector<1x64xf32>
    %61 = vector.shape_cast %60 : vector<1x64xf32> to vector<1x1x64xf32>
    %62 = vector.broadcast %61 : vector<1x1x64xf32> to vector<16x16x64xf32>
    %63 = arith.mulf %58, %62 : vector<16x16x64xf32>
    %64 = arith.addf %56, %63 : vector<16x16x64xf32>
    %c0_53 = arith.constant 0 : index
    %c2_54 = arith.constant 2 : index
    %c2_55 = arith.constant 2 : index
    %c0_56 = arith.constant 0 : index
    %65 = vector.load %arg1[%c0_53, %c2_54, %c2_55, %c0_56] : memref<1x18x18x64xf32, #tpu.memory_space<vmem>>, vector<1x16x16x64xf32>
    %66 = vector.shape_cast %65 : vector<1x16x16x64xf32> to vector<16x16x64xf32>
    %c2_57 = arith.constant 2 : index
    %c2_58 = arith.constant 2 : index
    %c0_59 = arith.constant 0 : index
    %67 = vector.load %arg2[%c2_57, %c2_58, %c0_59] : memref<3x3x64xf32, #tpu.memory_space<vmem>>, vector<1x1x64xf32>
    %68 = vector.shape_cast %67 : vector<1x1x64xf32> to vector<1x64xf32>
    %69 = vector.shape_cast %68 : vector<1x64xf32> to vector<1x1x64xf32>
    %70 = vector.broadcast %69 : vector<1x1x64xf32> to vector<16x16x64xf32>
    %71 = arith.mulf %66, %70 : vector<16x16x64xf32>
    %72 = arith.addf %64, %71 : vector<16x16x64xf32>
    %c0_60 = arith.constant 0 : index
    %c0_61 = arith.constant 0 : index
    %73 = vector.load %arg3[%c0_60, %c0_61] : memref<1x64xf32, #tpu.memory_space<vmem>>, vector<1x64xf32>
    %74 = vector.shape_cast %73 : vector<1x64xf32> to vector<1x1x64xf32>
    %75 = vector.broadcast %74 : vector<1x1x64xf32> to vector<16x16x64xf32>
    %76 = arith.addf %72, %75 : vector<16x16x64xf32>
    %77 = arith.negf %76 : vector<16x16x64xf32>
    %78 = math.exp %77 : vector<16x16x64xf32>
    %cst_62 = arith.constant 1.000000e+00 : f32
    %79 = vector.broadcast %cst_62 : f32 to vector<16x16x64xf32>
    %80 = arith.addf %79, %78 : vector<16x16x64xf32>
    %81 = arith.divf %79, %80 : vector<16x16x64xf32>
    %82 = arith.mulf %76, %81 : vector<16x16x64xf32>
    %c0_63 = arith.constant 0 : index
    %c0_64 = arith.constant 0 : index
    %c0_65 = arith.constant 0 : index
    %c0_66 = arith.constant 0 : index
    %83 = vector.load %arg4[%c0_63, %c0_64, %c0_65, %c0_66] : memref<1x16x16x64xf32, #tpu.memory_space<vmem>>, vector<1x16x16x64xf32>
    %84 = vector.shape_cast %83 : vector<1x16x16x64xf32> to vector<16x16x64xf32>
    %85 = vector.shape_cast %82 : vector<16x16x64xf32> to vector<1x16x16x64xf32>
    tpu.vector_store %arg4[%c0_63, %c0_64, %c0_65, %c0_66], %85 {strides = array<i32>} : memref<1x16x16x64xf32, #tpu.memory_space<vmem>>, vector<1x16x16x64xf32>,
    return
  }
  func.func @transform_0(%arg0: i32) -> (i32, i32, i32, i32) {
    %c0_i32 = arith.constant 0 : i32
    %c0_i32_0 = arith.constant 0 : i32
    %c0_i32_1 = arith.constant 0 : i32
    %c0_i32_2 = arith.constant 0 : i32
    return %arg0, %c0_i32, %c0_i32_0, %c0_i32_1 : i32, i32, i32, i32
  }
  func.func @transform_1(%arg0: i32) -> (i32, i32, i32) {
    %c0_i32 = arith.constant 0 : i32
    %c0_i32_0 = arith.constant 0 : i32
    %c0_i32_1 = arith.constant 0 : i32
    %c0_i32_2 = arith.constant 0 : i32
    return %c0_i32, %c0_i32_0, %c0_i32_1 : i32, i32, i32
  }
  func.func @transform_2(%arg0: i32) -> (i32, i32) {
    %c0_i32 = arith.constant 0 : i32
    %c0_i32_0 = arith.constant 0 : i32
    %c0_i32_1 = arith.constant 0 : i32
    return %c0_i32, %c0_i32_0 : i32, i32
  }
  func.func @transform_3(%arg0: i32) -> (i32, i32, i32, i32) {
    %c0_i32 = arith.constant 0 : i32
    %c0_i32_0 = arith.constant 0 : i32
    %c0_i32_1 = arith.constant 0 : i32
    %c0_i32_2 = arith.constant 0 : i32
    return %arg0, %c0_i32, %c0_i32_0, %c0_i32_1 : i32, i32, i32, i32
  }
}

module attributes {stable_mosaic.version = 11 : i64} {
  func.func @_proj_kernel(%arg0: i32, %arg1: i32, %arg2: memref<1x256x64xf32, #tpu.memory_space<vmem>>, %arg3: memref<1x64x64xf32, #tpu.memory_space<vmem>>, %arg4: memref<1x64x16xf32, #tpu.memory_space<vmem>>, %arg5: memref<1x64x16xf32, #tpu.memory_space<vmem>>, %arg6: memref<1x1x64xf32, #tpu.memory_space<vmem>>, %arg7: memref<1x256x64xf32, #tpu.memory_space<vmem>>, %arg8: memref<1x256x64xf32, #tpu.memory_space<vmem>>, %arg9: memref<1x256x16xf32, #tpu.memory_space<vmem>>, %arg10: memref<1x256x16xf32, #tpu.memory_space<vmem>>) attributes {dimension_semantics = [#tpu.dimension_semantics<parallel>, #tpu.dimension_semantics<parallel>], iteration_bounds = array<i64: 4, 2>, scalar_prefetch = 0 : i64, scratch_operands = 0 : i64, tpu.core_type = #tpu.core_type<tc>, window_params = [{transform_indices = @transform_0, window_bounds = array<i64: 1, 256, 64>}, {transform_indices = @transform_1, window_bounds = array<i64: 1, 64, 64>}, {transform_indices = @transform_2, window_bounds = array<i64: 1, 64, 16>}, {transform_indices = @transform_3, window_bounds = array<i64: 1, 64, 16>}, {transform_indices = @transform_4, window_bounds = array<i64: 1, 1, 64>}, {transform_indices = @transform_5, window_bounds = array<i64: 1, 256, 64>}, {transform_indices = @transform_6, window_bounds = array<i64: 1, 256, 64>}, {transform_indices = @transform_7, window_bounds = array<i64: 1, 256, 16>}, {transform_indices = @transform_8, window_bounds = array<i64: 1, 256, 16>}]} {
    %c0 = arith.constant 0 : index
    %c0_0 = arith.constant 0 : index
    %c0_1 = arith.constant 0 : index
    %0 = vector.load %arg2[%c0, %c0_0, %c0_1] : memref<1x256x64xf32, #tpu.memory_space<vmem>>, vector<1x256x64xf32>
    %1 = vector.shape_cast %0 : vector<1x256x64xf32> to vector<256x64xf32>
    %2 = arith.truncf %1 : vector<256x64xf32> to vector<256x64xbf16>
    %c0_2 = arith.constant 0 : index
    %c0_3 = arith.constant 0 : index
    %c0_4 = arith.constant 0 : index
    %3 = vector.load %arg3[%c0_2, %c0_3, %c0_4] : memref<1x64x64xf32, #tpu.memory_space<vmem>>, vector<1x64x64xf32>
    %4 = vector.shape_cast %3 : vector<1x64x64xf32> to vector<64x64xf32>
    %5 = arith.truncf %4 : vector<64x64xf32> to vector<64x64xbf16>
    %cst = arith.constant dense<0.000000e+00> : vector<256x64xf32>
    %6 = tpu.matmul %2, %5, %cst {dimension_numbers = #tpu.dot_dimension_numbers<[1], [0], [0], [1], [0, 0, 1, 1], [], []>} : vector<256x64xbf16>, vector<64x64xbf16>, vector<256x64xf32> -> vector<256x64xf32>
    %c0_5 = arith.constant 0 : index
    %c0_6 = arith.constant 0 : index
    %c0_7 = arith.constant 0 : index
    %7 = vector.load %arg6[%c0_5, %c0_6, %c0_7] : memref<1x1x64xf32, #tpu.memory_space<vmem>>, vector<1x1x64xf32>
    %8 = vector.shape_cast %7 : vector<1x1x64xf32> to vector<1x64xf32>
    %9 = vector.broadcast %8 : vector<1x64xf32> to vector<256x64xf32>
    %10 = arith.addf %6, %9 : vector<256x64xf32>
    %cst_8 = arith.constant 2.000000e+01 : f32
    %11 = vector.broadcast %cst_8 : f32 to vector<256x64xf32>
    %12 = arith.cmpf ogt, %10, %11 : vector<256x64xf32>
    %13 = math.exp %10 : vector<256x64xf32>
    %cst_9 = arith.constant 1.000000e+00 : f32
    %14 = vector.broadcast %cst_9 : f32 to vector<256x64xf32>
    %15 = arith.addf %14, %13 : vector<256x64xf32>
    %16 = math.log %15 : vector<256x64xf32>
    %17 = arith.select %12, %10, %16 : vector<256x64xi1>, vector<256x64xf32>
    %c0_10 = arith.constant 0 : index
    %c0_11 = arith.constant 0 : index
    %c0_12 = arith.constant 0 : index
    %18 = vector.load %arg7[%c0_10, %c0_11, %c0_12] : memref<1x256x64xf32, #tpu.memory_space<vmem>>, vector<1x256x64xf32>
    %19 = vector.shape_cast %18 : vector<1x256x64xf32> to vector<256x64xf32>
    %20 = vector.shape_cast %17 : vector<256x64xf32> to vector<1x256x64xf32>
    tpu.vector_store %arg7[%c0_10, %c0_11, %c0_12], %20 {strides = array<i32>} : memref<1x256x64xf32, #tpu.memory_space<vmem>>, vector<1x256x64xf32>,
    %21 = arith.mulf %17, %1 : vector<256x64xf32>
    %c0_13 = arith.constant 0 : index
    %c0_14 = arith.constant 0 : index
    %c0_15 = arith.constant 0 : index
    %22 = vector.load %arg8[%c0_13, %c0_14, %c0_15] : memref<1x256x64xf32, #tpu.memory_space<vmem>>, vector<1x256x64xf32>
    %23 = vector.shape_cast %22 : vector<1x256x64xf32> to vector<256x64xf32>
    %24 = vector.shape_cast %21 : vector<256x64xf32> to vector<1x256x64xf32>
    tpu.vector_store %arg8[%c0_13, %c0_14, %c0_15], %24 {strides = array<i32>} : memref<1x256x64xf32, #tpu.memory_space<vmem>>, vector<1x256x64xf32>,
    %c0_16 = arith.constant 0 : index
    %c0_17 = arith.constant 0 : index
    %c0_18 = arith.constant 0 : index
    %25 = vector.load %arg4[%c0_16, %c0_17, %c0_18] : memref<1x64x16xf32, #tpu.memory_space<vmem>>, vector<1x64x16xf32>
    %26 = vector.shape_cast %25 : vector<1x64x16xf32> to vector<64x16xf32>
    %27 = arith.truncf %26 : vector<64x16xf32> to vector<64x16xbf16>
    %cst_19 = arith.constant dense<0.000000e+00> : vector<256x16xf32>
    %28 = tpu.matmul %2, %27, %cst_19 {dimension_numbers = #tpu.dot_dimension_numbers<[1], [0], [0], [1], [0, 0, 1, 1], [], []>} : vector<256x64xbf16>, vector<64x16xbf16>, vector<256x16xf32> -> vector<256x16xf32>
    %c0_20 = arith.constant 0 : index
    %c0_21 = arith.constant 0 : index
    %c0_22 = arith.constant 0 : index
    %29 = vector.load %arg9[%c0_20, %c0_21, %c0_22] : memref<1x256x16xf32, #tpu.memory_space<vmem>>, vector<1x256x16xf32>
    %30 = vector.shape_cast %29 : vector<1x256x16xf32> to vector<256x16xf32>
    %31 = vector.shape_cast %28 : vector<256x16xf32> to vector<1x256x16xf32>
    tpu.vector_store %arg9[%c0_20, %c0_21, %c0_22], %31 {strides = array<i32>} : memref<1x256x16xf32, #tpu.memory_space<vmem>>, vector<1x256x16xf32>,
    %c0_23 = arith.constant 0 : index
    %c0_24 = arith.constant 0 : index
    %c0_25 = arith.constant 0 : index
    %32 = vector.load %arg5[%c0_23, %c0_24, %c0_25] : memref<1x64x16xf32, #tpu.memory_space<vmem>>, vector<1x64x16xf32>
    %33 = vector.shape_cast %32 : vector<1x64x16xf32> to vector<64x16xf32>
    %34 = arith.truncf %33 : vector<64x16xf32> to vector<64x16xbf16>
    %cst_26 = arith.constant dense<0.000000e+00> : vector<256x16xf32>
    %35 = tpu.matmul %2, %34, %cst_26 {dimension_numbers = #tpu.dot_dimension_numbers<[1], [0], [0], [1], [0, 0, 1, 1], [], []>} : vector<256x64xbf16>, vector<64x16xbf16>, vector<256x16xf32> -> vector<256x16xf32>
    %c0_27 = arith.constant 0 : index
    %c0_28 = arith.constant 0 : index
    %c0_29 = arith.constant 0 : index
    %36 = vector.load %arg10[%c0_27, %c0_28, %c0_29] : memref<1x256x16xf32, #tpu.memory_space<vmem>>, vector<1x256x16xf32>
    %37 = vector.shape_cast %36 : vector<1x256x16xf32> to vector<256x16xf32>
    %38 = vector.shape_cast %35 : vector<256x16xf32> to vector<1x256x16xf32>
    tpu.vector_store %arg10[%c0_27, %c0_28, %c0_29], %38 {strides = array<i32>} : memref<1x256x16xf32, #tpu.memory_space<vmem>>, vector<1x256x16xf32>,
    return
  }
  func.func @transform_0(%arg0: i32, %arg1: i32) -> (i32, i32, i32) {
    %c0_i32 = arith.constant 0 : i32
    %c0_i32_0 = arith.constant 0 : i32
    return %arg0, %arg1, %c0_i32 : i32, i32, i32
  }
  func.func @transform_1(%arg0: i32, %arg1: i32) -> (i32, i32, i32) {
    %c0_i32 = arith.constant 0 : i32
    %c0_i32_0 = arith.constant 0 : i32
    %c0_i32_1 = arith.constant 0 : i32
    return %arg0, %c0_i32, %c0_i32_0 : i32, i32, i32
  }
  func.func @transform_2(%arg0: i32, %arg1: i32) -> (i32, i32, i32) {
    %c0_i32 = arith.constant 0 : i32
    %c0_i32_0 = arith.constant 0 : i32
    %c0_i32_1 = arith.constant 0 : i32
    return %arg0, %c0_i32, %c0_i32_0 : i32, i32, i32
  }
  func.func @transform_3(%arg0: i32, %arg1: i32) -> (i32, i32, i32) {
    %c0_i32 = arith.constant 0 : i32
    %c0_i32_0 = arith.constant 0 : i32
    %c0_i32_1 = arith.constant 0 : i32
    return %arg0, %c0_i32, %c0_i32_0 : i32, i32, i32
  }
  func.func @transform_4(%arg0: i32, %arg1: i32) -> (i32, i32, i32) {
    %c0_i32 = arith.constant 0 : i32
    %c0_i32_0 = arith.constant 0 : i32
    %c0_i32_1 = arith.constant 0 : i32
    return %arg0, %c0_i32, %c0_i32_0 : i32, i32, i32
  }
  func.func @transform_5(%arg0: i32, %arg1: i32) -> (i32, i32, i32) {
    %c0_i32 = arith.constant 0 : i32
    %c0_i32_0 = arith.constant 0 : i32
    return %arg0, %arg1, %c0_i32 : i32, i32, i32
  }
  func.func @transform_6(%arg0: i32, %arg1: i32) -> (i32, i32, i32) {
    %c0_i32 = arith.constant 0 : i32
    %c0_i32_0 = arith.constant 0 : i32
    return %arg0, %arg1, %c0_i32 : i32, i32, i32
  }
  func.func @transform_7(%arg0: i32, %arg1: i32) -> (i32, i32, i32) {
    %c0_i32 = arith.constant 0 : i32
    %c0_i32_0 = arith.constant 0 : i32
    return %arg0, %arg1, %c0_i32 : i32, i32, i32
  }
  func.func @transform_8(%arg0: i32, %arg1: i32) -> (i32, i32, i32) {
    %c0_i32 = arith.constant 0 : i32
    %c0_i32_0 = arith.constant 0 : i32
    return %arg0, %arg1, %c0_i32 : i32, i32, i32
  }
}

module attributes {stable_mosaic.version = 11 : i64} {
  func.func @_scan_kernel(%arg0: i32, %arg1: i32, %arg2: i32, %arg3: memref<1x1x256x64xf32, #tpu.memory_space<vmem>>, %arg4: memref<1x1x256x64xf32, #tpu.memory_space<vmem>>, %arg5: memref<1x16x64xf32, #tpu.memory_space<vmem>>, %arg6: memref<1x1x256x16xf32, #tpu.memory_space<vmem>>, %arg7: memref<1x1x256x16xf32, #tpu.memory_space<vmem>>, %arg8: memref<1x1x256x64xf32, #tpu.memory_space<vmem>>, %arg9: memref<16x64xf32, #tpu.memory_space<vmem>>) attributes {dimension_semantics = [#tpu.dimension_semantics<parallel>, #tpu.dimension_semantics<parallel>, #tpu.dimension_semantics<arbitrary>], iteration_bounds = array<i64: 2, 4, 1>, scalar_prefetch = 0 : i64, scratch_operands = 1 : i64, tpu.core_type = #tpu.core_type<tc>, window_params = [{transform_indices = @transform_0, window_bounds = array<i64: 1, 1, 256, 64>}, {transform_indices = @transform_1, window_bounds = array<i64: 1, 1, 256, 64>}, {transform_indices = @transform_2, window_bounds = array<i64: 1, 16, 64>}, {transform_indices = @transform_3, window_bounds = array<i64: 1, 1, 256, 16>}, {transform_indices = @transform_4, window_bounds = array<i64: 1, 1, 256, 16>}, {transform_indices = @transform_5, window_bounds = array<i64: 1, 1, 256, 64>}]} {
    %c0_i32 = arith.constant 0 : i32
    %0 = arith.cmpi eq, %arg2, %c0_i32 : i32
    %1 = arith.extui %0 : i1 to i32
    %c0_i32_0 = arith.constant 0 : i32
    %2 = arith.cmpi ne, %1, %c0_i32_0 : i32
    scf.if %2 {
      %cst = arith.constant 0.000000e+00 : f32
      %11 = vector.broadcast %cst : f32 to vector<16x64xf32>
      %c0_5 = arith.constant 0 : index
      %c0_6 = arith.constant 0 : index
      %12 = vector.load %arg9[%c0_5, %c0_6] : memref<16x64xf32, #tpu.memory_space<vmem>>, vector<16x64xf32>
      tpu.vector_store %arg9[%c0_5, %c0_6], %11 {strides = array<i32>} : memref<16x64xf32, #tpu.memory_space<vmem>>, vector<16x64xf32>,
    } else {
    }
    %c0 = arith.constant 0 : index
    %c0_1 = arith.constant 0 : index
    %c0_2 = arith.constant 0 : index
    %3 = vector.load %arg5[%c0, %c0_1, %c0_2] : memref<1x16x64xf32, #tpu.memory_space<vmem>>, vector<1x16x64xf32>
    %4 = vector.shape_cast %3 : vector<1x16x64xf32> to vector<16x64xf32>
    %5 = tpu.iota {dimensions = array<i32: 0>} : vector<16x16xi32>
    %6 = tpu.iota {dimensions = array<i32: 1>} : vector<16x16xi32>
    %7 = arith.cmpi eq, %5, %6 : vector<16x16xi32>
    %8 = arith.extui %7 : vector<16x16xi1> to vector<16x16xi32>
    %9 = arith.sitofp %8 : vector<16x16xi32> to vector<16x16xf32>
    %c0_i32_3 = arith.constant 0 : i32
    %c32_i32 = arith.constant 32 : i32
    %10 = arith.addi %c0_i32_3, %c32_i32 : i32
    %c1_i32 = arith.constant 1 : i32
    scf.for %arg10 = %c0_i32_3 to %10 step %c1_i32  : i32 {
      %c8_i32 = arith.constant 8 : i32
      %11 = arith.muli %arg10, %c8_i32 : i32
      %12 = tpu.assume_multiple %11, 8 : i32
      %c0_5 = arith.constant 0 : index
      %c0_6 = arith.constant 0 : index
      %13 = arith.index_cast %12 : i32 to index
      %c0_7 = arith.constant 0 : index
      %14 = vector.load %arg3[%c0_5, %c0_6, %13, %c0_7] : memref<1x1x256x64xf32, #tpu.memory_space<vmem>>, vector<1x1x8x64xf32>
      %15 = vector.shape_cast %14 : vector<1x1x8x64xf32> to vector<8x64xf32>
      %c0_8 = arith.constant 0 : index
      %c0_9 = arith.constant 0 : index
      %16 = arith.index_cast %12 : i32 to index
      %c0_10 = arith.constant 0 : index
      %17 = vector.load %arg4[%c0_8, %c0_9, %16, %c0_10] : memref<1x1x256x64xf32, #tpu.memory_space<vmem>>, vector<1x1x8x64xf32>
      %18 = vector.shape_cast %17 : vector<1x1x8x64xf32> to vector<8x64xf32>
      %c0_11 = arith.constant 0 : index
      %c0_12 = arith.constant 0 : index
      %19 = arith.index_cast %12 : i32 to index
      %c0_13 = arith.constant 0 : index
      %20 = vector.load %arg6[%c0_11, %c0_12, %19, %c0_13] : memref<1x1x256x16xf32, #tpu.memory_space<vmem>>, vector<1x1x8x16xf32>
      %21 = vector.shape_cast %20 : vector<1x1x8x16xf32> to vector<8x16xf32>
      %c0_14 = arith.constant 0 : index
      %c0_15 = arith.constant 0 : index
      %22 = arith.index_cast %12 : i32 to index
      %c0_16 = arith.constant 0 : index
      %23 = vector.load %arg7[%c0_14, %c0_15, %22, %c0_16] : memref<1x1x256x16xf32, #tpu.memory_space<vmem>>, vector<1x1x8x16xf32>
      %24 = vector.shape_cast %23 : vector<1x1x8x16xf32> to vector<8x16xf32>
      %c0_17 = arith.constant 0 : index
      %c0_18 = arith.constant 0 : index
      %25 = vector.load %arg9[%c0_17, %c0_18] : memref<16x64xf32, #tpu.memory_space<vmem>>, vector<16x64xf32>
      %26 = vector.extract_strided_slice %15 {offsets = [0, 0], sizes = [1, 64], strides = [1, 1]} : vector<8x64xf32> to vector<1x64xf32>
      %27 = vector.broadcast %26 : vector<1x64xf32> to vector<16x64xf32>
      %28 = arith.mulf %27, %4 : vector<16x64xf32>
      %29 = math.exp %28 : vector<16x64xf32>
      %30 = vector.extract_strided_slice %21 {offsets = [0, 0], sizes = [1, 16], strides = [1, 1]} : vector<8x16xf32> to vector<1x16xf32>
      %31 = vector.broadcast %30 : vector<1x16xf32> to vector<16x16xf32>
      %32 = arith.mulf %31, %9 : vector<16x16xf32>
      %cst = arith.constant dense<0.000000e+00> : vector<16xf32>
      %33 = vector.multi_reduction <add>, %32, %cst [1] : vector<16x16xf32> to vector<16xf32>
      %34 = vector.shape_cast %33 : vector<16xf32> to vector<16x1xf32>
      %35 = vector.extract_strided_slice %24 {offsets = [0, 0], sizes = [1, 16], strides = [1, 1]} : vector<8x16xf32> to vector<1x16xf32>
      %36 = vector.broadcast %35 : vector<1x16xf32> to vector<16x16xf32>
      %37 = arith.mulf %36, %9 : vector<16x16xf32>
      %cst_19 = arith.constant dense<0.000000e+00> : vector<16xf32>
      %38 = vector.multi_reduction <add>, %37, %cst_19 [1] : vector<16x16xf32> to vector<16xf32>
      %39 = vector.shape_cast %38 : vector<16xf32> to vector<16x1xf32>
      %40 = arith.mulf %29, %25 : vector<16x64xf32>
      %41 = vector.extract_strided_slice %18 {offsets = [0, 0], sizes = [1, 64], strides = [1, 1]} : vector<8x64xf32> to vector<1x64xf32>
      %42 = vector.broadcast %34 : vector<16x1xf32> to vector<16x64xf32>
      %43 = vector.broadcast %41 : vector<1x64xf32> to vector<16x64xf32>
      %44 = arith.mulf %42, %43 : vector<16x64xf32>
      %45 = arith.addf %40, %44 : vector<16x64xf32>
      %46 = vector.broadcast %39 : vector<16x1xf32> to vector<16x64xf32>
      %47 = arith.mulf %46, %45 : vector<16x64xf32>
      %cst_20 = arith.constant dense<0.000000e+00> : vector<64xf32>
      %48 = vector.multi_reduction <add>, %47, %cst_20 [0] : vector<16x64xf32> to vector<64xf32>
      %49 = vector.shape_cast %48 : vector<64xf32> to vector<1x64xf32>
      %c0_i32_21 = arith.constant 0 : i32
      %50 = arith.addi %12, %c0_i32_21 : i32
      %c0_22 = arith.constant 0 : index
      %c0_23 = arith.constant 0 : index
      %51 = arith.index_cast %50 : i32 to index
      %c0_24 = arith.constant 0 : index
      %52 = vector.load %arg8[%c0_22, %c0_23, %51, %c0_24] : memref<1x1x256x64xf32, #tpu.memory_space<vmem>>, vector<1x1x1x64xf32>
      %53 = vector.shape_cast %52 : vector<1x1x1x64xf32> to vector<1x64xf32>
      %54 = vector.shape_cast %49 : vector<1x64xf32> to vector<1x1x1x64xf32>
      tpu.vector_store %arg8[%c0_22, %c0_23, %51, %c0_24], %54 {strides = array<i32>} : memref<1x1x256x64xf32, #tpu.memory_space<vmem>>, vector<1x1x1x64xf32>,
      %55 = vector.extract_strided_slice %15 {offsets = [1, 0], sizes = [1, 64], strides = [1, 1]} : vector<8x64xf32> to vector<1x64xf32>
      %56 = vector.broadcast %55 : vector<1x64xf32> to vector<16x64xf32>
      %57 = arith.mulf %56, %4 : vector<16x64xf32>
      %58 = math.exp %57 : vector<16x64xf32>
      %59 = vector.extract_strided_slice %21 {offsets = [1, 0], sizes = [1, 16], strides = [1, 1]} : vector<8x16xf32> to vector<1x16xf32>
      %60 = vector.broadcast %59 : vector<1x16xf32> to vector<16x16xf32>
      %61 = arith.mulf %60, %9 : vector<16x16xf32>
      %cst_25 = arith.constant dense<0.000000e+00> : vector<16xf32>
      %62 = vector.multi_reduction <add>, %61, %cst_25 [1] : vector<16x16xf32> to vector<16xf32>
      %63 = vector.shape_cast %62 : vector<16xf32> to vector<16x1xf32>
      %64 = vector.extract_strided_slice %24 {offsets = [1, 0], sizes = [1, 16], strides = [1, 1]} : vector<8x16xf32> to vector<1x16xf32>
      %65 = vector.broadcast %64 : vector<1x16xf32> to vector<16x16xf32>
      %66 = arith.mulf %65, %9 : vector<16x16xf32>
      %cst_26 = arith.constant dense<0.000000e+00> : vector<16xf32>
      %67 = vector.multi_reduction <add>, %66, %cst_26 [1] : vector<16x16xf32> to vector<16xf32>
      %68 = vector.shape_cast %67 : vector<16xf32> to vector<16x1xf32>
      %69 = arith.mulf %58, %45 : vector<16x64xf32>
      %70 = vector.extract_strided_slice %18 {offsets = [1, 0], sizes = [1, 64], strides = [1, 1]} : vector<8x64xf32> to vector<1x64xf32>
      %71 = vector.broadcast %63 : vector<16x1xf32> to vector<16x64xf32>
      %72 = vector.broadcast %70 : vector<1x64xf32> to vector<16x64xf32>
      %73 = arith.mulf %71, %72 : vector<16x64xf32>
      %74 = arith.addf %69, %73 : vector<16x64xf32>
      %75 = vector.broadcast %68 : vector<16x1xf32> to vector<16x64xf32>
      %76 = arith.mulf %75, %74 : vector<16x64xf32>
      %cst_27 = arith.constant dense<0.000000e+00> : vector<64xf32>
      %77 = vector.multi_reduction <add>, %76, %cst_27 [0] : vector<16x64xf32> to vector<64xf32>
      %78 = vector.shape_cast %77 : vector<64xf32> to vector<1x64xf32>
      %c1_i32_28 = arith.constant 1 : i32
      %79 = arith.addi %12, %c1_i32_28 : i32
      %c0_29 = arith.constant 0 : index
      %c0_30 = arith.constant 0 : index
      %80 = arith.index_cast %79 : i32 to index
      %c0_31 = arith.constant 0 : index
      %81 = vector.load %arg8[%c0_29, %c0_30, %80, %c0_31] : memref<1x1x256x64xf32, #tpu.memory_space<vmem>>, vector<1x1x1x64xf32>
      %82 = vector.shape_cast %81 : vector<1x1x1x64xf32> to vector<1x64xf32>
      %83 = vector.shape_cast %78 : vector<1x64xf32> to vector<1x1x1x64xf32>
      tpu.vector_store %arg8[%c0_29, %c0_30, %80, %c0_31], %83 {strides = array<i32>} : memref<1x1x256x64xf32, #tpu.memory_space<vmem>>, vector<1x1x1x64xf32>,
      %84 = vector.extract_strided_slice %15 {offsets = [2, 0], sizes = [1, 64], strides = [1, 1]} : vector<8x64xf32> to vector<1x64xf32>
      %85 = vector.broadcast %84 : vector<1x64xf32> to vector<16x64xf32>
      %86 = arith.mulf %85, %4 : vector<16x64xf32>
      %87 = math.exp %86 : vector<16x64xf32>
      %88 = vector.extract_strided_slice %21 {offsets = [2, 0], sizes = [1, 16], strides = [1, 1]} : vector<8x16xf32> to vector<1x16xf32>
      %89 = vector.broadcast %88 : vector<1x16xf32> to vector<16x16xf32>
      %90 = arith.mulf %89, %9 : vector<16x16xf32>
      %cst_32 = arith.constant dense<0.000000e+00> : vector<16xf32>
      %91 = vector.multi_reduction <add>, %90, %cst_32 [1] : vector<16x16xf32> to vector<16xf32>
      %92 = vector.shape_cast %91 : vector<16xf32> to vector<16x1xf32>
      %93 = vector.extract_strided_slice %24 {offsets = [2, 0], sizes = [1, 16], strides = [1, 1]} : vector<8x16xf32> to vector<1x16xf32>
      %94 = vector.broadcast %93 : vector<1x16xf32> to vector<16x16xf32>
      %95 = arith.mulf %94, %9 : vector<16x16xf32>
      %cst_33 = arith.constant dense<0.000000e+00> : vector<16xf32>
      %96 = vector.multi_reduction <add>, %95, %cst_33 [1] : vector<16x16xf32> to vector<16xf32>
      %97 = vector.shape_cast %96 : vector<16xf32> to vector<16x1xf32>
      %98 = arith.mulf %87, %74 : vector<16x64xf32>
      %99 = vector.extract_strided_slice %18 {offsets = [2, 0], sizes = [1, 64], strides = [1, 1]} : vector<8x64xf32> to vector<1x64xf32>
      %100 = vector.broadcast %92 : vector<16x1xf32> to vector<16x64xf32>
      %101 = vector.broadcast %99 : vector<1x64xf32> to vector<16x64xf32>
      %102 = arith.mulf %100, %101 : vector<16x64xf32>
      %103 = arith.addf %98, %102 : vector<16x64xf32>
      %104 = vector.broadcast %97 : vector<16x1xf32> to vector<16x64xf32>
      %105 = arith.mulf %104, %103 : vector<16x64xf32>
      %cst_34 = arith.constant dense<0.000000e+00> : vector<64xf32>
      %106 = vector.multi_reduction <add>, %105, %cst_34 [0] : vector<16x64xf32> to vector<64xf32>
      %107 = vector.shape_cast %106 : vector<64xf32> to vector<1x64xf32>
      %c2_i32 = arith.constant 2 : i32
      %108 = arith.addi %12, %c2_i32 : i32
      %c0_35 = arith.constant 0 : index
      %c0_36 = arith.constant 0 : index
      %109 = arith.index_cast %108 : i32 to index
      %c0_37 = arith.constant 0 : index
      %110 = vector.load %arg8[%c0_35, %c0_36, %109, %c0_37] : memref<1x1x256x64xf32, #tpu.memory_space<vmem>>, vector<1x1x1x64xf32>
      %111 = vector.shape_cast %110 : vector<1x1x1x64xf32> to vector<1x64xf32>
      %112 = vector.shape_cast %107 : vector<1x64xf32> to vector<1x1x1x64xf32>
      tpu.vector_store %arg8[%c0_35, %c0_36, %109, %c0_37], %112 {strides = array<i32>} : memref<1x1x256x64xf32, #tpu.memory_space<vmem>>, vector<1x1x1x64xf32>,
      %113 = vector.extract_strided_slice %15 {offsets = [3, 0], sizes = [1, 64], strides = [1, 1]} : vector<8x64xf32> to vector<1x64xf32>
      %114 = vector.broadcast %113 : vector<1x64xf32> to vector<16x64xf32>
      %115 = arith.mulf %114, %4 : vector<16x64xf32>
      %116 = math.exp %115 : vector<16x64xf32>
      %117 = vector.extract_strided_slice %21 {offsets = [3, 0], sizes = [1, 16], strides = [1, 1]} : vector<8x16xf32> to vector<1x16xf32>
      %118 = vector.broadcast %117 : vector<1x16xf32> to vector<16x16xf32>
      %119 = arith.mulf %118, %9 : vector<16x16xf32>
      %cst_38 = arith.constant dense<0.000000e+00> : vector<16xf32>
      %120 = vector.multi_reduction <add>, %119, %cst_38 [1] : vector<16x16xf32> to vector<16xf32>
      %121 = vector.shape_cast %120 : vector<16xf32> to vector<16x1xf32>
      %122 = vector.extract_strided_slice %24 {offsets = [3, 0], sizes = [1, 16], strides = [1, 1]} : vector<8x16xf32> to vector<1x16xf32>
      %123 = vector.broadcast %122 : vector<1x16xf32> to vector<16x16xf32>
      %124 = arith.mulf %123, %9 : vector<16x16xf32>
      %cst_39 = arith.constant dense<0.000000e+00> : vector<16xf32>
      %125 = vector.multi_reduction <add>, %124, %cst_39 [1] : vector<16x16xf32> to vector<16xf32>
      %126 = vector.shape_cast %125 : vector<16xf32> to vector<16x1xf32>
      %127 = arith.mulf %116, %103 : vector<16x64xf32>
      %128 = vector.extract_strided_slice %18 {offsets = [3, 0], sizes = [1, 64], strides = [1, 1]} : vector<8x64xf32> to vector<1x64xf32>
      %129 = vector.broadcast %121 : vector<16x1xf32> to vector<16x64xf32>
      %130 = vector.broadcast %128 : vector<1x64xf32> to vector<16x64xf32>
      %131 = arith.mulf %129, %130 : vector<16x64xf32>
      %132 = arith.addf %127, %131 : vector<16x64xf32>
      %133 = vector.broadcast %126 : vector<16x1xf32> to vector<16x64xf32>
      %134 = arith.mulf %133, %132 : vector<16x64xf32>
      %cst_40 = arith.constant dense<0.000000e+00> : vector<64xf32>
      %135 = vector.multi_reduction <add>, %134, %cst_40 [0] : vector<16x64xf32> to vector<64xf32>
      %136 = vector.shape_cast %135 : vector<64xf32> to vector<1x64xf32>
      %c3_i32 = arith.constant 3 : i32
      %137 = arith.addi %12, %c3_i32 : i32
      %c0_41 = arith.constant 0 : index
      %c0_42 = arith.constant 0 : index
      %138 = arith.index_cast %137 : i32 to index
      %c0_43 = arith.constant 0 : index
      %139 = vector.load %arg8[%c0_41, %c0_42, %138, %c0_43] : memref<1x1x256x64xf32, #tpu.memory_space<vmem>>, vector<1x1x1x64xf32>
      %140 = vector.shape_cast %139 : vector<1x1x1x64xf32> to vector<1x64xf32>
      %141 = vector.shape_cast %136 : vector<1x64xf32> to vector<1x1x1x64xf32>
      tpu.vector_store %arg8[%c0_41, %c0_42, %138, %c0_43], %141 {strides = array<i32>} : memref<1x1x256x64xf32, #tpu.memory_space<vmem>>, vector<1x1x1x64xf32>,
      %142 = vector.extract_strided_slice %15 {offsets = [4, 0], sizes = [1, 64], strides = [1, 1]} : vector<8x64xf32> to vector<1x64xf32>
      %143 = vector.broadcast %142 : vector<1x64xf32> to vector<16x64xf32>
      %144 = arith.mulf %143, %4 : vector<16x64xf32>
      %145 = math.exp %144 : vector<16x64xf32>
      %146 = vector.extract_strided_slice %21 {offsets = [4, 0], sizes = [1, 16], strides = [1, 1]} : vector<8x16xf32> to vector<1x16xf32>
      %147 = vector.broadcast %146 : vector<1x16xf32> to vector<16x16xf32>
      %148 = arith.mulf %147, %9 : vector<16x16xf32>
      %cst_44 = arith.constant dense<0.000000e+00> : vector<16xf32>
      %149 = vector.multi_reduction <add>, %148, %cst_44 [1] : vector<16x16xf32> to vector<16xf32>
      %150 = vector.shape_cast %149 : vector<16xf32> to vector<16x1xf32>
      %151 = vector.extract_strided_slice %24 {offsets = [4, 0], sizes = [1, 16], strides = [1, 1]} : vector<8x16xf32> to vector<1x16xf32>
      %152 = vector.broadcast %151 : vector<1x16xf32> to vector<16x16xf32>
      %153 = arith.mulf %152, %9 : vector<16x16xf32>
      %cst_45 = arith.constant dense<0.000000e+00> : vector<16xf32>
      %154 = vector.multi_reduction <add>, %153, %cst_45 [1] : vector<16x16xf32> to vector<16xf32>
      %155 = vector.shape_cast %154 : vector<16xf32> to vector<16x1xf32>
      %156 = arith.mulf %145, %132 : vector<16x64xf32>
      %157 = vector.extract_strided_slice %18 {offsets = [4, 0], sizes = [1, 64], strides = [1, 1]} : vector<8x64xf32> to vector<1x64xf32>
      %158 = vector.broadcast %150 : vector<16x1xf32> to vector<16x64xf32>
      %159 = vector.broadcast %157 : vector<1x64xf32> to vector<16x64xf32>
      %160 = arith.mulf %158, %159 : vector<16x64xf32>
      %161 = arith.addf %156, %160 : vector<16x64xf32>
      %162 = vector.broadcast %155 : vector<16x1xf32> to vector<16x64xf32>
      %163 = arith.mulf %162, %161 : vector<16x64xf32>
      %cst_46 = arith.constant dense<0.000000e+00> : vector<64xf32>
      %164 = vector.multi_reduction <add>, %163, %cst_46 [0] : vector<16x64xf32> to vector<64xf32>
      %165 = vector.shape_cast %164 : vector<64xf32> to vector<1x64xf32>
      %c4_i32 = arith.constant 4 : i32
      %166 = arith.addi %12, %c4_i32 : i32
      %c0_47 = arith.constant 0 : index
      %c0_48 = arith.constant 0 : index
      %167 = arith.index_cast %166 : i32 to index
      %c0_49 = arith.constant 0 : index
      %168 = vector.load %arg8[%c0_47, %c0_48, %167, %c0_49] : memref<1x1x256x64xf32, #tpu.memory_space<vmem>>, vector<1x1x1x64xf32>
      %169 = vector.shape_cast %168 : vector<1x1x1x64xf32> to vector<1x64xf32>
      %170 = vector.shape_cast %165 : vector<1x64xf32> to vector<1x1x1x64xf32>
      tpu.vector_store %arg8[%c0_47, %c0_48, %167, %c0_49], %170 {strides = array<i32>} : memref<1x1x256x64xf32, #tpu.memory_space<vmem>>, vector<1x1x1x64xf32>,
      %171 = vector.extract_strided_slice %15 {offsets = [5, 0], sizes = [1, 64], strides = [1, 1]} : vector<8x64xf32> to vector<1x64xf32>
      %172 = vector.broadcast %171 : vector<1x64xf32> to vector<16x64xf32>
      %173 = arith.mulf %172, %4 : vector<16x64xf32>
      %174 = math.exp %173 : vector<16x64xf32>
      %175 = vector.extract_strided_slice %21 {offsets = [5, 0], sizes = [1, 16], strides = [1, 1]} : vector<8x16xf32> to vector<1x16xf32>
      %176 = vector.broadcast %175 : vector<1x16xf32> to vector<16x16xf32>
      %177 = arith.mulf %176, %9 : vector<16x16xf32>
      %cst_50 = arith.constant dense<0.000000e+00> : vector<16xf32>
      %178 = vector.multi_reduction <add>, %177, %cst_50 [1] : vector<16x16xf32> to vector<16xf32>
      %179 = vector.shape_cast %178 : vector<16xf32> to vector<16x1xf32>
      %180 = vector.extract_strided_slice %24 {offsets = [5, 0], sizes = [1, 16], strides = [1, 1]} : vector<8x16xf32> to vector<1x16xf32>
      %181 = vector.broadcast %180 : vector<1x16xf32> to vector<16x16xf32>
      %182 = arith.mulf %181, %9 : vector<16x16xf32>
      %cst_51 = arith.constant dense<0.000000e+00> : vector<16xf32>
      %183 = vector.multi_reduction <add>, %182, %cst_51 [1] : vector<16x16xf32> to vector<16xf32>
      %184 = vector.shape_cast %183 : vector<16xf32> to vector<16x1xf32>
      %185 = arith.mulf %174, %161 : vector<16x64xf32>
      %186 = vector.extract_strided_slice %18 {offsets = [5, 0], sizes = [1, 64], strides = [1, 1]} : vector<8x64xf32> to vector<1x64xf32>
      %187 = vector.broadcast %179 : vector<16x1xf32> to vector<16x64xf32>
      %188 = vector.broadcast %186 : vector<1x64xf32> to vector<16x64xf32>
      %189 = arith.mulf %187, %188 : vector<16x64xf32>
      %190 = arith.addf %185, %189 : vector<16x64xf32>
      %191 = vector.broadcast %184 : vector<16x1xf32> to vector<16x64xf32>
      %192 = arith.mulf %191, %190 : vector<16x64xf32>
      %cst_52 = arith.constant dense<0.000000e+00> : vector<64xf32>
      %193 = vector.multi_reduction <add>, %192, %cst_52 [0] : vector<16x64xf32> to vector<64xf32>
      %194 = vector.shape_cast %193 : vector<64xf32> to vector<1x64xf32>
      %c5_i32 = arith.constant 5 : i32
      %195 = arith.addi %12, %c5_i32 : i32
      %c0_53 = arith.constant 0 : index
      %c0_54 = arith.constant 0 : index
      %196 = arith.index_cast %195 : i32 to index
      %c0_55 = arith.constant 0 : index
      %197 = vector.load %arg8[%c0_53, %c0_54, %196, %c0_55] : memref<1x1x256x64xf32, #tpu.memory_space<vmem>>, vector<1x1x1x64xf32>
      %198 = vector.shape_cast %197 : vector<1x1x1x64xf32> to vector<1x64xf32>
      %199 = vector.shape_cast %194 : vector<1x64xf32> to vector<1x1x1x64xf32>
      tpu.vector_store %arg8[%c0_53, %c0_54, %196, %c0_55], %199 {strides = array<i32>} : memref<1x1x256x64xf32, #tpu.memory_space<vmem>>, vector<1x1x1x64xf32>,
      %200 = vector.extract_strided_slice %15 {offsets = [6, 0], sizes = [1, 64], strides = [1, 1]} : vector<8x64xf32> to vector<1x64xf32>
      %201 = vector.broadcast %200 : vector<1x64xf32> to vector<16x64xf32>
      %202 = arith.mulf %201, %4 : vector<16x64xf32>
      %203 = math.exp %202 : vector<16x64xf32>
      %204 = vector.extract_strided_slice %21 {offsets = [6, 0], sizes = [1, 16], strides = [1, 1]} : vector<8x16xf32> to vector<1x16xf32>
      %205 = vector.broadcast %204 : vector<1x16xf32> to vector<16x16xf32>
      %206 = arith.mulf %205, %9 : vector<16x16xf32>
      %cst_56 = arith.constant dense<0.000000e+00> : vector<16xf32>
      %207 = vector.multi_reduction <add>, %206, %cst_56 [1] : vector<16x16xf32> to vector<16xf32>
      %208 = vector.shape_cast %207 : vector<16xf32> to vector<16x1xf32>
      %209 = vector.extract_strided_slice %24 {offsets = [6, 0], sizes = [1, 16], strides = [1, 1]} : vector<8x16xf32> to vector<1x16xf32>
      %210 = vector.broadcast %209 : vector<1x16xf32> to vector<16x16xf32>
      %211 = arith.mulf %210, %9 : vector<16x16xf32>
      %cst_57 = arith.constant dense<0.000000e+00> : vector<16xf32>
      %212 = vector.multi_reduction <add>, %211, %cst_57 [1] : vector<16x16xf32> to vector<16xf32>
      %213 = vector.shape_cast %212 : vector<16xf32> to vector<16x1xf32>
      %214 = arith.mulf %203, %190 : vector<16x64xf32>
      %215 = vector.extract_strided_slice %18 {offsets = [6, 0], sizes = [1, 64], strides = [1, 1]} : vector<8x64xf32> to vector<1x64xf32>
      %216 = vector.broadcast %208 : vector<16x1xf32> to vector<16x64xf32>
      %217 = vector.broadcast %215 : vector<1x64xf32> to vector<16x64xf32>
      %218 = arith.mulf %216, %217 : vector<16x64xf32>
      %219 = arith.addf %214, %218 : vector<16x64xf32>
      %220 = vector.broadcast %213 : vector<16x1xf32> to vector<16x64xf32>
      %221 = arith.mulf %220, %219 : vector<16x64xf32>
      %cst_58 = arith.constant dense<0.000000e+00> : vector<64xf32>
      %222 = vector.multi_reduction <add>, %221, %cst_58 [0] : vector<16x64xf32> to vector<64xf32>
      %223 = vector.shape_cast %222 : vector<64xf32> to vector<1x64xf32>
      %c6_i32 = arith.constant 6 : i32
      %224 = arith.addi %12, %c6_i32 : i32
      %c0_59 = arith.constant 0 : index
      %c0_60 = arith.constant 0 : index
      %225 = arith.index_cast %224 : i32 to index
      %c0_61 = arith.constant 0 : index
      %226 = vector.load %arg8[%c0_59, %c0_60, %225, %c0_61] : memref<1x1x256x64xf32, #tpu.memory_space<vmem>>, vector<1x1x1x64xf32>
      %227 = vector.shape_cast %226 : vector<1x1x1x64xf32> to vector<1x64xf32>
      %228 = vector.shape_cast %223 : vector<1x64xf32> to vector<1x1x1x64xf32>
      tpu.vector_store %arg8[%c0_59, %c0_60, %225, %c0_61], %228 {strides = array<i32>} : memref<1x1x256x64xf32, #tpu.memory_space<vmem>>, vector<1x1x1x64xf32>,
      %229 = vector.extract_strided_slice %15 {offsets = [7, 0], sizes = [1, 64], strides = [1, 1]} : vector<8x64xf32> to vector<1x64xf32>
      %230 = vector.broadcast %229 : vector<1x64xf32> to vector<16x64xf32>
      %231 = arith.mulf %230, %4 : vector<16x64xf32>
      %232 = math.exp %231 : vector<16x64xf32>
      %233 = vector.extract_strided_slice %21 {offsets = [7, 0], sizes = [1, 16], strides = [1, 1]} : vector<8x16xf32> to vector<1x16xf32>
      %234 = vector.broadcast %233 : vector<1x16xf32> to vector<16x16xf32>
      %235 = arith.mulf %234, %9 : vector<16x16xf32>
      %cst_62 = arith.constant dense<0.000000e+00> : vector<16xf32>
      %236 = vector.multi_reduction <add>, %235, %cst_62 [1] : vector<16x16xf32> to vector<16xf32>
      %237 = vector.shape_cast %236 : vector<16xf32> to vector<16x1xf32>
      %238 = vector.extract_strided_slice %24 {offsets = [7, 0], sizes = [1, 16], strides = [1, 1]} : vector<8x16xf32> to vector<1x16xf32>
      %239 = vector.broadcast %238 : vector<1x16xf32> to vector<16x16xf32>
      %240 = arith.mulf %239, %9 : vector<16x16xf32>
      %cst_63 = arith.constant dense<0.000000e+00> : vector<16xf32>
      %241 = vector.multi_reduction <add>, %240, %cst_63 [1] : vector<16x16xf32> to vector<16xf32>
      %242 = vector.shape_cast %241 : vector<16xf32> to vector<16x1xf32>
      %243 = arith.mulf %232, %219 : vector<16x64xf32>
      %244 = vector.extract_strided_slice %18 {offsets = [7, 0], sizes = [1, 64], strides = [1, 1]} : vector<8x64xf32> to vector<1x64xf32>
      %245 = vector.broadcast %237 : vector<16x1xf32> to vector<16x64xf32>
      %246 = vector.broadcast %244 : vector<1x64xf32> to vector<16x64xf32>
      %247 = arith.mulf %245, %246 : vector<16x64xf32>
      %248 = arith.addf %243, %247 : vector<16x64xf32>
      %249 = vector.broadcast %242 : vector<16x1xf32> to vector<16x64xf32>
      %250 = arith.mulf %249, %248 : vector<16x64xf32>
      %cst_64 = arith.constant dense<0.000000e+00> : vector<64xf32>
      %251 = vector.multi_reduction <add>, %250, %cst_64 [0] : vector<16x64xf32> to vector<64xf32>
      %252 = vector.shape_cast %251 : vector<64xf32> to vector<1x64xf32>
      %c7_i32 = arith.constant 7 : i32
      %253 = arith.addi %12, %c7_i32 : i32
      %c0_65 = arith.constant 0 : index
      %c0_66 = arith.constant 0 : index
      %254 = arith.index_cast %253 : i32 to index
      %c0_67 = arith.constant 0 : index
      %255 = vector.load %arg8[%c0_65, %c0_66, %254, %c0_67] : memref<1x1x256x64xf32, #tpu.memory_space<vmem>>, vector<1x1x1x64xf32>
      %256 = vector.shape_cast %255 : vector<1x1x1x64xf32> to vector<1x64xf32>
      %257 = vector.shape_cast %252 : vector<1x64xf32> to vector<1x1x1x64xf32>
      tpu.vector_store %arg8[%c0_65, %c0_66, %254, %c0_67], %257 {strides = array<i32>} : memref<1x1x256x64xf32, #tpu.memory_space<vmem>>, vector<1x1x1x64xf32>,
      %c0_68 = arith.constant 0 : index
      %c0_69 = arith.constant 0 : index
      %258 = vector.load %arg9[%c0_68, %c0_69] : memref<16x64xf32, #tpu.memory_space<vmem>>, vector<16x64xf32>
      tpu.vector_store %arg9[%c0_68, %c0_69], %248 {strides = array<i32>} : memref<16x64xf32, #tpu.memory_space<vmem>>, vector<16x64xf32>,
    }
    %c32_i32_4 = arith.constant 32 : i32
    return
  }
  func.func @transform_0(%arg0: i32, %arg1: i32, %arg2: i32) -> (i32, i32, i32, i32) {
    %c0_i32 = arith.constant 0 : i32
    %c0_i32_0 = arith.constant 0 : i32
    return %arg0, %arg1, %arg2, %c0_i32 : i32, i32, i32, i32
  }
  func.func @transform_1(%arg0: i32, %arg1: i32, %arg2: i32) -> (i32, i32, i32, i32) {
    %c0_i32 = arith.constant 0 : i32
    %c0_i32_0 = arith.constant 0 : i32
    return %arg0, %arg1, %arg2, %c0_i32 : i32, i32, i32, i32
  }
  func.func @transform_2(%arg0: i32, %arg1: i32, %arg2: i32) -> (i32, i32, i32) {
    %c0_i32 = arith.constant 0 : i32
    %c0_i32_0 = arith.constant 0 : i32
    %c0_i32_1 = arith.constant 0 : i32
    return %arg1, %c0_i32, %c0_i32_0 : i32, i32, i32
  }
  func.func @transform_3(%arg0: i32, %arg1: i32, %arg2: i32) -> (i32, i32, i32, i32) {
    %c0_i32 = arith.constant 0 : i32
    %c0_i32_0 = arith.constant 0 : i32
    return %arg0, %arg1, %arg2, %c0_i32 : i32, i32, i32, i32
  }
  func.func @transform_4(%arg0: i32, %arg1: i32, %arg2: i32) -> (i32, i32, i32, i32) {
    %c0_i32 = arith.constant 0 : i32
    %c0_i32_0 = arith.constant 0 : i32
    return %arg0, %arg1, %arg2, %c0_i32 : i32, i32, i32, i32
  }
  func.func @transform_5(%arg0: i32, %arg1: i32, %arg2: i32) -> (i32, i32, i32, i32) {
    %c0_i32 = arith.constant 0 : i32
    %c0_i32_0 = arith.constant 0 : i32
    return %arg0, %arg1, %arg2, %c0_i32 : i32, i32, i32, i32
  }
}

module attributes {stable_mosaic.version = 11 : i64} {
  func.func @_out_kernel(%arg0: i32, %arg1: memref<256x64xf32, #tpu.memory_space<vmem>>, %arg2: memref<256x64xf32, #tpu.memory_space<vmem>>, %arg3: memref<1x64xf32, #tpu.memory_space<vmem>>, %arg4: memref<256x64xf32, #tpu.memory_space<vmem>>, %arg5: memref<1x64xf32, #tpu.memory_space<vmem>>, %arg6: memref<1x64xf32, #tpu.memory_space<vmem>>, %arg7: memref<64x32xf32, #tpu.memory_space<vmem>>, %arg8: memref<256x32xf32, #tpu.memory_space<vmem>>) attributes {dimension_semantics = [#tpu.dimension_semantics<parallel>], iteration_bounds = array<i64: 2>, scalar_prefetch = 0 : i64, scratch_operands = 0 : i64, tpu.core_type = #tpu.core_type<tc>, window_params = [{transform_indices = @transform_0, window_bounds = array<i64: 256, 64>}, {transform_indices = @transform_1, window_bounds = array<i64: 256, 64>}, {pipeline_mode = #tpu.pipeline_mode<synchronous>, transform_indices = @transform_2, window_bounds = array<i64: 1, 64>}, {transform_indices = @transform_3, window_bounds = array<i64: 256, 64>}, {pipeline_mode = #tpu.pipeline_mode<synchronous>, transform_indices = @transform_4, window_bounds = array<i64: 1, 64>}, {pipeline_mode = #tpu.pipeline_mode<synchronous>, transform_indices = @transform_5, window_bounds = array<i64: 1, 64>}, {pipeline_mode = #tpu.pipeline_mode<synchronous>, transform_indices = @transform_6, window_bounds = array<i64: 64, 32>}, {transform_indices = @transform_7, window_bounds = array<i64: 256, 32>}]} {
    %c0 = arith.constant 0 : index
    %c0_0 = arith.constant 0 : index
    %0 = vector.load %arg1[%c0, %c0_0] : memref<256x64xf32, #tpu.memory_space<vmem>>, vector<256x64xf32>
    %c0_1 = arith.constant 0 : index
    %c0_2 = arith.constant 0 : index
    %1 = vector.load %arg2[%c0_1, %c0_2] : memref<256x64xf32, #tpu.memory_space<vmem>>, vector<256x64xf32>
    %c0_3 = arith.constant 0 : index
    %c0_4 = arith.constant 0 : index
    %2 = vector.load %arg3[%c0_3, %c0_4] : memref<1x64xf32, #tpu.memory_space<vmem>>, vector<1x64xf32>
    %3 = vector.broadcast %2 : vector<1x64xf32> to vector<256x64xf32>
    %4 = arith.mulf %1, %3 : vector<256x64xf32>
    %5 = arith.addf %0, %4 : vector<256x64xf32>
    %cst = arith.constant dense<0.000000e+00> : vector<256xf32>
    %6 = vector.multi_reduction <add>, %5, %cst [1] : vector<256x64xf32> to vector<256xf32>
    %7 = vector.shape_cast %6 : vector<256xf32> to vector<256x1xf32>
    %cst_5 = arith.constant 6.400000e+01 : f32
    %8 = vector.broadcast %cst_5 : f32 to vector<256x1xf32>
    %9 = arith.divf %7, %8 : vector<256x1xf32>
    %10 = vector.broadcast %9 : vector<256x1xf32> to vector<256x64xf32>
    %11 = arith.subf %5, %10 : vector<256x64xf32>
    %12 = arith.mulf %11, %11 : vector<256x64xf32>
    %cst_6 = arith.constant dense<0.000000e+00> : vector<256xf32>
    %13 = vector.multi_reduction <add>, %12, %cst_6 [1] : vector<256x64xf32> to vector<256xf32>
    %14 = vector.shape_cast %13 : vector<256xf32> to vector<256x1xf32>
    %cst_7 = arith.constant 6.400000e+01 : f32
    %15 = vector.broadcast %cst_7 : f32 to vector<256x1xf32>
    %16 = arith.divf %14, %15 : vector<256x1xf32>
    %cst_8 = arith.constant 9.99999974E-6 : f32
    %17 = vector.broadcast %cst_8 : f32 to vector<256x1xf32>
    %18 = arith.addf %16, %17 : vector<256x1xf32>
    %19 = math.rsqrt %18 : vector<256x1xf32>
    %20 = vector.broadcast %19 : vector<256x1xf32> to vector<256x64xf32>
    %21 = arith.mulf %11, %20 : vector<256x64xf32>
    %c0_9 = arith.constant 0 : index
    %c0_10 = arith.constant 0 : index
    %22 = vector.load %arg5[%c0_9, %c0_10] : memref<1x64xf32, #tpu.memory_space<vmem>>, vector<1x64xf32>
    %23 = vector.broadcast %22 : vector<1x64xf32> to vector<256x64xf32>
    %24 = arith.mulf %21, %23 : vector<256x64xf32>
    %c0_11 = arith.constant 0 : index
    %c0_12 = arith.constant 0 : index
    %25 = vector.load %arg6[%c0_11, %c0_12] : memref<1x64xf32, #tpu.memory_space<vmem>>, vector<1x64xf32>
    %26 = vector.broadcast %25 : vector<1x64xf32> to vector<256x64xf32>
    %27 = arith.addf %24, %26 : vector<256x64xf32>
    %c0_13 = arith.constant 0 : index
    %c0_14 = arith.constant 0 : index
    %28 = vector.load %arg4[%c0_13, %c0_14] : memref<256x64xf32, #tpu.memory_space<vmem>>, vector<256x64xf32>
    %29 = arith.negf %28 : vector<256x64xf32>
    %30 = math.exp %29 : vector<256x64xf32>
    %cst_15 = arith.constant 1.000000e+00 : f32
    %31 = vector.broadcast %cst_15 : f32 to vector<256x64xf32>
    %32 = arith.addf %31, %30 : vector<256x64xf32>
    %33 = arith.divf %31, %32 : vector<256x64xf32>
    %34 = arith.mulf %28, %33 : vector<256x64xf32>
    %35 = arith.mulf %27, %34 : vector<256x64xf32>
    %36 = arith.truncf %35 : vector<256x64xf32> to vector<256x64xbf16>
    %c0_16 = arith.constant 0 : index
    %c0_17 = arith.constant 0 : index
    %37 = vector.load %arg7[%c0_16, %c0_17] : memref<64x32xf32, #tpu.memory_space<vmem>>, vector<64x32xf32>
    %38 = arith.truncf %37 : vector<64x32xf32> to vector<64x32xbf16>
    %cst_18 = arith.constant dense<0.000000e+00> : vector<256x32xf32>
    %39 = tpu.matmul %36, %38, %cst_18 {dimension_numbers = #tpu.dot_dimension_numbers<[1], [0], [0], [1], [0, 0, 1, 1], [], []>} : vector<256x64xbf16>, vector<64x32xbf16>, vector<256x32xf32> -> vector<256x32xf32>
    %c0_19 = arith.constant 0 : index
    %c0_20 = arith.constant 0 : index
    %40 = vector.load %arg8[%c0_19, %c0_20] : memref<256x32xf32, #tpu.memory_space<vmem>>, vector<256x32xf32>
    tpu.vector_store %arg8[%c0_19, %c0_20], %39 {strides = array<i32>} : memref<256x32xf32, #tpu.memory_space<vmem>>, vector<256x32xf32>,
    return
  }
  func.func @transform_0(%arg0: i32) -> (i32, i32) {
    %c0_i32 = arith.constant 0 : i32
    %c0_i32_0 = arith.constant 0 : i32
    return %arg0, %c0_i32 : i32, i32
  }
  func.func @transform_1(%arg0: i32) -> (i32, i32) {
    %c0_i32 = arith.constant 0 : i32
    %c0_i32_0 = arith.constant 0 : i32
    return %arg0, %c0_i32 : i32, i32
  }
  func.func @transform_2(%arg0: i32) -> (i32, i32) {
    %c0_i32 = arith.constant 0 : i32
    %c0_i32_0 = arith.constant 0 : i32
    %c0_i32_1 = arith.constant 0 : i32
    return %c0_i32, %c0_i32_0 : i32, i32
  }
  func.func @transform_3(%arg0: i32) -> (i32, i32) {
    %c0_i32 = arith.constant 0 : i32
    %c0_i32_0 = arith.constant 0 : i32
    return %arg0, %c0_i32 : i32, i32
  }
  func.func @transform_4(%arg0: i32) -> (i32, i32) {
    %c0_i32 = arith.constant 0 : i32
    %c0_i32_0 = arith.constant 0 : i32
    %c0_i32_1 = arith.constant 0 : i32
    return %c0_i32, %c0_i32_0 : i32, i32
  }
  func.func @transform_5(%arg0: i32) -> (i32, i32) {
    %c0_i32 = arith.constant 0 : i32
    %c0_i32_0 = arith.constant 0 : i32
    %c0_i32_1 = arith.constant 0 : i32
    return %c0_i32, %c0_i32_0 : i32, i32
  }
  func.func @transform_6(%arg0: i32) -> (i32, i32) {
    %c0_i32 = arith.constant 0 : i32
    %c0_i32_0 = arith.constant 0 : i32
    %c0_i32_1 = arith.constant 0 : i32
    return %c0_i32, %c0_i32_0 : i32, i32
  }
  func.func @transform_7(%arg0: i32) -> (i32, i32) {
    %c0_i32 = arith.constant 0 : i32
    %c0_i32_0 = arith.constant 0 : i32
    return %arg0, %c0_i32 : i32, i32
  }
}

</mosaic_0001>

<llo_original>
// kernel: ss2d_forward.5
$region0: #{ss2d_forward.5}
  #allocation0 [shape = 'u32[]', space=smem, size = 0x4, offset = 0x4, fixed_abs, tag = 'smem constant byte address 0x4 - core index']
  #allocation1 [shape = 'u32[144,128]{1,0:T(1,128)}', space=vmem, size = 0x12000, scoped, tag = 'internal scratch']
  %s0 = inlined_call_operand.hbm [shape: f32[512,32], index: 0, kind: input, shape index: {}]
  %s1 = inlined_call_operand.vmem [shape: f32[32,64], index: 1, kind: input, shape index: {}]
  %s2 = inlined_call_operand.vmem [shape: f32[32,64], index: 2, kind: input, shape index: {}]
  %s3 = inlined_call_operand.vmem [shape: f32[512,64], index: 3, kind: output, shape index: {0}]
  %s4 = inlined_call_operand.vmem [shape: f32[512,64], index: 4, kind: output, shape index: {1}]
  %5 = xla_tuple %s3, %s4
  %s6 = sld [smem:[#allocation0]]
  $region57: #{ss2d_forward.5} parent=0
    _
  %s8 = ssub.s32 1, %s6
  %s9 = scalar_select 0, %s8, %s6
  $region1: #{ss2d_forward.5} parent=0
    #allocation2 [shape = 'u8[262144]{0}', space=vmem, size = 0x40000, scoped, tag = 'input window, operand 0']
    #allocation3 [shape = 's32[2]{0}', space=sflag, size = 0x8, scoped, tag = 'scoped memory for ss2d_forward.5']
    %10 = vsyncpa [#allocation3], 0
    %s11 = scalar_lea.sflag [#allocation3], 1
    %12 = vsyncpa %s11, 0
    loop: start=0, step=1, limit=4
    $region2: #{ss2d_forward.5} parent=1 // loop_pre_header
      _
    $region3: #{ss2d_forward.5} parent=1 // loop_header
      %s14 = sphi 0, %s18
      %p15 = scmp.ge.s32.totalorder %s14, 4
      %s24 = sphi 0, %s26
      %s27 = sphi 0, %s24
      %s28 = sphi 0, %s27
      %s44 = sphi 0, %s28
      %s48 = sphi 0, %s48
      %s50 = sphi 0, %s48
      %s51 = sphi 0, %s50
      %s65 = sphi 0, %s51
      %s69 = sphi 0, %s69
      %s71 = sphi 0, %s69
      %s72 = sphi 0, %s71
      %s86 = sphi 0, %s72
      %s92 = sphi 0, %s94
      %s95 = sphi 0, %s92
      %s96 = sphi 0, %s95
      %s112 = sphi 0, %s96
      %s118 = sphi 0, %s120
      %s121 = sphi 0, %s118
      %s122 = sphi 0, %s121
      %s138 = sphi 0, %s122
    $region4: #{ss2d_forward.5} parent=1 // loop_header_branch
      %17 = sbr.rel (%p15) target = $region8
    $region5: #{ss2d_forward.5} parent=1 // loop_body
      %s19 = ssub.s32 %s14, 1
      %s20 = ssub.s32 %s14, 2
      %s21 = sadd.s32 %s14, 1
      %s22 = ssub.s32 %s14, %s21
      %p23 = scmp.eq.s32.totalorder %s22, 0
      %s25 = sadd.s32 %s24, 1
      %s26 = scalar_select %p23, %s24, %s25
      %p29 = pneg %p23
      %p30 = scmp.eq.s32.totalorder %s14, 1
      %p31 = por %p29, %p30
      %p32 = scmp.ne.s32.totalorder %s24, %s27
      %p33 = scmp.eq.s32.totalorder %s14, 0
      %p34 = por %p32, %p33
      %p35 = scmp.ne.s32.totalorder %s24, %s27
      %p36 = scmp.eq.s32.totalorder %s19, 1
      %p37 = por %p35, %p36
      %p38 = scmp.ne.s32.totalorder %s27, %s28
      %p39 = scmp.eq.s32.totalorder %s19, 0
      %p40 = por %p38, %p39
      %p41 = scmp.ne.s32.totalorder %s27, %s28
      %p42 = scmp.eq.s32.totalorder %s20, 1
      %p43 = por %p41, %p42
      %p45 = scmp.ne.s32.totalorder %s28, %s44
      %p46 = scmp.eq.s32.totalorder %s20, 0
      %p47 = por %p45, %p46
      %s49 = sadd.s32 %s48, 1
      %p52 = scmp.eq.s32.totalorder %s14, 1
      %p53 = scmp.ne.s32.totalorder %s48, %s50
      %p54 = scmp.eq.s32.totalorder %s14, 0
      %p55 = por %p53, %p54
      %p56 = scmp.ne.s32.totalorder %s48, %s50
      %p57 = scmp.eq.s32.totalorder %s19, 1
      %p58 = por %p56, %p57
      %p59 = scmp.ne.s32.totalorder %s50, %s51
      %p60 = scmp.eq.s32.totalorder %s19, 0
      %p61 = por %p59, %p60
      %p62 = scmp.ne.s32.totalorder %s50, %s51
      %p63 = scmp.eq.s32.totalorder %s20, 1
      %p64 = por %p62, %p63
      %p66 = scmp.ne.s32.totalorder %s51, %s65
      %p67 = scmp.eq.s32.totalorder %s20, 0
      %p68 = por %p66, %p67
      %s70 = sadd.s32 %s69, 1
      %p73 = scmp.eq.s32.totalorder %s14, 1
      %p74 = scmp.ne.s32.totalorder %s69, %s71
      %p75 = scmp.eq.s32.totalorder %s14, 0
      %p76 = por %p74, %p75
      %p77 = scmp.ne.s32.totalorder %s69, %s71
      %p78 = scmp.eq.s32.totalorder %s19, 1
      %p79 = por %p77, %p78
      %p80 = scmp.ne.s32.totalorder %s71, %s72
      %p81 = scmp.eq.s32.totalorder %s19, 0
      %p82 = por %p80, %p81
      %p83 = scmp.ne.s32.totalorder %s71, %s72
      %p84 = scmp.eq.s32.totalorder %s20, 1
      %p85 = por %p83, %p84
      %p87 = scmp.ne.s32.totalorder %s72, %s86
      %p88 = scmp.eq.s32.totalorder %s20, 0
      %p89 = por %p87, %p88
      %s90 = ssub.s32 %s14, %s21
      %p91 = scmp.eq.s32.totalorder %s90, 0
      %s93 = sadd.s32 %s92, 1
      %s94 = scalar_select %p91, %s92, %s93
      %p97 = pneg %p91
      %p98 = scmp.eq.s32.totalorder %s14, 1
      %p99 = por %p97, %p98
      %p100 = scmp.ne.s32.totalorder %s92, %s95
      %p101 = scmp.eq.s32.totalorder %s14, 0
      %p102 = por %p100, %p101
      %p103 = scmp.ne.s32.totalorder %s92, %s95
      %p104 = scmp.eq.s32.totalorder %s19, 1
      %p105 = por %p103, %p104
      %p106 = scmp.ne.s32.totalorder %s95, %s96
      %p107 = scmp.eq.s32.totalorder %s19, 0
      %p108 = por %p106, %p107
      %p109 = scmp.ne.s32.totalorder %s95, %s96
      %p110 = scmp.eq.s32.totalorder %s20, 1
      %p111 = por %p109, %p110
      %p113 = scmp.ne.s32.totalorder %s96, %s112
      %p114 = scmp.eq.s32.totalorder %s20, 0
      %p115 = por %p113, %p114
      %s116 = ssub.s32 %s14, %s21
      %p117 = scmp.eq.s32.totalorder %s116, 0
      %s119 = sadd.s32 %s118, 1
      %s120 = scalar_select %p117, %s118, %s119
      %p123 = pneg %p117
      %p124 = scmp.eq.s32.totalorder %s14, 1
      %p125 = por %p123, %p124
      %p126 = scmp.ne.s32.totalorder %s118, %s121
      %p127 = scmp.eq.s32.totalorder %s14, 0
      %p128 = por %p126, %p127
      %p129 = scmp.ne.s32.totalorder %s118, %s121
      %p130 = scmp.eq.s32.totalorder %s19, 1
      %p131 = por %p129, %p130
      %p132 = scmp.ne.s32.totalorder %s121, %s122
      %p133 = scmp.eq.s32.totalorder %s19, 0
      %p134 = por %p132, %p133
      %p135 = scmp.ne.s32.totalorder %s121, %s122
      %p136 = scmp.eq.s32.totalorder %s20, 1
      %p137 = por %p135, %p136
      %p139 = scmp.ne.s32.totalorder %s122, %s138
      %p140 = scmp.eq.s32.totalorder %s20, 0
      %p141 = por %p139, %p140
      %p142 = scmp.le.s32.totalorder 1, %s14
      %p143 = scmp.lt.s32.totalorder %s14, 3
      %p144 = pnand %p142, %p143
      %p145 = pneg %p144
      // Predicated region
      $region9: #{ss2d_forward.5} parent=5 // pred_check
        _
      $region10: #{ss2d_forward.5} parent=5 // pred_check_branch
        %147 = sbr.rel (%p144) target = $region12
      $region11: #{ss2d_forward.5} parent=5 // pred_region
        %s148 = ssub.s32 %s14, 1
        // Predicated region
        $region13: #{ss2d_forward.5} parent=11 // pred_check
          %p149 = pneg %p61
        $region14: #{ss2d_forward.5} parent=11 // pred_check_branch
          %151 = sbr.rel (%p149) target = $region16
        $region15: #{ss2d_forward.5} parent=11 // pred_region
          _
        $region16: #{ss2d_forward.5} parent=11 // pred_fallthru
          _
        // Predicated region
        $region17: #{ss2d_forward.5} parent=11 // pred_check
          %p152 = pneg %p82
        $region18: #{ss2d_forward.5} parent=11 // pred_check_branch
          %154 = sbr.rel (%p152) target = $region20
        $region19: #{ss2d_forward.5} parent=11 // pred_region
          _
        $region20: #{ss2d_forward.5} parent=11 // pred_fallthru
          _
      $region12: #{ss2d_forward.5} parent=5 // pred_fallthru
        _
      %p155 = scmp.lt.s32.totalorder %s14, 2
      // Predicated region
      $region21: #{ss2d_forward.5} parent=5 // pred_check
        %p156 = pneg %p155
      $region22: #{ss2d_forward.5} parent=5 // pred_check_branch
        %158 = sbr.rel (%p156) target = $region24
      $region23: #{ss2d_forward.5} parent=5 // pred_region
        // Predicated region
        $region25: #{ss2d_forward.5} parent=23 // pred_check
          %p159 = pneg %p34
        $region26: #{ss2d_forward.5} parent=23 // pred_check_branch
          %161 = sbr.rel (%p159) target = $region28
        $region27: #{ss2d_forward.5} parent=23 // pred_region
          %s162 = sand.u32 %s24, 1
          %s163 = scalar_lea.sflag [#allocation3], %s162
          %s164 = sand.u32 %s24, 1
          %s165 = smul.addr %s164, 256
          %s166 = scalar_lea.vmem [#allocation2], %s165
          %s167 = smul.u32 32, %s14
          %s169 = ssub.s32 4096, 4096
          %170 = vsyncadd %s163, %s169
          %s171 = smul.addr %s167, 128
          %s172 = scalar_lea.hbm %s0, %s171
          %s173 = sshll.u32 %s166, 4
          %s174 = int_to_ptr.vmem [resolvable:$true] %s173
          %179 = dma.hbm_to_vmem [thread:$0]  %s172, 4096, %s174, %s163, 128, 128, 8
        $region28: #{ss2d_forward.5} parent=23 // pred_fallthru
          _
      $region24: #{ss2d_forward.5} parent=5 // pred_fallthru
        _
      %p180 = scmp.le.s32.totalorder 1, %s14
      %p181 = scmp.lt.s32.totalorder %s14, 3
      %p182 = pnand %p180, %p181
      %p183 = pneg %p182
      // Predicated region
      $region29: #{ss2d_forward.5} parent=5 // pred_check
        _
      $region30: #{ss2d_forward.5} parent=5 // pred_check_branch
        %185 = sbr.rel (%p182) target = $region32
      $region31: #{ss2d_forward.5} parent=5 // pred_region
        %s186 = ssub.s32 %s14, 1
        %s187 = sand.u32 %s27, 1
        %s188 = scalar_lea.sflag [#allocation3], %s187
        %s189 = sand.u32 %s27, 1
        %s190 = smul.addr %s189, 256
        %s191 = scalar_lea.vmem [#allocation2], %s190
        // Predicated region
        $region33: #{ss2d_forward.5} parent=31 // pred_check
          %p192 = pneg %p40
        $region34: #{ss2d_forward.5} parent=31 // pred_check_branch
          %194 = sbr.rel (%p192) target = $region36
        $region35: #{ss2d_forward.5} parent=31 // pred_region
          %195 = dma.done %s188, 4096
        $region36: #{ss2d_forward.5} parent=31 // pred_fallthru
          _
        %s196 = sand.u32 %s27, 1
        %s197 = scalar_lea.sflag [#allocation3], %s196
        %s198 = sand.u32 %s27, 1
        %s199 = smul.addr %s198, 256
        %s200 = scalar_lea.vmem [#allocation2], %s199
        %p201 = pneg %p40
        %p202 = pneg %p37
        %p203 = pneg %p61
        %p204 = pneg %p58
        %p205 = pneg %p82
        %p206 = pneg %p79
        %p207 = pneg %p108
        %p208 = pneg %p105
        %s209 = smul.u32 32, %s19
        %p210 = scmp.lt.s32.totalorder %s209, 63
        %s211 = scalar_select %p210, %s209, 63
        %s212 = smul.addr %s211, 8
        %s213 = scalar_lea.vmem %s3, %s212
        %p214 = pneg %p134
        %p215 = pneg %p131
        %s216 = smul.u32 32, %s19
        %p217 = scmp.lt.s32.totalorder %s216, 63
        %s218 = scalar_select %p217, %s216, 63
        %s219 = smul.addr %s218, 8
        %s220 = scalar_lea.vmem %s4, %s219
        %s221 = smul.u32 32, %s19
        %s222 = smul.u32 32, %s19
        %p223 = scmp.lt.s32.totalorder %s222, 63
        %s224 = scalar_select %p223, %s222, 63
        %s225 = smul.addr %s224, 8
        %s226 = scalar_lea.vmem %s3, %s225
        %s227 = smul.u32 32, %s19
        %s228 = smul.u32 32, %s19
        %p229 = scmp.lt.s32.totalorder %s228, 63
        %s230 = scalar_select %p229, %s228, 63
        %s231 = smul.addr %s230, 8
        %s232 = scalar_lea.vmem %s4, %s231
        %s233 = smul.u32 32, %s19
        %v235 = vld [vmem:[%s191] sm:$0xff]
        %v236 = vld [vmem:[%s191 + $0x8] sm:$0xff]
        %v237 = vld [vmem:[%s191 + $0x10] sm:$0xff]
        %v238 = vld [vmem:[%s191 + $0x18] sm:$0xff]
        %v239 = vld [vmem:[%s191 + $0x20] sm:$0xff]
        %v240 = vld [vmem:[%s191 + $0x28] sm:$0xff]
        %v241 = vld [vmem:[%s191 + $0x30] sm:$0xff]
        %v242 = vld [vmem:[%s191 + $0x38] sm:$0xff]
        %v243 = vld [vmem:[%s191 + $0x40] sm:$0xff]
        %v244 = vld [vmem:[%s191 + $0x48] sm:$0xff]
        %v245 = vld [vmem:[%s191 + $0x50] sm:$0xff]
        %v246 = vld [vmem:[%s191 + $0x58] sm:$0xff]
        %v247 = vld [vmem:[%s191 + $0x60] sm:$0xff]
        %v248 = vld [vmem:[%s191 + $0x68] sm:$0xff]
        %v249 = vld [vmem:[%s191 + $0x70] sm:$0xff]
        %v250 = vld [vmem:[%s191 + $0x78] sm:$0xff]
        %v251 = vld [vmem:[%s191 + $0x80] sm:$0xff]
        %v252 = vld [vmem:[%s191 + $0x88] sm:$0xff]
        %v253 = vld [vmem:[%s191 + $0x90] sm:$0xff]
        %v254 = vld [vmem:[%s191 + $0x98] sm:$0xff]
        %v255 = vld [vmem:[%s191 + $0xa0] sm:$0xff]
        %v256 = vld [vmem:[%s191 + $0xa8] sm:$0xff]
        %v257 = vld [vmem:[%s191 + $0xb0] sm:$0xff]
        %v258 = vld [vmem:[%s191 + $0xb8] sm:$0xff]
        %v259 = vld [vmem:[%s191 + $0xc0] sm:$0xff]
        %v260 = vld [vmem:[%s191 + $0xc8] sm:$0xff]
        %v261 = vld [vmem:[%s191 + $0xd0] sm:$0xff]
        %v262 = vld [vmem:[%s191 + $0xd8] sm:$0xff]
        %v263 = vld [vmem:[%s191 + $0xe0] sm:$0xff]
        %v264 = vld [vmem:[%s191 + $0xe8] sm:$0xff]
        %v265 = vld [vmem:[%s191 + $0xf0] sm:$0xff]
        %v266 = vld [vmem:[%s191 + $0xf8] sm:$0xff]
        %v267 = vpack.c.bf16 %v236, %v235
        %v268 = vpack.c.bf16 %v238, %v237
        %v269 = vpack.c.bf16 %v240, %v239
        %v270 = vpack.c.bf16 %v242, %v241
        %v271 = vpack.c.bf16 %v244, %v243
        %v272 = vpack.c.bf16 %v246, %v245
        %v273 = vpack.c.bf16 %v248, %v247
        %v274 = vpack.c.bf16 %v250, %v249
        %v275 = vpack.c.bf16 %v252, %v251
        %v276 = vpack.c.bf16 %v254, %v253
        %v277 = vpack.c.bf16 %v256, %v255
        %v278 = vpack.c.bf16 %v258, %v257
        %v279 = vpack.c.bf16 %v260, %v259
        %v280 = vpack.c.bf16 %v262, %v261
        %v281 = vpack.c.bf16 %v264, %v263
        %v282 = vpack.c.bf16 %v266, %v265
        %v283 = vld [vmem:[%s1] sm:$0xff]
        %v284 = vld [vmem:[%s1 + $0x8] sm:$0xff]
        %v285 = vld [vmem:[%s1 + $0x10] sm:$0xff]
        %v286 = vld [vmem:[%s1 + $0x18] sm:$0xff]
        %v287 = vpack.c.bf16 %v284, %v283
        %v288 = vpack.c.bf16 %v286, %v285
        %vm289 = vcmask 261120
        %v291 = vsel %vm289, %v267, 0
        %v294 = vsel %vm289, %v268, 0
        %v297 = vsel %vm289, %v269, 0
        %v300 = vsel %vm289, %v270, 0
        %v303 = vsel %vm289, %v271, 0
        %v306 = vsel %vm289, %v272, 0
        %v309 = vsel %vm289, %v273, 0
        %v312 = vsel %vm289, %v274, 0
        %v315 = vsel %vm289, %v275, 0
        %v318 = vsel %vm289, %v276, 0
        %v321 = vsel %vm289, %v277, 0
        %v324 = vsel %vm289, %v278, 0
        %v327 = vsel %vm289, %v279, 0
        %v330 = vsel %vm289, %v280, 0
        %v333 = vsel %vm289, %v281, 0
        %v336 = vsel %vm289, %v282, 0
        %338 = vmatprep.subr.bf16.mxu0 0
        %339 = vmatpush1.bf16.msra.mxu0 0
        %340 = vmatprep.subr.bf16.mxu0 0
        %341 = vmatpush1.bf16.msra.mxu0 0
        %342 = vmatprep.subr.bf16.mxu0 0
        %343 = vmatpush1.bf16.msra.mxu0 0
        %344 = vmatprep.subr.bf16.mxu0 0
        %345 = vmatpush1.bf16.msra.mxu0 0
        %346 = vmatprep.subr.bf16.mxu0 0
        %347 = vmatpush1.bf16.msra.mxu0 0
        %348 = vmatprep.subr.bf16.mxu0 0
        %349 = vmatpush1.bf16.msra.mxu0 0
        %350 = vmatprep.subr.bf16.mxu0 0
        %351 = vmatpush1.bf16.msra.mxu0 %v288
        %352 = vmatprep.subr.bf16.mxu0 0
        %353 = vmatpush1.bf16.msra.mxu0 %v287
        %354 = vmatprep.subr.bf16.mxu0 0
        %355 = vmatpush2.bf16.msra.mxu0 0
        %356 = vmatprep.subr.bf16.mxu0 0
        %357 = vmatpush2.bf16.msra.mxu0 0
        %358 = vmatprep.subr.bf16.mxu0 0
        %359 = vmatpush2.bf16.msra.mxu0 0
        %360 = vmatprep.subr.bf16.mxu0 0
        %361 = vmatpush2.bf16.msra.mxu0 0
        %362 = vmatprep.subr.bf16.mxu0 0
        %363 = vmatpush2.bf16.msra.mxu0 0
        %364 = vmatprep.subr.bf16.mxu0 0
        %365 = vmatpush2.bf16.msra.mxu0 0
        %366 = vmatprep.subr.bf16.mxu0 0
        %367 = vmatpush2.bf16.msra.mxu0 0
        %368 = vmatprep.subr.bf16.mxu0 0
        %369 = vmatpush2.bf16.msra.mxu0 0
        %370 = vmatprep.mubr.bf16.mxu0 0
        %371 = vmatmul.mubr.bf16.gmra.mxu0 %v291
        %v372 = vpop.f32.mrf.mxu0
        %v373 = vadd.f32 0.0, %v372
        %v374 = vpop.f32.mrf.mxu0
        %v375 = vpop.f32.mrf.mxu0
        %v376 = vadd.f32 0.0, %v375
        %v377 = vpop.f32.mrf.mxu0
        %378 = vmatprep.mubr.bf16.mxu0 0
        %379 = vmatmul.mubr.bf16.gmra.mxu0 %v294
        %v380 = vpop.f32.mrf.mxu0
        %v381 = vadd.f32 0.0, %v380
        %v382 = vpop.f32.mrf.mxu0
        %v383 = vpop.f32.mrf.mxu0
        %v384 = vadd.f32 0.0, %v383
        %v385 = vpop.f32.mrf.mxu0
        %386 = vmatprep.mubr.bf16.mxu0 0
        %387 = vmatmul.mubr.bf16.gmra.mxu0 %v297
        %v388 = vpop.f32.mrf.mxu0
        %v389 = vadd.f32 0.0, %v388
        %v390 = vpop.f32.mrf.mxu0
        %v391 = vpop.f32.mrf.mxu0
        %v392 = vadd.f32 0.0, %v391
        %v393 = vpop.f32.mrf.mxu0
        %394 = vmatprep.mubr.bf16.mxu0 0
        %395 = vmatmul.mubr.bf16.gmra.mxu0 %v300
        %v396 = vpop.f32.mrf.mxu0
        %v397 = vadd.f32 0.0, %v396
        %v398 = vpop.f32.mrf.mxu0
        %v399 = vpop.f32.mrf.mxu0
        %v400 = vadd.f32 0.0, %v399
        %v401 = vpop.f32.mrf.mxu0
        %402 = vmatprep.mubr.bf16.mxu0 0
        %403 = vmatmul.mubr.bf16.gmra.mxu0 %v303
        %v404 = vpop.f32.mrf.mxu0
        %v405 = vadd.f32 0.0, %v404
        %v406 = vpop.f32.mrf.mxu0
        %v407 = vpop.f32.mrf.mxu0
        %v408 = vadd.f32 0.0, %v407
        %v409 = vpop.f32.mrf.mxu0
        %410 = vmatprep.mubr.bf16.mxu0 0
        %411 = vmatmul.mubr.bf16.gmra.mxu0 %v306
        %v412 = vpop.f32.mrf.mxu0
        %v413 = vadd.f32 0.0, %v412
        %v414 = vpop.f32.mrf.mxu0
        %v415 = vpop.f32.mrf.mxu0
        %v416 = vadd.f32 0.0, %v415
        %v417 = vpop.f32.mrf.mxu0
        %418 = vmatprep.mubr.bf16.mxu0 0
        %419 = vmatmul.mubr.bf16.gmra.mxu0 %v309
        %v420 = vpop.f32.mrf.mxu0
        %v421 = vadd.f32 0.0, %v420
        %v422 = vpop.f32.mrf.mxu0
        %v423 = vpop.f32.mrf.mxu0
        %v424 = vadd.f32 0.0, %v423
        %v425 = vpop.f32.mrf.mxu0
        %426 = vmatprep.mubr.bf16.mxu0 0
        %427 = vmatmul.mubr.bf16.gmra.mxu0 %v312
        %v428 = vpop.f32.mrf.mxu0
        %v429 = vadd.f32 0.0, %v428
        %v430 = vpop.f32.mrf.mxu0
        %v431 = vpop.f32.mrf.mxu0
        %v432 = vadd.f32 0.0, %v431
        %v433 = vpop.f32.mrf.mxu0
        %434 = vmatprep.mubr.bf16.mxu0 0
        %435 = vmatmul.mubr.bf16.gmra.mxu0 %v315
        %v436 = vpop.f32.mrf.mxu0
        %v437 = vadd.f32 0.0, %v436
        %v438 = vpop.f32.mrf.mxu0
        %v439 = vpop.f32.mrf.mxu0
        %v440 = vadd.f32 0.0, %v439
        %v441 = vpop.f32.mrf.mxu0
        %442 = vmatprep.mubr.bf16.mxu0 0
        %443 = vmatmul.mubr.bf16.gmra.mxu0 %v318
        %v444 = vpop.f32.mrf.mxu0
        %v445 = vadd.f32 0.0, %v444
        %v446 = vpop.f32.mrf.mxu0
        %v447 = vpop.f32.mrf.mxu0
        %v448 = vadd.f32 0.0, %v447
        %v449 = vpop.f32.mrf.mxu0
        %450 = vmatprep.mubr.bf16.mxu0 0
        %451 = vmatmul.mubr.bf16.gmra.mxu0 %v321
        %v452 = vpop.f32.mrf.mxu0
        %v453 = vadd.f32 0.0, %v452
        %v454 = vpop.f32.mrf.mxu0
        %v455 = vpop.f32.mrf.mxu0
        %v456 = vadd.f32 0.0, %v455
        %v457 = vpop.f32.mrf.mxu0
        %458 = vmatprep.mubr.bf16.mxu0 0
        %459 = vmatmul.mubr.bf16.gmra.mxu0 %v324
        %v460 = vpop.f32.mrf.mxu0
        %v461 = vadd.f32 0.0, %v460
        %v462 = vpop.f32.mrf.mxu0
        %v463 = vpop.f32.mrf.mxu0
        %v464 = vadd.f32 0.0, %v463
        %v465 = vpop.f32.mrf.mxu0
        %466 = vmatprep.mubr.bf16.mxu0 0
        %467 = vmatmul.mubr.bf16.gmra.mxu0 %v327
        %v468 = vpop.f32.mrf.mxu0
        %v469 = vadd.f32 0.0, %v468
        %v470 = vpop.f32.mrf.mxu0
        %v471 = vpop.f32.mrf.mxu0
        %v472 = vadd.f32 0.0, %v471
        %v473 = vpop.f32.mrf.mxu0
        %474 = vmatprep.mubr.bf16.mxu0 0
        %475 = vmatmul.mubr.bf16.gmra.mxu0 %v330
        %v476 = vpop.f32.mrf.mxu0
        %v477 = vadd.f32 0.0, %v476
        %v478 = vpop.f32.mrf.mxu0
        %v479 = vpop.f32.mrf.mxu0
        %v480 = vadd.f32 0.0, %v479
        %v481 = vpop.f32.mrf.mxu0
        %482 = vmatprep.mubr.bf16.mxu0 0
        %483 = vmatmul.mubr.bf16.gmra.mxu0 %v333
        %v484 = vpop.f32.mrf.mxu0
        %v485 = vadd.f32 0.0, %v484
        %v486 = vpop.f32.mrf.mxu0
        %v487 = vpop.f32.mrf.mxu0
        %v488 = vadd.f32 0.0, %v487
        %v489 = vpop.f32.mrf.mxu0
        %490 = vmatprep.mubr.bf16.mxu0 0
        %491 = vmatmul.mubr.bf16.gmra.mxu0 %v336
        %v492 = vpop.f32.mrf.mxu0
        %v493 = vadd.f32 0.0, %v492
        %v494 = vpop.f32.mrf.mxu0
        %v495 = vpop.f32.mrf.mxu0
        %v496 = vadd.f32 0.0, %v495
        %v497 = vpop.f32.mrf.mxu0
        %498 = vdwg.mxu0
        %vm499 = vcmask 523264
        %500 = vst.msk [vmem:[%s226] sm:$0xff] %vm499, %v373
        %501 = vst.msk [vmem:[%s226 + $0x8] sm:$0xff] %vm499, %v376
        %502 = vst.msk [vmem:[%s226 + $0x10] sm:$0xff] %vm499, %v381
        %503 = vst.msk [vmem:[%s226 + $0x18] sm:$0xff] %vm499, %v384
        %504 = vst.msk [vmem:[%s226 + $0x20] sm:$0xff] %vm499, %v389
        %505 = vst.msk [vmem:[%s226 + $0x28] sm:$0xff] %vm499, %v392
        %506 = vst.msk [vmem:[%s226 + $0x30] sm:$0xff] %vm499, %v397
        %507 = vst.msk [vmem:[%s226 + $0x38] sm:$0xff] %vm499, %v400
        %508 = vst.msk [vmem:[%s226 + $0x40] sm:$0xff] %vm499, %v405
        %509 = vst.msk [vmem:[%s226 + $0x48] sm:$0xff] %vm499, %v408
        %510 = vst.msk [vmem:[%s226 + $0x50] sm:$0xff] %vm499, %v413
        %511 = vst.msk [vmem:[%s226 + $0x58] sm:$0xff] %vm499, %v416
        %512 = vst.msk [vmem:[%s226 + $0x60] sm:$0xff] %vm499, %v421
        %513 = vst.msk [vmem:[%s226 + $0x68] sm:$0xff] %vm499, %v424
        %514 = vst.msk [vmem:[%s226 + $0x70] sm:$0xff] %vm499, %v429
        %515 = vst.msk [vmem:[%s226 + $0x78] sm:$0xff] %vm499, %v432
        %516 = vst.msk [vmem:[%s226 + $0x80] sm:$0xff] %vm499, %v437
        %517 = vst.msk [vmem:[%s226 + $0x88] sm:$0xff] %vm499, %v440
        %518 = vst.msk [vmem:[%s226 + $0x90] sm:$0xff] %vm499, %v445
        %519 = vst.msk [vmem:[%s226 + $0x98] sm:$0xff] %vm499, %v448
        %520 = vst.msk [vmem:[%s226 + $0xa0] sm:$0xff] %vm499, %v453
        %521 = vst.msk [vmem:[%s226 + $0xa8] sm:$0xff] %vm499, %v456
        %522 = vst.msk [vmem:[%s226 + $0xb0] sm:$0xff] %vm499, %v461
        %523 = vst.msk [vmem:[%s226 + $0xb8] sm:$0xff] %vm499, %v464
        %524 = vst.msk [vmem:[%s226 + $0xc0] sm:$0xff] %vm499, %v469
        %525 = vst.msk [vmem:[%s226 + $0xc8] sm:$0xff] %vm499, %v472
        %526 = vst.msk [vmem:[%s226 + $0xd0] sm:$0xff] %vm499, %v477
        %527 = vst.msk [vmem:[%s226 + $0xd8] sm:$0xff] %vm499, %v480
        %528 = vst.msk [vmem:[%s226 + $0xe0] sm:$0xff] %vm499, %v485
        %529 = vst.msk [vmem:[%s226 + $0xe8] sm:$0xff] %vm499, %v488
        %530 = vst.msk [vmem:[%s226 + $0xf0] sm:$0xff] %vm499, %v493
        %531 = vst.msk [vmem:[%s226 + $0xf8] sm:$0xff] %vm499, %v496
        %v532 = vld [vmem:[%s2] sm:$0xff]
        %v533 = vld [vmem:[%s2 + $0x8] sm:$0xff]
        %v534 = vld [vmem:[%s2 + $0x10] sm:$0xff]
        %v535 = vld [vmem:[%s2 + $0x18] sm:$0xff]
        %v536 = vpack.c.bf16 %v533, %v532
        %v537 = vpack.c.bf16 %v535, %v534
        %538 = vmatprep.subr.bf16.mxu0 0
        %539 = vmatpush1.bf16.msra.mxu0 0
        %540 = vmatprep.subr.bf16.mxu0 0
        %541 = vmatpush1.bf16.msra.mxu0 0
        %542 = vmatprep.subr.bf16.mxu0 0
        %543 = vmatpush1.bf16.msra.mxu0 0
        %544 = vmatprep.subr.bf16.mxu0 0
        %545 = vmatpush1.bf16.msra.mxu0 0
        %546 = vmatprep.subr.bf16.mxu0 0
        %547 = vmatpush1.bf16.msra.mxu0 0
        %548 = vmatprep.subr.bf16.mxu0 0
        %549 = vmatpush1.bf16.msra.mxu0 0
        %550 = vmatprep.subr.bf16.mxu0 0
        %551 = vmatpush1.bf16.msra.mxu0 %v537
        %552 = vmatprep.subr.bf16.mxu0 0
        %553 = vmatpush1.bf16.msra.mxu0 %v536
        %554 = vmatprep.subr.bf16.mxu0 0
        %555 = vmatpush2.bf16.msra.mxu0 0
        %556 = vmatprep.subr.bf16.mxu0 0
        %557 = vmatpush2.bf16.msra.mxu0 0
        %558 = vmatprep.subr.bf16.mxu0 0
        %559 = vmatpush2.bf16.msra.mxu0 0
        %560 = vmatprep.subr.bf16.mxu0 0
        %561 = vmatpush2.bf16.msra.mxu0 0
        %562 = vmatprep.subr.bf16.mxu0 0
        %563 = vmatpush2.bf16.msra.mxu0 0
        %564 = vmatprep.subr.bf16.mxu0 0
        %565 = vmatpush2.bf16.msra.mxu0 0
        %566 = vmatprep.subr.bf16.mxu0 0
        %567 = vmatpush2.bf16.msra.mxu0 0
        %568 = vmatprep.subr.bf16.mxu0 0
        %569 = vmatpush2.bf16.msra.mxu0 0
        %570 = vmatprep.mubr.bf16.mxu0 0
        %571 = vmatmul.mubr.bf16.gmra.mxu0 %v291
        %v572 = vpop.f32.mrf.mxu0
        %v573 = vadd.f32 0.0, %v572
        %v574 = vpop.f32.mrf.mxu0
        %v575 = vpop.f32.mrf.mxu0
        %v576 = vadd.f32 0.0, %v575
        %v577 = vpop.f32.mrf.mxu0
        %578 = vmatprep.mubr.bf16.mxu0 0
        %579 = vmatmul.mubr.bf16.gmra.mxu0 %v294
        %v580 = vpop.f32.mrf.mxu0
        %v581 = vadd.f32 0.0, %v580
        %v582 = vpop.f32.mrf.mxu0
        %v583 = vpop.f32.mrf.mxu0
        %v584 = vadd.f32 0.0, %v583
        %v585 = vpop.f32.mrf.mxu0
        %586 = vmatprep.mubr.bf16.mxu0 0
        %587 = vmatmul.mubr.bf16.gmra.mxu0 %v297
        %v588 = vpop.f32.mrf.mxu0
        %v589 = vadd.f32 0.0, %v588
        %v590 = vpop.f32.mrf.mxu0
        %v591 = vpop.f32.mrf.mxu0
        %v592 = vadd.f32 0.0, %v591
        %v593 = vpop.f32.mrf.mxu0
        %594 = vmatprep.mubr.bf16.mxu0 0
        %595 = vmatmul.mubr.bf16.gmra.mxu0 %v300
        %v596 = vpop.f32.mrf.mxu0
        %v597 = vadd.f32 0.0, %v596
        %v598 = vpop.f32.mrf.mxu0
        %v599 = vpop.f32.mrf.mxu0
        %v600 = vadd.f32 0.0, %v599
        %v601 = vpop.f32.mrf.mxu0
        %602 = vmatprep.mubr.bf16.mxu0 0
        %603 = vmatmul.mubr.bf16.gmra.mxu0 %v303
        %v604 = vpop.f32.mrf.mxu0
        %v605 = vadd.f32 0.0, %v604
        %v606 = vpop.f32.mrf.mxu0
        %v607 = vpop.f32.mrf.mxu0
        %v608 = vadd.f32 0.0, %v607
        %v609 = vpop.f32.mrf.mxu0
        %610 = vmatprep.mubr.bf16.mxu0 0
        %611 = vmatmul.mubr.bf16.gmra.mxu0 %v306
        %v612 = vpop.f32.mrf.mxu0
        %v613 = vadd.f32 0.0, %v612
        %v614 = vpop.f32.mrf.mxu0
        %v615 = vpop.f32.mrf.mxu0
        %v616 = vadd.f32 0.0, %v615
        %v617 = vpop.f32.mrf.mxu0
        %618 = vmatprep.mubr.bf16.mxu0 0
        %619 = vmatmul.mubr.bf16.gmra.mxu0 %v309
        %v620 = vpop.f32.mrf.mxu0
        %v621 = vadd.f32 0.0, %v620
        %v622 = vpop.f32.mrf.mxu0
        %v623 = vpop.f32.mrf.mxu0
        %v624 = vadd.f32 0.0, %v623
        %v625 = vpop.f32.mrf.mxu0
        %626 = vmatprep.mubr.bf16.mxu0 0
        %627 = vmatmul.mubr.bf16.gmra.mxu0 %v312
        %v628 = vpop.f32.mrf.mxu0
        %v629 = vadd.f32 0.0, %v628
        %v630 = vpop.f32.mrf.mxu0
        %v631 = vpop.f32.mrf.mxu0
        %v632 = vadd.f32 0.0, %v631
        %v633 = vpop.f32.mrf.mxu0
        %634 = vmatprep.mubr.bf16.mxu0 0
        %635 = vmatmul.mubr.bf16.gmra.mxu0 %v315
        %v636 = vpop.f32.mrf.mxu0
        %v637 = vadd.f32 0.0, %v636
        %v638 = vpop.f32.mrf.mxu0
        %v639 = vpop.f32.mrf.mxu0
        %v640 = vadd.f32 0.0, %v639
        %v641 = vpop.f32.mrf.mxu0
        %642 = vmatprep.mubr.bf16.mxu0 0
        %643 = vmatmul.mubr.bf16.gmra.mxu0 %v318
        %v644 = vpop.f32.mrf.mxu0
        %v645 = vadd.f32 0.0, %v644
        %v646 = vpop.f32.mrf.mxu0
        %v647 = vpop.f32.mrf.mxu0
        %v648 = vadd.f32 0.0, %v647
        %v649 = vpop.f32.mrf.mxu0
        %650 = vmatprep.mubr.bf16.mxu0 0
        %651 = vmatmul.mubr.bf16.gmra.mxu0 %v321
        %v652 = vpop.f32.mrf.mxu0
        %v653 = vadd.f32 0.0, %v652
        %v654 = vpop.f32.mrf.mxu0
        %v655 = vpop.f32.mrf.mxu0
        %v656 = vadd.f32 0.0, %v655
        %v657 = vpop.f32.mrf.mxu0
        %658 = vmatprep.mubr.bf16.mxu0 0
        %659 = vmatmul.mubr.bf16.gmra.mxu0 %v324
        %v660 = vpop.f32.mrf.mxu0
        %v661 = vadd.f32 0.0, %v660
        %v662 = vpop.f32.mrf.mxu0
        %v663 = vpop.f32.mrf.mxu0
        %v664 = vadd.f32 0.0, %v663
        %v665 = vpop.f32.mrf.mxu0
        %666 = vmatprep.mubr.bf16.mxu0 0
        %667 = vmatmul.mubr.bf16.gmra.mxu0 %v327
        %v668 = vpop.f32.mrf.mxu0
        %v669 = vadd.f32 0.0, %v668
        %v670 = vpop.f32.mrf.mxu0
        %v671 = vpop.f32.mrf.mxu0
        %v672 = vadd.f32 0.0, %v671
        %v673 = vpop.f32.mrf.mxu0
        %674 = vmatprep.mubr.bf16.mxu0 0
        %675 = vmatmul.mubr.bf16.gmra.mxu0 %v330
        %v676 = vpop.f32.mrf.mxu0
        %v677 = vadd.f32 0.0, %v676
        %v678 = vpop.f32.mrf.mxu0
        %v679 = vpop.f32.mrf.mxu0
        %v680 = vadd.f32 0.0, %v679
        %v681 = vpop.f32.mrf.mxu0
        %682 = vmatprep.mubr.bf16.mxu0 0
        %683 = vmatmul.mubr.bf16.gmra.mxu0 %v333
        %v684 = vpop.f32.mrf.mxu0
        %v685 = vadd.f32 0.0, %v684
        %v686 = vpop.f32.mrf.mxu0
        %v687 = vpop.f32.mrf.mxu0
        %v688 = vadd.f32 0.0, %v687
        %v689 = vpop.f32.mrf.mxu0
        %690 = vmatprep.mubr.bf16.mxu0 0
        %691 = vmatmul.mubr.bf16.gmra.mxu0 %v336
        %v692 = vpop.f32.mrf.mxu0
        %v693 = vadd.f32 0.0, %v692
        %v694 = vpop.f32.mrf.mxu0
        %v695 = vpop.f32.mrf.mxu0
        %v696 = vadd.f32 0.0, %v695
        %v697 = vpop.f32.mrf.mxu0
        %698 = vdwg.mxu0
        %699 = vst.msk [vmem:[%s232] sm:$0xff] %vm499, %v573
        %700 = vst.msk [vmem:[%s232 + $0x8] sm:$0xff] %vm499, %v576
        %701 = vst.msk [vmem:[%s232 + $0x10] sm:$0xff] %vm499, %v581
        %702 = vst.msk [vmem:[%s232 + $0x18] sm:$0xff] %vm499, %v584
        %703 = vst.msk [vmem:[%s232 + $0x20] sm:$0xff] %vm499, %v589
        %704 = vst.msk [vmem:[%s232 + $0x28] sm:$0xff] %vm499, %v592
        %705 = vst.msk [vmem:[%s232 + $0x30] sm:$0xff] %vm499, %v597
        %706 = vst.msk [vmem:[%s232 + $0x38] sm:$0xff] %vm499, %v600
        %707 = vst.msk [vmem:[%s232 + $0x40] sm:$0xff] %vm499, %v605
        %708 = vst.msk [vmem:[%s232 + $0x48] sm:$0xff] %vm499, %v608
        %709 = vst.msk [vmem:[%s232 + $0x50] sm:$0xff] %vm499, %v613
        %710 = vst.msk [vmem:[%s232 + $0x58] sm:$0xff] %vm499, %v616
        %711 = vst.msk [vmem:[%s232 + $0x60] sm:$0xff] %vm499, %v621
        %712 = vst.msk [vmem:[%s232 + $0x68] sm:$0xff] %vm499, %v624
        %713 = vst.msk [vmem:[%s232 + $0x70] sm:$0xff] %vm499, %v629
        %714 = vst.msk [vmem:[%s232 + $0x78] sm:$0xff] %vm499, %v632
        %715 = vst.msk [vmem:[%s232 + $0x80] sm:$0xff] %vm499, %v637
        %716 = vst.msk [vmem:[%s232 + $0x88] sm:$0xff] %vm499, %v640
        %717 = vst.msk [vmem:[%s232 + $0x90] sm:$0xff] %vm499, %v645
        %718 = vst.msk [vmem:[%s232 + $0x98] sm:$0xff] %vm499, %v648
        %719 = vst.msk [vmem:[%s232 + $0xa0] sm:$0xff] %vm499, %v653
        %720 = vst.msk [vmem:[%s232 + $0xa8] sm:$0xff] %vm499, %v656
        %721 = vst.msk [vmem:[%s232 + $0xb0] sm:$0xff] %vm499, %v661
        %722 = vst.msk [vmem:[%s232 + $0xb8] sm:$0xff] %vm499, %v664
        %723 = vst.msk [vmem:[%s232 + $0xc0] sm:$0xff] %vm499, %v669
        %724 = vst.msk [vmem:[%s232 + $0xc8] sm:$0xff] %vm499, %v672
        %725 = vst.msk [vmem:[%s232 + $0xd0] sm:$0xff] %vm499, %v677
        %726 = vst.msk [vmem:[%s232 + $0xd8] sm:$0xff] %vm499, %v680
        %727 = vst.msk [vmem:[%s232 + $0xe0] sm:$0xff] %vm499, %v685
        %728 = vst.msk [vmem:[%s232 + $0xe8] sm:$0xff] %vm499, %v688
        %729 = vst.msk [vmem:[%s232 + $0xf0] sm:$0xff] %vm499, %v693
        %730 = vst.msk [vmem:[%s232 + $0xf8] sm:$0xff] %vm499, %v696
        %s731 = smul.u32 32, %s19
        %p732 = scmp.lt.s32.totalorder %s731, 63
        %s733 = scalar_select %p732, %s731, 63
        %s734 = smul.addr %s733, 8
        %s735 = scalar_lea.vmem %s3, %s734
        %s736 = smul.u32 32, %s19
        %p737 = scmp.lt.s32.totalorder %s736, 63
        %s738 = scalar_select %p737, %s736, 63
        %s739 = smul.addr %s738, 8
        %s740 = scalar_lea.vmem %s4, %s739
        // Predicated region
        $region37: #{ss2d_forward.5} parent=31 // pred_check
          %p741 = pneg %p105
        $region38: #{ss2d_forward.5} parent=31 // pred_check_branch
          %743 = sbr.rel (%p741) target = $region40
        $region39: #{ss2d_forward.5} parent=31 // pred_region
          %s744 = smul.u32 32, %s19
        $region40: #{ss2d_forward.5} parent=31 // pred_fallthru
          _
        // Predicated region
        $region41: #{ss2d_forward.5} parent=31 // pred_check
          %p745 = pneg %p131
        $region42: #{ss2d_forward.5} parent=31 // pred_check_branch
          %747 = sbr.rel (%p745) target = $region44
        $region43: #{ss2d_forward.5} parent=31 // pred_region
          %s748 = smul.u32 32, %s19
        $region44: #{ss2d_forward.5} parent=31 // pred_fallthru
          _
      $region32: #{ss2d_forward.5} parent=5 // pred_fallthru
        _
      %p749 = scmp.le.s32.totalorder 2, %s14
      // Predicated region
      $region45: #{ss2d_forward.5} parent=5 // pred_check
        %p750 = pneg %p749
      $region46: #{ss2d_forward.5} parent=5 // pred_check_branch
        %752 = sbr.rel (%p750) target = $region48
      $region47: #{ss2d_forward.5} parent=5 // pred_region
        %s753 = ssub.s32 %s14, 2
        // Predicated region
        $region49: #{ss2d_forward.5} parent=47 // pred_check
          %p754 = pneg %p111
        $region50: #{ss2d_forward.5} parent=47 // pred_check_branch
          %756 = sbr.rel (%p754) target = $region52
        $region51: #{ss2d_forward.5} parent=47 // pred_region
          %s757 = smul.u32 32, %s20
          %p758 = scmp.lt.s32.totalorder %s757, 63
          %s759 = scalar_select %p758, %s757, 63
          %s760 = smul.addr %s759, 8
          %s761 = scalar_lea.vmem %s3, %s760
        $region52: #{ss2d_forward.5} parent=47 // pred_fallthru
          _
        // Predicated region
        $region53: #{ss2d_forward.5} parent=47 // pred_check
          %p762 = pneg %p137
        $region54: #{ss2d_forward.5} parent=47 // pred_check_branch
          %764 = sbr.rel (%p762) target = $region56
        $region55: #{ss2d_forward.5} parent=47 // pred_region
          %s765 = smul.u32 32, %s20
          %p766 = scmp.lt.s32.totalorder %s765, 63
          %s767 = scalar_select %p766, %s765, 63
          %s768 = smul.addr %s767, 8
          %s769 = scalar_lea.vmem %s4, %s768
        $region56: #{ss2d_forward.5} parent=47 // pred_fallthru
          _
      $region48: #{ss2d_forward.5} parent=5 // pred_fallthru
        _
    $region6: #{ss2d_forward.5} parent=1 // loop_footer
      %s18 = sadd.s32 1, %s14
    $region7: #{ss2d_forward.5} parent=1 // loop_footer_branch
      %13 = sbr.rel target = $region3
    $region8: #{ss2d_forward.5} parent=1 // loop_exit
      _
    %770 = vsyncpa [#allocation3], 1
    %s771 = scalar_lea.sflag [#allocation3], 1
    %772 = vsyncpa %s771, 1

// kernel: ss2d_forward.6
$region0: #{ss2d_forward.6}
  #allocation0 [shape = 'u32[]', space=smem, size = 0x4, offset = 0x4, fixed_abs, tag = 'smem constant byte address 0x4 - core index']
  #allocation1 [shape = 'u32[144,128]{1,0:T(1,128)}', space=vmem, size = 0x12000, scoped, tag = 'internal scratch']
  %s0 = inlined_call_operand.vmem [shape: f32[2,18,18,64], index: 0, kind: input, shape index: {}]
  %s1 = inlined_call_operand.vmem [shape: f32[3,3,64], index: 1, kind: input, shape index: {}]
  %s2 = inlined_call_operand.vmem [shape: f32[1,64], index: 2, kind: input, shape index: {}]
  %s3 = inlined_call_operand.vmem [shape: f32[2,16,16,64], index: 3, kind: output, shape index: {}]
  %s4 = sld [smem:[#allocation0]]
  $region45: #{ss2d_forward.6} parent=0
    _
  %s6 = ssub.s32 1, %s4
  %s7 = scalar_select 0, %s6, %s4
  loop: start=0, step=1, limit=4
  $region2: #{ss2d_forward.6} parent=0 // loop_pre_header
    _
  $region3: #{ss2d_forward.6} parent=0 // loop_header
    %s9 = sphi 0, %s13
    %p10 = scmp.ge.s32.totalorder %s9, 4
    %s19 = sphi 0, %s21
    %s22 = sphi 0, %s19
    %s23 = sphi 0, %s22
    %s39 = sphi 0, %s23
    %s43 = sphi 0, %s43
    %s45 = sphi 0, %s43
    %s46 = sphi 0, %s45
    %s60 = sphi 0, %s46
    %s64 = sphi 0, %s64
    %s66 = sphi 0, %s64
    %s67 = sphi 0, %s66
    %s81 = sphi 0, %s67
    %s87 = sphi 0, %s89
    %s90 = sphi 0, %s87
    %s91 = sphi 0, %s90
    %s107 = sphi 0, %s91
  $region4: #{ss2d_forward.6} parent=0 // loop_header_branch
    %12 = sbr.rel (%p10) target = $region8
  $region5: #{ss2d_forward.6} parent=0 // loop_body
    %s14 = ssub.s32 %s9, 1
    %s15 = ssub.s32 %s9, 2
    %s16 = sadd.s32 %s9, 1
    %s17 = ssub.s32 %s9, %s16
    %p18 = scmp.eq.s32.totalorder %s17, 0
    %s20 = sadd.s32 %s19, 1
    %s21 = scalar_select %p18, %s19, %s20
    %p24 = pneg %p18
    %p25 = scmp.eq.s32.totalorder %s9, 1
    %p26 = por %p24, %p25
    %p27 = scmp.ne.s32.totalorder %s19, %s22
    %p28 = scmp.eq.s32.totalorder %s9, 0
    %p29 = por %p27, %p28
    %p30 = scmp.ne.s32.totalorder %s19, %s22
    %p31 = scmp.eq.s32.totalorder %s14, 1
    %p32 = por %p30, %p31
    %p33 = scmp.ne.s32.totalorder %s22, %s23
    %p34 = scmp.eq.s32.totalorder %s14, 0
    %p35 = por %p33, %p34
    %p36 = scmp.ne.s32.totalorder %s22, %s23
    %p37 = scmp.eq.s32.totalorder %s15, 1
    %p38 = por %p36, %p37
    %p40 = scmp.ne.s32.totalorder %s23, %s39
    %p41 = scmp.eq.s32.totalorder %s15, 0
    %p42 = por %p40, %p41
    %s44 = sadd.s32 %s43, 1
    %p47 = scmp.eq.s32.totalorder %s9, 1
    %p48 = scmp.ne.s32.totalorder %s43, %s45
    %p49 = scmp.eq.s32.totalorder %s9, 0
    %p50 = por %p48, %p49
    %p51 = scmp.ne.s32.totalorder %s43, %s45
    %p52 = scmp.eq.s32.totalorder %s14, 1
    %p53 = por %p51, %p52
    %p54 = scmp.ne.s32.totalorder %s45, %s46
    %p55 = scmp.eq.s32.totalorder %s14, 0
    %p56 = por %p54, %p55
    %p57 = scmp.ne.s32.totalorder %s45, %s46
    %p58 = scmp.eq.s32.totalorder %s15, 1
    %p59 = por %p57, %p58
    %p61 = scmp.ne.s32.totalorder %s46, %s60
    %p62 = scmp.eq.s32.totalorder %s15, 0
    %p63 = por %p61, %p62
    %s65 = sadd.s32 %s64, 1
    %p68 = scmp.eq.s32.totalorder %s9, 1
    %p69 = scmp.ne.s32.totalorder %s64, %s66
    %p70 = scmp.eq.s32.totalorder %s9, 0
    %p71 = por %p69, %p70
    %p72 = scmp.ne.s32.totalorder %s64, %s66
    %p73 = scmp.eq.s32.totalorder %s14, 1
    %p74 = por %p72, %p73
    %p75 = scmp.ne.s32.totalorder %s66, %s67
    %p76 = scmp.eq.s32.totalorder %s14, 0
    %p77 = por %p75, %p76
    %p78 = scmp.ne.s32.totalorder %s66, %s67
    %p79 = scmp.eq.s32.totalorder %s15, 1
    %p80 = por %p78, %p79
    %p82 = scmp.ne.s32.totalorder %s67, %s81
    %p83 = scmp.eq.s32.totalorder %s15, 0
    %p84 = por %p82, %p83
    %s85 = ssub.s32 %s9, %s16
    %p86 = scmp.eq.s32.totalorder %s85, 0
    %s88 = sadd.s32 %s87, 1
    %s89 = scalar_select %p86, %s87, %s88
    %p92 = pneg %p86
    %p93 = scmp.eq.s32.totalorder %s9, 1
    %p94 = por %p92, %p93
    %p95 = scmp.ne.s32.totalorder %s87, %s90
    %p96 = scmp.eq.s32.totalorder %s9, 0
    %p97 = por %p95, %p96
    %p98 = scmp.ne.s32.totalorder %s87, %s90
    %p99 = scmp.eq.s32.totalorder %s14, 1
    %p100 = por %p98, %p99
    %p101 = scmp.ne.s32.totalorder %s90, %s91
    %p102 = scmp.eq.s32.totalorder %s14, 0
    %p103 = por %p101, %p102
    %p104 = scmp.ne.s32.totalorder %s90, %s91
    %p105 = scmp.eq.s32.totalorder %s15, 1
    %p106 = por %p104, %p105
    %p108 = scmp.ne.s32.totalorder %s91, %s107
    %p109 = scmp.eq.s32.totalorder %s15, 0
    %p110 = por %p108, %p109
    %p111 = scmp.le.s32.totalorder 1, %s9
    %p112 = scmp.lt.s32.totalorder %s9, 3
    %p113 = pnand %p111, %p112
    %p114 = pneg %p113
    // Predicated region
    $region9: #{ss2d_forward.6} parent=5 // pred_check
      _
    $region10: #{ss2d_forward.6} parent=5 // pred_check_branch
      %116 = sbr.rel (%p113) target = $region12
    $region11: #{ss2d_forward.6} parent=5 // pred_region
      %s117 = ssub.s32 %s9, 1
      // Predicated region
      $region13: #{ss2d_forward.6} parent=11 // pred_check
        %p118 = pneg %p56
      $region14: #{ss2d_forward.6} parent=11 // pred_check_branch
        %120 = sbr.rel (%p118) target = $region16
      $region15: #{ss2d_forward.6} parent=11 // pred_region
        _
      $region16: #{ss2d_forward.6} parent=11 // pred_fallthru
        _
      // Predicated region
      $region17: #{ss2d_forward.6} parent=11 // pred_check
        %p121 = pneg %p77
      $region18: #{ss2d_forward.6} parent=11 // pred_check_branch
        %123 = sbr.rel (%p121) target = $region20
      $region19: #{ss2d_forward.6} parent=11 // pred_region
        _
      $region20: #{ss2d_forward.6} parent=11 // pred_fallthru
        _
    $region12: #{ss2d_forward.6} parent=5 // pred_fallthru
      _
    %p124 = scmp.lt.s32.totalorder %s9, 2
    // Predicated region
    $region21: #{ss2d_forward.6} parent=5 // pred_check
      %p125 = pneg %p124
    $region22: #{ss2d_forward.6} parent=5 // pred_check_branch
      %127 = sbr.rel (%p125) target = $region24
    $region23: #{ss2d_forward.6} parent=5 // pred_region
      // Predicated region
      $region25: #{ss2d_forward.6} parent=23 // pred_check
        %p128 = pneg %p29
      $region26: #{ss2d_forward.6} parent=23 // pred_check_branch
        %130 = sbr.rel (%p128) target = $region28
      $region27: #{ss2d_forward.6} parent=23 // pred_region
        %p131 = scmp.lt.s32.totalorder %s9, 1
        %s132 = scalar_select %p131, %s9, 1
        %s133 = smul.addr %s132, 54
        %s134 = smul.addr %s133, 8
        %s135 = scalar_lea.vmem %s0, %s134
      $region28: #{ss2d_forward.6} parent=23 // pred_fallthru
        _
    $region24: #{ss2d_forward.6} parent=5 // pred_fallthru
      _
    %p136 = scmp.le.s32.totalorder 1, %s9
    %p137 = scmp.lt.s32.totalorder %s9, 3
    %p138 = pnand %p136, %p137
    %p139 = pneg %p138
    // Predicated region
    $region29: #{ss2d_forward.6} parent=5 // pred_check
      _
    $region30: #{ss2d_forward.6} parent=5 // pred_check_branch
      %141 = sbr.rel (%p138) target = $region32
    $region31: #{ss2d_forward.6} parent=5 // pred_region
      %s142 = ssub.s32 %s9, 1
      %p143 = scmp.lt.s32.totalorder %s14, 1
      %s144 = scalar_select %p143, %s14, 1
      %s145 = smul.addr %s144, 54
      %s146 = smul.addr %s145, 8
      %s147 = scalar_lea.vmem %s0, %s146
      %p148 = pneg %p35
      %p149 = pneg %p32
      %p150 = pneg %p56
      %p151 = pneg %p53
      %p152 = pneg %p77
      %p153 = pneg %p74
      %p154 = pneg %p103
      %p155 = pneg %p100
      %p156 = scmp.lt.s32.totalorder %s14, 1
      %s157 = scalar_select %p156, %s14, 1
      %s158 = smul.addr %s157, 32
      %s159 = smul.addr %s158, 8
      %s160 = scalar_lea.vmem %s3, %s159
      %p161 = scmp.lt.s32.totalorder %s14, 1
      %s162 = scalar_select %p161, %s14, 1
      %s163 = smul.addr %s162, 54
      %s164 = smul.addr %s163, 8
      %s165 = scalar_lea.vmem %s0, %s164
      %p166 = scmp.lt.s32.totalorder %s14, 1
      %s167 = scalar_select %p166, %s14, 1
      %s168 = smul.addr %s167, 32
      %s169 = smul.addr %s168, 8
      %s170 = scalar_lea.vmem %s3, %s169
      %v171 = vld [vmem:[%s165] sm:$0xff]
      %v172 = vld [vmem:[%s165 + $0x8] sm:$0xff]
      %v173 = vld [vmem:[%s165 + $0x18] sm:$0xff]
      %v174 = vld [vmem:[%s165 + $0x20] sm:$0xff]
      %v175 = vld [vmem:[%s165 + $0x30] sm:$0xff]
      %v176 = vld [vmem:[%s165 + $0x38] sm:$0xff]
      %v177 = vld [vmem:[%s165 + $0x48] sm:$0xff]
      %v178 = vld [vmem:[%s165 + $0x50] sm:$0xff]
      %v179 = vld [vmem:[%s165 + $0x60] sm:$0xff]
      %v180 = vld [vmem:[%s165 + $0x68] sm:$0xff]
      %v181 = vld [vmem:[%s165 + $0x78] sm:$0xff]
      %v182 = vld [vmem:[%s165 + $0x80] sm:$0xff]
      %v183 = vld [vmem:[%s165 + $0x90] sm:$0xff]
      %v184 = vld [vmem:[%s165 + $0x98] sm:$0xff]
      %v185 = vld [vmem:[%s165 + $0xa8] sm:$0xff]
      %v186 = vld [vmem:[%s165 + $0xb0] sm:$0xff]
      %v187 = vld [vmem:[%s165 + $0xc0] sm:$0xff]
      %v188 = vld [vmem:[%s165 + $0xc8] sm:$0xff]
      %v189 = vld [vmem:[%s165 + $0xd8] sm:$0xff]
      %v190 = vld [vmem:[%s165 + $0xe0] sm:$0xff]
      %v191 = vld [vmem:[%s165 + $0xf0] sm:$0xff]
      %v192 = vld [vmem:[%s165 + $0xf8] sm:$0xff]
      %v193 = vld [vmem:[%s165 + $0x108] sm:$0xff]
      %v194 = vld [vmem:[%s165 + $0x110] sm:$0xff]
      %v195 = vld [vmem:[%s165 + $0x120] sm:$0xff]
      %v196 = vld [vmem:[%s165 + $0x128] sm:$0xff]
      %v197 = vld [vmem:[%s165 + $0x138] sm:$0xff]
      %v198 = vld [vmem:[%s165 + $0x140] sm:$0xff]
      %v199 = vld [vmem:[%s165 + $0x150] sm:$0xff]
      %v200 = vld [vmem:[%s165 + $0x158] sm:$0xff]
      %v201 = vld [vmem:[%s165 + $0x168] sm:$0xff]
      %v202 = vld [vmem:[%s165 + $0x170] sm:$0xff]
      %v203 = vld [vmem:[%s1] sm:$0x1]
      %v204 = vlaneseq
      %v205 = vshrl.u32 %v204, 7
      %v206 = vsub.s32 0, %v205
      %v207 = vrot.slane %v203, %v206
      %v208 = vmul.f32 %v171, %v207
      %v209 = vmul.f32 %v172, %v207
      %v210 = vmul.f32 %v173, %v207
      %v211 = vmul.f32 %v174, %v207
      %v212 = vmul.f32 %v175, %v207
      %v213 = vmul.f32 %v176, %v207
      %v214 = vmul.f32 %v177, %v207
      %v215 = vmul.f32 %v178, %v207
      %v216 = vmul.f32 %v179, %v207
      %v217 = vmul.f32 %v180, %v207
      %v218 = vmul.f32 %v181, %v207
      %v219 = vmul.f32 %v182, %v207
      %v220 = vmul.f32 %v183, %v207
      %v221 = vmul.f32 %v184, %v207
      %v222 = vmul.f32 %v185, %v207
      %v223 = vmul.f32 %v186, %v207
      %v224 = vmul.f32 %v187, %v207
      %v225 = vmul.f32 %v188, %v207
      %v226 = vmul.f32 %v189, %v207
      %v227 = vmul.f32 %v190, %v207
      %v228 = vmul.f32 %v191, %v207
      %v229 = vmul.f32 %v192, %v207
      %v230 = vmul.f32 %v193, %v207
      %v231 = vmul.f32 %v194, %v207
      %v232 = vmul.f32 %v195, %v207
      %v233 = vmul.f32 %v196, %v207
      %v234 = vmul.f32 %v197, %v207
      %v235 = vmul.f32 %v198, %v207
      %v236 = vmul.f32 %v199, %v207
      %v237 = vmul.f32 %v200, %v207
      %v238 = vmul.f32 %v201, %v207
      %v239 = vmul.f32 %v202, %v207
      %v240 = vadd.f32 %v208, 0.0
      %v241 = vadd.f32 %v209, 0.0
      %v242 = vadd.f32 %v210, 0.0
      %v243 = vadd.f32 %v211, 0.0
      %v244 = vadd.f32 %v212, 0.0
      %v245 = vadd.f32 %v213, 0.0
      %v246 = vadd.f32 %v214, 0.0
      %v247 = vadd.f32 %v215, 0.0
      %v248 = vadd.f32 %v216, 0.0
      %v249 = vadd.f32 %v217, 0.0
      %v250 = vadd.f32 %v218, 0.0
      %v251 = vadd.f32 %v219, 0.0
      %v252 = vadd.f32 %v220, 0.0
      %v253 = vadd.f32 %v221, 0.0
      %v254 = vadd.f32 %v222, 0.0
      %v255 = vadd.f32 %v223, 0.0
      %v256 = vadd.f32 %v224, 0.0
      %v257 = vadd.f32 %v225, 0.0
      %v258 = vadd.f32 %v226, 0.0
      %v259 = vadd.f32 %v227, 0.0
      %v260 = vadd.f32 %v228, 0.0
      %v261 = vadd.f32 %v229, 0.0
      %v262 = vadd.f32 %v230, 0.0
      %v263 = vadd.f32 %v231, 0.0
      %v264 = vadd.f32 %v232, 0.0
      %v265 = vadd.f32 %v233, 0.0
      %v266 = vadd.f32 %v234, 0.0
      %v267 = vadd.f32 %v235, 0.0
      %v268 = vadd.f32 %v236, 0.0
      %v269 = vadd.f32 %v237, 0.0
      %v270 = vadd.f32 %v238, 0.0
      %v271 = vadd.f32 %v239, 0.0
      %v272 = vld [vmem:[%s165 + $0x1] sm:$0xff]
      %v273 = vld [vmem:[%s165 + $0x9] sm:$0xff]
      %v274 = vld [vmem:[%s165 + $0x19] sm:$0xff]
      %v275 = vld [vmem:[%s165 + $0x21] sm:$0xff]
      %v276 = vld [vmem:[%s165 + $0x31] sm:$0xff]
      %v277 = vld [vmem:[%s165 + $0x39] sm:$0xff]
      %v278 = vld [vmem:[%s165 + $0x49] sm:$0xff]
      %v279 = vld [vmem:[%s165 + $0x51] sm:$0xff]
      %v280 = vld [vmem:[%s165 + $0x61] sm:$0xff]
      %v281 = vld [vmem:[%s165 + $0x69] sm:$0xff]
      %v282 = vld [vmem:[%s165 + $0x79] sm:$0xff]
      %v283 = vld [vmem:[%s165 + $0x81] sm:$0xff]
      %v284 = vld [vmem:[%s165 + $0x91] sm:$0xff]
      %v285 = vld [vmem:[%s165 + $0x99] sm:$0xff]
      %v286 = vld [vmem:[%s165 + $0xa9] sm:$0xff]
      %v287 = vld [vmem:[%s165 + $0xb1] sm:$0xff]
      %v288 = vld [vmem:[%s165 + $0xc1] sm:$0xff]
      %v289 = vld [vmem:[%s165 + $0xc9] sm:$0xff]
      %v290 = vld [vmem:[%s165 + $0xd9] sm:$0xff]
      %v291 = vld [vmem:[%s165 + $0xe1] sm:$0xff]
      %v292 = vld [vmem:[%s165 + $0xf1] sm:$0xff]
      %v293 = vld [vmem:[%s165 + $0xf9] sm:$0xff]
      %v294 = vld [vmem:[%s165 + $0x109] sm:$0xff]
      %v295 = vld [vmem:[%s165 + $0x111] sm:$0xff]
      %v296 = vld [vmem:[%s165 + $0x121] sm:$0xff]
      %v297 = vld [vmem:[%s165 + $0x129] sm:$0xff]
      %v298 = vld [vmem:[%s165 + $0x139] sm:$0xff]
      %v299 = vld [vmem:[%s165 + $0x141] sm:$0xff]
      %v300 = vld [vmem:[%s165 + $0x151] sm:$0xff]
      %v301 = vld [vmem:[%s165 + $0x159] sm:$0xff]
      %v302 = vld [vmem:[%s165 + $0x169] sm:$0xff]
      %v303 = vld [vmem:[%s165 + $0x171] sm:$0xff]
      %v304 = vld [vmem:[%s1 + $0x1] sm:$0x1]
      %v305 = vlaneseq
      %v306 = vshrl.u32 %v305, 7
      %v307 = vsub.s32 0, %v306
      %v308 = vrot.slane %v304, %v307
      %v309 = vmul.f32 %v272, %v308
      %v310 = vmul.f32 %v273, %v308
      %v311 = vmul.f32 %v274, %v308
      %v312 = vmul.f32 %v275, %v308
      %v313 = vmul.f32 %v276, %v308
      %v314 = vmul.f32 %v277, %v308
      %v315 = vmul.f32 %v278, %v308
      %v316 = vmul.f32 %v279, %v308
      %v317 = vmul.f32 %v280, %v308
      %v318 = vmul.f32 %v281, %v308
      %v319 = vmul.f32 %v282, %v308
      %v320 = vmul.f32 %v283, %v308
      %v321 = vmul.f32 %v284, %v308
      %v322 = vmul.f32 %v285, %v308
      %v323 = vmul.f32 %v286, %v308
      %v324 = vmul.f32 %v287, %v308
      %v325 = vmul.f32 %v288, %v308
      %v326 = vmul.f32 %v289, %v308
      %v327 = vmul.f32 %v290, %v308
      %v328 = vmul.f32 %v291, %v308
      %v329 = vmul.f32 %v292, %v308
      %v330 = vmul.f32 %v293, %v308
      %v331 = vmul.f32 %v294, %v308
      %v332 = vmul.f32 %v295, %v308
      %v333 = vmul.f32 %v296, %v308
      %v334 = vmul.f32 %v297, %v308
      %v335 = vmul.f32 %v298, %v308
      %v336 = vmul.f32 %v299, %v308
      %v337 = vmul.f32 %v300, %v308
      %v338 = vmul.f32 %v301, %v308
      %v339 = vmul.f32 %v302, %v308
      %v340 = vmul.f32 %v303, %v308
      %v341 = vadd.f32 %v240, %v309
      %v342 = vadd.f32 %v241, %v310
      %v343 = vadd.f32 %v242, %v311
      %v344 = vadd.f32 %v243, %v312
      %v345 = vadd.f32 %v244, %v313
      %v346 = vadd.f32 %v245, %v314
      %v347 = vadd.f32 %v246, %v315
      %v348 = vadd.f32 %v247, %v316
      %v349 = vadd.f32 %v248, %v317
      %v350 = vadd.f32 %v249, %v318
      %v351 = vadd.f32 %v250, %v319
      %v352 = vadd.f32 %v251, %v320
      %v353 = vadd.f32 %v252, %v321
      %v354 = vadd.f32 %v253, %v322
      %v355 = vadd.f32 %v254, %v323
      %v356 = vadd.f32 %v255, %v324
      %v357 = vadd.f32 %v256, %v325
      %v358 = vadd.f32 %v257, %v326
      %v359 = vadd.f32 %v258, %v327
      %v360 = vadd.f32 %v259, %v328
      %v361 = vadd.f32 %v260, %v329
      %v362 = vadd.f32 %v261, %v330
      %v363 = vadd.f32 %v262, %v331
      %v364 = vadd.f32 %v263, %v332
      %v365 = vadd.f32 %v264, %v333
      %v366 = vadd.f32 %v265, %v334
      %v367 = vadd.f32 %v266, %v335
      %v368 = vadd.f32 %v267, %v336
      %v369 = vadd.f32 %v268, %v337
      %v370 = vadd.f32 %v269, %v338
      %v371 = vadd.f32 %v270, %v339
      %v372 = vadd.f32 %v271, %v340
      %v373 = vld [vmem:[%s165 + $0x2] sm:$0xff]
      %v374 = vld [vmem:[%s165 + $0xa] sm:$0xff]
      %v375 = vld [vmem:[%s165 + $0x1a] sm:$0xff]
      %v376 = vld [vmem:[%s165 + $0x22] sm:$0xff]
      %v377 = vld [vmem:[%s165 + $0x32] sm:$0xff]
      %v378 = vld [vmem:[%s165 + $0x3a] sm:$0xff]
      %v379 = vld [vmem:[%s165 + $0x4a] sm:$0xff]
      %v380 = vld [vmem:[%s165 + $0x52] sm:$0xff]
      %v381 = vld [vmem:[%s165 + $0x62] sm:$0xff]
      %v382 = vld [vmem:[%s165 + $0x6a] sm:$0xff]
      %v383 = vld [vmem:[%s165 + $0x7a] sm:$0xff]
      %v384 = vld [vmem:[%s165 + $0x82] sm:$0xff]
      %v385 = vld [vmem:[%s165 + $0x92] sm:$0xff]
      %v386 = vld [vmem:[%s165 + $0x9a] sm:$0xff]
      %v387 = vld [vmem:[%s165 + $0xaa] sm:$0xff]
      %v388 = vld [vmem:[%s165 + $0xb2] sm:$0xff]
      %v389 = vld [vmem:[%s165 + $0xc2] sm:$0xff]
      %v390 = vld [vmem:[%s165 + $0xca] sm:$0xff]
      %v391 = vld [vmem:[%s165 + $0xda] sm:$0xff]
      %v392 = vld [vmem:[%s165 + $0xe2] sm:$0xff]
      %v393 = vld [vmem:[%s165 + $0xf2] sm:$0xff]
      %v394 = vld [vmem:[%s165 + $0xfa] sm:$0xff]
      %v395 = vld [vmem:[%s165 + $0x10a] sm:$0xff]
      %v396 = vld [vmem:[%s165 + $0x112] sm:$0xff]
      %v397 = vld [vmem:[%s165 + $0x122] sm:$0xff]
      %v398 = vld [vmem:[%s165 + $0x12a] sm:$0xff]
      %v399 = vld [vmem:[%s165 + $0x13a] sm:$0xff]
      %v400 = vld [vmem:[%s165 + $0x142] sm:$0xff]
      %v401 = vld [vmem:[%s165 + $0x152] sm:$0xff]
      %v402 = vld [vmem:[%s165 + $0x15a] sm:$0xff]
      %v403 = vld [vmem:[%s165 + $0x16a] sm:$0xff]
      %v404 = vld [vmem:[%s165 + $0x172] sm:$0xff]
      %v405 = vld [vmem:[%s1 + $0x2] sm:$0x1]
      %v406 = vlaneseq
      %v407 = vshrl.u32 %v406, 7
      %v408 = vsub.s32 0, %v407
      %v409 = vrot.slane %v405, %v408
      %v410 = vmul.f32 %v373, %v409
      %v411 = vmul.f32 %v374, %v409
      %v412 = vmul.f32 %v375, %v409
      %v413 = vmul.f32 %v376, %v409
      %v414 = vmul.f32 %v377, %v409
      %v415 = vmul.f32 %v378, %v409
      %v416 = vmul.f32 %v379, %v409
      %v417 = vmul.f32 %v380, %v409
      %v418 = vmul.f32 %v381, %v409
      %v419 = vmul.f32 %v382, %v409
      %v420 = vmul.f32 %v383, %v409
      %v421 = vmul.f32 %v384, %v409
      %v422 = vmul.f32 %v385, %v409
      %v423 = vmul.f32 %v386, %v409
      %v424 = vmul.f32 %v387, %v409
      %v425 = vmul.f32 %v388, %v409
      %v426 = vmul.f32 %v389, %v409
      %v427 = vmul.f32 %v390, %v409
      %v428 = vmul.f32 %v391, %v409
      %v429 = vmul.f32 %v392, %v409
      %v430 = vmul.f32 %v393, %v409
      %v431 = vmul.f32 %v394, %v409
      %v432 = vmul.f32 %v395, %v409
      %v433 = vmul.f32 %v396, %v409
      %v434 = vmul.f32 %v397, %v409
      %v435 = vmul.f32 %v398, %v409
      %v436 = vmul.f32 %v399, %v409
      %v437 = vmul.f32 %v400, %v409
      %v438 = vmul.f32 %v401, %v409
      %v439 = vmul.f32 %v402, %v409
      %v440 = vmul.f32 %v403, %v409
      %v441 = vmul.f32 %v404, %v409
      %v442 = vadd.f32 %v341, %v410
      %v443 = vadd.f32 %v342, %v411
      %v444 = vadd.f32 %v343, %v412
      %v445 = vadd.f32 %v344, %v413
      %v446 = vadd.f32 %v345, %v414
      %v447 = vadd.f32 %v346, %v415
      %v448 = vadd.f32 %v347, %v416
      %v449 = vadd.f32 %v348, %v417
      %v450 = vadd.f32 %v349, %v418
      %v451 = vadd.f32 %v350, %v419
      %v452 = vadd.f32 %v351, %v420
      %v453 = vadd.f32 %v352, %v421
      %v454 = vadd.f32 %v353, %v422
      %v455 = vadd.f32 %v354, %v423
      %v456 = vadd.f32 %v355, %v424
      %v457 = vadd.f32 %v356, %v425
      %v458 = vadd.f32 %v357, %v426
      %v459 = vadd.f32 %v358, %v427
      %v460 = vadd.f32 %v359, %v428
      %v461 = vadd.f32 %v360, %v429
      %v462 = vadd.f32 %v361, %v430
      %v463 = vadd.f32 %v362, %v431
      %v464 = vadd.f32 %v363, %v432
      %v465 = vadd.f32 %v364, %v433
      %v466 = vadd.f32 %v365, %v434
      %v467 = vadd.f32 %v366, %v435
      %v468 = vadd.f32 %v367, %v436
      %v469 = vadd.f32 %v368, %v437
      %v470 = vadd.f32 %v369, %v438
      %v471 = vadd.f32 %v370, %v439
      %v472 = vadd.f32 %v371, %v440
      %v473 = vadd.f32 %v372, %v441
      %s474 = scalar_lea.vmem %s165, 24
      %v475 = vld [vmem:[%s474] sm:$0xff]
      %v476 = vld [vmem:[%s474 + $0x8] sm:$0xff]
      %v477 = vld [vmem:[%s474 + $0x18] sm:$0xff]
      %v478 = vld [vmem:[%s474 + $0x20] sm:$0xff]
      %v479 = vld [vmem:[%s474 + $0x30] sm:$0xff]
      %v480 = vld [vmem:[%s474 + $0x38] sm:$0xff]
      %v481 = vld [vmem:[%s474 + $0x48] sm:$0xff]
      %v482 = vld [vmem:[%s474 + $0x50] sm:$0xff]
      %v483 = vld [vmem:[%s474 + $0x60] sm:$0xff]
      %v484 = vld [vmem:[%s474 + $0x68] sm:$0xff]
      %v485 = vld [vmem:[%s474 + $0x78] sm:$0xff]
      %v486 = vld [vmem:[%s474 + $0x80] sm:$0xff]
      %v487 = vld [vmem:[%s474 + $0x90] sm:$0xff]
      %v488 = vld [vmem:[%s474 + $0x98] sm:$0xff]
      %v489 = vld [vmem:[%s474 + $0xa8] sm:$0xff]
      %v490 = vld [vmem:[%s474 + $0xb0] sm:$0xff]
      %v491 = vld [vmem:[%s474 + $0xc0] sm:$0xff]
      %v492 = vld [vmem:[%s474 + $0xc8] sm:$0xff]
      %v493 = vld [vmem:[%s474 + $0xd8] sm:$0xff]
      %v494 = vld [vmem:[%s474 + $0xe0] sm:$0xff]
      %v495 = vld [vmem:[%s474 + $0xf0] sm:$0xff]
      %v496 = vld [vmem:[%s474 + $0xf8] sm:$0xff]
      %v497 = vld [vmem:[%s474 + $0x108] sm:$0xff]
      %v498 = vld [vmem:[%s474 + $0x110] sm:$0xff]
      %v499 = vld [vmem:[%s474 + $0x120] sm:$0xff]
      %v500 = vld [vmem:[%s474 + $0x128] sm:$0xff]
      %v501 = vld [vmem:[%s474 + $0x138] sm:$0xff]
      %v502 = vld [vmem:[%s474 + $0x140] sm:$0xff]
      %v503 = vld [vmem:[%s474 + $0x150] sm:$0xff]
      %v504 = vld [vmem:[%s474 + $0x158] sm:$0xff]
      %v505 = vld [vmem:[%s474 + $0x168] sm:$0xff]
      %v506 = vld [vmem:[%s474 + $0x170] sm:$0xff]
      %s507 = scalar_lea.vmem %s1, 4
      %v508 = vld [vmem:[%s507] sm:$0x1]
      %v509 = vlaneseq
      %v510 = vshrl.u32 %v509, 7
      %v511 = vsub.s32 0, %v510
      %v512 = vrot.slane %v508, %v511
      %v513 = vmul.f32 %v475, %v512
      %v514 = vmul.f32 %v476, %v512
      %v515 = vmul.f32 %v477, %v512
      %v516 = vmul.f32 %v478, %v512
      %v517 = vmul.f32 %v479, %v512
      %v518 = vmul.f32 %v480, %v512
      %v519 = vmul.f32 %v481, %v512
      %v520 = vmul.f32 %v482, %v512
      %v521 = vmul.f32 %v483, %v512
      %v522 = vmul.f32 %v484, %v512
      %v523 = vmul.f32 %v485, %v512
      %v524 = vmul.f32 %v486, %v512
      %v525 = vmul.f32 %v487, %v512
      %v526 = vmul.f32 %v488, %v512
      %v527 = vmul.f32 %v489, %v512
      %v528 = vmul.f32 %v490, %v512
      %v529 = vmul.f32 %v491, %v512
      %v530 = vmul.f32 %v492, %v512
      %v531 = vmul.f32 %v493, %v512
      %v532 = vmul.f32 %v494, %v512
      %v533 = vmul.f32 %v495, %v512
      %v534 = vmul.f32 %v496, %v512
      %v535 = vmul.f32 %v497, %v512
      %v536 = vmul.f32 %v498, %v512
      %v537 = vmul.f32 %v499, %v512
      %v538 = vmul.f32 %v500, %v512
      %v539 = vmul.f32 %v501, %v512
      %v540 = vmul.f32 %v502, %v512
      %v541 = vmul.f32 %v503, %v512
      %v542 = vmul.f32 %v504, %v512
      %v543 = vmul.f32 %v505, %v512
      %v544 = vmul.f32 %v506, %v512
      %v545 = vadd.f32 %v442, %v513
      %v546 = vadd.f32 %v443, %v514
      %v547 = vadd.f32 %v444, %v515
      %v548 = vadd.f32 %v445, %v516
      %v549 = vadd.f32 %v446, %v517
      %v550 = vadd.f32 %v447, %v518
      %v551 = vadd.f32 %v448, %v519
      %v552 = vadd.f32 %v449, %v520
      %v553 = vadd.f32 %v450, %v521
      %v554 = vadd.f32 %v451, %v522
      %v555 = vadd.f32 %v452, %v523
      %v556 = vadd.f32 %v453, %v524
      %v557 = vadd.f32 %v454, %v525
      %v558 = vadd.f32 %v455, %v526
      %v559 = vadd.f32 %v456, %v527
      %v560 = vadd.f32 %v457, %v528
      %v561 = vadd.f32 %v458, %v529
      %v562 = vadd.f32 %v459, %v530
      %v563 = vadd.f32 %v460, %v531
      %v564 = vadd.f32 %v461, %v532
      %v565 = vadd.f32 %v462, %v533
      %v566 = vadd.f32 %v463, %v534
      %v567 = vadd.f32 %v464, %v535
      %v568 = vadd.f32 %v465, %v536
      %v569 = vadd.f32 %v466, %v537
      %v570 = vadd.f32 %v467, %v538
      %v571 = vadd.f32 %v468, %v539
      %v572 = vadd.f32 %v469, %v540
      %v573 = vadd.f32 %v470, %v541
      %v574 = vadd.f32 %v471, %v542
      %v575 = vadd.f32 %v472, %v543
      %v576 = vadd.f32 %v473, %v544
      %v577 = vld [vmem:[%s474 + $0x1] sm:$0xff]
      %v578 = vld [vmem:[%s474 + $0x9] sm:$0xff]
      %v579 = vld [vmem:[%s474 + $0x19] sm:$0xff]
      %v580 = vld [vmem:[%s474 + $0x21] sm:$0xff]
      %v581 = vld [vmem:[%s474 + $0x31] sm:$0xff]
      %v582 = vld [vmem:[%s474 + $0x39] sm:$0xff]
      %v583 = vld [vmem:[%s474 + $0x49] sm:$0xff]
      %v584 = vld [vmem:[%s474 + $0x51] sm:$0xff]
      %v585 = vld [vmem:[%s474 + $0x61] sm:$0xff]
      %v586 = vld [vmem:[%s474 + $0x69] sm:$0xff]
      %v587 = vld [vmem:[%s474 + $0x79] sm:$0xff]
      %v588 = vld [vmem:[%s474 + $0x81] sm:$0xff]
      %v589 = vld [vmem:[%s474 + $0x91] sm:$0xff]
      %v590 = vld [vmem:[%s474 + $0x99] sm:$0xff]
      %v591 = vld [vmem:[%s474 + $0xa9] sm:$0xff]
      %v592 = vld [vmem:[%s474 + $0xb1] sm:$0xff]
      %v593 = vld [vmem:[%s474 + $0xc1] sm:$0xff]
      %v594 = vld [vmem:[%s474 + $0xc9] sm:$0xff]
      %v595 = vld [vmem:[%s474 + $0xd9] sm:$0xff]
      %v596 = vld [vmem:[%s474 + $0xe1] sm:$0xff]
      %v597 = vld [vmem:[%s474 + $0xf1] sm:$0xff]
      %v598 = vld [vmem:[%s474 + $0xf9] sm:$0xff]
      %v599 = vld [vmem:[%s474 + $0x109] sm:$0xff]
      %v600 = vld [vmem:[%s474 + $0x111] sm:$0xff]
      %v601 = vld [vmem:[%s474 + $0x121] sm:$0xff]
      %v602 = vld [vmem:[%s474 + $0x129] sm:$0xff]
      %v603 = vld [vmem:[%s474 + $0x139] sm:$0xff]
      %v604 = vld [vmem:[%s474 + $0x141] sm:$0xff]
      %v605 = vld [vmem:[%s474 + $0x151] sm:$0xff]
      %v606 = vld [vmem:[%s474 + $0x159] sm:$0xff]
      %v607 = vld [vmem:[%s474 + $0x169] sm:$0xff]
      %v608 = vld [vmem:[%s474 + $0x171] sm:$0xff]
      %v609 = vld [vmem:[%s507 + $0x1] sm:$0x1]
      %v610 = vlaneseq
      %v611 = vshrl.u32 %v610, 7
      %v612 = vsub.s32 0, %v611
      %v613 = vrot.slane %v609, %v612
      %v614 = vmul.f32 %v577, %v613
      %v615 = vmul.f32 %v578, %v613
      %v616 = vmul.f32 %v579, %v613
      %v617 = vmul.f32 %v580, %v613
      %v618 = vmul.f32 %v581, %v613
      %v619 = vmul.f32 %v582, %v613
      %v620 = vmul.f32 %v583, %v613
      %v621 = vmul.f32 %v584, %v613
      %v622 = vmul.f32 %v585, %v613
      %v623 = vmul.f32 %v586, %v613
      %v624 = vmul.f32 %v587, %v613
      %v625 = vmul.f32 %v588, %v613
      %v626 = vmul.f32 %v589, %v613
      %v627 = vmul.f32 %v590, %v613
      %v628 = vmul.f32 %v591, %v613
      %v629 = vmul.f32 %v592, %v613
      %v630 = vmul.f32 %v593, %v613
      %v631 = vmul.f32 %v594, %v613
      %v632 = vmul.f32 %v595, %v613
      %v633 = vmul.f32 %v596, %v613
      %v634 = vmul.f32 %v597, %v613
      %v635 = vmul.f32 %v598, %v613
      %v636 = vmul.f32 %v599, %v613
      %v637 = vmul.f32 %v600, %v613
      %v638 = vmul.f32 %v601, %v613
      %v639 = vmul.f32 %v602, %v613
      %v640 = vmul.f32 %v603, %v613
      %v641 = vmul.f32 %v604, %v613
      %v642 = vmul.f32 %v605, %v613
      %v643 = vmul.f32 %v606, %v613
      %v644 = vmul.f32 %v607, %v613
      %v645 = vmul.f32 %v608, %v613
      %v646 = vadd.f32 %v545, %v614
      %v647 = vadd.f32 %v546, %v615
      %v648 = vadd.f32 %v547, %v616
      %v649 = vadd.f32 %v548, %v617
      %v650 = vadd.f32 %v549, %v618
      %v651 = vadd.f32 %v550, %v619
      %v652 = vadd.f32 %v551, %v620
      %v653 = vadd.f32 %v552, %v621
      %v654 = vadd.f32 %v553, %v622
      %v655 = vadd.f32 %v554, %v623
      %v656 = vadd.f32 %v555, %v624
      %v657 = vadd.f32 %v556, %v625
      %v658 = vadd.f32 %v557, %v626
      %v659 = vadd.f32 %v558, %v627
      %v660 = vadd.f32 %v559, %v628
      %v661 = vadd.f32 %v560, %v629
      %v662 = vadd.f32 %v561, %v630
      %v663 = vadd.f32 %v562, %v631
      %v664 = vadd.f32 %v563, %v632
      %v665 = vadd.f32 %v564, %v633
      %v666 = vadd.f32 %v565, %v634
      %v667 = vadd.f32 %v566, %v635
      %v668 = vadd.f32 %v567, %v636
      %v669 = vadd.f32 %v568, %v637
      %v670 = vadd.f32 %v569, %v638
      %v671 = vadd.f32 %v570, %v639
      %v672 = vadd.f32 %v571, %v640
      %v673 = vadd.f32 %v572, %v641
      %v674 = vadd.f32 %v573, %v642
      %v675 = vadd.f32 %v574, %v643
      %v676 = vadd.f32 %v575, %v644
      %v677 = vadd.f32 %v576, %v645
      %v678 = vld [vmem:[%s474 + $0x2] sm:$0xff]
      %v679 = vld [vmem:[%s474 + $0xa] sm:$0xff]
      %v680 = vld [vmem:[%s474 + $0x1a] sm:$0xff]
      %v681 = vld [vmem:[%s474 + $0x22] sm:$0xff]
      %v682 = vld [vmem:[%s474 + $0x32] sm:$0xff]
      %v683 = vld [vmem:[%s474 + $0x3a] sm:$0xff]
      %v684 = vld [vmem:[%s474 + $0x4a] sm:$0xff]
      %v685 = vld [vmem:[%s474 + $0x52] sm:$0xff]
      %v686 = vld [vmem:[%s474 + $0x62] sm:$0xff]
      %v687 = vld [vmem:[%s474 + $0x6a] sm:$0xff]
      %v688 = vld [vmem:[%s474 + $0x7a] sm:$0xff]
      %v689 = vld [vmem:[%s474 + $0x82] sm:$0xff]
      %v690 = vld [vmem:[%s474 + $0x92] sm:$0xff]
      %v691 = vld [vmem:[%s474 + $0x9a] sm:$0xff]
      %v692 = vld [vmem:[%s474 + $0xaa] sm:$0xff]
      %v693 = vld [vmem:[%s474 + $0xb2] sm:$0xff]
      %v694 = vld [vmem:[%s474 + $0xc2] sm:$0xff]
      %v695 = vld [vmem:[%s474 + $0xca] sm:$0xff]
      %v696 = vld [vmem:[%s474 + $0xda] sm:$0xff]
      %v697 = vld [vmem:[%s474 + $0xe2] sm:$0xff]
      %v698 = vld [vmem:[%s474 + $0xf2] sm:$0xff]
      %v699 = vld [vmem:[%s474 + $0xfa] sm:$0xff]
      %v700 = vld [vmem:[%s474 + $0x10a] sm:$0xff]
      %v701 = vld [vmem:[%s474 + $0x112] sm:$0xff]
      %v702 = vld [vmem:[%s474 + $0x122] sm:$0xff]
      %v703 = vld [vmem:[%s474 + $0x12a] sm:$0xff]
      %v704 = vld [vmem:[%s474 + $0x13a] sm:$0xff]
      %v705 = vld [vmem:[%s474 + $0x142] sm:$0xff]
      %v706 = vld [vmem:[%s474 + $0x152] sm:$0xff]
      %v707 = vld [vmem:[%s474 + $0x15a] sm:$0xff]
      %v708 = vld [vmem:[%s474 + $0x16a] sm:$0xff]
      %v709 = vld [vmem:[%s474 + $0x172] sm:$0xff]
      %v710 = vld [vmem:[%s507 + $0x2] sm:$0x1]
      %v711 = vlaneseq
      %v712 = vshrl.u32 %v711, 7
      %v713 = vsub.s32 0, %v712
      %v714 = vrot.slane %v710, %v713
      %v715 = vmul.f32 %v678, %v714
      %v716 = vmul.f32 %v679, %v714
      %v717 = vmul.f32 %v680, %v714
      %v718 = vmul.f32 %v681, %v714
      %v719 = vmul.f32 %v682, %v714
      %v720 = vmul.f32 %v683, %v714
      %v721 = vmul.f32 %v684, %v714
      %v722 = vmul.f32 %v685, %v714
      %v723 = vmul.f32 %v686, %v714
      %v724 = vmul.f32 %v687, %v714
      %v725 = vmul.f32 %v688, %v714
      %v726 = vmul.f32 %v689, %v714
      %v727 = vmul.f32 %v690, %v714
      %v728 = vmul.f32 %v691, %v714
      %v729 = vmul.f32 %v692, %v714
      %v730 = vmul.f32 %v693, %v714
      %v731 = vmul.f32 %v694, %v714
      %v732 = vmul.f32 %v695, %v714
      %v733 = vmul.f32 %v696, %v714
      %v734 = vmul.f32 %v697, %v714
      %v735 = vmul.f32 %v698, %v714
      %v736 = vmul.f32 %v699, %v714
      %v737 = vmul.f32 %v700, %v714
      %v738 = vmul.f32 %v701, %v714
      %v739 = vmul.f32 %v702, %v714
      %v740 = vmul.f32 %v703, %v714
      %v741 = vmul.f32 %v704, %v714
      %v742 = vmul.f32 %v705, %v714
      %v743 = vmul.f32 %v706, %v714
      %v744 = vmul.f32 %v707, %v714
      %v745 = vmul.f32 %v708, %v714
      %v746 = vmul.f32 %v709, %v714
      %v747 = vadd.f32 %v646, %v715
      %v748 = vadd.f32 %v647, %v716
      %v749 = vadd.f32 %v648, %v717
      %v750 = vadd.f32 %v649, %v718
      %v751 = vadd.f32 %v650, %v719
      %v752 = vadd.f32 %v651, %v720
      %v753 = vadd.f32 %v652, %v721
      %v754 = vadd.f32 %v653, %v722
      %v755 = vadd.f32 %v654, %v723
      %v756 = vadd.f32 %v655, %v724
      %v757 = vadd.f32 %v656, %v725
      %v758 = vadd.f32 %v657, %v726
      %v759 = vadd.f32 %v658, %v727
      %v760 = vadd.f32 %v659, %v728
      %v761 = vadd.f32 %v660, %v729
      %v762 = vadd.f32 %v661, %v730
      %v763 = vadd.f32 %v662, %v731
      %v764 = vadd.f32 %v663, %v732
      %v765 = vadd.f32 %v664, %v733
      %v766 = vadd.f32 %v665, %v734
      %v767 = vadd.f32 %v666, %v735
      %v768 = vadd.f32 %v667, %v736
      %v769 = vadd.f32 %v668, %v737
      %v770 = vadd.f32 %v669, %v738
      %v771 = vadd.f32 %v670, %v739
      %v772 = vadd.f32 %v671, %v740
      %v773 = vadd.f32 %v672, %v741
      %v774 = vadd.f32 %v673, %v742
      %v775 = vadd.f32 %v674, %v743
      %v776 = vadd.f32 %v675, %v744
      %v777 = vadd.f32 %v676, %v745
      %v778 = vadd.f32 %v677, %v746
      %s779 = scalar_lea.vmem %s165, 48
      %v780 = vld [vmem:[%s779] sm:$0xff]
      %v781 = vld [vmem:[%s779 + $0x8] sm:$0xff]
      %v782 = vld [vmem:[%s779 + $0x18] sm:$0xff]
      %v783 = vld [vmem:[%s779 + $0x20] sm:$0xff]
      %v784 = vld [vmem:[%s779 + $0x30] sm:$0xff]
      %v785 = vld [vmem:[%s779 + $0x38] sm:$0xff]
      %v786 = vld [vmem:[%s779 + $0x48] sm:$0xff]
      %v787 = vld [vmem:[%s779 + $0x50] sm:$0xff]
      %v788 = vld [vmem:[%s779 + $0x60] sm:$0xff]
      %v789 = vld [vmem:[%s779 + $0x68] sm:$0xff]
      %v790 = vld [vmem:[%s779 + $0x78] sm:$0xff]
      %v791 = vld [vmem:[%s779 + $0x80] sm:$0xff]
      %v792 = vld [vmem:[%s779 + $0x90] sm:$0xff]
      %v793 = vld [vmem:[%s779 + $0x98] sm:$0xff]
      %v794 = vld [vmem:[%s779 + $0xa8] sm:$0xff]
      %v795 = vld [vmem:[%s779 + $0xb0] sm:$0xff]
      %v796 = vld [vmem:[%s779 + $0xc0] sm:$0xff]
      %v797 = vld [vmem:[%s779 + $0xc8] sm:$0xff]
      %v798 = vld [vmem:[%s779 + $0xd8] sm:$0xff]
      %v799 = vld [vmem:[%s779 + $0xe0] sm:$0xff]
      %v800 = vld [vmem:[%s779 + $0xf0] sm:$0xff]
      %v801 = vld [vmem:[%s779 + $0xf8] sm:$0xff]
      %v802 = vld [vmem:[%s779 + $0x108] sm:$0xff]
      %v803 = vld [vmem:[%s779 + $0x110] sm:$0xff]
      %v804 = vld [vmem:[%s779 + $0x120] sm:$0xff]
      %v805 = vld [vmem:[%s779 + $0x128] sm:$0xff]
      %v806 = vld [vmem:[%s779 + $0x138] sm:$0xff]
      %v807 = vld [vmem:[%s779 + $0x140] sm:$0xff]
      %v808 = vld [vmem:[%s779 + $0x150] sm:$0xff]
      %v809 = vld [vmem:[%s779 + $0x158] sm:$0xff]
      %v810 = vld [vmem:[%s779 + $0x168] sm:$0xff]
      %v811 = vld [vmem:[%s779 + $0x170] sm:$0xff]
      %s812 = scalar_lea.vmem %s1, 8
      %v813 = vld [vmem:[%s812] sm:$0x1]
      %v814 = vlaneseq
      %v815 = vshrl.u32 %v814, 7
      %v816 = vsub.s32 0, %v815
      %v817 = vrot.slane %v813, %v816
      %v818 = vmul.f32 %v780, %v817
      %v819 = vmul.f32 %v781, %v817
      %v820 = vmul.f32 %v782, %v817
      %v821 = vmul.f32 %v783, %v817
      %v822 = vmul.f32 %v784, %v817
      %v823 = vmul.f32 %v785, %v817
      %v824 = vmul.f32 %v786, %v817
      %v825 = vmul.f32 %v787, %v817
      %v826 = vmul.f32 %v788, %v817
      %v827 = vmul.f32 %v789, %v817
      %v828 = vmul.f32 %v790, %v817
      %v829 = vmul.f32 %v791, %v817
      %v830 = vmul.f32 %v792, %v817
      %v831 = vmul.f32 %v793, %v817
      %v832 = vmul.f32 %v794, %v817
      %v833 = vmul.f32 %v795, %v817
      %v834 = vmul.f32 %v796, %v817
      %v835 = vmul.f32 %v797, %v817
      %v836 = vmul.f32 %v798, %v817
      %v837 = vmul.f32 %v799, %v817
      %v838 = vmul.f32 %v800, %v817
      %v839 = vmul.f32 %v801, %v817
      %v840 = vmul.f32 %v802, %v817
      %v841 = vmul.f32 %v803, %v817
      %v842 = vmul.f32 %v804, %v817
      %v843 = vmul.f32 %v805, %v817
      %v844 = vmul.f32 %v806, %v817
      %v845 = vmul.f32 %v807, %v817
      %v846 = vmul.f32 %v808, %v817
      %v847 = vmul.f32 %v809, %v817
      %v848 = vmul.f32 %v810, %v817
      %v849 = vmul.f32 %v811, %v817
      %v850 = vadd.f32 %v747, %v818
      %v851 = vadd.f32 %v748, %v819
      %v852 = vadd.f32 %v749, %v820
      %v853 = vadd.f32 %v750, %v821
      %v854 = vadd.f32 %v751, %v822
      %v855 = vadd.f32 %v752, %v823
      %v856 = vadd.f32 %v753, %v824
      %v857 = vadd.f32 %v754, %v825
      %v858 = vadd.f32 %v755, %v826
      %v859 = vadd.f32 %v756, %v827
      %v860 = vadd.f32 %v757, %v828
      %v861 = vadd.f32 %v758, %v829
      %v862 = vadd.f32 %v759, %v830
      %v863 = vadd.f32 %v760, %v831
      %v864 = vadd.f32 %v761, %v832
      %v865 = vadd.f32 %v762, %v833
      %v866 = vadd.f32 %v763, %v834
      %v867 = vadd.f32 %v764, %v835
      %v868 = vadd.f32 %v765, %v836
      %v869 = vadd.f32 %v766, %v837
      %v870 = vadd.f32 %v767, %v838
      %v871 = vadd.f32 %v768, %v839
      %v872 = vadd.f32 %v769, %v840
      %v873 = vadd.f32 %v770, %v841
      %v874 = vadd.f32 %v771, %v842
      %v875 = vadd.f32 %v772, %v843
      %v876 = vadd.f32 %v773, %v844
      %v877 = vadd.f32 %v774, %v845
      %v878 = vadd.f32 %v775, %v846
      %v879 = vadd.f32 %v776, %v847
      %v880 = vadd.f32 %v777, %v848
      %v881 = vadd.f32 %v778, %v849
      %v882 = vld [vmem:[%s779 + $0x1] sm:$0xff]
      %v883 = vld [vmem:[%s779 + $0x9] sm:$0xff]
      %v884 = vld [vmem:[%s779 + $0x19] sm:$0xff]
      %v885 = vld [vmem:[%s779 + $0x21] sm:$0xff]
      %v886 = vld [vmem:[%s779 + $0x31] sm:$0xff]
      %v887 = vld [vmem:[%s779 + $0x39] sm:$0xff]
      %v888 = vld [vmem:[%s779 + $0x49] sm:$0xff]
      %v889 = vld [vmem:[%s779 + $0x51] sm:$0xff]
      %v890 = vld [vmem:[%s779 + $0x61] sm:$0xff]
      %v891 = vld [vmem:[%s779 + $0x69] sm:$0xff]
      %v892 = vld [vmem:[%s779 + $0x79] sm:$0xff]
      %v893 = vld [vmem:[%s779 + $0x81] sm:$0xff]
      %v894 = vld [vmem:[%s779 + $0x91] sm:$0xff]
      %v895 = vld [vmem:[%s779 + $0x99] sm:$0xff]
      %v896 = vld [vmem:[%s779 + $0xa9] sm:$0xff]
      %v897 = vld [vmem:[%s779 + $0xb1] sm:$0xff]
      %v898 = vld [vmem:[%s779 + $0xc1] sm:$0xff]
      %v899 = vld [vmem:[%s779 + $0xc9] sm:$0xff]
      %v900 = vld [vmem:[%s779 + $0xd9] sm:$0xff]
      %v901 = vld [vmem:[%s779 + $0xe1] sm:$0xff]
      %v902 = vld [vmem:[%s779 + $0xf1] sm:$0xff]
      %v903 = vld [vmem:[%s779 + $0xf9] sm:$0xff]
      %v904 = vld [vmem:[%s779 + $0x109] sm:$0xff]
      %v905 = vld [vmem:[%s779 + $0x111] sm:$0xff]
      %v906 = vld [vmem:[%s779 + $0x121] sm:$0xff]
      %v907 = vld [vmem:[%s779 + $0x129] sm:$0xff]
      %v908 = vld [vmem:[%s779 + $0x139] sm:$0xff]
      %v909 = vld [vmem:[%s779 + $0x141] sm:$0xff]
      %v910 = vld [vmem:[%s779 + $0x151] sm:$0xff]
      %v911 = vld [vmem:[%s779 + $0x159] sm:$0xff]
      %v912 = vld [vmem:[%s779 + $0x169] sm:$0xff]
      %v913 = vld [vmem:[%s779 + $0x171] sm:$0xff]
      %v914 = vld [vmem:[%s812 + $0x1] sm:$0x1]
      %v915 = vlaneseq
      %v916 = vshrl.u32 %v915, 7
      %v917 = vsub.s32 0, %v916
      %v918 = vrot.slane %v914, %v917
      %v919 = vmul.f32 %v882, %v918
      %v920 = vmul.f32 %v883, %v918
      %v921 = vmul.f32 %v884, %v918
      %v922 = vmul.f32 %v885, %v918
      %v923 = vmul.f32 %v886, %v918
      %v924 = vmul.f32 %v887, %v918
      %v925 = vmul.f32 %v888, %v918
      %v926 = vmul.f32 %v889, %v918
      %v927 = vmul.f32 %v890, %v918
      %v928 = vmul.f32 %v891, %v918
      %v929 = vmul.f32 %v892, %v918
      %v930 = vmul.f32 %v893, %v918
      %v931 = vmul.f32 %v894, %v918
      %v932 = vmul.f32 %v895, %v918
      %v933 = vmul.f32 %v896, %v918
      %v934 = vmul.f32 %v897, %v918
      %v935 = vmul.f32 %v898, %v918
      %v936 = vmul.f32 %v899, %v918
      %v937 = vmul.f32 %v900, %v918
      %v938 = vmul.f32 %v901, %v918
      %v939 = vmul.f32 %v902, %v918
      %v940 = vmul.f32 %v903, %v918
      %v941 = vmul.f32 %v904, %v918
      %v942 = vmul.f32 %v905, %v918
      %v943 = vmul.f32 %v906, %v918
      %v944 = vmul.f32 %v907, %v918
      %v945 = vmul.f32 %v908, %v918
      %v946 = vmul.f32 %v909, %v918
      %v947 = vmul.f32 %v910, %v918
      %v948 = vmul.f32 %v911, %v918
      %v949 = vmul.f32 %v912, %v918
      %v950 = vmul.f32 %v913, %v918
      %v951 = vadd.f32 %v850, %v919
      %v952 = vadd.f32 %v851, %v920
      %v953 = vadd.f32 %v852, %v921
      %v954 = vadd.f32 %v853, %v922
      %v955 = vadd.f32 %v854, %v923
      %v956 = vadd.f32 %v855, %v924
      %v957 = vadd.f32 %v856, %v925
      %v958 = vadd.f32 %v857, %v926
      %v959 = vadd.f32 %v858, %v927
      %v960 = vadd.f32 %v859, %v928
      %v961 = vadd.f32 %v860, %v929
      %v962 = vadd.f32 %v861, %v930
      %v963 = vadd.f32 %v862, %v931
      %v964 = vadd.f32 %v863, %v932
      %v965 = vadd.f32 %v864, %v933
      %v966 = vadd.f32 %v865, %v934
      %v967 = vadd.f32 %v866, %v935
      %v968 = vadd.f32 %v867, %v936
      %v969 = vadd.f32 %v868, %v937
      %v970 = vadd.f32 %v869, %v938
      %v971 = vadd.f32 %v870, %v939
      %v972 = vadd.f32 %v871, %v940
      %v973 = vadd.f32 %v872, %v941
      %v974 = vadd.f32 %v873, %v942
      %v975 = vadd.f32 %v874, %v943
      %v976 = vadd.f32 %v875, %v944
      %v977 = vadd.f32 %v876, %v945
      %v978 = vadd.f32 %v877, %v946
      %v979 = vadd.f32 %v878, %v947
      %v980 = vadd.f32 %v879, %v948
      %v981 = vadd.f32 %v880, %v949
      %v982 = vadd.f32 %v881, %v950
      %v983 = vld [vmem:[%s779 + $0x2] sm:$0xff]
      %v984 = vld [vmem:[%s779 + $0xa] sm:$0xff]
      %v985 = vld [vmem:[%s779 + $0x1a] sm:$0xff]
      %v986 = vld [vmem:[%s779 + $0x22] sm:$0xff]
      %v987 = vld [vmem:[%s779 + $0x32] sm:$0xff]
      %v988 = vld [vmem:[%s779 + $0x3a] sm:$0xff]
      %v989 = vld [vmem:[%s779 + $0x4a] sm:$0xff]
      %v990 = vld [vmem:[%s779 + $0x52] sm:$0xff]
      %v991 = vld [vmem:[%s779 + $0x62] sm:$0xff]
      %v992 = vld [vmem:[%s779 + $0x6a] sm:$0xff]
      %v993 = vld [vmem:[%s779 + $0x7a] sm:$0xff]
      %v994 = vld [vmem:[%s779 + $0x82] sm:$0xff]
      %v995 = vld [vmem:[%s779 + $0x92] sm:$0xff]
      %v996 = vld [vmem:[%s779 + $0x9a] sm:$0xff]
      %v997 = vld [vmem:[%s779 + $0xaa] sm:$0xff]
      %v998 = vld [vmem:[%s779 + $0xb2] sm:$0xff]
      %v999 = vld [vmem:[%s779 + $0xc2] sm:$0xff]
      %v1000 = vld [vmem:[%s779 + $0xca] sm:$0xff]
      %v1001 = vld [vmem:[%s779 + $0xda] sm:$0xff]
      %v1002 = vld [vmem:[%s779 + $0xe2] sm:$0xff]
      %v1003 = vld [vmem:[%s779 + $0xf2] sm:$0xff]
      %v1004 = vld [vmem:[%s779 + $0xfa] sm:$0xff]
      %v1005 = vld [vmem:[%s779 + $0x10a] sm:$0xff]
      %v1006 = vld [vmem:[%s779 + $0x112] sm:$0xff]
      %v1007 = vld [vmem:[%s779 + $0x122] sm:$0xff]
      %v1008 = vld [vmem:[%s779 + $0x12a] sm:$0xff]
      %v1009 = vld [vmem:[%s779 + $0x13a] sm:$0xff]
      %v1010 = vld [vmem:[%s779 + $0x142] sm:$0xff]
      %v1011 = vld [vmem:[%s779 + $0x152] sm:$0xff]
      %v1012 = vld [vmem:[%s779 + $0x15a] sm:$0xff]
      %v1013 = vld [vmem:[%s779 + $0x16a] sm:$0xff]
      %v1014 = vld [vmem:[%s779 + $0x172] sm:$0xff]
      %v1015 = vld [vmem:[%s812 + $0x2] sm:$0x1]
      %v1016 = vlaneseq
      %v1017 = vshrl.u32 %v1016, 7
      %v1018 = vsub.s32 0, %v1017
      %v1019 = vrot.slane %v1015, %v1018
      %v1020 = vmul.f32 %v983, %v1019
      %v1021 = vmul.f32 %v984, %v1019
      %v1022 = vmul.f32 %v985, %v1019
      %v1023 = vmul.f32 %v986, %v1019
      %v1024 = vmul.f32 %v987, %v1019
      %v1025 = vmul.f32 %v988, %v1019
      %v1026 = vmul.f32 %v989, %v1019
      %v1027 = vmul.f32 %v990, %v1019
      %v1028 = vmul.f32 %v991, %v1019
      %v1029 = vmul.f32 %v992, %v1019
      %v1030 = vmul.f32 %v993, %v1019
      %v1031 = vmul.f32 %v994, %v1019
      %v1032 = vmul.f32 %v995, %v1019
      %v1033 = vmul.f32 %v996, %v1019
      %v1034 = vmul.f32 %v997, %v1019
      %v1035 = vmul.f32 %v998, %v1019
      %v1036 = vmul.f32 %v999, %v1019
      %v1037 = vmul.f32 %v1000, %v1019
      %v1038 = vmul.f32 %v1001, %v1019
      %v1039 = vmul.f32 %v1002, %v1019
      %v1040 = vmul.f32 %v1003, %v1019
      %v1041 = vmul.f32 %v1004, %v1019
      %v1042 = vmul.f32 %v1005, %v1019
      %v1043 = vmul.f32 %v1006, %v1019
      %v1044 = vmul.f32 %v1007, %v1019
      %v1045 = vmul.f32 %v1008, %v1019
      %v1046 = vmul.f32 %v1009, %v1019
      %v1047 = vmul.f32 %v1010, %v1019
      %v1048 = vmul.f32 %v1011, %v1019
      %v1049 = vmul.f32 %v1012, %v1019
      %v1050 = vmul.f32 %v1013, %v1019
      %v1051 = vmul.f32 %v1014, %v1019
      %v1052 = vadd.f32 %v951, %v1020
      %v1053 = vadd.f32 %v952, %v1021
      %v1054 = vadd.f32 %v953, %v1022
      %v1055 = vadd.f32 %v954, %v1023
      %v1056 = vadd.f32 %v955, %v1024
      %v1057 = vadd.f32 %v956, %v1025
      %v1058 = vadd.f32 %v957, %v1026
      %v1059 = vadd.f32 %v958, %v1027
      %v1060 = vadd.f32 %v959, %v1028
      %v1061 = vadd.f32 %v960, %v1029
      %v1062 = vadd.f32 %v961, %v1030
      %v1063 = vadd.f32 %v962, %v1031
      %v1064 = vadd.f32 %v963, %v1032
      %v1065 = vadd.f32 %v964, %v1033
      %v1066 = vadd.f32 %v965, %v1034
      %v1067 = vadd.f32 %v966, %v1035
      %v1068 = vadd.f32 %v967, %v1036
      %v1069 = vadd.f32 %v968, %v1037
      %v1070 = vadd.f32 %v969, %v1038
      %v1071 = vadd.f32 %v970, %v1039
      %v1072 = vadd.f32 %v971, %v1040
      %v1073 = vadd.f32 %v972, %v1041
      %v1074 = vadd.f32 %v973, %v1042
      %v1075 = vadd.f32 %v974, %v1043
      %v1076 = vadd.f32 %v975, %v1044
      %v1077 = vadd.f32 %v976, %v1045
      %v1078 = vadd.f32 %v977, %v1046
      %v1079 = vadd.f32 %v978, %v1047
      %v1080 = vadd.f32 %v979, %v1048
      %v1081 = vadd.f32 %v980, %v1049
      %v1082 = vadd.f32 %v981, %v1050
      %v1083 = vadd.f32 %v982, %v1051
      %v1084 = vld [vmem:[%s2] sm:$0x1]
      %v1086 = vlaneseq
      %v1087 = vshrl.u32 %v1086, 7
      %v1088 = vsub.s32 0, %v1087
      %v1089 = vrot.slane %v1084, %v1088
      %v1091 = vadd.f32 %v1052, %v1089
      %v1092 = vadd.f32 %v1053, %v1089
      %v1093 = vadd.f32 %v1054, %v1089
      %v1094 = vadd.f32 %v1055, %v1089
      %v1095 = vadd.f32 %v1056, %v1089
      %v1096 = vadd.f32 %v1057, %v1089
      %v1097 = vadd.f32 %v1058, %v1089
      %v1098 = vadd.f32 %v1059, %v1089
      %v1099 = vadd.f32 %v1060, %v1089
      %v1100 = vadd.f32 %v1061, %v1089
      %v1101 = vadd.f32 %v1062, %v1089
      %v1102 = vadd.f32 %v1063, %v1089
      %v1103 = vadd.f32 %v1064, %v1089
      %v1104 = vadd.f32 %v1065, %v1089
      %v1105 = vadd.f32 %v1066, %v1089
      %v1106 = vadd.f32 %v1067, %v1089
      %v1107 = vadd.f32 %v1068, %v1089
      %v1108 = vadd.f32 %v1069, %v1089
      %v1109 = vadd.f32 %v1070, %v1089
      %v1110 = vadd.f32 %v1071, %v1089
      %v1111 = vadd.f32 %v1072, %v1089
      %v1112 = vadd.f32 %v1073, %v1089
      %v1113 = vadd.f32 %v1074, %v1089
      %v1114 = vadd.f32 %v1075, %v1089
      %v1115 = vadd.f32 %v1076, %v1089
      %v1116 = vadd.f32 %v1077, %v1089
      %v1117 = vadd.f32 %v1078, %v1089
      %v1118 = vadd.f32 %v1079, %v1089
      %v1119 = vadd.f32 %v1080, %v1089
      %v1120 = vadd.f32 %v1081, %v1089
      %v1121 = vadd.f32 %v1082, %v1089
      %v1122 = vadd.f32 %v1083, %v1089
      %v1123 = vxor.u32 %v1091, 2147483648
      %v1124 = vxor.u32 %v1092, 2147483648
      %v1125 = vxor.u32 %v1093, 2147483648
      %v1126 = vxor.u32 %v1094, 2147483648
      %v1127 = vxor.u32 %v1095, 2147483648
      %v1128 = vxor.u32 %v1096, 2147483648
      %v1129 = vxor.u32 %v1097, 2147483648
      %v1130 = vxor.u32 %v1098, 2147483648
      %v1131 = vxor.u32 %v1099, 2147483648
      %v1132 = vxor.u32 %v1100, 2147483648
      %v1133 = vxor.u32 %v1101, 2147483648
      %v1134 = vxor.u32 %v1102, 2147483648
      %v1135 = vxor.u32 %v1103, 2147483648
      %v1136 = vxor.u32 %v1104, 2147483648
      %v1137 = vxor.u32 %v1105, 2147483648
      %v1138 = vxor.u32 %v1106, 2147483648
      %v1139 = vxor.u32 %v1107, 2147483648
      %v1140 = vxor.u32 %v1108, 2147483648
      %v1141 = vxor.u32 %v1109, 2147483648
      %v1142 = vxor.u32 %v1110, 2147483648
      %v1143 = vxor.u32 %v1111, 2147483648
      %v1144 = vxor.u32 %v1112, 2147483648
      %v1145 = vxor.u32 %v1113, 2147483648
      %v1146 = vxor.u32 %v1114, 2147483648
      %v1147 = vxor.u32 %v1115, 2147483648
      %v1148 = vxor.u32 %v1116, 2147483648
      %v1149 = vxor.u32 %v1117, 2147483648
      %v1150 = vxor.u32 %v1118, 2147483648
      %v1151 = vxor.u32 %v1119, 2147483648
      %v1152 = vxor.u32 %v1120, 2147483648
      %v1153 = vxor.u32 %v1121, 2147483648
      %v1154 = vxor.u32 %v1122, 2147483648
      %v1155 = vmul.f32 %v1123, 1.442695
      %v1156 = vpow.pop %v1155
      %v1157 = vmul.f32 %v1124, 1.442695
      %v1158 = vpow.pop %v1157
      %v1159 = vmul.f32 %v1125, 1.442695
      %v1160 = vpow.pop %v1159
      %v1161 = vmul.f32 %v1126, 1.442695
      %v1162 = vpow.pop %v1161
      %v1163 = vmul.f32 %v1127, 1.442695
      %v1164 = vpow.pop %v1163
      %v1165 = vmul.f32 %v1128, 1.442695
      %v1166 = vpow.pop %v1165
      %v1167 = vmul.f32 %v1129, 1.442695
      %v1168 = vpow.pop %v1167
      %v1169 = vmul.f32 %v1130, 1.442695
      %v1170 = vpow.pop %v1169
      %v1171 = vmul.f32 %v1131, 1.442695
      %v1172 = vpow.pop %v1171
      %v1173 = vmul.f32 %v1132, 1.442695
      %v1174 = vpow.pop %v1173
      %v1175 = vmul.f32 %v1133, 1.442695
      %v1176 = vpow.pop %v1175
      %v1177 = vmul.f32 %v1134, 1.442695
      %v1178 = vpow.pop %v1177
      %v1179 = vmul.f32 %v1135, 1.442695
      %v1180 = vpow.pop %v1179
      %v1181 = vmul.f32 %v1136, 1.442695
      %v1182 = vpow.pop %v1181
      %v1183 = vmul.f32 %v1137, 1.442695
      %v1184 = vpow.pop %v1183
      %v1185 = vmul.f32 %v1138, 1.442695
      %v1186 = vpow.pop %v1185
      %v1187 = vmul.f32 %v1139, 1.442695
      %v1188 = vpow.pop %v1187
      %v1189 = vmul.f32 %v1140, 1.442695
      %v1190 = vpow.pop %v1189
      %v1191 = vmul.f32 %v1141, 1.442695
      %v1192 = vpow.pop %v1191
      %v1193 = vmul.f32 %v1142, 1.442695
      %v1194 = vpow.pop %v1193
      %v1195 = vmul.f32 %v1143, 1.442695
      %v1196 = vpow.pop %v1195
      %v1197 = vmul.f32 %v1144, 1.442695
      %v1198 = vpow.pop %v1197
      %v1199 = vmul.f32 %v1145, 1.442695
      %v1200 = vpow.pop %v1199
      %v1201 = vmul.f32 %v1146, 1.442695
      %v1202 = vpow.pop %v1201
      %v1203 = vmul.f32 %v1147, 1.442695
      %v1204 = vpow.pop %v1203
      %v1205 = vmul.f32 %v1148, 1.442695
      %v1206 = vpow.pop %v1205
      %v1207 = vmul.f32 %v1149, 1.442695
      %v1208 = vpow.pop %v1207
      %v1209 = vmul.f32 %v1150, 1.442695
      %v1210 = vpow.pop %v1209
      %v1211 = vmul.f32 %v1151, 1.442695
      %v1212 = vpow.pop %v1211
      %v1213 = vmul.f32 %v1152, 1.442695
      %v1214 = vpow.pop %v1213
      %v1215 = vmul.f32 %v1153, 1.442695
      %v1216 = vpow.pop %v1215
      %v1217 = vmul.f32 %v1154, 1.442695
      %v1218 = vpow.pop %v1217
      %v1219 = vadd.f32 %v1156, 1.0
      %v1220 = vadd.f32 %v1158, 1.0
      %v1221 = vadd.f32 %v1160, 1.0
      %v1222 = vadd.f32 %v1162, 1.0
      %v1223 = vadd.f32 %v1164, 1.0
      %v1224 = vadd.f32 %v1166, 1.0
      %v1225 = vadd.f32 %v1168, 1.0
      %v1226 = vadd.f32 %v1170, 1.0
      %v1227 = vadd.f32 %v1172, 1.0
      %v1228 = vadd.f32 %v1174, 1.0
      %v1229 = vadd.f32 %v1176, 1.0
      %v1230 = vadd.f32 %v1178, 1.0
      %v1231 = vadd.f32 %v1180, 1.0
      %v1232 = vadd.f32 %v1182, 1.0
      %v1233 = vadd.f32 %v1184, 1.0
      %v1234 = vadd.f32 %v1186, 1.0
      %v1235 = vadd.f32 %v1188, 1.0
      %v1236 = vadd.f32 %v1190, 1.0
      %v1237 = vadd.f32 %v1192, 1.0
      %v1238 = vadd.f32 %v1194, 1.0
      %v1239 = vadd.f32 %v1196, 1.0
      %v1240 = vadd.f32 %v1198, 1.0
      %v1241 = vadd.f32 %v1200, 1.0
      %v1242 = vadd.f32 %v1202, 1.0
      %v1243 = vadd.f32 %v1204, 1.0
      %v1244 = vadd.f32 %v1206, 1.0
      %v1245 = vadd.f32 %v1208, 1.0
      %v1246 = vadd.f32 %v1210, 1.0
      %v1247 = vadd.f32 %v1212, 1.0
      %v1248 = vadd.f32 %v1214, 1.0
      %v1249 = vadd.f32 %v1216, 1.0
      %v1250 = vadd.f32 %v1218, 1.0
      %v1251 = vrcp.pop %v1219
      %v1252 = vmul.f32 1.0, %v1251
      %v1253 = vrcp.pop %v1220
      %v1254 = vmul.f32 1.0, %v1253
      %v1255 = vrcp.pop %v1221
      %v1256 = vmul.f32 1.0, %v1255
      %v1257 = vrcp.pop %v1222
      %v1258 = vmul.f32 1.0, %v1257
      %v1259 = vrcp.pop %v1223
      %v1260 = vmul.f32 1.0, %v1259
      %v1261 = vrcp.pop %v1224
      %v1262 = vmul.f32 1.0, %v1261
      %v1263 = vrcp.pop %v1225
      %v1264 = vmul.f32 1.0, %v1263
      %v1265 = vrcp.pop %v1226
      %v1266 = vmul.f32 1.0, %v1265
      %v1267 = vrcp.pop %v1227
      %v1268 = vmul.f32 1.0, %v1267
      %v1269 = vrcp.pop %v1228
      %v1270 = vmul.f32 1.0, %v1269
      %v1271 = vrcp.pop %v1229
      %v1272 = vmul.f32 1.0, %v1271
      %v1273 = vrcp.pop %v1230
      %v1274 = vmul.f32 1.0, %v1273
      %v1275 = vrcp.pop %v1231
      %v1276 = vmul.f32 1.0, %v1275
      %v1277 = vrcp.pop %v1232
      %v1278 = vmul.f32 1.0, %v1277
      %v1279 = vrcp.pop %v1233
      %v1280 = vmul.f32 1.0, %v1279
      %v1281 = vrcp.pop %v1234
      %v1282 = vmul.f32 1.0, %v1281
      %v1283 = vrcp.pop %v1235
      %v1284 = vmul.f32 1.0, %v1283
      %v1285 = vrcp.pop %v1236
      %v1286 = vmul.f32 1.0, %v1285
      %v1287 = vrcp.pop %v1237
      %v1288 = vmul.f32 1.0, %v1287
      %v1289 = vrcp.pop %v1238
      %v1290 = vmul.f32 1.0, %v1289
      %v1291 = vrcp.pop %v1239
      %v1292 = vmul.f32 1.0, %v1291
      %v1293 = vrcp.pop %v1240
      %v1294 = vmul.f32 1.0, %v1293
      %v1295 = vrcp.pop %v1241
      %v1296 = vmul.f32 1.0, %v1295
      %v1297 = vrcp.pop %v1242
      %v1298 = vmul.f32 1.0, %v1297
      %v1299 = vrcp.pop %v1243
      %v1300 = vmul.f32 1.0, %v1299
      %v1301 = vrcp.pop %v1244
      %v1302 = vmul.f32 1.0, %v1301
      %v1303 = vrcp.pop %v1245
      %v1304 = vmul.f32 1.0, %v1303
      %v1305 = vrcp.pop %v1246
      %v1306 = vmul.f32 1.0, %v1305
      %v1307 = vrcp.pop %v1247
      %v1308 = vmul.f32 1.0, %v1307
      %v1309 = vrcp.pop %v1248
      %v1310 = vmul.f32 1.0, %v1309
      %v1311 = vrcp.pop %v1249
      %v1312 = vmul.f32 1.0, %v1311
      %v1313 = vrcp.pop %v1250
      %v1314 = vmul.f32 1.0, %v1313
      %v1315 = vmul.f32 %v1091, %v1252
      %v1316 = vmul.f32 %v1092, %v1254
      %v1317 = vmul.f32 %v1093, %v1256
      %v1318 = vmul.f32 %v1094, %v1258
      %v1319 = vmul.f32 %v1095, %v1260
      %v1320 = vmul.f32 %v1096, %v1262
      %v1321 = vmul.f32 %v1097, %v1264
      %v1322 = vmul.f32 %v1098, %v1266
      %v1323 = vmul.f32 %v1099, %v1268
      %v1324 = vmul.f32 %v1100, %v1270
      %v1325 = vmul.f32 %v1101, %v1272
      %v1326 = vmul.f32 %v1102, %v1274
      %v1327 = vmul.f32 %v1103, %v1276
      %v1328 = vmul.f32 %v1104, %v1278
      %v1329 = vmul.f32 %v1105, %v1280
      %v1330 = vmul.f32 %v1106, %v1282
      %v1331 = vmul.f32 %v1107, %v1284
      %v1332 = vmul.f32 %v1108, %v1286
      %v1333 = vmul.f32 %v1109, %v1288
      %v1334 = vmul.f32 %v1110, %v1290
      %v1335 = vmul.f32 %v1111, %v1292
      %v1336 = vmul.f32 %v1112, %v1294
      %v1337 = vmul.f32 %v1113, %v1296
      %v1338 = vmul.f32 %v1114, %v1298
      %v1339 = vmul.f32 %v1115, %v1300
      %v1340 = vmul.f32 %v1116, %v1302
      %v1341 = vmul.f32 %v1117, %v1304
      %v1342 = vmul.f32 %v1118, %v1306
      %v1343 = vmul.f32 %v1119, %v1308
      %v1344 = vmul.f32 %v1120, %v1310
      %v1345 = vmul.f32 %v1121, %v1312
      %v1346 = vmul.f32 %v1122, %v1314
      %vm1347 = vcmask 523264
      %1348 = vst.msk [vmem:[%s170] sm:$0xff] %vm1347, %v1315
      %1349 = vst.msk [vmem:[%s170 + $0x8] sm:$0xff] %vm1347, %v1316
      %1350 = vst.msk [vmem:[%s170 + $0x10] sm:$0xff] %vm1347, %v1317
      %1351 = vst.msk [vmem:[%s170 + $0x18] sm:$0xff] %vm1347, %v1318
      %1352 = vst.msk [vmem:[%s170 + $0x20] sm:$0xff] %vm1347, %v1319
      %1353 = vst.msk [vmem:[%s170 + $0x28] sm:$0xff] %vm1347, %v1320
      %1354 = vst.msk [vmem:[%s170 + $0x30] sm:$0xff] %vm1347, %v1321
      %1355 = vst.msk [vmem:[%s170 + $0x38] sm:$0xff] %vm1347, %v1322
      %1356 = vst.msk [vmem:[%s170 + $0x40] sm:$0xff] %vm1347, %v1323
      %1357 = vst.msk [vmem:[%s170 + $0x48] sm:$0xff] %vm1347, %v1324
      %1358 = vst.msk [vmem:[%s170 + $0x50] sm:$0xff] %vm1347, %v1325
      %1359 = vst.msk [vmem:[%s170 + $0x58] sm:$0xff] %vm1347, %v1326
      %1360 = vst.msk [vmem:[%s170 + $0x60] sm:$0xff] %vm1347, %v1327
      %1361 = vst.msk [vmem:[%s170 + $0x68] sm:$0xff] %vm1347, %v1328
      %1362 = vst.msk [vmem:[%s170 + $0x70] sm:$0xff] %vm1347, %v1329
      %1363 = vst.msk [vmem:[%s170 + $0x78] sm:$0xff] %vm1347, %v1330
      %1364 = vst.msk [vmem:[%s170 + $0x80] sm:$0xff] %vm1347, %v1331
      %1365 = vst.msk [vmem:[%s170 + $0x88] sm:$0xff] %vm1347, %v1332
      %1366 = vst.msk [vmem:[%s170 + $0x90] sm:$0xff] %vm1347, %v1333
      %1367 = vst.msk [vmem:[%s170 + $0x98] sm:$0xff] %vm1347, %v1334
      %1368 = vst.msk [vmem:[%s170 + $0xa0] sm:$0xff] %vm1347, %v1335
      %1369 = vst.msk [vmem:[%s170 + $0xa8] sm:$0xff] %vm1347, %v1336
      %1370 = vst.msk [vmem:[%s170 + $0xb0] sm:$0xff] %vm1347, %v1337
      %1371 = vst.msk [vmem:[%s170 + $0xb8] sm:$0xff] %vm1347, %v1338
      %1372 = vst.msk [vmem:[%s170 + $0xc0] sm:$0xff] %vm1347, %v1339
      %1373 = vst.msk [vmem:[%s170 + $0xc8] sm:$0xff] %vm1347, %v1340
      %1374 = vst.msk [vmem:[%s170 + $0xd0] sm:$0xff] %vm1347, %v1341
      %1375 = vst.msk [vmem:[%s170 + $0xd8] sm:$0xff] %vm1347, %v1342
      %1376 = vst.msk [vmem:[%s170 + $0xe0] sm:$0xff] %vm1347, %v1343
      %1377 = vst.msk [vmem:[%s170 + $0xe8] sm:$0xff] %vm1347, %v1344
      %1378 = vst.msk [vmem:[%s170 + $0xf0] sm:$0xff] %vm1347, %v1345
      %1379 = vst.msk [vmem:[%s170 + $0xf8] sm:$0xff] %vm1347, %v1346
      %p1380 = scmp.lt.s32.totalorder %s14, 1
      %s1381 = scalar_select %p1380, %s14, 1
      %s1382 = smul.addr %s1381, 32
      %s1383 = smul.addr %s1382, 8
      %s1384 = scalar_lea.vmem %s3, %s1383
      // Predicated region
      $region33: #{ss2d_forward.6} parent=31 // pred_check
        %p1385 = pneg %p100
      $region34: #{ss2d_forward.6} parent=31 // pred_check_branch
        %1387 = sbr.rel (%p1385) target = $region36
      $region35: #{ss2d_forward.6} parent=31 // pred_region
        _
      $region36: #{ss2d_forward.6} parent=31 // pred_fallthru
        _
    $region32: #{ss2d_forward.6} parent=5 // pred_fallthru
      _
    %p1388 = scmp.le.s32.totalorder 2, %s9
    // Predicated region
    $region37: #{ss2d_forward.6} parent=5 // pred_check
      %p1389 = pneg %p1388
    $region38: #{ss2d_forward.6} parent=5 // pred_check_branch
      %1391 = sbr.rel (%p1389) target = $region40
    $region39: #{ss2d_forward.6} parent=5 // pred_region
      %s1392 = ssub.s32 %s9, 2
      // Predicated region
      $region41: #{ss2d_forward.6} parent=39 // pred_check
        %p1393 = pneg %p106
      $region42: #{ss2d_forward.6} parent=39 // pred_check_branch
        %1395 = sbr.rel (%p1393) target = $region44
      $region43: #{ss2d_forward.6} parent=39 // pred_region
        %p1396 = scmp.lt.s32.totalorder %s15, 1
        %s1397 = scalar_select %p1396, %s15, 1
        %s1398 = smul.addr %s1397, 32
        %s1399 = smul.addr %s1398, 8
        %s1400 = scalar_lea.vmem %s3, %s1399
      $region44: #{ss2d_forward.6} parent=39 // pred_fallthru
        _
    $region40: #{ss2d_forward.6} parent=5 // pred_fallthru
      _
  $region6: #{ss2d_forward.6} parent=0 // loop_footer
    %s13 = sadd.s32 1, %s9
  $region7: #{ss2d_forward.6} parent=0 // loop_footer_branch
    %8 = sbr.rel target = $region3
  $region8: #{ss2d_forward.6} parent=0 // loop_exit
    _

// kernel: ss2d_forward.7
$region0: #{ss2d_forward.7}
  #allocation0 [shape = 'u32[]', space=smem, size = 0x4, offset = 0x4, fixed_abs, tag = 'smem constant byte address 0x4 - core index']
  #allocation1 [shape = 'u32[144,128]{1,0:T(1,128)}', space=vmem, size = 0x12000, scoped, tag = 'internal scratch']
  %s0 = inlined_call_operand.vmem [shape: f32[4,512,64], index: 0, kind: input, shape index: {}]
  %s1 = inlined_call_operand.vmem [shape: f32[4,64,64], index: 1, kind: input, shape index: {}]
  %s2 = inlined_call_operand.vmem [shape: f32[4,64,16], index: 2, kind: input, shape index: {}]
  %s3 = inlined_call_operand.vmem [shape: f32[4,64,16], index: 3, kind: input, shape index: {}]
  %s4 = inlined_call_operand.vmem [shape: f32[4,1,64], index: 4, kind: input, shape index: {}]
  %s5 = inlined_call_operand.vmem [shape: f32[4,512,64], index: 5, kind: output, shape index: {0}]
  %s6 = inlined_call_operand.vmem [shape: f32[4,512,64], index: 6, kind: output, shape index: {1}]
  %s7 = inlined_call_operand.vmem [shape: f32[4,512,16], index: 7, kind: output, shape index: {2}]
  %s8 = inlined_call_operand.vmem [shape: f32[4,512,16], index: 8, kind: output, shape index: {3}]
  %9 = xla_tuple %s5, %s6, %s7, %s8
  %s10 = sld [smem:[#allocation0]]
  $region77: #{ss2d_forward.7} parent=0
    _
  %s12 = ssub.s32 1, %s10
  %s13 = scalar_select 0, %s12, %s10
  loop: start=0, step=1, limit=10
  $region2: #{ss2d_forward.7} parent=0 // loop_pre_header
    _
  $region3: #{ss2d_forward.7} parent=0 // loop_header
    %s15 = sphi 0, %s19
    %p16 = scmp.ge.s32.totalorder %s15, 10
    %s22 = sphi 0, %s34
    %s23 = sphi 0, %s30
    %s24 = sphi 0, %s22
    %s25 = sphi 0, %s23
    %s26 = sphi 0, %s24
    %s27 = sphi 0, %s25
    %s39 = sphi 0, %s41
    %s42 = sphi 0, %s39
    %s43 = sphi 0, %s42
    %s59 = sphi 0, %s43
    %s65 = sphi 0, %s67
    %s68 = sphi 0, %s65
    %s69 = sphi 0, %s68
    %s85 = sphi 0, %s69
    %s91 = sphi 0, %s93
    %s94 = sphi 0, %s91
    %s95 = sphi 0, %s94
    %s111 = sphi 0, %s95
    %s117 = sphi 0, %s119
    %s120 = sphi 0, %s117
    %s121 = sphi 0, %s120
    %s137 = sphi 0, %s121
    %s143 = sphi 0, %s145
    %s146 = sphi 0, %s143
    %s147 = sphi 0, %s146
    %s163 = sphi 0, %s147
    %s171 = sphi 0, %s173
    %s174 = sphi 0, %s171
    %s175 = sphi 0, %s174
    %s191 = sphi 0, %s175
    %s199 = sphi 0, %s201
    %s202 = sphi 0, %s199
    %s203 = sphi 0, %s202
    %s219 = sphi 0, %s203
    %s227 = sphi 0, %s229
    %s230 = sphi 0, %s227
    %s231 = sphi 0, %s230
    %s247 = sphi 0, %s231
    %s255 = sphi 0, %s257
    %s258 = sphi 0, %s255
    %s259 = sphi 0, %s258
    %s275 = sphi 0, %s259
  $region4: #{ss2d_forward.7} parent=0 // loop_header_branch
    %18 = sbr.rel (%p16) target = $region8
  $region5: #{ss2d_forward.7} parent=0 // loop_body
    %s20 = ssub.s32 %s15, 1
    %s21 = ssub.s32 %s15, 2
    %s28 = sadd.s32 1, %s23
    %p29 = scmp.ge.s32.totalorder %s28, 2
    %s30 = scalar_select %p29, 0, %s28
    %s31 = sadd.s32 1, %s22
    %s32 = scalar_select %p29, %s31, %s22
    %p33 = scmp.ge.s32.totalorder %s32, 4
    %s34 = scalar_select %p33, 0, %s32
    %s35 = ssub.s32 %s22, %s34
    %s36 = ssub.s32 %s23, %s30
    %s37 = sor.u32 %s35, %s36
    %p38 = scmp.eq.s32.totalorder %s37, 0
    %s40 = sadd.s32 %s39, 1
    %s41 = scalar_select %p38, %s39, %s40
    %p44 = pneg %p38
    %p45 = scmp.eq.s32.totalorder %s15, 7
    %p46 = por %p44, %p45
    %p47 = scmp.ne.s32.totalorder %s39, %s42
    %p48 = scmp.eq.s32.totalorder %s15, 0
    %p49 = por %p47, %p48
    %p50 = scmp.ne.s32.totalorder %s39, %s42
    %p51 = scmp.eq.s32.totalorder %s20, 7
    %p52 = por %p50, %p51
    %p53 = scmp.ne.s32.totalorder %s42, %s43
    %p54 = scmp.eq.s32.totalorder %s20, 0
    %p55 = por %p53, %p54
    %p56 = scmp.ne.s32.totalorder %s42, %s43
    %p57 = scmp.eq.s32.totalorder %s21, 7
    %p58 = por %p56, %p57
    %p60 = scmp.ne.s32.totalorder %s43, %s59
    %p61 = scmp.eq.s32.totalorder %s21, 0
    %p62 = por %p60, %p61
    %s63 = ssub.s32 %s22, %s34
    %p64 = scmp.eq.s32.totalorder %s63, 0
    %s66 = sadd.s32 %s65, 1
    %s67 = scalar_select %p64, %s65, %s66
    %p70 = pneg %p64
    %p71 = scmp.eq.s32.totalorder %s15, 7
    %p72 = por %p70, %p71
    %p73 = scmp.ne.s32.totalorder %s65, %s68
    %p74 = scmp.eq.s32.totalorder %s15, 0
    %p75 = por %p73, %p74
    %p76 = scmp.ne.s32.totalorder %s65, %s68
    %p77 = scmp.eq.s32.totalorder %s20, 7
    %p78 = por %p76, %p77
    %p79 = scmp.ne.s32.totalorder %s68, %s69
    %p80 = scmp.eq.s32.totalorder %s20, 0
    %p81 = por %p79, %p80
    %p82 = scmp.ne.s32.totalorder %s68, %s69
    %p83 = scmp.eq.s32.totalorder %s21, 7
    %p84 = por %p82, %p83
    %p86 = scmp.ne.s32.totalorder %s69, %s85
    %p87 = scmp.eq.s32.totalorder %s21, 0
    %p88 = por %p86, %p87
    %s89 = ssub.s32 %s22, %s34
    %p90 = scmp.eq.s32.totalorder %s89, 0
    %s92 = sadd.s32 %s91, 1
    %s93 = scalar_select %p90, %s91, %s92
    %p96 = pneg %p90
    %p97 = scmp.eq.s32.totalorder %s15, 7
    %p98 = por %p96, %p97
    %p99 = scmp.ne.s32.totalorder %s91, %s94
    %p100 = scmp.eq.s32.totalorder %s15, 0
    %p101 = por %p99, %p100
    %p102 = scmp.ne.s32.totalorder %s91, %s94
    %p103 = scmp.eq.s32.totalorder %s20, 7
    %p104 = por %p102, %p103
    %p105 = scmp.ne.s32.totalorder %s94, %s95
    %p106 = scmp.eq.s32.totalorder %s20, 0
    %p107 = por %p105, %p106
    %p108 = scmp.ne.s32.totalorder %s94, %s95
    %p109 = scmp.eq.s32.totalorder %s21, 7
    %p110 = por %p108, %p109
    %p112 = scmp.ne.s32.totalorder %s95, %s111
    %p113 = scmp.eq.s32.totalorder %s21, 0
    %p114 = por %p112, %p113
    %s115 = ssub.s32 %s22, %s34
    %p116 = scmp.eq.s32.totalorder %s115, 0
    %s118 = sadd.s32 %s117, 1
    %s119 = scalar_select %p116, %s117, %s118
    %p122 = pneg %p116
    %p123 = scmp.eq.s32.totalorder %s15, 7
    %p124 = por %p122, %p123
    %p125 = scmp.ne.s32.totalorder %s117, %s120
    %p126 = scmp.eq.s32.totalorder %s15, 0
    %p127 = por %p125, %p126
    %p128 = scmp.ne.s32.totalorder %s117, %s120
    %p129 = scmp.eq.s32.totalorder %s20, 7
    %p130 = por %p128, %p129
    %p131 = scmp.ne.s32.totalorder %s120, %s121
    %p132 = scmp.eq.s32.totalorder %s20, 0
    %p133 = por %p131, %p132
    %p134 = scmp.ne.s32.totalorder %s120, %s121
    %p135 = scmp.eq.s32.totalorder %s21, 7
    %p136 = por %p134, %p135
    %p138 = scmp.ne.s32.totalorder %s121, %s137
    %p139 = scmp.eq.s32.totalorder %s21, 0
    %p140 = por %p138, %p139
    %s141 = ssub.s32 %s22, %s34
    %p142 = scmp.eq.s32.totalorder %s141, 0
    %s144 = sadd.s32 %s143, 1
    %s145 = scalar_select %p142, %s143, %s144
    %p148 = pneg %p142
    %p149 = scmp.eq.s32.totalorder %s15, 7
    %p150 = por %p148, %p149
    %p151 = scmp.ne.s32.totalorder %s143, %s146
    %p152 = scmp.eq.s32.totalorder %s15, 0
    %p153 = por %p151, %p152
    %p154 = scmp.ne.s32.totalorder %s143, %s146
    %p155 = scmp.eq.s32.totalorder %s20, 7
    %p156 = por %p154, %p155
    %p157 = scmp.ne.s32.totalorder %s146, %s147
    %p158 = scmp.eq.s32.totalorder %s20, 0
    %p159 = por %p157, %p158
    %p160 = scmp.ne.s32.totalorder %s146, %s147
    %p161 = scmp.eq.s32.totalorder %s21, 7
    %p162 = por %p160, %p161
    %p164 = scmp.ne.s32.totalorder %s147, %s163
    %p165 = scmp.eq.s32.totalorder %s21, 0
    %p166 = por %p164, %p165
    %s167 = ssub.s32 %s22, %s34
    %s168 = ssub.s32 %s23, %s30
    %s169 = sor.u32 %s167, %s168
    %p170 = scmp.eq.s32.totalorder %s169, 0
    %s172 = sadd.s32 %s171, 1
    %s173 = scalar_select %p170, %s171, %s172
    %p176 = pneg %p170
    %p177 = scmp.eq.s32.totalorder %s15, 7
    %p178 = por %p176, %p177
    %p179 = scmp.ne.s32.totalorder %s171, %s174
    %p180 = scmp.eq.s32.totalorder %s15, 0
    %p181 = por %p179, %p180
    %p182 = scmp.ne.s32.totalorder %s171, %s174
    %p183 = scmp.eq.s32.totalorder %s20, 7
    %p184 = por %p182, %p183
    %p185 = scmp.ne.s32.totalorder %s174, %s175
    %p186 = scmp.eq.s32.totalorder %s20, 0
    %p187 = por %p185, %p186
    %p188 = scmp.ne.s32.totalorder %s174, %s175
    %p189 = scmp.eq.s32.totalorder %s21, 7
    %p190 = por %p188, %p189
    %p192 = scmp.ne.s32.totalorder %s175, %s191
    %p193 = scmp.eq.s32.totalorder %s21, 0
    %p194 = por %p192, %p193
    %s195 = ssub.s32 %s22, %s34
    %s196 = ssub.s32 %s23, %s30
    %s197 = sor.u32 %s195, %s196
    %p198 = scmp.eq.s32.totalorder %s197, 0
    %s200 = sadd.s32 %s199, 1
    %s201 = scalar_select %p198, %s199, %s200
    %p204 = pneg %p198
    %p205 = scmp.eq.s32.totalorder %s15, 7
    %p206 = por %p204, %p205
    %p207 = scmp.ne.s32.totalorder %s199, %s202
    %p208 = scmp.eq.s32.totalorder %s15, 0
    %p209 = por %p207, %p208
    %p210 = scmp.ne.s32.totalorder %s199, %s202
    %p211 = scmp.eq.s32.totalorder %s20, 7
    %p212 = por %p210, %p211
    %p213 = scmp.ne.s32.totalorder %s202, %s203
    %p214 = scmp.eq.s32.totalorder %s20, 0
    %p215 = por %p213, %p214
    %p216 = scmp.ne.s32.totalorder %s202, %s203
    %p217 = scmp.eq.s32.totalorder %s21, 7
    %p218 = por %p216, %p217
    %p220 = scmp.ne.s32.totalorder %s203, %s219
    %p221 = scmp.eq.s32.totalorder %s21, 0
    %p222 = por %p220, %p221
    %s223 = ssub.s32 %s22, %s34
    %s224 = ssub.s32 %s23, %s30
    %s225 = sor.u32 %s223, %s224
    %p226 = scmp.eq.s32.totalorder %s225, 0
    %s228 = sadd.s32 %s227, 1
    %s229 = scalar_select %p226, %s227, %s228
    %p232 = pneg %p226
    %p233 = scmp.eq.s32.totalorder %s15, 7
    %p234 = por %p232, %p233
    %p235 = scmp.ne.s32.totalorder %s227, %s230
    %p236 = scmp.eq.s32.totalorder %s15, 0
    %p237 = por %p235, %p236
    %p238 = scmp.ne.s32.totalorder %s227, %s230
    %p239 = scmp.eq.s32.totalorder %s20, 7
    %p240 = por %p238, %p239
    %p241 = scmp.ne.s32.totalorder %s230, %s231
    %p242 = scmp.eq.s32.totalorder %s20, 0
    %p243 = por %p241, %p242
    %p244 = scmp.ne.s32.totalorder %s230, %s231
    %p245 = scmp.eq.s32.totalorder %s21, 7
    %p246 = por %p244, %p245
    %p248 = scmp.ne.s32.totalorder %s231, %s247
    %p249 = scmp.eq.s32.totalorder %s21, 0
    %p250 = por %p248, %p249
    %s251 = ssub.s32 %s22, %s34
    %s252 = ssub.s32 %s23, %s30
    %s253 = sor.u32 %s251, %s252
    %p254 = scmp.eq.s32.totalorder %s253, 0
    %s256 = sadd.s32 %s255, 1
    %s257 = scalar_select %p254, %s255, %s256
    %p260 = pneg %p254
    %p261 = scmp.eq.s32.totalorder %s15, 7
    %p262 = por %p260, %p261
    %p263 = scmp.ne.s32.totalorder %s255, %s258
    %p264 = scmp.eq.s32.totalorder %s15, 0
    %p265 = por %p263, %p264
    %p266 = scmp.ne.s32.totalorder %s255, %s258
    %p267 = scmp.eq.s32.totalorder %s20, 7
    %p268 = por %p266, %p267
    %p269 = scmp.ne.s32.totalorder %s258, %s259
    %p270 = scmp.eq.s32.totalorder %s20, 0
    %p271 = por %p269, %p270
    %p272 = scmp.ne.s32.totalorder %s258, %s259
    %p273 = scmp.eq.s32.totalorder %s21, 7
    %p274 = por %p272, %p273
    %p276 = scmp.ne.s32.totalorder %s259, %s275
    %p277 = scmp.eq.s32.totalorder %s21, 0
    %p278 = por %p276, %p277
    %p279 = scmp.le.s32.totalorder 1, %s15
    %p280 = scmp.lt.s32.totalorder %s15, 9
    %p281 = pnand %p279, %p280
    %p282 = pneg %p281
    // Predicated region
    $region9: #{ss2d_forward.7} parent=5 // pred_check
      _
    $region10: #{ss2d_forward.7} parent=5 // pred_check_branch
      %284 = sbr.rel (%p281) target = $region12
    $region11: #{ss2d_forward.7} parent=5 // pred_region
      %s285 = ssub.s32 %s15, 1
    $region12: #{ss2d_forward.7} parent=5 // pred_fallthru
      _
    %p286 = scmp.lt.s32.totalorder %s15, 8
    // Predicated region
    $region13: #{ss2d_forward.7} parent=5 // pred_check
      %p287 = pneg %p286
    $region14: #{ss2d_forward.7} parent=5 // pred_check_branch
      %289 = sbr.rel (%p287) target = $region16
    $region15: #{ss2d_forward.7} parent=5 // pred_region
      // Predicated region
      $region17: #{ss2d_forward.7} parent=15 // pred_check
        %p290 = pneg %p49
      $region18: #{ss2d_forward.7} parent=15 // pred_check_branch
        %292 = sbr.rel (%p290) target = $region20
      $region19: #{ss2d_forward.7} parent=15 // pred_region
        %s293 = smul.u32 32, %s23
        %p294 = scmp.lt.s32.totalorder %s22, 3
        %s295 = scalar_select %p294, %s22, 3
        %p296 = scmp.lt.s32.totalorder %s293, 63
        %s297 = scalar_select %p296, %s293, 63
        %s298 = smul.addr %s295, 64
        %s299 = sadd.s32 %s297, %s298
        %s300 = smul.addr %s299, 8
        %s301 = scalar_lea.vmem %s0, %s300
        %s302 = smul.u32 32, %s23
      $region20: #{ss2d_forward.7} parent=15 // pred_fallthru
        _
      // Predicated region
      $region21: #{ss2d_forward.7} parent=15 // pred_check
        %p303 = pneg %p75
      $region22: #{ss2d_forward.7} parent=15 // pred_check_branch
        %305 = sbr.rel (%p303) target = $region24
      $region23: #{ss2d_forward.7} parent=15 // pred_region
        %p306 = scmp.lt.s32.totalorder %s22, 3
        %s307 = scalar_select %p306, %s22, 3
        %s308 = smul.addr %s307, 8
        %s309 = smul.addr %s308, 8
        %s310 = scalar_lea.vmem %s1, %s309
      $region24: #{ss2d_forward.7} parent=15 // pred_fallthru
        _
      // Predicated region
      $region25: #{ss2d_forward.7} parent=15 // pred_check
        %p311 = pneg %p101
      $region26: #{ss2d_forward.7} parent=15 // pred_check_branch
        %313 = sbr.rel (%p311) target = $region28
      $region27: #{ss2d_forward.7} parent=15 // pred_region
        %p314 = scmp.lt.s32.totalorder %s22, 3
        %s315 = scalar_select %p314, %s22, 3
        %s316 = smul.addr %s315, 8
        %s317 = smul.addr %s316, 8
        %s318 = scalar_lea.vmem %s2, %s317
      $region28: #{ss2d_forward.7} parent=15 // pred_fallthru
        _
      // Predicated region
      $region29: #{ss2d_forward.7} parent=15 // pred_check
        %p319 = pneg %p127
      $region30: #{ss2d_forward.7} parent=15 // pred_check_branch
        %321 = sbr.rel (%p319) target = $region32
      $region31: #{ss2d_forward.7} parent=15 // pred_region
        %p322 = scmp.lt.s32.totalorder %s22, 3
        %s323 = scalar_select %p322, %s22, 3
        %s324 = smul.addr %s323, 8
        %s325 = smul.addr %s324, 8
        %s326 = scalar_lea.vmem %s3, %s325
      $region32: #{ss2d_forward.7} parent=15 // pred_fallthru
        _
      // Predicated region
      $region33: #{ss2d_forward.7} parent=15 // pred_check
        %p327 = pneg %p153
      $region34: #{ss2d_forward.7} parent=15 // pred_check_branch
        %329 = sbr.rel (%p327) target = $region36
      $region35: #{ss2d_forward.7} parent=15 // pred_region
        %p330 = scmp.lt.s32.totalorder %s22, 3
        %s331 = scalar_select %p330, %s22, 3
        %s332 = scalar_lea.vmem %s4, %s331
      $region36: #{ss2d_forward.7} parent=15 // pred_fallthru
        _
    $region16: #{ss2d_forward.7} parent=5 // pred_fallthru
      _
    %p333 = scmp.le.s32.totalorder 1, %s15
    %p334 = scmp.lt.s32.totalorder %s15, 9
    %p335 = pnand %p333, %p334
    %p336 = pneg %p335
    // Predicated region
    $region37: #{ss2d_forward.7} parent=5 // pred_check
      _
    $region38: #{ss2d_forward.7} parent=5 // pred_check_branch
      %338 = sbr.rel (%p335) target = $region40
    $region39: #{ss2d_forward.7} parent=5 // pred_region
      %s339 = ssub.s32 %s15, 1
      %s340 = smul.u32 32, %s25
      %p341 = scmp.lt.s32.totalorder %s24, 3
      %s342 = scalar_select %p341, %s24, 3
      %p343 = scmp.lt.s32.totalorder %s340, 63
      %s344 = scalar_select %p343, %s340, 63
      %s345 = smul.addr %s342, 64
      %s346 = sadd.s32 %s344, %s345
      %s347 = smul.addr %s346, 8
      %s348 = scalar_lea.vmem %s0, %s347
      %p349 = pneg %p55
      %p350 = pneg %p52
      %p351 = scmp.lt.s32.totalorder %s24, 3
      %s352 = scalar_select %p351, %s24, 3
      %s353 = smul.addr %s352, 8
      %s354 = smul.addr %s353, 8
      %s355 = scalar_lea.vmem %s1, %s354
      %p356 = pneg %p81
      %p357 = pneg %p78
      %p358 = scmp.lt.s32.totalorder %s24, 3
      %s359 = scalar_select %p358, %s24, 3
      %s360 = smul.addr %s359, 8
      %s361 = smul.addr %s360, 8
      %s362 = scalar_lea.vmem %s2, %s361
      %p363 = pneg %p107
      %p364 = pneg %p104
      %p365 = scmp.lt.s32.totalorder %s24, 3
      %s366 = scalar_select %p365, %s24, 3
      %s367 = smul.addr %s366, 8
      %s368 = smul.addr %s367, 8
      %s369 = scalar_lea.vmem %s3, %s368
      %p370 = pneg %p133
      %p371 = pneg %p130
      %p372 = scmp.lt.s32.totalorder %s24, 3
      %s373 = scalar_select %p372, %s24, 3
      %s374 = scalar_lea.vmem %s4, %s373
      %p375 = pneg %p159
      %p376 = pneg %p156
      %p377 = pneg %p187
      %p378 = pneg %p184
      %s379 = smul.u32 32, %s25
      %p380 = scmp.lt.s32.totalorder %s24, 3
      %s381 = scalar_select %p380, %s24, 3
      %p382 = scmp.lt.s32.totalorder %s379, 63
      %s383 = scalar_select %p382, %s379, 63
      %s384 = smul.addr %s381, 64
      %s385 = sadd.s32 %s383, %s384
      %s386 = smul.addr %s385, 8
      %s387 = scalar_lea.vmem %s5, %s386
      %p388 = pneg %p215
      %p389 = pneg %p212
      %s390 = smul.u32 32, %s25
      %p391 = scmp.lt.s32.totalorder %s24, 3
      %s392 = scalar_select %p391, %s24, 3
      %p393 = scmp.lt.s32.totalorder %s390, 63
      %s394 = scalar_select %p393, %s390, 63
      %s395 = smul.addr %s392, 64
      %s396 = sadd.s32 %s394, %s395
      %s397 = smul.addr %s396, 8
      %s398 = scalar_lea.vmem %s6, %s397
      %p399 = pneg %p243
      %p400 = pneg %p240
      %s401 = smul.u32 32, %s25
      %p402 = scmp.lt.s32.totalorder %s24, 3
      %s403 = scalar_select %p402, %s24, 3
      %p404 = scmp.lt.s32.totalorder %s401, 63
      %s405 = scalar_select %p404, %s401, 63
      %s406 = smul.addr %s403, 64
      %s407 = sadd.s32 %s405, %s406
      %s408 = smul.addr %s407, 8
      %s409 = scalar_lea.vmem %s7, %s408
      %p410 = pneg %p271
      %p411 = pneg %p268
      %s412 = smul.u32 32, %s25
      %p413 = scmp.lt.s32.totalorder %s24, 3
      %s414 = scalar_select %p413, %s24, 3
      %p415 = scmp.lt.s32.totalorder %s412, 63
      %s416 = scalar_select %p415, %s412, 63
      %s417 = smul.addr %s414, 64
      %s418 = sadd.s32 %s416, %s417
      %s419 = smul.addr %s418, 8
      %s420 = scalar_lea.vmem %s8, %s419
      %s421 = smul.u32 32, %s25
      %p422 = scmp.lt.s32.totalorder %s24, 3
      %s423 = scalar_select %p422, %s24, 3
      %p424 = scmp.lt.s32.totalorder %s421, 63
      %s425 = scalar_select %p424, %s421, 63
      %s426 = smul.addr %s423, 64
      %s427 = sadd.s32 %s425, %s426
      %s428 = smul.addr %s427, 8
      %s429 = scalar_lea.vmem %s0, %s428
      %s430 = smul.u32 32, %s25
      %p431 = scmp.lt.s32.totalorder %s24, 3
      %s432 = scalar_select %p431, %s24, 3
      %s433 = smul.addr %s432, 8
      %s434 = smul.addr %s433, 8
      %s435 = scalar_lea.vmem %s1, %s434
      %p436 = scmp.lt.s32.totalorder %s24, 3
      %s437 = scalar_select %p436, %s24, 3
      %s438 = smul.addr %s437, 8
      %s439 = smul.addr %s438, 8
      %s440 = scalar_lea.vmem %s2, %s439
      %p441 = scmp.lt.s32.totalorder %s24, 3
      %s442 = scalar_select %p441, %s24, 3
      %s443 = smul.addr %s442, 8
      %s444 = smul.addr %s443, 8
      %s445 = scalar_lea.vmem %s3, %s444
      %p446 = scmp.lt.s32.totalorder %s24, 3
      %s447 = scalar_select %p446, %s24, 3
      %s448 = scalar_lea.vmem %s4, %s447
      %s449 = smul.u32 32, %s25
      %p450 = scmp.lt.s32.totalorder %s24, 3
      %s451 = scalar_select %p450, %s24, 3
      %p452 = scmp.lt.s32.totalorder %s449, 63
      %s453 = scalar_select %p452, %s449, 63
      %s454 = smul.addr %s451, 64
      %s455 = sadd.s32 %s453, %s454
      %s456 = smul.addr %s455, 8
      %s457 = scalar_lea.vmem %s5, %s456
      %s458 = smul.u32 32, %s25
      %s459 = smul.u32 32, %s25
      %p460 = scmp.lt.s32.totalorder %s24, 3
      %s461 = scalar_select %p460, %s24, 3
      %p462 = scmp.lt.s32.totalorder %s459, 63
      %s463 = scalar_select %p462, %s459, 63
      %s464 = smul.addr %s461, 64
      %s465 = sadd.s32 %s463, %s464
      %s466 = smul.addr %s465, 8
      %s467 = scalar_lea.vmem %s6, %s466
      %s468 = smul.u32 32, %s25
      %s469 = smul.u32 32, %s25
      %p470 = scmp.lt.s32.totalorder %s24, 3
      %s471 = scalar_select %p470, %s24, 3
      %p472 = scmp.lt.s32.totalorder %s469, 63
      %s473 = scalar_select %p472, %s469, 63
      %s474 = smul.addr %s471, 64
      %s475 = sadd.s32 %s473, %s474
      %s476 = smul.addr %s475, 8
      %s477 = scalar_lea.vmem %s7, %s476
      %s478 = smul.u32 32, %s25
      %s479 = smul.u32 32, %s25
      %p480 = scmp.lt.s32.totalorder %s24, 3
      %s481 = scalar_select %p480, %s24, 3
      %p482 = scmp.lt.s32.totalorder %s479, 63
      %s483 = scalar_select %p482, %s479, 63
      %s484 = smul.addr %s481, 64
      %s485 = sadd.s32 %s483, %s484
      %s486 = smul.addr %s485, 8
      %s487 = scalar_lea.vmem %s8, %s486
      %s488 = smul.u32 32, %s25
      %v490 = vld [vmem:[%s429] sm:$0xff]
      %v491 = vld [vmem:[%s429 + $0x8] sm:$0xff]
      %v492 = vld [vmem:[%s429 + $0x10] sm:$0xff]
      %v493 = vld [vmem:[%s429 + $0x18] sm:$0xff]
      %v494 = vld [vmem:[%s429 + $0x20] sm:$0xff]
      %v495 = vld [vmem:[%s429 + $0x28] sm:$0xff]
      %v496 = vld [vmem:[%s429 + $0x30] sm:$0xff]
      %v497 = vld [vmem:[%s429 + $0x38] sm:$0xff]
      %v498 = vld [vmem:[%s429 + $0x40] sm:$0xff]
      %v499 = vld [vmem:[%s429 + $0x48] sm:$0xff]
      %v500 = vld [vmem:[%s429 + $0x50] sm:$0xff]
      %v501 = vld [vmem:[%s429 + $0x58] sm:$0xff]
      %v502 = vld [vmem:[%s429 + $0x60] sm:$0xff]
      %v503 = vld [vmem:[%s429 + $0x68] sm:$0xff]
      %v504 = vld [vmem:[%s429 + $0x70] sm:$0xff]
      %v505 = vld [vmem:[%s429 + $0x78] sm:$0xff]
      %v506 = vld [vmem:[%s429 + $0x80] sm:$0xff]
      %v507 = vld [vmem:[%s429 + $0x88] sm:$0xff]
      %v508 = vld [vmem:[%s429 + $0x90] sm:$0xff]
      %v509 = vld [vmem:[%s429 + $0x98] sm:$0xff]
      %v510 = vld [vmem:[%s429 + $0xa0] sm:$0xff]
      %v511 = vld [vmem:[%s429 + $0xa8] sm:$0xff]
      %v512 = vld [vmem:[%s429 + $0xb0] sm:$0xff]
      %v513 = vld [vmem:[%s429 + $0xb8] sm:$0xff]
      %v514 = vld [vmem:[%s429 + $0xc0] sm:$0xff]
      %v515 = vld [vmem:[%s429 + $0xc8] sm:$0xff]
      %v516 = vld [vmem:[%s429 + $0xd0] sm:$0xff]
      %v517 = vld [vmem:[%s429 + $0xd8] sm:$0xff]
      %v518 = vld [vmem:[%s429 + $0xe0] sm:$0xff]
      %v519 = vld [vmem:[%s429 + $0xe8] sm:$0xff]
      %v520 = vld [vmem:[%s429 + $0xf0] sm:$0xff]
      %v521 = vld [vmem:[%s429 + $0xf8] sm:$0xff]
      %v522 = vpack.c.bf16 %v491, %v490
      %v523 = vpack.c.bf16 %v493, %v492
      %v524 = vpack.c.bf16 %v495, %v494
      %v525 = vpack.c.bf16 %v497, %v496
      %v526 = vpack.c.bf16 %v499, %v498
      %v527 = vpack.c.bf16 %v501, %v500
      %v528 = vpack.c.bf16 %v503, %v502
      %v529 = vpack.c.bf16 %v505, %v504
      %v530 = vpack.c.bf16 %v507, %v506
      %v531 = vpack.c.bf16 %v509, %v508
      %v532 = vpack.c.bf16 %v511, %v510
      %v533 = vpack.c.bf16 %v513, %v512
      %v534 = vpack.c.bf16 %v515, %v514
      %v535 = vpack.c.bf16 %v517, %v516
      %v536 = vpack.c.bf16 %v519, %v518
      %v537 = vpack.c.bf16 %v521, %v520
      %v538 = vld [vmem:[%s435] sm:$0xff]
      %v539 = vld [vmem:[%s435 + $0x8] sm:$0xff]
      %v540 = vld [vmem:[%s435 + $0x10] sm:$0xff]
      %v541 = vld [vmem:[%s435 + $0x18] sm:$0xff]
      %v542 = vld [vmem:[%s435 + $0x20] sm:$0xff]
      %v543 = vld [vmem:[%s435 + $0x28] sm:$0xff]
      %v544 = vld [vmem:[%s435 + $0x30] sm:$0xff]
      %v545 = vld [vmem:[%s435 + $0x38] sm:$0xff]
      %v546 = vpack.c.bf16 %v539, %v538
      %v547 = vpack.c.bf16 %v541, %v540
      %v548 = vpack.c.bf16 %v543, %v542
      %v549 = vpack.c.bf16 %v545, %v544
      %v550 = vld [vmem:[%s448] sm:$0x1]
      %v552 = vlaneseq
      %v553 = vshrl.u32 %v552, 7
      %v554 = vsub.s32 0, %v553
      %v555 = vrot.slane %v550, %v554
      %vm557 = vcmask 523264
      %v559 = vsel %vm557, %v522, 0
      %v562 = vsel %vm557, %v523, 0
      %v565 = vsel %vm557, %v524, 0
      %v568 = vsel %vm557, %v525, 0
      %v571 = vsel %vm557, %v526, 0
      %v574 = vsel %vm557, %v527, 0
      %v577 = vsel %vm557, %v528, 0
      %v580 = vsel %vm557, %v529, 0
      %v583 = vsel %vm557, %v530, 0
      %v586 = vsel %vm557, %v531, 0
      %v589 = vsel %vm557, %v532, 0
      %v592 = vsel %vm557, %v533, 0
      %v595 = vsel %vm557, %v534, 0
      %v598 = vsel %vm557, %v535, 0
      %v601 = vsel %vm557, %v536, 0
      %v604 = vsel %vm557, %v537, 0
      %606 = vmatprep.subr.bf16.mxu0 0
      %607 = vmatpush1.bf16.msra.mxu0 0
      %608 = vmatprep.subr.bf16.mxu0 0
      %609 = vmatpush1.bf16.msra.mxu0 0
      %610 = vmatprep.subr.bf16.mxu0 0
      %611 = vmatpush1.bf16.msra.mxu0 0
      %612 = vmatprep.subr.bf16.mxu0 0
      %613 = vmatpush1.bf16.msra.mxu0 0
      %614 = vmatprep.subr.bf16.mxu0 0
      %615 = vmatpush1.bf16.msra.mxu0 %v549
      %616 = vmatprep.subr.bf16.mxu0 0
      %617 = vmatpush1.bf16.msra.mxu0 %v548
      %618 = vmatprep.subr.bf16.mxu0 0
      %619 = vmatpush1.bf16.msra.mxu0 %v547
      %620 = vmatprep.subr.bf16.mxu0 0
      %621 = vmatpush1.bf16.msra.mxu0 %v546
      %622 = vmatprep.subr.bf16.mxu0 0
      %623 = vmatpush2.bf16.msra.mxu0 0
      %624 = vmatprep.subr.bf16.mxu0 0
      %625 = vmatpush2.bf16.msra.mxu0 0
      %626 = vmatprep.subr.bf16.mxu0 0
      %627 = vmatpush2.bf16.msra.mxu0 0
      %628 = vmatprep.subr.bf16.mxu0 0
      %629 = vmatpush2.bf16.msra.mxu0 0
      %630 = vmatprep.subr.bf16.mxu0 0
      %631 = vmatpush2.bf16.msra.mxu0 0
      %632 = vmatprep.subr.bf16.mxu0 0
      %633 = vmatpush2.bf16.msra.mxu0 0
      %634 = vmatprep.subr.bf16.mxu0 0
      %635 = vmatpush2.bf16.msra.mxu0 0
      %636 = vmatprep.subr.bf16.mxu0 0
      %637 = vmatpush2.bf16.msra.mxu0 0
      %638 = vmatprep.mubr.bf16.mxu0 0
      %639 = vmatmul.mubr.bf16.gmra.mxu0 %v559
      %v640 = vpop.f32.mrf.mxu0
      %v641 = vadd.f32 %v555, %v640
      %v642 = vpop.f32.mrf.mxu0
      %v643 = vpop.f32.mrf.mxu0
      %v644 = vadd.f32 %v555, %v643
      %v645 = vpop.f32.mrf.mxu0
      %646 = vmatprep.mubr.bf16.mxu0 0
      %647 = vmatmul.mubr.bf16.gmra.mxu0 %v562
      %v648 = vpop.f32.mrf.mxu0
      %v649 = vadd.f32 %v555, %v648
      %v650 = vpop.f32.mrf.mxu0
      %v651 = vpop.f32.mrf.mxu0
      %v652 = vadd.f32 %v555, %v651
      %v653 = vpop.f32.mrf.mxu0
      %654 = vmatprep.mubr.bf16.mxu0 0
      %655 = vmatmul.mubr.bf16.gmra.mxu0 %v565
      %v656 = vpop.f32.mrf.mxu0
      %v657 = vadd.f32 %v555, %v656
      %v658 = vpop.f32.mrf.mxu0
      %v659 = vpop.f32.mrf.mxu0
      %v660 = vadd.f32 %v555, %v659
      %v661 = vpop.f32.mrf.mxu0
      %662 = vmatprep.mubr.bf16.mxu0 0
      %663 = vmatmul.mubr.bf16.gmra.mxu0 %v568
      %v664 = vpop.f32.mrf.mxu0
      %v665 = vadd.f32 %v555, %v664
      %v666 = vpop.f32.mrf.mxu0
      %v667 = vpop.f32.mrf.mxu0
      %v668 = vadd.f32 %v555, %v667
      %v669 = vpop.f32.mrf.mxu0
      %670 = vmatprep.mubr.bf16.mxu0 0
      %671 = vmatmul.mubr.bf16.gmra.mxu0 %v571
      %v672 = vpop.f32.mrf.mxu0
      %v673 = vadd.f32 %v555, %v672
      %v674 = vpop.f32.mrf.mxu0
      %v675 = vpop.f32.mrf.mxu0
      %v676 = vadd.f32 %v555, %v675
      %v677 = vpop.f32.mrf.mxu0
      %678 = vmatprep.mubr.bf16.mxu0 0
      %679 = vmatmul.mubr.bf16.gmra.mxu0 %v574
      %v680 = vpop.f32.mrf.mxu0
      %v681 = vadd.f32 %v555, %v680
      %v682 = vpop.f32.mrf.mxu0
      %v683 = vpop.f32.mrf.mxu0
      %v684 = vadd.f32 %v555, %v683
      %v685 = vpop.f32.mrf.mxu0
      %686 = vmatprep.mubr.bf16.mxu0 0
      %687 = vmatmul.mubr.bf16.gmra.mxu0 %v577
      %v688 = vpop.f32.mrf.mxu0
      %v689 = vadd.f32 %v555, %v688
      %v690 = vpop.f32.mrf.mxu0
      %v691 = vpop.f32.mrf.mxu0
      %v692 = vadd.f32 %v555, %v691
      %v693 = vpop.f32.mrf.mxu0
      %694 = vmatprep.mubr.bf16.mxu0 0
      %695 = vmatmul.mubr.bf16.gmra.mxu0 %v580
      %v696 = vpop.f32.mrf.mxu0
      %v697 = vadd.f32 %v555, %v696
      %v698 = vpop.f32.mrf.mxu0
      %v699 = vpop.f32.mrf.mxu0
      %v700 = vadd.f32 %v555, %v699
      %v701 = vpop.f32.mrf.mxu0
      %702 = vmatprep.mubr.bf16.mxu0 0
      %703 = vmatmul.mubr.bf16.gmra.mxu0 %v583
      %v704 = vpop.f32.mrf.mxu0
      %v705 = vadd.f32 %v555, %v704
      %v706 = vpop.f32.mrf.mxu0
      %v707 = vpop.f32.mrf.mxu0
      %v708 = vadd.f32 %v555, %v707
      %v709 = vpop.f32.mrf.mxu0
      %710 = vmatprep.mubr.bf16.mxu0 0
      %711 = vmatmul.mubr.bf16.gmra.mxu0 %v586
      %v712 = vpop.f32.mrf.mxu0
      %v713 = vadd.f32 %v555, %v712
      %v714 = vpop.f32.mrf.mxu0
      %v715 = vpop.f32.mrf.mxu0
      %v716 = vadd.f32 %v555, %v715
      %v717 = vpop.f32.mrf.mxu0
      %718 = vmatprep.mubr.bf16.mxu0 0
      %719 = vmatmul.mubr.bf16.gmra.mxu0 %v589
      %v720 = vpop.f32.mrf.mxu0
      %v721 = vadd.f32 %v555, %v720
      %v722 = vpop.f32.mrf.mxu0
      %v723 = vpop.f32.mrf.mxu0
      %v724 = vadd.f32 %v555, %v723
      %v725 = vpop.f32.mrf.mxu0
      %726 = vmatprep.mubr.bf16.mxu0 0
      %727 = vmatmul.mubr.bf16.gmra.mxu0 %v592
      %v728 = vpop.f32.mrf.mxu0
      %v729 = vadd.f32 %v555, %v728
      %v730 = vpop.f32.mrf.mxu0
      %v731 = vpop.f32.mrf.mxu0
      %v732 = vadd.f32 %v555, %v731
      %v733 = vpop.f32.mrf.mxu0
      %734 = vmatprep.mubr.bf16.mxu0 0
      %735 = vmatmul.mubr.bf16.gmra.mxu0 %v595
      %v736 = vpop.f32.mrf.mxu0
      %v737 = vadd.f32 %v555, %v736
      %v738 = vpop.f32.mrf.mxu0
      %v739 = vpop.f32.mrf.mxu0
      %v740 = vadd.f32 %v555, %v739
      %v741 = vpop.f32.mrf.mxu0
      %742 = vmatprep.mubr.bf16.mxu0 0
      %743 = vmatmul.mubr.bf16.gmra.mxu0 %v598
      %v744 = vpop.f32.mrf.mxu0
      %v745 = vadd.f32 %v555, %v744
      %v746 = vpop.f32.mrf.mxu0
      %v747 = vpop.f32.mrf.mxu0
      %v748 = vadd.f32 %v555, %v747
      %v749 = vpop.f32.mrf.mxu0
      %750 = vmatprep.mubr.bf16.mxu0 0
      %751 = vmatmul.mubr.bf16.gmra.mxu0 %v601
      %v752 = vpop.f32.mrf.mxu0
      %v753 = vadd.f32 %v555, %v752
      %v754 = vpop.f32.mrf.mxu0
      %v755 = vpop.f32.mrf.mxu0
      %v756 = vadd.f32 %v555, %v755
      %v757 = vpop.f32.mrf.mxu0
      %758 = vmatprep.mubr.bf16.mxu0 0
      %759 = vmatmul.mubr.bf16.gmra.mxu0 %v604
      %v760 = vpop.f32.mrf.mxu0
      %v761 = vadd.f32 %v555, %v760
      %v762 = vpop.f32.mrf.mxu0
      %v763 = vpop.f32.mrf.mxu0
      %v764 = vadd.f32 %v555, %v763
      %v765 = vpop.f32.mrf.mxu0
      %766 = vdwg.mxu0
      %vm767 = vcmp.gt.f32.partialorder %v641, 20.0
      %vm768 = vcmp.gt.f32.partialorder %v644, 20.0
      %vm769 = vcmp.gt.f32.partialorder %v649, 20.0
      %vm770 = vcmp.gt.f32.partialorder %v652, 20.0
      %vm771 = vcmp.gt.f32.partialorder %v657, 20.0
      %vm772 = vcmp.gt.f32.partialorder %v660, 20.0
      %vm773 = vcmp.gt.f32.partialorder %v665, 20.0
      %vm774 = vcmp.gt.f32.partialorder %v668, 20.0
      %vm775 = vcmp.gt.f32.partialorder %v673, 20.0
      %vm776 = vcmp.gt.f32.partialorder %v676, 20.0
      %vm777 = vcmp.gt.f32.partialorder %v681, 20.0
      %vm778 = vcmp.gt.f32.partialorder %v684, 20.0
      %vm779 = vcmp.gt.f32.partialorder %v689, 20.0
      %vm780 = vcmp.gt.f32.partialorder %v692, 20.0
      %vm781 = vcmp.gt.f32.partialorder %v697, 20.0
      %vm782 = vcmp.gt.f32.partialorder %v700, 20.0
      %vm783 = vcmp.gt.f32.partialorder %v705, 20.0
      %vm784 = vcmp.gt.f32.partialorder %v708, 20.0
      %vm785 = vcmp.gt.f32.partialorder %v713, 20.0
      %vm786 = vcmp.gt.f32.partialorder %v716, 20.0
      %vm787 = vcmp.gt.f32.partialorder %v721, 20.0
      %vm788 = vcmp.gt.f32.partialorder %v724, 20.0
      %vm789 = vcmp.gt.f32.partialorder %v729, 20.0
      %vm790 = vcmp.gt.f32.partialorder %v732, 20.0
      %vm791 = vcmp.gt.f32.partialorder %v737, 20.0
      %vm792 = vcmp.gt.f32.partialorder %v740, 20.0
      %vm793 = vcmp.gt.f32.partialorder %v745, 20.0
      %vm794 = vcmp.gt.f32.partialorder %v748, 20.0
      %vm795 = vcmp.gt.f32.partialorder %v753, 20.0
      %vm796 = vcmp.gt.f32.partialorder %v756, 20.0
      %vm797 = vcmp.gt.f32.partialorder %v761, 20.0
      %vm798 = vcmp.gt.f32.partialorder %v764, 20.0
      %v799 = vmul.f32 %v641, 1.442695
      %v800 = vpow.pop %v799
      %v801 = vmul.f32 %v644, 1.442695
      %v802 = vpow.pop %v801
      %v803 = vmul.f32 %v649, 1.442695
      %v804 = vpow.pop %v803
      %v805 = vmul.f32 %v652, 1.442695
      %v806 = vpow.pop %v805
      %v807 = vmul.f32 %v657, 1.442695
      %v808 = vpow.pop %v807
      %v809 = vmul.f32 %v660, 1.442695
      %v810 = vpow.pop %v809
      %v811 = vmul.f32 %v665, 1.442695
      %v812 = vpow.pop %v811
      %v813 = vmul.f32 %v668, 1.442695
      %v814 = vpow.pop %v813
      %v815 = vmul.f32 %v673, 1.442695
      %v816 = vpow.pop %v815
      %v817 = vmul.f32 %v676, 1.442695
      %v818 = vpow.pop %v817
      %v819 = vmul.f32 %v681, 1.442695
      %v820 = vpow.pop %v819
      %v821 = vmul.f32 %v684, 1.442695
      %v822 = vpow.pop %v821
      %v823 = vmul.f32 %v689, 1.442695
      %v824 = vpow.pop %v823
      %v825 = vmul.f32 %v692, 1.442695
      %v826 = vpow.pop %v825
      %v827 = vmul.f32 %v697, 1.442695
      %v828 = vpow.pop %v827
      %v829 = vmul.f32 %v700, 1.442695
      %v830 = vpow.pop %v829
      %v831 = vmul.f32 %v705, 1.442695
      %v832 = vpow.pop %v831
      %v833 = vmul.f32 %v708, 1.442695
      %v834 = vpow.pop %v833
      %v835 = vmul.f32 %v713, 1.442695
      %v836 = vpow.pop %v835
      %v837 = vmul.f32 %v716, 1.442695
      %v838 = vpow.pop %v837
      %v839 = vmul.f32 %v721, 1.442695
      %v840 = vpow.pop %v839
      %v841 = vmul.f32 %v724, 1.442695
      %v842 = vpow.pop %v841
      %v843 = vmul.f32 %v729, 1.442695
      %v844 = vpow.pop %v843
      %v845 = vmul.f32 %v732, 1.442695
      %v846 = vpow.pop %v845
      %v847 = vmul.f32 %v737, 1.442695
      %v848 = vpow.pop %v847
      %v849 = vmul.f32 %v740, 1.442695
      %v850 = vpow.pop %v849
      %v851 = vmul.f32 %v745, 1.442695
      %v852 = vpow.pop %v851
      %v853 = vmul.f32 %v748, 1.442695
      %v854 = vpow.pop %v853
      %v855 = vmul.f32 %v753, 1.442695
      %v856 = vpow.pop %v855
      %v857 = vmul.f32 %v756, 1.442695
      %v858 = vpow.pop %v857
      %v859 = vmul.f32 %v761, 1.442695
      %v860 = vpow.pop %v859
      %v861 = vmul.f32 %v764, 1.442695
      %v862 = vpow.pop %v861
      %v863 = vadd.f32 %v800, 1.0
      %v864 = vadd.f32 %v802, 1.0
      %v865 = vadd.f32 %v804, 1.0
      %v866 = vadd.f32 %v806, 1.0
      %v867 = vadd.f32 %v808, 1.0
      %v868 = vadd.f32 %v810, 1.0
      %v869 = vadd.f32 %v812, 1.0
      %v870 = vadd.f32 %v814, 1.0
      %v871 = vadd.f32 %v816, 1.0
      %v872 = vadd.f32 %v818, 1.0
      %v873 = vadd.f32 %v820, 1.0
      %v874 = vadd.f32 %v822, 1.0
      %v875 = vadd.f32 %v824, 1.0
      %v876 = vadd.f32 %v826, 1.0
      %v877 = vadd.f32 %v828, 1.0
      %v878 = vadd.f32 %v830, 1.0
      %v879 = vadd.f32 %v832, 1.0
      %v880 = vadd.f32 %v834, 1.0
      %v881 = vadd.f32 %v836, 1.0
      %v882 = vadd.f32 %v838, 1.0
      %v883 = vadd.f32 %v840, 1.0
      %v884 = vadd.f32 %v842, 1.0
      %v885 = vadd.f32 %v844, 1.0
      %v886 = vadd.f32 %v846, 1.0
      %v887 = vadd.f32 %v848, 1.0
      %v888 = vadd.f32 %v850, 1.0
      %v889 = vadd.f32 %v852, 1.0
      %v890 = vadd.f32 %v854, 1.0
      %v891 = vadd.f32 %v856, 1.0
      %v892 = vadd.f32 %v858, 1.0
      %v893 = vadd.f32 %v860, 1.0
      %v894 = vadd.f32 %v862, 1.0
      %v895 = vlog2.pop %v863
      %v896 = vmul.f32 %v895, 0.6931472
      %v897 = vlog2.pop %v864
      %v898 = vmul.f32 %v897, 0.6931472
      %v899 = vlog2.pop %v865
      %v900 = vmul.f32 %v899, 0.6931472
      %v901 = vlog2.pop %v866
      %v902 = vmul.f32 %v901, 0.6931472
      %v903 = vlog2.pop %v867
      %v904 = vmul.f32 %v903, 0.6931472
      %v905 = vlog2.pop %v868
      %v906 = vmul.f32 %v905, 0.6931472
      %v907 = vlog2.pop %v869
      %v908 = vmul.f32 %v907, 0.6931472
      %v909 = vlog2.pop %v870
      %v910 = vmul.f32 %v909, 0.6931472
      %v911 = vlog2.pop %v871
      %v912 = vmul.f32 %v911, 0.6931472
      %v913 = vlog2.pop %v872
      %v914 = vmul.f32 %v913, 0.6931472
      %v915 = vlog2.pop %v873
      %v916 = vmul.f32 %v915, 0.6931472
      %v917 = vlog2.pop %v874
      %v918 = vmul.f32 %v917, 0.6931472
      %v919 = vlog2.pop %v875
      %v920 = vmul.f32 %v919, 0.6931472
      %v921 = vlog2.pop %v876
      %v922 = vmul.f32 %v921, 0.6931472
      %v923 = vlog2.pop %v877
      %v924 = vmul.f32 %v923, 0.6931472
      %v925 = vlog2.pop %v878
      %v926 = vmul.f32 %v925, 0.6931472
      %v927 = vlog2.pop %v879
      %v928 = vmul.f32 %v927, 0.6931472
      %v929 = vlog2.pop %v880
      %v930 = vmul.f32 %v929, 0.6931472
      %v931 = vlog2.pop %v881
      %v932 = vmul.f32 %v931, 0.6931472
      %v933 = vlog2.pop %v882
      %v934 = vmul.f32 %v933, 0.6931472
      %v935 = vlog2.pop %v883
      %v936 = vmul.f32 %v935, 0.6931472
      %v937 = vlog2.pop %v884
      %v938 = vmul.f32 %v937, 0.6931472
      %v939 = vlog2.pop %v885
      %v940 = vmul.f32 %v939, 0.6931472
      %v941 = vlog2.pop %v886
      %v942 = vmul.f32 %v941, 0.6931472
      %v943 = vlog2.pop %v887
      %v944 = vmul.f32 %v943, 0.6931472
      %v945 = vlog2.pop %v888
      %v946 = vmul.f32 %v945, 0.6931472
      %v947 = vlog2.pop %v889
      %v948 = vmul.f32 %v947, 0.6931472
      %v949 = vlog2.pop %v890
      %v950 = vmul.f32 %v949, 0.6931472
      %v951 = vlog2.pop %v891
      %v952 = vmul.f32 %v951, 0.6931472
      %v953 = vlog2.pop %v892
      %v954 = vmul.f32 %v953, 0.6931472
      %v955 = vlog2.pop %v893
      %v956 = vmul.f32 %v955, 0.6931472
      %v957 = vlog2.pop %v894
      %v958 = vmul.f32 %v957, 0.6931472
      %v959 = vsel %vm767, %v641, %v896
      %v960 = vsel %vm768, %v644, %v898
      %v961 = vsel %vm769, %v649, %v900
      %v962 = vsel %vm770, %v652, %v902
      %v963 = vsel %vm771, %v657, %v904
      %v964 = vsel %vm772, %v660, %v906
      %v965 = vsel %vm773, %v665, %v908
      %v966 = vsel %vm774, %v668, %v910
      %v967 = vsel %vm775, %v673, %v912
      %v968 = vsel %vm776, %v676, %v914
      %v969 = vsel %vm777, %v681, %v916
      %v970 = vsel %vm778, %v684, %v918
      %v971 = vsel %vm779, %v689, %v920
      %v972 = vsel %vm780, %v692, %v922
      %v973 = vsel %vm781, %v697, %v924
      %v974 = vsel %vm782, %v700, %v926
      %v975 = vsel %vm783, %v705, %v928
      %v976 = vsel %vm784, %v708, %v930
      %v977 = vsel %vm785, %v713, %v932
      %v978 = vsel %vm786, %v716, %v934
      %v979 = vsel %vm787, %v721, %v936
      %v980 = vsel %vm788, %v724, %v938
      %v981 = vsel %vm789, %v729, %v940
      %v982 = vsel %vm790, %v732, %v942
      %v983 = vsel %vm791, %v737, %v944
      %v984 = vsel %vm792, %v740, %v946
      %v985 = vsel %vm793, %v745, %v948
      %v986 = vsel %vm794, %v748, %v950
      %v987 = vsel %vm795, %v753, %v952
      %v988 = vsel %vm796, %v756, %v954
      %v989 = vsel %vm797, %v761, %v956
      %v990 = vsel %vm798, %v764, %v958
      %991 = vst.msk [vmem:[%s457] sm:$0xff] %vm557, %v959
      %992 = vst.msk [vmem:[%s457 + $0x8] sm:$0xff] %vm557, %v960
      %993 = vst.msk [vmem:[%s457 + $0x10] sm:$0xff] %vm557, %v961
      %994 = vst.msk [vmem:[%s457 + $0x18] sm:$0xff] %vm557, %v962
      %995 = vst.msk [vmem:[%s457 + $0x20] sm:$0xff] %vm557, %v963
      %996 = vst.msk [vmem:[%s457 + $0x28] sm:$0xff] %vm557, %v964
      %997 = vst.msk [vmem:[%s457 + $0x30] sm:$0xff] %vm557, %v965
      %998 = vst.msk [vmem:[%s457 + $0x38] sm:$0xff] %vm557, %v966
      %999 = vst.msk [vmem:[%s457 + $0x40] sm:$0xff] %vm557, %v967
      %1000 = vst.msk [vmem:[%s457 + $0x48] sm:$0xff] %vm557, %v968
      %1001 = vst.msk [vmem:[%s457 + $0x50] sm:$0xff] %vm557, %v969
      %1002 = vst.msk [vmem:[%s457 + $0x58] sm:$0xff] %vm557, %v970
      %1003 = vst.msk [vmem:[%s457 + $0x60] sm:$0xff] %vm557, %v971
      %1004 = vst.msk [vmem:[%s457 + $0x68] sm:$0xff] %vm557, %v972
      %1005 = vst.msk [vmem:[%s457 + $0x70] sm:$0xff] %vm557, %v973
      %1006 = vst.msk [vmem:[%s457 + $0x78] sm:$0xff] %vm557, %v974
      %1007 = vst.msk [vmem:[%s457 + $0x80] sm:$0xff] %vm557, %v975
      %1008 = vst.msk [vmem:[%s457 + $0x88] sm:$0xff] %vm557, %v976
      %1009 = vst.msk [vmem:[%s457 + $0x90] sm:$0xff] %vm557, %v977
      %1010 = vst.msk [vmem:[%s457 + $0x98] sm:$0xff] %vm557, %v978
      %1011 = vst.msk [vmem:[%s457 + $0xa0] sm:$0xff] %vm557, %v979
      %1012 = vst.msk [vmem:[%s457 + $0xa8] sm:$0xff] %vm557, %v980
      %1013 = vst.msk [vmem:[%s457 + $0xb0] sm:$0xff] %vm557, %v981
      %1014 = vst.msk [vmem:[%s457 + $0xb8] sm:$0xff] %vm557, %v982
      %1015 = vst.msk [vmem:[%s457 + $0xc0] sm:$0xff] %vm557, %v983
      %1016 = vst.msk [vmem:[%s457 + $0xc8] sm:$0xff] %vm557, %v984
      %1017 = vst.msk [vmem:[%s457 + $0xd0] sm:$0xff] %vm557, %v985
      %1018 = vst.msk [vmem:[%s457 + $0xd8] sm:$0xff] %vm557, %v986
      %1019 = vst.msk [vmem:[%s457 + $0xe0] sm:$0xff] %vm557, %v987
      %1020 = vst.msk [vmem:[%s457 + $0xe8] sm:$0xff] %vm557, %v988
      %1021 = vst.msk [vmem:[%s457 + $0xf0] sm:$0xff] %vm557, %v989
      %1022 = vst.msk [vmem:[%s457 + $0xf8] sm:$0xff] %vm557, %v990
      %v1023 = vmul.f32 %v959, %v490
      %v1024 = vmul.f32 %v960, %v491
      %v1025 = vmul.f32 %v961, %v492
      %v1026 = vmul.f32 %v962, %v493
      %v1027 = vmul.f32 %v963, %v494
      %v1028 = vmul.f32 %v964, %v495
      %v1029 = vmul.f32 %v965, %v496
      %v1030 = vmul.f32 %v966, %v497
      %v1031 = vmul.f32 %v967, %v498
      %v1032 = vmul.f32 %v968, %v499
      %v1033 = vmul.f32 %v969, %v500
      %v1034 = vmul.f32 %v970, %v501
      %v1035 = vmul.f32 %v971, %v502
      %v1036 = vmul.f32 %v972, %v503
      %v1037 = vmul.f32 %v973, %v504
      %v1038 = vmul.f32 %v974, %v505
      %v1039 = vmul.f32 %v975, %v506
      %v1040 = vmul.f32 %v976, %v507
      %v1041 = vmul.f32 %v977, %v508
      %v1042 = vmul.f32 %v978, %v509
      %v1043 = vmul.f32 %v979, %v510
      %v1044 = vmul.f32 %v980, %v511
      %v1045 = vmul.f32 %v981, %v512
      %v1046 = vmul.f32 %v982, %v513
      %v1047 = vmul.f32 %v983, %v514
      %v1048 = vmul.f32 %v984, %v515
      %v1049 = vmul.f32 %v985, %v516
      %v1050 = vmul.f32 %v986, %v517
      %v1051 = vmul.f32 %v987, %v518
      %v1052 = vmul.f32 %v988, %v519
      %v1053 = vmul.f32 %v989, %v520
      %v1054 = vmul.f32 %v990, %v521
      %1055 = vst.msk [vmem:[%s467] sm:$0xff] %vm557, %v1023
      %1056 = vst.msk [vmem:[%s467 + $0x8] sm:$0xff] %vm557, %v1024
      %1057 = vst.msk [vmem:[%s467 + $0x10] sm:$0xff] %vm557, %v1025
      %1058 = vst.msk [vmem:[%s467 + $0x18] sm:$0xff] %vm557, %v1026
      %1059 = vst.msk [vmem:[%s467 + $0x20] sm:$0xff] %vm557, %v1027
      %1060 = vst.msk [vmem:[%s467 + $0x28] sm:$0xff] %vm557, %v1028
      %1061 = vst.msk [vmem:[%s467 + $0x30] sm:$0xff] %vm557, %v1029
      %1062 = vst.msk [vmem:[%s467 + $0x38] sm:$0xff] %vm557, %v1030
      %1063 = vst.msk [vmem:[%s467 + $0x40] sm:$0xff] %vm557, %v1031
      %1064 = vst.msk [vmem:[%s467 + $0x48] sm:$0xff] %vm557, %v1032
      %1065 = vst.msk [vmem:[%s467 + $0x50] sm:$0xff] %vm557, %v1033
      %1066 = vst.msk [vmem:[%s467 + $0x58] sm:$0xff] %vm557, %v1034
      %1067 = vst.msk [vmem:[%s467 + $0x60] sm:$0xff] %vm557, %v1035
      %1068 = vst.msk [vmem:[%s467 + $0x68] sm:$0xff] %vm557, %v1036
      %1069 = vst.msk [vmem:[%s467 + $0x70] sm:$0xff] %vm557, %v1037
      %1070 = vst.msk [vmem:[%s467 + $0x78] sm:$0xff] %vm557, %v1038
      %1071 = vst.msk [vmem:[%s467 + $0x80] sm:$0xff] %vm557, %v1039
      %1072 = vst.msk [vmem:[%s467 + $0x88] sm:$0xff] %vm557, %v1040
      %1073 = vst.msk [vmem:[%s467 + $0x90] sm:$0xff] %vm557, %v1041
      %1074 = vst.msk [vmem:[%s467 + $0x98] sm:$0xff] %vm557, %v1042
      %1075 = vst.msk [vmem:[%s467 + $0xa0] sm:$0xff] %vm557, %v1043
      %1076 = vst.msk [vmem:[%s467 + $0xa8] sm:$0xff] %vm557, %v1044
      %1077 = vst.msk [vmem:[%s467 + $0xb0] sm:$0xff] %vm557, %v1045
      %1078 = vst.msk [vmem:[%s467 + $0xb8] sm:$0xff] %vm557, %v1046
      %1079 = vst.msk [vmem:[%s467 + $0xc0] sm:$0xff] %vm557, %v1047
      %1080 = vst.msk [vmem:[%s467 + $0xc8] sm:$0xff] %vm557, %v1048
      %1081 = vst.msk [vmem:[%s467 + $0xd0] sm:$0xff] %vm557, %v1049
      %1082 = vst.msk [vmem:[%s467 + $0xd8] sm:$0xff] %vm557, %v1050
      %1083 = vst.msk [vmem:[%s467 + $0xe0] sm:$0xff] %vm557, %v1051
      %1084 = vst.msk [vmem:[%s467 + $0xe8] sm:$0xff] %vm557, %v1052
      %1085 = vst.msk [vmem:[%s467 + $0xf0] sm:$0xff] %vm557, %v1053
      %1086 = vst.msk [vmem:[%s467 + $0xf8] sm:$0xff] %vm557, %v1054
      %v1087 = vld [vmem:[%s440] sm:$0xff]
      %v1088 = vld [vmem:[%s440 + $0x8] sm:$0xff]
      %v1089 = vld [vmem:[%s440 + $0x10] sm:$0xff]
      %v1090 = vld [vmem:[%s440 + $0x18] sm:$0xff]
      %v1091 = vld [vmem:[%s440 + $0x20] sm:$0xff]
      %v1092 = vld [vmem:[%s440 + $0x28] sm:$0xff]
      %v1093 = vld [vmem:[%s440 + $0x30] sm:$0xff]
      %v1094 = vld [vmem:[%s440 + $0x38] sm:$0xff]
      %v1095 = vpack.c.bf16 %v1088, %v1087
      %v1096 = vpack.c.bf16 %v1090, %v1089
      %v1097 = vpack.c.bf16 %v1092, %v1091
      %v1098 = vpack.c.bf16 %v1094, %v1093
      %1099 = vmatprep.subr.bf16.mxu0 0
      %1100 = vmatpush1.bf16.msra.mxu0 0
      %1101 = vmatprep.subr.bf16.mxu0 0
      %1102 = vmatpush1.bf16.msra.mxu0 0
      %1103 = vmatprep.subr.bf16.mxu0 0
      %1104 = vmatpush1.bf16.msra.mxu0 0
      %1105 = vmatprep.subr.bf16.mxu0 0
      %1106 = vmatpush1.bf16.msra.mxu0 0
      %1107 = vmatprep.subr.bf16.mxu0 0
      %1108 = vmatpush1.bf16.msra.mxu0 %v1098
      %1109 = vmatprep.subr.bf16.mxu0 0
      %1110 = vmatpush1.bf16.msra.mxu0 %v1097
      %1111 = vmatprep.subr.bf16.mxu0 0
      %1112 = vmatpush1.bf16.msra.mxu0 %v1096
      %1113 = vmatprep.subr.bf16.mxu0 0
      %1114 = vmatpush1.bf16.msra.mxu0 %v1095
      %1115 = vmatprep.subr.bf16.mxu0 0
      %1116 = vmatpush2.bf16.msra.mxu0 0
      %1117 = vmatprep.subr.bf16.mxu0 0
      %1118 = vmatpush2.bf16.msra.mxu0 0
      %1119 = vmatprep.subr.bf16.mxu0 0
      %1120 = vmatpush2.bf16.msra.mxu0 0
      %1121 = vmatprep.subr.bf16.mxu0 0
      %1122 = vmatpush2.bf16.msra.mxu0 0
      %1123 = vmatprep.subr.bf16.mxu0 0
      %1124 = vmatpush2.bf16.msra.mxu0 0
      %1125 = vmatprep.subr.bf16.mxu0 0
      %1126 = vmatpush2.bf16.msra.mxu0 0
      %1127 = vmatprep.subr.bf16.mxu0 0
      %1128 = vmatpush2.bf16.msra.mxu0 0
      %1129 = vmatprep.subr.bf16.mxu0 0
      %1130 = vmatpush2.bf16.msra.mxu0 0
      %1131 = vmatprep.mubr.bf16.mxu0 0
      %1132 = vmatmul.mubr.bf16.gmra.mxu0 %v559
      %v1133 = vpop.f32.mrf.mxu0
      %v1134 = vadd.f32 0.0, %v1133
      %v1135 = vpop.f32.mrf.mxu0
      %v1136 = vpop.f32.mrf.mxu0
      %v1137 = vadd.f32 0.0, %v1136
      %v1138 = vpop.f32.mrf.mxu0
      %1139 = vmatprep.mubr.bf16.mxu0 0
      %1140 = vmatmul.mubr.bf16.gmra.mxu0 %v562
      %v1141 = vpop.f32.mrf.mxu0
      %v1142 = vadd.f32 0.0, %v1141
      %v1143 = vpop.f32.mrf.mxu0
      %v1144 = vpop.f32.mrf.mxu0
      %v1145 = vadd.f32 0.0, %v1144
      %v1146 = vpop.f32.mrf.mxu0
      %1147 = vmatprep.mubr.bf16.mxu0 0
      %1148 = vmatmul.mubr.bf16.gmra.mxu0 %v565
      %v1149 = vpop.f32.mrf.mxu0
      %v1150 = vadd.f32 0.0, %v1149
      %v1151 = vpop.f32.mrf.mxu0
      %v1152 = vpop.f32.mrf.mxu0
      %v1153 = vadd.f32 0.0, %v1152
      %v1154 = vpop.f32.mrf.mxu0
      %1155 = vmatprep.mubr.bf16.mxu0 0
      %1156 = vmatmul.mubr.bf16.gmra.mxu0 %v568
      %v1157 = vpop.f32.mrf.mxu0
      %v1158 = vadd.f32 0.0, %v1157
      %v1159 = vpop.f32.mrf.mxu0
      %v1160 = vpop.f32.mrf.mxu0
      %v1161 = vadd.f32 0.0, %v1160
      %v1162 = vpop.f32.mrf.mxu0
      %1163 = vmatprep.mubr.bf16.mxu0 0
      %1164 = vmatmul.mubr.bf16.gmra.mxu0 %v571
      %v1165 = vpop.f32.mrf.mxu0
      %v1166 = vadd.f32 0.0, %v1165
      %v1167 = vpop.f32.mrf.mxu0
      %v1168 = vpop.f32.mrf.mxu0
      %v1169 = vadd.f32 0.0, %v1168
      %v1170 = vpop.f32.mrf.mxu0
      %1171 = vmatprep.mubr.bf16.mxu0 0
      %1172 = vmatmul.mubr.bf16.gmra.mxu0 %v574
      %v1173 = vpop.f32.mrf.mxu0
      %v1174 = vadd.f32 0.0, %v1173
      %v1175 = vpop.f32.mrf.mxu0
      %v1176 = vpop.f32.mrf.mxu0
      %v1177 = vadd.f32 0.0, %v1176
      %v1178 = vpop.f32.mrf.mxu0
      %1179 = vmatprep.mubr.bf16.mxu0 0
      %1180 = vmatmul.mubr.bf16.gmra.mxu0 %v577
      %v1181 = vpop.f32.mrf.mxu0
      %v1182 = vadd.f32 0.0, %v1181
      %v1183 = vpop.f32.mrf.mxu0
      %v1184 = vpop.f32.mrf.mxu0
      %v1185 = vadd.f32 0.0, %v1184
      %v1186 = vpop.f32.mrf.mxu0
      %1187 = vmatprep.mubr.bf16.mxu0 0
      %1188 = vmatmul.mubr.bf16.gmra.mxu0 %v580
      %v1189 = vpop.f32.mrf.mxu0
      %v1190 = vadd.f32 0.0, %v1189
      %v1191 = vpop.f32.mrf.mxu0
      %v1192 = vpop.f32.mrf.mxu0
      %v1193 = vadd.f32 0.0, %v1192
      %v1194 = vpop.f32.mrf.mxu0
      %1195 = vmatprep.mubr.bf16.mxu0 0
      %1196 = vmatmul.mubr.bf16.gmra.mxu0 %v583
      %v1197 = vpop.f32.mrf.mxu0
      %v1198 = vadd.f32 0.0, %v1197
      %v1199 = vpop.f32.mrf.mxu0
      %v1200 = vpop.f32.mrf.mxu0
      %v1201 = vadd.f32 0.0, %v1200
      %v1202 = vpop.f32.mrf.mxu0
      %1203 = vmatprep.mubr.bf16.mxu0 0
      %1204 = vmatmul.mubr.bf16.gmra.mxu0 %v586
      %v1205 = vpop.f32.mrf.mxu0
      %v1206 = vadd.f32 0.0, %v1205
      %v1207 = vpop.f32.mrf.mxu0
      %v1208 = vpop.f32.mrf.mxu0
      %v1209 = vadd.f32 0.0, %v1208
      %v1210 = vpop.f32.mrf.mxu0
      %1211 = vmatprep.mubr.bf16.mxu0 0
      %1212 = vmatmul.mubr.bf16.gmra.mxu0 %v589
      %v1213 = vpop.f32.mrf.mxu0
      %v1214 = vadd.f32 0.0, %v1213
      %v1215 = vpop.f32.mrf.mxu0
      %v1216 = vpop.f32.mrf.mxu0
      %v1217 = vadd.f32 0.0, %v1216
      %v1218 = vpop.f32.mrf.mxu0
      %1219 = vmatprep.mubr.bf16.mxu0 0
      %1220 = vmatmul.mubr.bf16.gmra.mxu0 %v592
      %v1221 = vpop.f32.mrf.mxu0
      %v1222 = vadd.f32 0.0, %v1221
      %v1223 = vpop.f32.mrf.mxu0
      %v1224 = vpop.f32.mrf.mxu0
      %v1225 = vadd.f32 0.0, %v1224
      %v1226 = vpop.f32.mrf.mxu0
      %1227 = vmatprep.mubr.bf16.mxu0 0
      %1228 = vmatmul.mubr.bf16.gmra.mxu0 %v595
      %v1229 = vpop.f32.mrf.mxu0
      %v1230 = vadd.f32 0.0, %v1229
      %v1231 = vpop.f32.mrf.mxu0
      %v1232 = vpop.f32.mrf.mxu0
      %v1233 = vadd.f32 0.0, %v1232
      %v1234 = vpop.f32.mrf.mxu0
      %1235 = vmatprep.mubr.bf16.mxu0 0
      %1236 = vmatmul.mubr.bf16.gmra.mxu0 %v598
      %v1237 = vpop.f32.mrf.mxu0
      %v1238 = vadd.f32 0.0, %v1237
      %v1239 = vpop.f32.mrf.mxu0
      %v1240 = vpop.f32.mrf.mxu0
      %v1241 = vadd.f32 0.0, %v1240
      %v1242 = vpop.f32.mrf.mxu0
      %1243 = vmatprep.mubr.bf16.mxu0 0
      %1244 = vmatmul.mubr.bf16.gmra.mxu0 %v601
      %v1245 = vpop.f32.mrf.mxu0
      %v1246 = vadd.f32 0.0, %v1245
      %v1247 = vpop.f32.mrf.mxu0
      %v1248 = vpop.f32.mrf.mxu0
      %v1249 = vadd.f32 0.0, %v1248
      %v1250 = vpop.f32.mrf.mxu0
      %1251 = vmatprep.mubr.bf16.mxu0 0
      %1252 = vmatmul.mubr.bf16.gmra.mxu0 %v604
      %v1253 = vpop.f32.mrf.mxu0
      %v1254 = vadd.f32 0.0, %v1253
      %v1255 = vpop.f32.mrf.mxu0
      %v1256 = vpop.f32.mrf.mxu0
      %v1257 = vadd.f32 0.0, %v1256
      %v1258 = vpop.f32.mrf.mxu0
      %1259 = vdwg.mxu0
      %vm1260 = vcmask 130048
      %1261 = vst.msk [vmem:[%s477] sm:$0xff] %vm1260, %v1134
      %1262 = vst.msk [vmem:[%s477 + $0x8] sm:$0xff] %vm1260, %v1137
      %1263 = vst.msk [vmem:[%s477 + $0x10] sm:$0xff] %vm1260, %v1142
      %1264 = vst.msk [vmem:[%s477 + $0x18] sm:$0xff] %vm1260, %v1145
      %1265 = vst.msk [vmem:[%s477 + $0x20] sm:$0xff] %vm1260, %v1150
      %1266 = vst.msk [vmem:[%s477 + $0x28] sm:$0xff] %vm1260, %v1153
      %1267 = vst.msk [vmem:[%s477 + $0x30] sm:$0xff] %vm1260, %v1158
      %1268 = vst.msk [vmem:[%s477 + $0x38] sm:$0xff] %vm1260, %v1161
      %1269 = vst.msk [vmem:[%s477 + $0x40] sm:$0xff] %vm1260, %v1166
      %1270 = vst.msk [vmem:[%s477 + $0x48] sm:$0xff] %vm1260, %v1169
      %1271 = vst.msk [vmem:[%s477 + $0x50] sm:$0xff] %vm1260, %v1174
      %1272 = vst.msk [vmem:[%s477 + $0x58] sm:$0xff] %vm1260, %v1177
      %1273 = vst.msk [vmem:[%s477 + $0x60] sm:$0xff] %vm1260, %v1182
      %1274 = vst.msk [vmem:[%s477 + $0x68] sm:$0xff] %vm1260, %v1185
      %1275 = vst.msk [vmem:[%s477 + $0x70] sm:$0xff] %vm1260, %v1190
      %1276 = vst.msk [vmem:[%s477 + $0x78] sm:$0xff] %vm1260, %v1193
      %1277 = vst.msk [vmem:[%s477 + $0x80] sm:$0xff] %vm1260, %v1198
      %1278 = vst.msk [vmem:[%s477 + $0x88] sm:$0xff] %vm1260, %v1201
      %1279 = vst.msk [vmem:[%s477 + $0x90] sm:$0xff] %vm1260, %v1206
      %1280 = vst.msk [vmem:[%s477 + $0x98] sm:$0xff] %vm1260, %v1209
      %1281 = vst.msk [vmem:[%s477 + $0xa0] sm:$0xff] %vm1260, %v1214
      %1282 = vst.msk [vmem:[%s477 + $0xa8] sm:$0xff] %vm1260, %v1217
      %1283 = vst.msk [vmem:[%s477 + $0xb0] sm:$0xff] %vm1260, %v1222
      %1284 = vst.msk [vmem:[%s477 + $0xb8] sm:$0xff] %vm1260, %v1225
      %1285 = vst.msk [vmem:[%s477 + $0xc0] sm:$0xff] %vm1260, %v1230
      %1286 = vst.msk [vmem:[%s477 + $0xc8] sm:$0xff] %vm1260, %v1233
      %1287 = vst.msk [vmem:[%s477 + $0xd0] sm:$0xff] %vm1260, %v1238
      %1288 = vst.msk [vmem:[%s477 + $0xd8] sm:$0xff] %vm1260, %v1241
      %1289 = vst.msk [vmem:[%s477 + $0xe0] sm:$0xff] %vm1260, %v1246
      %1290 = vst.msk [vmem:[%s477 + $0xe8] sm:$0xff] %vm1260, %v1249
      %1291 = vst.msk [vmem:[%s477 + $0xf0] sm:$0xff] %vm1260, %v1254
      %1292 = vst.msk [vmem:[%s477 + $0xf8] sm:$0xff] %vm1260, %v1257
      %v1293 = vld [vmem:[%s445] sm:$0xff]
      %v1294 = vld [vmem:[%s445 + $0x8] sm:$0xff]
      %v1295 = vld [vmem:[%s445 + $0x10] sm:$0xff]
      %v1296 = vld [vmem:[%s445 + $0x18] sm:$0xff]
      %v1297 = vld [vmem:[%s445 + $0x20] sm:$0xff]
      %v1298 = vld [vmem:[%s445 + $0x28] sm:$0xff]
      %v1299 = vld [vmem:[%s445 + $0x30] sm:$0xff]
      %v1300 = vld [vmem:[%s445 + $0x38] sm:$0xff]
      %v1301 = vpack.c.bf16 %v1294, %v1293
      %v1302 = vpack.c.bf16 %v1296, %v1295
      %v1303 = vpack.c.bf16 %v1298, %v1297
      %v1304 = vpack.c.bf16 %v1300, %v1299
      %1305 = vmatprep.subr.bf16.mxu0 0
      %1306 = vmatpush1.bf16.msra.mxu0 0
      %1307 = vmatprep.subr.bf16.mxu0 0
      %1308 = vmatpush1.bf16.msra.mxu0 0
      %1309 = vmatprep.subr.bf16.mxu0 0
      %1310 = vmatpush1.bf16.msra.mxu0 0
      %1311 = vmatprep.subr.bf16.mxu0 0
      %1312 = vmatpush1.bf16.msra.mxu0 0
      %1313 = vmatprep.subr.bf16.mxu0 0
      %1314 = vmatpush1.bf16.msra.mxu0 %v1304
      %1315 = vmatprep.subr.bf16.mxu0 0
      %1316 = vmatpush1.bf16.msra.mxu0 %v1303
      %1317 = vmatprep.subr.bf16.mxu0 0
      %1318 = vmatpush1.bf16.msra.mxu0 %v1302
      %1319 = vmatprep.subr.bf16.mxu0 0
      %1320 = vmatpush1.bf16.msra.mxu0 %v1301
      %1321 = vmatprep.subr.bf16.mxu0 0
      %1322 = vmatpush2.bf16.msra.mxu0 0
      %1323 = vmatprep.subr.bf16.mxu0 0
      %1324 = vmatpush2.bf16.msra.mxu0 0
      %1325 = vmatprep.subr.bf16.mxu0 0
      %1326 = vmatpush2.bf16.msra.mxu0 0
      %1327 = vmatprep.subr.bf16.mxu0 0
      %1328 = vmatpush2.bf16.msra.mxu0 0
      %1329 = vmatprep.subr.bf16.mxu0 0
      %1330 = vmatpush2.bf16.msra.mxu0 0
      %1331 = vmatprep.subr.bf16.mxu0 0
      %1332 = vmatpush2.bf16.msra.mxu0 0
      %1333 = vmatprep.subr.bf16.mxu0 0
      %1334 = vmatpush2.bf16.msra.mxu0 0
      %1335 = vmatprep.subr.bf16.mxu0 0
      %1336 = vmatpush2.bf16.msra.mxu0 0
      %1337 = vmatprep.mubr.bf16.mxu0 0
      %1338 = vmatmul.mubr.bf16.gmra.mxu0 %v559
      %v1339 = vpop.f32.mrf.mxu0
      %v1340 = vadd.f32 0.0, %v1339
      %v1341 = vpop.f32.mrf.mxu0
      %v1342 = vpop.f32.mrf.mxu0
      %v1343 = vadd.f32 0.0, %v1342
      %v1344 = vpop.f32.mrf.mxu0
      %1345 = vmatprep.mubr.bf16.mxu0 0
      %1346 = vmatmul.mubr.bf16.gmra.mxu0 %v562
      %v1347 = vpop.f32.mrf.mxu0
      %v1348 = vadd.f32 0.0, %v1347
      %v1349 = vpop.f32.mrf.mxu0
      %v1350 = vpop.f32.mrf.mxu0
      %v1351 = vadd.f32 0.0, %v1350
      %v1352 = vpop.f32.mrf.mxu0
      %1353 = vmatprep.mubr.bf16.mxu0 0
      %1354 = vmatmul.mubr.bf16.gmra.mxu0 %v565
      %v1355 = vpop.f32.mrf.mxu0
      %v1356 = vadd.f32 0.0, %v1355
      %v1357 = vpop.f32.mrf.mxu0
      %v1358 = vpop.f32.mrf.mxu0
      %v1359 = vadd.f32 0.0, %v1358
      %v1360 = vpop.f32.mrf.mxu0
      %1361 = vmatprep.mubr.bf16.mxu0 0
      %1362 = vmatmul.mubr.bf16.gmra.mxu0 %v568
      %v1363 = vpop.f32.mrf.mxu0
      %v1364 = vadd.f32 0.0, %v1363
      %v1365 = vpop.f32.mrf.mxu0
      %v1366 = vpop.f32.mrf.mxu0
      %v1367 = vadd.f32 0.0, %v1366
      %v1368 = vpop.f32.mrf.mxu0
      %1369 = vmatprep.mubr.bf16.mxu0 0
      %1370 = vmatmul.mubr.bf16.gmra.mxu0 %v571
      %v1371 = vpop.f32.mrf.mxu0
      %v1372 = vadd.f32 0.0, %v1371
      %v1373 = vpop.f32.mrf.mxu0
      %v1374 = vpop.f32.mrf.mxu0
      %v1375 = vadd.f32 0.0, %v1374
      %v1376 = vpop.f32.mrf.mxu0
      %1377 = vmatprep.mubr.bf16.mxu0 0
      %1378 = vmatmul.mubr.bf16.gmra.mxu0 %v574
      %v1379 = vpop.f32.mrf.mxu0
      %v1380 = vadd.f32 0.0, %v1379
      %v1381 = vpop.f32.mrf.mxu0
      %v1382 = vpop.f32.mrf.mxu0
      %v1383 = vadd.f32 0.0, %v1382
      %v1384 = vpop.f32.mrf.mxu0
      %1385 = vmatprep.mubr.bf16.mxu0 0
      %1386 = vmatmul.mubr.bf16.gmra.mxu0 %v577
      %v1387 = vpop.f32.mrf.mxu0
      %v1388 = vadd.f32 0.0, %v1387
      %v1389 = vpop.f32.mrf.mxu0
      %v1390 = vpop.f32.mrf.mxu0
      %v1391 = vadd.f32 0.0, %v1390
      %v1392 = vpop.f32.mrf.mxu0
      %1393 = vmatprep.mubr.bf16.mxu0 0
      %1394 = vmatmul.mubr.bf16.gmra.mxu0 %v580
      %v1395 = vpop.f32.mrf.mxu0
      %v1396 = vadd.f32 0.0, %v1395
      %v1397 = vpop.f32.mrf.mxu0
      %v1398 = vpop.f32.mrf.mxu0
      %v1399 = vadd.f32 0.0, %v1398
      %v1400 = vpop.f32.mrf.mxu0
      %1401 = vmatprep.mubr.bf16.mxu0 0
      %1402 = vmatmul.mubr.bf16.gmra.mxu0 %v583
      %v1403 = vpop.f32.mrf.mxu0
      %v1404 = vadd.f32 0.0, %v1403
      %v1405 = vpop.f32.mrf.mxu0
      %v1406 = vpop.f32.mrf.mxu0
      %v1407 = vadd.f32 0.0, %v1406
      %v1408 = vpop.f32.mrf.mxu0
      %1409 = vmatprep.mubr.bf16.mxu0 0
      %1410 = vmatmul.mubr.bf16.gmra.mxu0 %v586
      %v1411 = vpop.f32.mrf.mxu0
      %v1412 = vadd.f32 0.0, %v1411
      %v1413 = vpop.f32.mrf.mxu0
      %v1414 = vpop.f32.mrf.mxu0
      %v1415 = vadd.f32 0.0, %v1414
      %v1416 = vpop.f32.mrf.mxu0
      %1417 = vmatprep.mubr.bf16.mxu0 0
      %1418 = vmatmul.mubr.bf16.gmra.mxu0 %v589
      %v1419 = vpop.f32.mrf.mxu0
      %v1420 = vadd.f32 0.0, %v1419
      %v1421 = vpop.f32.mrf.mxu0
      %v1422 = vpop.f32.mrf.mxu0
      %v1423 = vadd.f32 0.0, %v1422
      %v1424 = vpop.f32.mrf.mxu0
      %1425 = vmatprep.mubr.bf16.mxu0 0
      %1426 = vmatmul.mubr.bf16.gmra.mxu0 %v592
      %v1427 = vpop.f32.mrf.mxu0
      %v1428 = vadd.f32 0.0, %v1427
      %v1429 = vpop.f32.mrf.mxu0
      %v1430 = vpop.f32.mrf.mxu0
      %v1431 = vadd.f32 0.0, %v1430
      %v1432 = vpop.f32.mrf.mxu0
      %1433 = vmatprep.mubr.bf16.mxu0 0
      %1434 = vmatmul.mubr.bf16.gmra.mxu0 %v595
      %v1435 = vpop.f32.mrf.mxu0
      %v1436 = vadd.f32 0.0, %v1435
      %v1437 = vpop.f32.mrf.mxu0
      %v1438 = vpop.f32.mrf.mxu0
      %v1439 = vadd.f32 0.0, %v1438
      %v1440 = vpop.f32.mrf.mxu0
      %1441 = vmatprep.mubr.bf16.mxu0 0
      %1442 = vmatmul.mubr.bf16.gmra.mxu0 %v598
      %v1443 = vpop.f32.mrf.mxu0
      %v1444 = vadd.f32 0.0, %v1443
      %v1445 = vpop.f32.mrf.mxu0
      %v1446 = vpop.f32.mrf.mxu0
      %v1447 = vadd.f32 0.0, %v1446
      %v1448 = vpop.f32.mrf.mxu0
      %1449 = vmatprep.mubr.bf16.mxu0 0
      %1450 = vmatmul.mubr.bf16.gmra.mxu0 %v601
      %v1451 = vpop.f32.mrf.mxu0
      %v1452 = vadd.f32 0.0, %v1451
      %v1453 = vpop.f32.mrf.mxu0
      %v1454 = vpop.f32.mrf.mxu0
      %v1455 = vadd.f32 0.0, %v1454
      %v1456 = vpop.f32.mrf.mxu0
      %1457 = vmatprep.mubr.bf16.mxu0 0
      %1458 = vmatmul.mubr.bf16.gmra.mxu0 %v604
      %v1459 = vpop.f32.mrf.mxu0
      %v1460 = vadd.f32 0.0, %v1459
      %v1461 = vpop.f32.mrf.mxu0
      %v1462 = vpop.f32.mrf.mxu0
      %v1463 = vadd.f32 0.0, %v1462
      %v1464 = vpop.f32.mrf.mxu0
      %1465 = vdwg.mxu0
      %1466 = vst.msk [vmem:[%s487] sm:$0xff] %vm1260, %v1340
      %1467 = vst.msk [vmem:[%s487 + $0x8] sm:$0xff] %vm1260, %v1343
      %1468 = vst.msk [vmem:[%s487 + $0x10] sm:$0xff] %vm1260, %v1348
      %1469 = vst.msk [vmem:[%s487 + $0x18] sm:$0xff] %vm1260, %v1351
      %1470 = vst.msk [vmem:[%s487 + $0x20] sm:$0xff] %vm1260, %v1356
      %1471 = vst.msk [vmem:[%s487 + $0x28] sm:$0xff] %vm1260, %v1359
      %1472 = vst.msk [vmem:[%s487 + $0x30] sm:$0xff] %vm1260, %v1364
      %1473 = vst.msk [vmem:[%s487 + $0x38] sm:$0xff] %vm1260, %v1367
      %1474 = vst.msk [vmem:[%s487 + $0x40] sm:$0xff] %vm1260, %v1372
      %1475 = vst.msk [vmem:[%s487 + $0x48] sm:$0xff] %vm1260, %v1375
      %1476 = vst.msk [vmem:[%s487 + $0x50] sm:$0xff] %vm1260, %v1380
      %1477 = vst.msk [vmem:[%s487 + $0x58] sm:$0xff] %vm1260, %v1383
      %1478 = vst.msk [vmem:[%s487 + $0x60] sm:$0xff] %vm1260, %v1388
      %1479 = vst.msk [vmem:[%s487 + $0x68] sm:$0xff] %vm1260, %v1391
      %1480 = vst.msk [vmem:[%s487 + $0x70] sm:$0xff] %vm1260, %v1396
      %1481 = vst.msk [vmem:[%s487 + $0x78] sm:$0xff] %vm1260, %v1399
      %1482 = vst.msk [vmem:[%s487 + $0x80] sm:$0xff] %vm1260, %v1404
      %1483 = vst.msk [vmem:[%s487 + $0x88] sm:$0xff] %vm1260, %v1407
      %1484 = vst.msk [vmem:[%s487 + $0x90] sm:$0xff] %vm1260, %v1412
      %1485 = vst.msk [vmem:[%s487 + $0x98] sm:$0xff] %vm1260, %v1415
      %1486 = vst.msk [vmem:[%s487 + $0xa0] sm:$0xff] %vm1260, %v1420
      %1487 = vst.msk [vmem:[%s487 + $0xa8] sm:$0xff] %vm1260, %v1423
      %1488 = vst.msk [vmem:[%s487 + $0xb0] sm:$0xff] %vm1260, %v1428
      %1489 = vst.msk [vmem:[%s487 + $0xb8] sm:$0xff] %vm1260, %v1431
      %1490 = vst.msk [vmem:[%s487 + $0xc0] sm:$0xff] %vm1260, %v1436
      %1491 = vst.msk [vmem:[%s487 + $0xc8] sm:$0xff] %vm1260, %v1439
      %1492 = vst.msk [vmem:[%s487 + $0xd0] sm:$0xff] %vm1260, %v1444
      %1493 = vst.msk [vmem:[%s487 + $0xd8] sm:$0xff] %vm1260, %v1447
      %1494 = vst.msk [vmem:[%s487 + $0xe0] sm:$0xff] %vm1260, %v1452
      %1495 = vst.msk [vmem:[%s487 + $0xe8] sm:$0xff] %vm1260, %v1455
      %1496 = vst.msk [vmem:[%s487 + $0xf0] sm:$0xff] %vm1260, %v1460
      %1497 = vst.msk [vmem:[%s487 + $0xf8] sm:$0xff] %vm1260, %v1463
      %s1498 = smul.u32 32, %s25
      %p1499 = scmp.lt.s32.totalorder %s24, 3
      %s1500 = scalar_select %p1499, %s24, 3
      %p1501 = scmp.lt.s32.totalorder %s1498, 63
      %s1502 = scalar_select %p1501, %s1498, 63
      %s1503 = smul.addr %s1500, 64
      %s1504 = sadd.s32 %s1502, %s1503
      %s1505 = smul.addr %s1504, 8
      %s1506 = scalar_lea.vmem %s5, %s1505
      %s1507 = smul.u32 32, %s25
      %p1508 = scmp.lt.s32.totalorder %s24, 3
      %s1509 = scalar_select %p1508, %s24, 3
      %p1510 = scmp.lt.s32.totalorder %s1507, 63
      %s1511 = scalar_select %p1510, %s1507, 63
      %s1512 = smul.addr %s1509, 64
      %s1513 = sadd.s32 %s1511, %s1512
      %s1514 = smul.addr %s1513, 8
      %s1515 = scalar_lea.vmem %s6, %s1514
      %s1516 = smul.u32 32, %s25
      %p1517 = scmp.lt.s32.totalorder %s24, 3
      %s1518 = scalar_select %p1517, %s24, 3
      %p1519 = scmp.lt.s32.totalorder %s1516, 63
      %s1520 = scalar_select %p1519, %s1516, 63
      %s1521 = smul.addr %s1518, 64
      %s1522 = sadd.s32 %s1520, %s1521
      %s1523 = smul.addr %s1522, 8
      %s1524 = scalar_lea.vmem %s7, %s1523
      %s1525 = smul.u32 32, %s25
      %p1526 = scmp.lt.s32.totalorder %s24, 3
      %s1527 = scalar_select %p1526, %s24, 3
      %p1528 = scmp.lt.s32.totalorder %s1525, 63
      %s1529 = scalar_select %p1528, %s1525, 63
      %s1530 = smul.addr %s1527, 64
      %s1531 = sadd.s32 %s1529, %s1530
      %s1532 = smul.addr %s1531, 8
      %s1533 = scalar_lea.vmem %s8, %s1532
      // Predicated region
      $region41: #{ss2d_forward.7} parent=39 // pred_check
        %p1534 = pneg %p184
      $region42: #{ss2d_forward.7} parent=39 // pred_check_branch
        %1536 = sbr.rel (%p1534) target = $region44
      $region43: #{ss2d_forward.7} parent=39 // pred_region
        %s1537 = smul.u32 32, %s25
      $region44: #{ss2d_forward.7} parent=39 // pred_fallthru
        _
      // Predicated region
      $region45: #{ss2d_forward.7} parent=39 // pred_check
        %p1538 = pneg %p212
      $region46: #{ss2d_forward.7} parent=39 // pred_check_branch
        %1540 = sbr.rel (%p1538) target = $region48
      $region47: #{ss2d_forward.7} parent=39 // pred_region
        %s1541 = smul.u32 32, %s25
      $region48: #{ss2d_forward.7} parent=39 // pred_fallthru
        _
      // Predicated region
      $region49: #{ss2d_forward.7} parent=39 // pred_check
        %p1542 = pneg %p240
      $region50: #{ss2d_forward.7} parent=39 // pred_check_branch
        %1544 = sbr.rel (%p1542) target = $region52
      $region51: #{ss2d_forward.7} parent=39 // pred_region
        %s1545 = smul.u32 32, %s25
      $region52: #{ss2d_forward.7} parent=39 // pred_fallthru
        _
      // Predicated region
      $region53: #{ss2d_forward.7} parent=39 // pred_check
        %p1546 = pneg %p268
      $region54: #{ss2d_forward.7} parent=39 // pred_check_branch
        %1548 = sbr.rel (%p1546) target = $region56
      $region55: #{ss2d_forward.7} parent=39 // pred_region
        %s1549 = smul.u32 32, %s25
      $region56: #{ss2d_forward.7} parent=39 // pred_fallthru
        _
    $region40: #{ss2d_forward.7} parent=5 // pred_fallthru
      _
    %p1550 = scmp.le.s32.totalorder 2, %s15
    // Predicated region
    $region57: #{ss2d_forward.7} parent=5 // pred_check
      %p1551 = pneg %p1550
    $region58: #{ss2d_forward.7} parent=5 // pred_check_branch
      %1553 = sbr.rel (%p1551) target = $region60
    $region59: #{ss2d_forward.7} parent=5 // pred_region
      %s1554 = ssub.s32 %s15, 2
      // Predicated region
      $region61: #{ss2d_forward.7} parent=59 // pred_check
        %p1555 = pneg %p190
      $region62: #{ss2d_forward.7} parent=59 // pred_check_branch
        %1557 = sbr.rel (%p1555) target = $region64
      $region63: #{ss2d_forward.7} parent=59 // pred_region
        %s1558 = smul.u32 32, %s27
        %p1559 = scmp.lt.s32.totalorder %s26, 3
        %s1560 = scalar_select %p1559, %s26, 3
        %p1561 = scmp.lt.s32.totalorder %s1558, 63
        %s1562 = scalar_select %p1561, %s1558, 63
        %s1563 = smul.addr %s1560, 64
        %s1564 = sadd.s32 %s1562, %s1563
        %s1565 = smul.addr %s1564, 8
        %s1566 = scalar_lea.vmem %s5, %s1565
      $region64: #{ss2d_forward.7} parent=59 // pred_fallthru
        _
      // Predicated region
      $region65: #{ss2d_forward.7} parent=59 // pred_check
        %p1567 = pneg %p218
      $region66: #{ss2d_forward.7} parent=59 // pred_check_branch
        %1569 = sbr.rel (%p1567) target = $region68
      $region67: #{ss2d_forward.7} parent=59 // pred_region
        %s1570 = smul.u32 32, %s27
        %p1571 = scmp.lt.s32.totalorder %s26, 3
        %s1572 = scalar_select %p1571, %s26, 3
        %p1573 = scmp.lt.s32.totalorder %s1570, 63
        %s1574 = scalar_select %p1573, %s1570, 63
        %s1575 = smul.addr %s1572, 64
        %s1576 = sadd.s32 %s1574, %s1575
        %s1577 = smul.addr %s1576, 8
        %s1578 = scalar_lea.vmem %s6, %s1577
      $region68: #{ss2d_forward.7} parent=59 // pred_fallthru
        _
      // Predicated region
      $region69: #{ss2d_forward.7} parent=59 // pred_check
        %p1579 = pneg %p246
      $region70: #{ss2d_forward.7} parent=59 // pred_check_branch
        %1581 = sbr.rel (%p1579) target = $region72
      $region71: #{ss2d_forward.7} parent=59 // pred_region
        %s1582 = smul.u32 32, %s27
        %p1583 = scmp.lt.s32.totalorder %s26, 3
        %s1584 = scalar_select %p1583, %s26, 3
        %p1585 = scmp.lt.s32.totalorder %s1582, 63
        %s1586 = scalar_select %p1585, %s1582, 63
        %s1587 = smul.addr %s1584, 64
        %s1588 = sadd.s32 %s1586, %s1587
        %s1589 = smul.addr %s1588, 8
        %s1590 = scalar_lea.vmem %s7, %s1589
      $region72: #{ss2d_forward.7} parent=59 // pred_fallthru
        _
      // Predicated region
      $region73: #{ss2d_forward.7} parent=59 // pred_check
        %p1591 = pneg %p274
      $region74: #{ss2d_forward.7} parent=59 // pred_check_branch
        %1593 = sbr.rel (%p1591) target = $region76
      $region75: #{ss2d_forward.7} parent=59 // pred_region
        %s1594 = smul.u32 32, %s27
        %p1595 = scmp.lt.s32.totalorder %s26, 3
        %s1596 = scalar_select %p1595, %s26, 3
        %p1597 = scmp.lt.s32.totalorder %s1594, 63
        %s1598 = scalar_select %p1597, %s1594, 63
        %s1599 = smul.addr %s1596, 64
        %s1600 = sadd.s32 %s1598, %s1599
        %s1601 = smul.addr %s1600, 8
        %s1602 = scalar_lea.vmem %s8, %s1601
      $region76: #{ss2d_forward.7} parent=59 // pred_fallthru
        _
    $region60: #{ss2d_forward.7} parent=5 // pred_fallthru
      _
  $region6: #{ss2d_forward.7} parent=0 // loop_footer
    %s19 = sadd.s32 1, %s15
  $region7: #{ss2d_forward.7} parent=0 // loop_footer_branch
    %14 = sbr.rel target = $region3
  $region8: #{ss2d_forward.7} parent=0 // loop_exit
    _

// kernel: ss2d_forward.8
$region0: #{ss2d_forward.8}
  #allocation0 [shape = 'u32[]', space=smem, size = 0x4, offset = 0x4, fixed_abs, tag = 'smem constant byte address 0x4 - core index']
  #allocation1 [shape = 'u32[144,128]{1,0:T(1,128)}', space=vmem, size = 0x12000, scoped, tag = 'internal scratch']
  #allocation2 [shape = 'f32[16,64]{1,0:T(8,128)}', space=vmem, size = 0x2000, scoped, tag = 'scratch operand']
  %s0 = inlined_call_operand.vmem [shape: f32[2,4,256,64], index: 0, kind: input, shape index: {}]
  %s1 = inlined_call_operand.vmem [shape: f32[2,4,256,64], index: 1, kind: input, shape index: {}]
  %s2 = inlined_call_operand.vmem [shape: f32[4,16,64], index: 2, kind: input, shape index: {}]
  %s3 = inlined_call_operand.vmem [shape: f32[2,4,256,16], index: 3, kind: input, shape index: {}]
  %s4 = inlined_call_operand.vmem [shape: f32[2,4,256,16], index: 4, kind: input, shape index: {}]
  %s5 = inlined_call_operand.vmem [shape: f32[2,4,256,64], index: 5, kind: output, shape index: {}]
  %s6 = sld [smem:[#allocation0]]
  $region64: #{ss2d_forward.8} parent=0
    _
  %s8 = ssub.s32 1, %s6
  %s9 = scalar_select 0, %s8, %s6
  loop: start=0, step=1, limit=10
  $region2: #{ss2d_forward.8} parent=0 // loop_pre_header
    _
  $region3: #{ss2d_forward.8} parent=0 // loop_header
    %s11 = sphi 0, %s15
    %p12 = scmp.ge.s32.totalorder %s11, 10
    %s18 = sphi 0, %s37
    %s19 = sphi 0, %s33
    %s20 = sphi 0, %s29
    %s21 = sphi 0, %s18
    %s22 = sphi 0, %s19
    %s23 = sphi 0, %s20
    %s24 = sphi 0, %s21
    %s25 = sphi 0, %s22
    %s26 = sphi 0, %s23
    %s44 = sphi 0, %s46
    %s47 = sphi 0, %s44
    %s48 = sphi 0, %s47
    %s64 = sphi 0, %s48
    %s74 = sphi 0, %s76
    %s77 = sphi 0, %s74
    %s78 = sphi 0, %s77
    %s94 = sphi 0, %s78
    %s100 = sphi 0, %s102
    %s103 = sphi 0, %s100
    %s104 = sphi 0, %s103
    %s120 = sphi 0, %s104
    %s130 = sphi 0, %s132
    %s133 = sphi 0, %s130
    %s134 = sphi 0, %s133
    %s150 = sphi 0, %s134
    %s160 = sphi 0, %s162
    %s163 = sphi 0, %s160
    %s164 = sphi 0, %s163
    %s180 = sphi 0, %s164
    %s190 = sphi 0, %s192
    %s193 = sphi 0, %s190
    %s194 = sphi 0, %s193
    %s210 = sphi 0, %s194
  $region4: #{ss2d_forward.8} parent=0 // loop_header_branch
    %14 = sbr.rel (%p12) target = $region8
  $region5: #{ss2d_forward.8} parent=0 // loop_body
    %s16 = ssub.s32 %s11, 1
    %s17 = ssub.s32 %s11, 2
    %s27 = sadd.s32 1, %s20
    %p28 = scmp.ge.s32.totalorder %s27, 1
    %s29 = scalar_select %p28, 0, %s27
    %s30 = sadd.s32 1, %s19
    %s31 = scalar_select %p28, %s30, %s19
    %p32 = scmp.ge.s32.totalorder %s31, 4
    %s33 = scalar_select %p32, 0, %s31
    %s34 = sadd.s32 1, %s18
    %s35 = scalar_select %p32, %s34, %s18
    %p36 = scmp.ge.s32.totalorder %s35, 2
    %s37 = scalar_select %p36, 0, %s35
    %s38 = ssub.s32 %s18, %s37
    %s39 = ssub.s32 %s19, %s33
    %s40 = sor.u32 %s38, %s39
    %s41 = ssub.s32 %s20, %s29
    %s42 = sor.u32 %s40, %s41
    %p43 = scmp.eq.s32.totalorder %s42, 0
    %s45 = sadd.s32 %s44, 1
    %s46 = scalar_select %p43, %s44, %s45
    %p49 = pneg %p43
    %p50 = scmp.eq.s32.totalorder %s11, 7
    %p51 = por %p49, %p50
    %p52 = scmp.ne.s32.totalorder %s44, %s47
    %p53 = scmp.eq.s32.totalorder %s11, 0
    %p54 = por %p52, %p53
    %p55 = scmp.ne.s32.totalorder %s44, %s47
    %p56 = scmp.eq.s32.totalorder %s16, 7
    %p57 = por %p55, %p56
    %p58 = scmp.ne.s32.totalorder %s47, %s48
    %p59 = scmp.eq.s32.totalorder %s16, 0
    %p60 = por %p58, %p59
    %p61 = scmp.ne.s32.totalorder %s47, %s48
    %p62 = scmp.eq.s32.totalorder %s17, 7
    %p63 = por %p61, %p62
    %p65 = scmp.ne.s32.totalorder %s48, %s64
    %p66 = scmp.eq.s32.totalorder %s17, 0
    %p67 = por %p65, %p66
    %s68 = ssub.s32 %s18, %s37
    %s69 = ssub.s32 %s19, %s33
    %s70 = sor.u32 %s68, %s69
    %s71 = ssub.s32 %s20, %s29
    %s72 = sor.u32 %s70, %s71
    %p73 = scmp.eq.s32.totalorder %s72, 0
    %s75 = sadd.s32 %s74, 1
    %s76 = scalar_select %p73, %s74, %s75
    %p79 = pneg %p73
    %p80 = scmp.eq.s32.totalorder %s11, 7
    %p81 = por %p79, %p80
    %p82 = scmp.ne.s32.totalorder %s74, %s77
    %p83 = scmp.eq.s32.totalorder %s11, 0
    %p84 = por %p82, %p83
    %p85 = scmp.ne.s32.totalorder %s74, %s77
    %p86 = scmp.eq.s32.totalorder %s16, 7
    %p87 = por %p85, %p86
    %p88 = scmp.ne.s32.totalorder %s77, %s78
    %p89 = scmp.eq.s32.totalorder %s16, 0
    %p90 = por %p88, %p89
    %p91 = scmp.ne.s32.totalorder %s77, %s78
    %p92 = scmp.eq.s32.totalorder %s17, 7
    %p93 = por %p91, %p92
    %p95 = scmp.ne.s32.totalorder %s78, %s94
    %p96 = scmp.eq.s32.totalorder %s17, 0
    %p97 = por %p95, %p96
    %s98 = ssub.s32 %s19, %s33
    %p99 = scmp.eq.s32.totalorder %s98, 0
    %s101 = sadd.s32 %s100, 1
    %s102 = scalar_select %p99, %s100, %s101
    %p105 = pneg %p99
    %p106 = scmp.eq.s32.totalorder %s11, 7
    %p107 = por %p105, %p106
    %p108 = scmp.ne.s32.totalorder %s100, %s103
    %p109 = scmp.eq.s32.totalorder %s11, 0
    %p110 = por %p108, %p109
    %p111 = scmp.ne.s32.totalorder %s100, %s103
    %p112 = scmp.eq.s32.totalorder %s16, 7
    %p113 = por %p111, %p112
    %p114 = scmp.ne.s32.totalorder %s103, %s104
    %p115 = scmp.eq.s32.totalorder %s16, 0
    %p116 = por %p114, %p115
    %p117 = scmp.ne.s32.totalorder %s103, %s104
    %p118 = scmp.eq.s32.totalorder %s17, 7
    %p119 = por %p117, %p118
    %p121 = scmp.ne.s32.totalorder %s104, %s120
    %p122 = scmp.eq.s32.totalorder %s17, 0
    %p123 = por %p121, %p122
    %s124 = ssub.s32 %s18, %s37
    %s125 = ssub.s32 %s19, %s33
    %s126 = sor.u32 %s124, %s125
    %s127 = ssub.s32 %s20, %s29
    %s128 = sor.u32 %s126, %s127
    %p129 = scmp.eq.s32.totalorder %s128, 0
    %s131 = sadd.s32 %s130, 1
    %s132 = scalar_select %p129, %s130, %s131
    %p135 = pneg %p129
    %p136 = scmp.eq.s32.totalorder %s11, 7
    %p137 = por %p135, %p136
    %p138 = scmp.ne.s32.totalorder %s130, %s133
    %p139 = scmp.eq.s32.totalorder %s11, 0
    %p140 = por %p138, %p139
    %p141 = scmp.ne.s32.totalorder %s130, %s133
    %p142 = scmp.eq.s32.totalorder %s16, 7
    %p143 = por %p141, %p142
    %p144 = scmp.ne.s32.totalorder %s133, %s134
    %p145 = scmp.eq.s32.totalorder %s16, 0
    %p146 = por %p144, %p145
    %p147 = scmp.ne.s32.totalorder %s133, %s134
    %p148 = scmp.eq.s32.totalorder %s17, 7
    %p149 = por %p147, %p148
    %p151 = scmp.ne.s32.totalorder %s134, %s150
    %p152 = scmp.eq.s32.totalorder %s17, 0
    %p153 = por %p151, %p152
    %s154 = ssub.s32 %s18, %s37
    %s155 = ssub.s32 %s19, %s33
    %s156 = sor.u32 %s154, %s155
    %s157 = ssub.s32 %s20, %s29
    %s158 = sor.u32 %s156, %s157
    %p159 = scmp.eq.s32.totalorder %s158, 0
    %s161 = sadd.s32 %s160, 1
    %s162 = scalar_select %p159, %s160, %s161
    %p165 = pneg %p159
    %p166 = scmp.eq.s32.totalorder %s11, 7
    %p167 = por %p165, %p166
    %p168 = scmp.ne.s32.totalorder %s160, %s163
    %p169 = scmp.eq.s32.totalorder %s11, 0
    %p170 = por %p168, %p169
    %p171 = scmp.ne.s32.totalorder %s160, %s163
    %p172 = scmp.eq.s32.totalorder %s16, 7
    %p173 = por %p171, %p172
    %p174 = scmp.ne.s32.totalorder %s163, %s164
    %p175 = scmp.eq.s32.totalorder %s16, 0
    %p176 = por %p174, %p175
    %p177 = scmp.ne.s32.totalorder %s163, %s164
    %p178 = scmp.eq.s32.totalorder %s17, 7
    %p179 = por %p177, %p178
    %p181 = scmp.ne.s32.totalorder %s164, %s180
    %p182 = scmp.eq.s32.totalorder %s17, 0
    %p183 = por %p181, %p182
    %s184 = ssub.s32 %s18, %s37
    %s185 = ssub.s32 %s19, %s33
    %s186 = sor.u32 %s184, %s185
    %s187 = ssub.s32 %s20, %s29
    %s188 = sor.u32 %s186, %s187
    %p189 = scmp.eq.s32.totalorder %s188, 0
    %s191 = sadd.s32 %s190, 1
    %s192 = scalar_select %p189, %s190, %s191
    %p195 = pneg %p189
    %p196 = scmp.eq.s32.totalorder %s11, 7
    %p197 = por %p195, %p196
    %p198 = scmp.ne.s32.totalorder %s190, %s193
    %p199 = scmp.eq.s32.totalorder %s11, 0
    %p200 = por %p198, %p199
    %p201 = scmp.ne.s32.totalorder %s190, %s193
    %p202 = scmp.eq.s32.totalorder %s16, 7
    %p203 = por %p201, %p202
    %p204 = scmp.ne.s32.totalorder %s193, %s194
    %p205 = scmp.eq.s32.totalorder %s16, 0
    %p206 = por %p204, %p205
    %p207 = scmp.ne.s32.totalorder %s193, %s194
    %p208 = scmp.eq.s32.totalorder %s17, 7
    %p209 = por %p207, %p208
    %p211 = scmp.ne.s32.totalorder %s194, %s210
    %p212 = scmp.eq.s32.totalorder %s17, 0
    %p213 = por %p211, %p212
    %p214 = scmp.le.s32.totalorder 1, %s11
    %p215 = scmp.lt.s32.totalorder %s11, 9
    %p216 = pnand %p214, %p215
    %p217 = pneg %p216
    // Predicated region
    $region9: #{ss2d_forward.8} parent=5 // pred_check
      _
    $region10: #{ss2d_forward.8} parent=5 // pred_check_branch
      %219 = sbr.rel (%p216) target = $region12
    $region11: #{ss2d_forward.8} parent=5 // pred_region
      %s220 = ssub.s32 %s11, 1
    $region12: #{ss2d_forward.8} parent=5 // pred_fallthru
      _
    %p221 = scmp.lt.s32.totalorder %s11, 8
    // Predicated region
    $region13: #{ss2d_forward.8} parent=5 // pred_check
      %p222 = pneg %p221
    $region14: #{ss2d_forward.8} parent=5 // pred_check_branch
      %224 = sbr.rel (%p222) target = $region16
    $region15: #{ss2d_forward.8} parent=5 // pred_region
      // Predicated region
      $region17: #{ss2d_forward.8} parent=15 // pred_check
        %p225 = pneg %p54
      $region18: #{ss2d_forward.8} parent=15 // pred_check_branch
        %227 = sbr.rel (%p225) target = $region20
      $region19: #{ss2d_forward.8} parent=15 // pred_region
        %s228 = smul.u32 32, %s20
        %p229 = scmp.lt.s32.totalorder %s18, 1
        %s230 = scalar_select %p229, %s18, 1
        %p231 = scmp.lt.s32.totalorder %s19, 3
        %s232 = scalar_select %p231, %s19, 3
        %p233 = scmp.lt.s32.totalorder %s228, 31
        %s234 = scalar_select %p233, %s228, 31
        %s235 = smul.addr %s232, 32
        %s236 = sadd.s32 %s234, %s235
        %s237 = smul.addr %s230, 128
        %s238 = sadd.s32 %s236, %s237
        %s239 = smul.addr %s238, 8
        %s240 = scalar_lea.vmem %s0, %s239
        %s241 = smul.u32 32, %s20
      $region20: #{ss2d_forward.8} parent=15 // pred_fallthru
        _
      // Predicated region
      $region21: #{ss2d_forward.8} parent=15 // pred_check
        %p242 = pneg %p84
      $region22: #{ss2d_forward.8} parent=15 // pred_check_branch
        %244 = sbr.rel (%p242) target = $region24
      $region23: #{ss2d_forward.8} parent=15 // pred_region
        %s245 = smul.u32 32, %s20
        %p246 = scmp.lt.s32.totalorder %s18, 1
        %s247 = scalar_select %p246, %s18, 1
        %p248 = scmp.lt.s32.totalorder %s19, 3
        %s249 = scalar_select %p248, %s19, 3
        %p250 = scmp.lt.s32.totalorder %s245, 31
        %s251 = scalar_select %p250, %s245, 31
        %s252 = smul.addr %s249, 32
        %s253 = sadd.s32 %s251, %s252
        %s254 = smul.addr %s247, 128
        %s255 = sadd.s32 %s253, %s254
        %s256 = smul.addr %s255, 8
        %s257 = scalar_lea.vmem %s1, %s256
        %s258 = smul.u32 32, %s20
      $region24: #{ss2d_forward.8} parent=15 // pred_fallthru
        _
      // Predicated region
      $region25: #{ss2d_forward.8} parent=15 // pred_check
        %p259 = pneg %p110
      $region26: #{ss2d_forward.8} parent=15 // pred_check_branch
        %261 = sbr.rel (%p259) target = $region28
      $region27: #{ss2d_forward.8} parent=15 // pred_region
        %p262 = scmp.lt.s32.totalorder %s19, 3
        %s263 = scalar_select %p262, %s19, 3
        %s264 = smul.addr %s263, 2
        %s265 = smul.addr %s264, 8
        %s266 = scalar_lea.vmem %s2, %s265
      $region28: #{ss2d_forward.8} parent=15 // pred_fallthru
        _
      // Predicated region
      $region29: #{ss2d_forward.8} parent=15 // pred_check
        %p267 = pneg %p140
      $region30: #{ss2d_forward.8} parent=15 // pred_check_branch
        %269 = sbr.rel (%p267) target = $region32
      $region31: #{ss2d_forward.8} parent=15 // pred_region
        %s270 = smul.u32 32, %s20
        %p271 = scmp.lt.s32.totalorder %s18, 1
        %s272 = scalar_select %p271, %s18, 1
        %p273 = scmp.lt.s32.totalorder %s19, 3
        %s274 = scalar_select %p273, %s19, 3
        %p275 = scmp.lt.s32.totalorder %s270, 31
        %s276 = scalar_select %p275, %s270, 31
        %s277 = smul.addr %s274, 32
        %s278 = sadd.s32 %s276, %s277
        %s279 = smul.addr %s272, 128
        %s280 = sadd.s32 %s278, %s279
        %s281 = smul.addr %s280, 8
        %s282 = scalar_lea.vmem %s3, %s281
        %s283 = smul.u32 32, %s20
      $region32: #{ss2d_forward.8} parent=15 // pred_fallthru
        _
      // Predicated region
      $region33: #{ss2d_forward.8} parent=15 // pred_check
        %p284 = pneg %p170
      $region34: #{ss2d_forward.8} parent=15 // pred_check_branch
        %286 = sbr.rel (%p284) target = $region36
      $region35: #{ss2d_forward.8} parent=15 // pred_region
        %s287 = smul.u32 32, %s20
        %p288 = scmp.lt.s32.totalorder %s18, 1
        %s289 = scalar_select %p288, %s18, 1
        %p290 = scmp.lt.s32.totalorder %s19, 3
        %s291 = scalar_select %p290, %s19, 3
        %p292 = scmp.lt.s32.totalorder %s287, 31
        %s293 = scalar_select %p292, %s287, 31
        %s294 = smul.addr %s291, 32
        %s295 = sadd.s32 %s293, %s294
        %s296 = smul.addr %s289, 128
        %s297 = sadd.s32 %s295, %s296
        %s298 = smul.addr %s297, 8
        %s299 = scalar_lea.vmem %s4, %s298
        %s300 = smul.u32 32, %s20
      $region36: #{ss2d_forward.8} parent=15 // pred_fallthru
        _
    $region16: #{ss2d_forward.8} parent=5 // pred_fallthru
      _
    %p301 = scmp.le.s32.totalorder 1, %s11
    %p302 = scmp.lt.s32.totalorder %s11, 9
    %p303 = pnand %p301, %p302
    %p304 = pneg %p303
    // Predicated region
    $region37: #{ss2d_forward.8} parent=5 // pred_check
      _
    $region38: #{ss2d_forward.8} parent=5 // pred_check_branch
      %306 = sbr.rel (%p303) target = $region40
    $region39: #{ss2d_forward.8} parent=5 // pred_region
      %s307 = ssub.s32 %s11, 1
      %s308 = smul.u32 32, %s23
      %p309 = scmp.lt.s32.totalorder %s21, 1
      %s310 = scalar_select %p309, %s21, 1
      %p311 = scmp.lt.s32.totalorder %s22, 3
      %s312 = scalar_select %p311, %s22, 3
      %p313 = scmp.lt.s32.totalorder %s308, 31
      %s314 = scalar_select %p313, %s308, 31
      %s315 = smul.addr %s312, 32
      %s316 = sadd.s32 %s314, %s315
      %s317 = smul.addr %s310, 128
      %s318 = sadd.s32 %s316, %s317
      %s319 = smul.addr %s318, 8
      %s320 = scalar_lea.vmem %s0, %s319
      %p321 = pneg %p60
      %p322 = pneg %p57
      %s323 = smul.u32 32, %s23
      %p324 = scmp.lt.s32.totalorder %s21, 1
      %s325 = scalar_select %p324, %s21, 1
      %p326 = scmp.lt.s32.totalorder %s22, 3
      %s327 = scalar_select %p326, %s22, 3
      %p328 = scmp.lt.s32.totalorder %s323, 31
      %s329 = scalar_select %p328, %s323, 31
      %s330 = smul.addr %s327, 32
      %s331 = sadd.s32 %s329, %s330
      %s332 = smul.addr %s325, 128
      %s333 = sadd.s32 %s331, %s332
      %s334 = smul.addr %s333, 8
      %s335 = scalar_lea.vmem %s1, %s334
      %p336 = pneg %p90
      %p337 = pneg %p87
      %p338 = scmp.lt.s32.totalorder %s22, 3
      %s339 = scalar_select %p338, %s22, 3
      %s340 = smul.addr %s339, 2
      %s341 = smul.addr %s340, 8
      %s342 = scalar_lea.vmem %s2, %s341
      %p343 = pneg %p116
      %p344 = pneg %p113
      %s345 = smul.u32 32, %s23
      %p346 = scmp.lt.s32.totalorder %s21, 1
      %s347 = scalar_select %p346, %s21, 1
      %p348 = scmp.lt.s32.totalorder %s22, 3
      %s349 = scalar_select %p348, %s22, 3
      %p350 = scmp.lt.s32.totalorder %s345, 31
      %s351 = scalar_select %p350, %s345, 31
      %s352 = smul.addr %s349, 32
      %s353 = sadd.s32 %s351, %s352
      %s354 = smul.addr %s347, 128
      %s355 = sadd.s32 %s353, %s354
      %s356 = smul.addr %s355, 8
      %s357 = scalar_lea.vmem %s3, %s356
      %p358 = pneg %p146
      %p359 = pneg %p143
      %s360 = smul.u32 32, %s23
      %p361 = scmp.lt.s32.totalorder %s21, 1
      %s362 = scalar_select %p361, %s21, 1
      %p363 = scmp.lt.s32.totalorder %s22, 3
      %s364 = scalar_select %p363, %s22, 3
      %p365 = scmp.lt.s32.totalorder %s360, 31
      %s366 = scalar_select %p365, %s360, 31
      %s367 = smul.addr %s364, 32
      %s368 = sadd.s32 %s366, %s367
      %s369 = smul.addr %s362, 128
      %s370 = sadd.s32 %s368, %s369
      %s371 = smul.addr %s370, 8
      %s372 = scalar_lea.vmem %s4, %s371
      %p373 = pneg %p176
      %p374 = pneg %p173
      %p375 = pneg %p206
      %p376 = pneg %p203
      %s377 = smul.u32 32, %s23
      %p378 = scmp.lt.s32.totalorder %s21, 1
      %s379 = scalar_select %p378, %s21, 1
      %p380 = scmp.lt.s32.totalorder %s22, 3
      %s381 = scalar_select %p380, %s22, 3
      %p382 = scmp.lt.s32.totalorder %s377, 31
      %s383 = scalar_select %p382, %s377, 31
      %s384 = smul.addr %s381, 32
      %s385 = sadd.s32 %s383, %s384
      %s386 = smul.addr %s379, 128
      %s387 = sadd.s32 %s385, %s386
      %s388 = smul.addr %s387, 8
      %s389 = scalar_lea.vmem %s5, %s388
      %s390 = smul.u32 32, %s23
      %p391 = scmp.lt.s32.totalorder %s21, 1
      %s392 = scalar_select %p391, %s21, 1
      %p393 = scmp.lt.s32.totalorder %s22, 3
      %s394 = scalar_select %p393, %s22, 3
      %p395 = scmp.lt.s32.totalorder %s390, 31
      %s396 = scalar_select %p395, %s390, 31
      %s397 = smul.addr %s394, 32
      %s398 = sadd.s32 %s396, %s397
      %s399 = smul.addr %s392, 128
      %s400 = sadd.s32 %s398, %s399
      %s401 = smul.addr %s400, 8
      %s402 = scalar_lea.vmem %s0, %s401
      %s403 = smul.u32 32, %s23
      %s404 = smul.u32 32, %s23
      %p405 = scmp.lt.s32.totalorder %s21, 1
      %s406 = scalar_select %p405, %s21, 1
      %p407 = scmp.lt.s32.totalorder %s22, 3
      %s408 = scalar_select %p407, %s22, 3
      %p409 = scmp.lt.s32.totalorder %s404, 31
      %s410 = scalar_select %p409, %s404, 31
      %s411 = smul.addr %s408, 32
      %s412 = sadd.s32 %s410, %s411
      %s413 = smul.addr %s406, 128
      %s414 = sadd.s32 %s412, %s413
      %s415 = smul.addr %s414, 8
      %s416 = scalar_lea.vmem %s1, %s415
      %s417 = smul.u32 32, %s23
      %p418 = scmp.lt.s32.totalorder %s22, 3
      %s419 = scalar_select %p418, %s22, 3
      %s420 = smul.addr %s419, 2
      %s421 = smul.addr %s420, 8
      %s422 = scalar_lea.vmem %s2, %s421
      %s423 = smul.u32 32, %s23
      %p424 = scmp.lt.s32.totalorder %s21, 1
      %s425 = scalar_select %p424, %s21, 1
      %p426 = scmp.lt.s32.totalorder %s22, 3
      %s427 = scalar_select %p426, %s22, 3
      %p428 = scmp.lt.s32.totalorder %s423, 31
      %s429 = scalar_select %p428, %s423, 31
      %s430 = smul.addr %s427, 32
      %s431 = sadd.s32 %s429, %s430
      %s432 = smul.addr %s425, 128
      %s433 = sadd.s32 %s431, %s432
      %s434 = smul.addr %s433, 8
      %s435 = scalar_lea.vmem %s3, %s434
      %s436 = smul.u32 32, %s23
      %s437 = smul.u32 32, %s23
      %p438 = scmp.lt.s32.totalorder %s21, 1
      %s439 = scalar_select %p438, %s21, 1
      %p440 = scmp.lt.s32.totalorder %s22, 3
      %s441 = scalar_select %p440, %s22, 3
      %p442 = scmp.lt.s32.totalorder %s437, 31
      %s443 = scalar_select %p442, %s437, 31
      %s444 = smul.addr %s441, 32
      %s445 = sadd.s32 %s443, %s444
      %s446 = smul.addr %s439, 128
      %s447 = sadd.s32 %s445, %s446
      %s448 = smul.addr %s447, 8
      %s449 = scalar_lea.vmem %s4, %s448
      %s450 = smul.u32 32, %s23
      %s451 = smul.u32 32, %s23
      %p452 = scmp.lt.s32.totalorder %s21, 1
      %s453 = scalar_select %p452, %s21, 1
      %p454 = scmp.lt.s32.totalorder %s22, 3
      %s455 = scalar_select %p454, %s22, 3
      %p456 = scmp.lt.s32.totalorder %s451, 31
      %s457 = scalar_select %p456, %s451, 31
      %s458 = smul.addr %s455, 32
      %s459 = sadd.s32 %s457, %s458
      %s460 = smul.addr %s453, 128
      %s461 = sadd.s32 %s459, %s460
      %s462 = smul.addr %s461, 8
      %s463 = scalar_lea.vmem %s5, %s462
      %s464 = smul.u32 32, %s23
      %p465 = scmp.eq.s32.totalorder %s23, 0
      // Predicated region
      $region41: #{ss2d_forward.8} parent=39 // pred_check
        %p466 = pneg %p465
      $region42: #{ss2d_forward.8} parent=39 // pred_check_branch
        %468 = sbr.rel (%p466) target = $region44
      $region43: #{ss2d_forward.8} parent=39 // pred_region
        %vm469 = vcmask 523264
        %470 = vst.msk [vmem:[#allocation2] sm:$0xff] %vm469, 0.0
        %471 = vst.msk [vmem:[#allocation2 + $0x8] sm:$0xff] %vm469, 0.0
      $region44: #{ss2d_forward.8} parent=39 // pred_fallthru
        _
      %v472 = vld [vmem:[%s422] sm:$0xff]
      %v473 = vld [vmem:[%s422 + $0x8] sm:$0xff]
      %v474 = vlaneseq
      %v475 = vshrl.u32 %v474, 7
      %v476 = vadd.s32 %v475, 8
      %v477 = vlaneseq
      %v478 = vand.u32 %v477, 127
      %vm479 = vcmp.eq.s32.totalorder %v475, %v478
      %vm480 = vcmp.eq.s32.totalorder %v476, %v478
      %v481 = vsel %vm479, 1, 0
      %v482 = vsel %vm480, 1, 0
      %v483 = vcvt.s32.f32 %v481
      %v484 = vcvt.s32.f32 %v482
      loop: start=0, step=1, limit=32
      $region45: #{ss2d_forward.8} parent=39 // loop_pre_header
        _
      $region46: #{ss2d_forward.8} parent=39 // loop_header
        %s486 = sphi 0, %s490
        %p487 = scmp.ge.s32.totalorder %s486, 32
      $region47: #{ss2d_forward.8} parent=39 // loop_header_branch
        %489 = sbr.rel (%p487) target = $region51
      $region48: #{ss2d_forward.8} parent=39 // loop_body
        %s491 = smul.u32 %s486, 8
        %s492 = scalar_lea.vmem %s402, %s491
        %v493 = vld [vmem:[%s492] sm:$0xff]
        %s494 = scalar_lea.vmem %s416, %s491
        %v495 = vld [vmem:[%s494] sm:$0xff]
        %s496 = scalar_lea.vmem %s435, %s491
        %v497 = vld [vmem:[%s496] sm:$0xff]
        %s498 = scalar_lea.vmem %s449, %s491
        %v499 = vld [vmem:[%s498] sm:$0xff]
        %v500 = vld [vmem:[#allocation2] sm:$0xff]
        %v501 = vld [vmem:[#allocation2 + $0x8] sm:$0xff]
        %v502 = vlaneseq
        %v503 = vshrl.u32 %v502, 7
        %v504 = vsub.s32 0, %v503
        %v505 = vrot.slane %v493, %v504
        %v506 = vmul.f32 %v505, %v472
        %v507 = vmul.f32 %v505, %v473
        %v508 = vmul.f32 %v506, 1.442695
        %v509 = vpow.pop %v508
        %v510 = vmul.f32 %v507, 1.442695
        %v511 = vpow.pop %v510
        %v512 = vlaneseq
        %v513 = vshrl.u32 %v512, 7
        %v514 = vsub.s32 0, %v513
        %v515 = vrot.slane %v497, %v514
        %v516 = vmul.f32 %v515, %v483
        %v517 = vmul.f32 %v515, %v484
        %vm518 = vcmask 130048
        %v519 = vsel %vm518, %v516, 0.0
        %520 = vadd.xlane.f32.xlu0 %v519
        %v521 = vpop.xlane.xlu0 %520
        %v522 = vsel %vm518, %v517, 0.0
        %523 = vadd.xlane.f32.xlu0 %v522
        %v524 = vpop.xlane.xlu0 %523
        %v525 = vlaneseq
        %v526 = vshrl.u32 %v525, 7
        %v527 = vsub.s32 0, %v526
        %v528 = vrot.slane %v499, %v527
        %v529 = vmul.f32 %v528, %v483
        %v530 = vmul.f32 %v528, %v484
        %v531 = vsel %vm518, %v529, 0.0
        %532 = vadd.xlane.f32.xlu0 %v531
        %v533 = vpop.xlane.xlu0 %532
        %v534 = vsel %vm518, %v530, 0.0
        %535 = vadd.xlane.f32.xlu0 %v534
        %v536 = vpop.xlane.xlu0 %535
        %v537 = vmul.f32 %v509, %v500
        %v538 = vmul.f32 %v511, %v501
        %v539 = vlaneseq
        %v540 = vshrl.u32 %v539, 7
        %v541 = vsub.s32 0, %v540
        %v542 = vrot.slane %v495, %v541
        %v543 = vmul.f32 %v521, %v542
        %v544 = vmul.f32 %v524, %v542
        %v545 = vadd.f32 %v537, %v543
        %v546 = vadd.f32 %v538, %v544
        %v547 = vmul.f32 %v533, %v545
        %v548 = vmul.f32 %v536, %v546
        %vm549 = vcmask 523264
        %v550 = vsel %vm549, %v547, 0.0
        %v551 = vsel %vm549, %v548, 0.0
        %v552 = vadd.f32 %v550, %v551
        %v553 = vrot.slane %v552, 4
        %v554 = vadd.f32 %v552, %v553
        %v555 = vrot.slane %v554, 2
        %v556 = vadd.f32 %v554, %v555
        %v557 = vrot.slane %v556, 1
        %v558 = vadd.f32 %v556, %v557
        %s559 = scalar_lea.vmem %s463, %s491
        %vm560 = vcmask 516096
        %561 = vst.msk [vmem:[%s559] sm:$0x1] %vm560, %v558
        %v562 = vlaneseq
        %v563 = vshrl.u32 %v562, 7
        %v564 = vsub.s32 1, %v563
        %v565 = vrot.slane %v493, %v564
        %v566 = vmul.f32 %v565, %v472
        %v567 = vmul.f32 %v565, %v473
        %v568 = vmul.f32 %v566, 1.442695
        %v569 = vpow.pop %v568
        %v570 = vmul.f32 %v567, 1.442695
        %v571 = vpow.pop %v570
        %v572 = vlaneseq
        %v573 = vshrl.u32 %v572, 7
        %v574 = vsub.s32 1, %v573
        %v575 = vrot.slane %v497, %v574
        %v576 = vmul.f32 %v575, %v483
        %v577 = vmul.f32 %v575, %v484
        %v578 = vsel %vm518, %v576, 0.0
        %579 = vadd.xlane.f32.xlu0 %v578
        %v580 = vpop.xlane.xlu0 %579
        %v581 = vsel %vm518, %v577, 0.0
        %582 = vadd.xlane.f32.xlu0 %v581
        %v583 = vpop.xlane.xlu0 %582
        %v584 = vlaneseq
        %v585 = vshrl.u32 %v584, 7
        %v586 = vsub.s32 1, %v585
        %v587 = vrot.slane %v499, %v586
        %v588 = vmul.f32 %v587, %v483
        %v589 = vmul.f32 %v587, %v484
        %v590 = vsel %vm518, %v588, 0.0
        %591 = vadd.xlane.f32.xlu0 %v590
        %v592 = vpop.xlane.xlu0 %591
        %v593 = vsel %vm518, %v589, 0.0
        %594 = vadd.xlane.f32.xlu0 %v593
        %v595 = vpop.xlane.xlu0 %594
        %v596 = vmul.f32 %v569, %v545
        %v597 = vmul.f32 %v571, %v546
        %v598 = vlaneseq
        %v599 = vshrl.u32 %v598, 7
        %v600 = vsub.s32 1, %v599
        %v601 = vrot.slane %v495, %v600
        %v602 = vmul.f32 %v580, %v601
        %v603 = vmul.f32 %v583, %v601
        %v604 = vadd.f32 %v596, %v602
        %v605 = vadd.f32 %v597, %v603
        %v606 = vmul.f32 %v592, %v604
        %v607 = vmul.f32 %v595, %v605
        %v608 = vsel %vm549, %v606, 0.0
        %v609 = vsel %vm549, %v607, 0.0
        %v610 = vadd.f32 %v608, %v609
        %v611 = vrot.slane %v610, 4
        %v612 = vadd.f32 %v610, %v611
        %v613 = vrot.slane %v612, 2
        %v614 = vadd.f32 %v612, %v613
        %v615 = vrot.slane %v614, 1
        %v616 = vadd.f32 %v614, %v615
        %s617 = sadd.s32 %s491, 1
        %s618 = scalar_lea.vmem %s463, %s617
        %619 = vst.msk [vmem:[%s618] sm:$0x1] %vm560, %v616
        %v620 = vlaneseq
        %v621 = vshrl.u32 %v620, 7
        %v622 = vsub.s32 2, %v621
        %v623 = vrot.slane %v493, %v622
        %v624 = vmul.f32 %v623, %v472
        %v625 = vmul.f32 %v623, %v473
        %v626 = vmul.f32 %v624, 1.442695
        %v627 = vpow.pop %v626
        %v628 = vmul.f32 %v625, 1.442695
        %v629 = vpow.pop %v628
        %v630 = vlaneseq
        %v631 = vshrl.u32 %v630, 7
        %v632 = vsub.s32 2, %v631
        %v633 = vrot.slane %v497, %v632
        %v634 = vmul.f32 %v633, %v483
        %v635 = vmul.f32 %v633, %v484
        %v636 = vsel %vm518, %v634, 0.0
        %637 = vadd.xlane.f32.xlu0 %v636
        %v638 = vpop.xlane.xlu0 %637
        %v639 = vsel %vm518, %v635, 0.0
        %640 = vadd.xlane.f32.xlu0 %v639
        %v641 = vpop.xlane.xlu0 %640
        %v642 = vlaneseq
        %v643 = vshrl.u32 %v642, 7
        %v644 = vsub.s32 2, %v643
        %v645 = vrot.slane %v499, %v644
        %v646 = vmul.f32 %v645, %v483
        %v647 = vmul.f32 %v645, %v484
        %v648 = vsel %vm518, %v646, 0.0
        %649 = vadd.xlane.f32.xlu0 %v648
        %v650 = vpop.xlane.xlu0 %649
        %v651 = vsel %vm518, %v647, 0.0
        %652 = vadd.xlane.f32.xlu0 %v651
        %v653 = vpop.xlane.xlu0 %652
        %v654 = vmul.f32 %v627, %v604
        %v655 = vmul.f32 %v629, %v605
        %v656 = vlaneseq
        %v657 = vshrl.u32 %v656, 7
        %v658 = vsub.s32 2, %v657
        %v659 = vrot.slane %v495, %v658
        %v660 = vmul.f32 %v638, %v659
        %v661 = vmul.f32 %v641, %v659
        %v662 = vadd.f32 %v654, %v660
        %v663 = vadd.f32 %v655, %v661
        %v664 = vmul.f32 %v650, %v662
        %v665 = vmul.f32 %v653, %v663
        %v666 = vsel %vm549, %v664, 0.0
        %v667 = vsel %vm549, %v665, 0.0
        %v668 = vadd.f32 %v666, %v667
        %v669 = vrot.slane %v668, 4
        %v670 = vadd.f32 %v668, %v669
        %v671 = vrot.slane %v670, 2
        %v672 = vadd.f32 %v670, %v671
        %v673 = vrot.slane %v672, 1
        %v674 = vadd.f32 %v672, %v673
        %s675 = sadd.s32 %s491, 2
        %s676 = scalar_lea.vmem %s463, %s675
        %677 = vst.msk [vmem:[%s676] sm:$0x1] %vm560, %v674
        %v678 = vlaneseq
        %v679 = vshrl.u32 %v678, 7
        %v680 = vsub.s32 3, %v679
        %v681 = vrot.slane %v493, %v680
        %v682 = vmul.f32 %v681, %v472
        %v683 = vmul.f32 %v681, %v473
        %v684 = vmul.f32 %v682, 1.442695
        %v685 = vpow.pop %v684
        %v686 = vmul.f32 %v683, 1.442695
        %v687 = vpow.pop %v686
        %v688 = vlaneseq
        %v689 = vshrl.u32 %v688, 7
        %v690 = vsub.s32 3, %v689
        %v691 = vrot.slane %v497, %v690
        %v692 = vmul.f32 %v691, %v483
        %v693 = vmul.f32 %v691, %v484
        %v694 = vsel %vm518, %v692, 0.0
        %695 = vadd.xlane.f32.xlu0 %v694
        %v696 = vpop.xlane.xlu0 %695
        %v697 = vsel %vm518, %v693, 0.0
        %698 = vadd.xlane.f32.xlu0 %v697
        %v699 = vpop.xlane.xlu0 %698
        %v700 = vlaneseq
        %v701 = vshrl.u32 %v700, 7
        %v702 = vsub.s32 3, %v701
        %v703 = vrot.slane %v499, %v702
        %v704 = vmul.f32 %v703, %v483
        %v705 = vmul.f32 %v703, %v484
        %v706 = vsel %vm518, %v704, 0.0
        %707 = vadd.xlane.f32.xlu0 %v706
        %v708 = vpop.xlane.xlu0 %707
        %v709 = vsel %vm518, %v705, 0.0
        %710 = vadd.xlane.f32.xlu0 %v709
        %v711 = vpop.xlane.xlu0 %710
        %v712 = vmul.f32 %v685, %v662
        %v713 = vmul.f32 %v687, %v663
        %v714 = vlaneseq
        %v715 = vshrl.u32 %v714, 7
        %v716 = vsub.s32 3, %v715
        %v717 = vrot.slane %v495, %v716
        %v718 = vmul.f32 %v696, %v717
        %v719 = vmul.f32 %v699, %v717
        %v720 = vadd.f32 %v712, %v718
        %v721 = vadd.f32 %v713, %v719
        %v722 = vmul.f32 %v708, %v720
        %v723 = vmul.f32 %v711, %v721
        %v724 = vsel %vm549, %v722, 0.0
        %v725 = vsel %vm549, %v723, 0.0
        %v726 = vadd.f32 %v724, %v725
        %v727 = vrot.slane %v726, 4
        %v728 = vadd.f32 %v726, %v727
        %v729 = vrot.slane %v728, 2
        %v730 = vadd.f32 %v728, %v729
        %v731 = vrot.slane %v730, 1
        %v732 = vadd.f32 %v730, %v731
        %s733 = sadd.s32 %s491, 3
        %s734 = scalar_lea.vmem %s463, %s733
        %735 = vst.msk [vmem:[%s734] sm:$0x1] %vm560, %v732
        %v736 = vlaneseq
        %v737 = vshrl.u32 %v736, 7
        %v738 = vsub.s32 4, %v737
        %v739 = vrot.slane %v493, %v738
        %v740 = vmul.f32 %v739, %v472
        %v741 = vmul.f32 %v739, %v473
        %v742 = vmul.f32 %v740, 1.442695
        %v743 = vpow.pop %v742
        %v744 = vmul.f32 %v741, 1.442695
        %v745 = vpow.pop %v744
        %v746 = vlaneseq
        %v747 = vshrl.u32 %v746, 7
        %v748 = vsub.s32 4, %v747
        %v749 = vrot.slane %v497, %v748
        %v750 = vmul.f32 %v749, %v483
        %v751 = vmul.f32 %v749, %v484
        %v752 = vsel %vm518, %v750, 0.0
        %753 = vadd.xlane.f32.xlu0 %v752
        %v754 = vpop.xlane.xlu0 %753
        %v755 = vsel %vm518, %v751, 0.0
        %756 = vadd.xlane.f32.xlu0 %v755
        %v757 = vpop.xlane.xlu0 %756
        %v758 = vlaneseq
        %v759 = vshrl.u32 %v758, 7
        %v760 = vsub.s32 4, %v759
        %v761 = vrot.slane %v499, %v760
        %v762 = vmul.f32 %v761, %v483
        %v763 = vmul.f32 %v761, %v484
        %v764 = vsel %vm518, %v762, 0.0
        %765 = vadd.xlane.f32.xlu0 %v764
        %v766 = vpop.xlane.xlu0 %765
        %v767 = vsel %vm518, %v763, 0.0
        %768 = vadd.xlane.f32.xlu0 %v767
        %v769 = vpop.xlane.xlu0 %768
        %v770 = vmul.f32 %v743, %v720
        %v771 = vmul.f32 %v745, %v721
        %v772 = vlaneseq
        %v773 = vshrl.u32 %v772, 7
        %v774 = vsub.s32 4, %v773
        %v775 = vrot.slane %v495, %v774
        %v776 = vmul.f32 %v754, %v775
        %v777 = vmul.f32 %v757, %v775
        %v778 = vadd.f32 %v770, %v776
        %v779 = vadd.f32 %v771, %v777
        %v780 = vmul.f32 %v766, %v778
        %v781 = vmul.f32 %v769, %v779
        %v782 = vsel %vm549, %v780, 0.0
        %v783 = vsel %vm549, %v781, 0.0
        %v784 = vadd.f32 %v782, %v783
        %v785 = vrot.slane %v784, 4
        %v786 = vadd.f32 %v784, %v785
        %v787 = vrot.slane %v786, 2
        %v788 = vadd.f32 %v786, %v787
        %v789 = vrot.slane %v788, 1
        %v790 = vadd.f32 %v788, %v789
        %s791 = sadd.s32 %s491, 4
        %s792 = scalar_lea.vmem %s463, %s791
        %793 = vst.msk [vmem:[%s792] sm:$0x1] %vm560, %v790
        %v794 = vlaneseq
        %v795 = vshrl.u32 %v794, 7
        %v796 = vsub.s32 5, %v795
        %v797 = vrot.slane %v493, %v796
        %v798 = vmul.f32 %v797, %v472
        %v799 = vmul.f32 %v797, %v473
        %v800 = vmul.f32 %v798, 1.442695
        %v801 = vpow.pop %v800
        %v802 = vmul.f32 %v799, 1.442695
        %v803 = vpow.pop %v802
        %v804 = vlaneseq
        %v805 = vshrl.u32 %v804, 7
        %v806 = vsub.s32 5, %v805
        %v807 = vrot.slane %v497, %v806
        %v808 = vmul.f32 %v807, %v483
        %v809 = vmul.f32 %v807, %v484
        %v810 = vsel %vm518, %v808, 0.0
        %811 = vadd.xlane.f32.xlu0 %v810
        %v812 = vpop.xlane.xlu0 %811
        %v813 = vsel %vm518, %v809, 0.0
        %814 = vadd.xlane.f32.xlu0 %v813
        %v815 = vpop.xlane.xlu0 %814
        %v816 = vlaneseq
        %v817 = vshrl.u32 %v816, 7
        %v818 = vsub.s32 5, %v817
        %v819 = vrot.slane %v499, %v818
        %v820 = vmul.f32 %v819, %v483
        %v821 = vmul.f32 %v819, %v484
        %v822 = vsel %vm518, %v820, 0.0
        %823 = vadd.xlane.f32.xlu0 %v822
        %v824 = vpop.xlane.xlu0 %823
        %v825 = vsel %vm518, %v821, 0.0
        %826 = vadd.xlane.f32.xlu0 %v825
        %v827 = vpop.xlane.xlu0 %826
        %v828 = vmul.f32 %v801, %v778
        %v829 = vmul.f32 %v803, %v779
        %v830 = vlaneseq
        %v831 = vshrl.u32 %v830, 7
        %v832 = vsub.s32 5, %v831
        %v833 = vrot.slane %v495, %v832
        %v834 = vmul.f32 %v812, %v833
        %v835 = vmul.f32 %v815, %v833
        %v836 = vadd.f32 %v828, %v834
        %v837 = vadd.f32 %v829, %v835
        %v838 = vmul.f32 %v824, %v836
        %v839 = vmul.f32 %v827, %v837
        %v840 = vsel %vm549, %v838, 0.0
        %v841 = vsel %vm549, %v839, 0.0
        %v842 = vadd.f32 %v840, %v841
        %v843 = vrot.slane %v842, 4
        %v844 = vadd.f32 %v842, %v843
        %v845 = vrot.slane %v844, 2
        %v846 = vadd.f32 %v844, %v845
        %v847 = vrot.slane %v846, 1
        %v848 = vadd.f32 %v846, %v847
        %s849 = sadd.s32 %s491, 5
        %s850 = scalar_lea.vmem %s463, %s849
        %851 = vst.msk [vmem:[%s850] sm:$0x1] %vm560, %v848
        %v852 = vlaneseq
        %v853 = vshrl.u32 %v852, 7
        %v854 = vsub.s32 6, %v853
        %v855 = vrot.slane %v493, %v854
        %v856 = vmul.f32 %v855, %v472
        %v857 = vmul.f32 %v855, %v473
        %v858 = vmul.f32 %v856, 1.442695
        %v859 = vpow.pop %v858
        %v860 = vmul.f32 %v857, 1.442695
        %v861 = vpow.pop %v860
        %v862 = vlaneseq
        %v863 = vshrl.u32 %v862, 7
        %v864 = vsub.s32 6, %v863
        %v865 = vrot.slane %v497, %v864
        %v866 = vmul.f32 %v865, %v483
        %v867 = vmul.f32 %v865, %v484
        %v868 = vsel %vm518, %v866, 0.0
        %869 = vadd.xlane.f32.xlu0 %v868
        %v870 = vpop.xlane.xlu0 %869
        %v871 = vsel %vm518, %v867, 0.0
        %872 = vadd.xlane.f32.xlu0 %v871
        %v873 = vpop.xlane.xlu0 %872
        %v874 = vlaneseq
        %v875 = vshrl.u32 %v874, 7
        %v876 = vsub.s32 6, %v875
        %v877 = vrot.slane %v499, %v876
        %v878 = vmul.f32 %v877, %v483
        %v879 = vmul.f32 %v877, %v484
        %v880 = vsel %vm518, %v878, 0.0
        %881 = vadd.xlane.f32.xlu0 %v880
        %v882 = vpop.xlane.xlu0 %881
        %v883 = vsel %vm518, %v879, 0.0
        %884 = vadd.xlane.f32.xlu0 %v883
        %v885 = vpop.xlane.xlu0 %884
        %v886 = vmul.f32 %v859, %v836
        %v887 = vmul.f32 %v861, %v837
        %v888 = vlaneseq
        %v889 = vshrl.u32 %v888, 7
        %v890 = vsub.s32 6, %v889
        %v891 = vrot.slane %v495, %v890
        %v892 = vmul.f32 %v870, %v891
        %v893 = vmul.f32 %v873, %v891
        %v894 = vadd.f32 %v886, %v892
        %v895 = vadd.f32 %v887, %v893
        %v896 = vmul.f32 %v882, %v894
        %v897 = vmul.f32 %v885, %v895
        %v898 = vsel %vm549, %v896, 0.0
        %v899 = vsel %vm549, %v897, 0.0
        %v900 = vadd.f32 %v898, %v899
        %v901 = vrot.slane %v900, 4
        %v902 = vadd.f32 %v900, %v901
        %v903 = vrot.slane %v902, 2
        %v904 = vadd.f32 %v902, %v903
        %v905 = vrot.slane %v904, 1
        %v906 = vadd.f32 %v904, %v905
        %s907 = sadd.s32 %s491, 6
        %s908 = scalar_lea.vmem %s463, %s907
        %909 = vst.msk [vmem:[%s908] sm:$0x1] %vm560, %v906
        %v910 = vlaneseq
        %v911 = vshrl.u32 %v910, 7
        %v912 = vsub.s32 7, %v911
        %v913 = vrot.slane %v493, %v912
        %v914 = vmul.f32 %v913, %v472
        %v915 = vmul.f32 %v913, %v473
        %v916 = vmul.f32 %v914, 1.442695
        %v917 = vpow.pop %v916
        %v918 = vmul.f32 %v915, 1.442695
        %v919 = vpow.pop %v918
        %v920 = vlaneseq
        %v921 = vshrl.u32 %v920, 7
        %v922 = vsub.s32 7, %v921
        %v923 = vrot.slane %v497, %v922
        %v924 = vmul.f32 %v923, %v483
        %v925 = vmul.f32 %v923, %v484
        %v926 = vsel %vm518, %v924, 0.0
        %927 = vadd.xlane.f32.xlu0 %v926
        %v928 = vpop.xlane.xlu0 %927
        %v929 = vsel %vm518, %v925, 0.0
        %930 = vadd.xlane.f32.xlu0 %v929
        %v931 = vpop.xlane.xlu0 %930
        %v932 = vlaneseq
        %v933 = vshrl.u32 %v932, 7
        %v934 = vsub.s32 7, %v933
        %v935 = vrot.slane %v499, %v934
        %v936 = vmul.f32 %v935, %v483
        %v937 = vmul.f32 %v935, %v484
        %v938 = vsel %vm518, %v936, 0.0
        %939 = vadd.xlane.f32.xlu0 %v938
        %v940 = vpop.xlane.xlu0 %939
        %v941 = vsel %vm518, %v937, 0.0
        %942 = vadd.xlane.f32.xlu0 %v941
        %v943 = vpop.xlane.xlu0 %942
        %v944 = vmul.f32 %v917, %v894
        %v945 = vmul.f32 %v919, %v895
        %v946 = vlaneseq
        %v947 = vshrl.u32 %v946, 7
        %v948 = vsub.s32 7, %v947
        %v949 = vrot.slane %v495, %v948
        %v950 = vmul.f32 %v928, %v949
        %v951 = vmul.f32 %v931, %v949
        %v952 = vadd.f32 %v944, %v950
        %v953 = vadd.f32 %v945, %v951
        %v954 = vmul.f32 %v940, %v952
        %v955 = vmul.f32 %v943, %v953
        %v956 = vsel %vm549, %v954, 0.0
        %v957 = vsel %vm549, %v955, 0.0
        %v958 = vadd.f32 %v956, %v957
        %v959 = vrot.slane %v958, 4
        %v960 = vadd.f32 %v958, %v959
        %v961 = vrot.slane %v960, 2
        %v962 = vadd.f32 %v960, %v961
        %v963 = vrot.slane %v962, 1
        %v964 = vadd.f32 %v962, %v963
        %s965 = sadd.s32 %s491, 7
        %s966 = scalar_lea.vmem %s463, %s965
        %967 = vst.msk [vmem:[%s966] sm:$0x1] %vm560, %v964
        %968 = vst.msk [vmem:[#allocation2] sm:$0xff] %vm549, %v952
        %969 = vst.msk [vmem:[#allocation2 + $0x8] sm:$0xff] %vm549, %v953
      $region49: #{ss2d_forward.8} parent=39 // loop_footer
        %s490 = sadd.s32 1, %s486
      $region50: #{ss2d_forward.8} parent=39 // loop_footer_branch
        %485 = sbr.rel target = $region46
      $region51: #{ss2d_forward.8} parent=39 // loop_exit
        _
      %s970 = smul.u32 32, %s23
      %p971 = scmp.lt.s32.totalorder %s21, 1
      %s972 = scalar_select %p971, %s21, 1
      %p973 = scmp.lt.s32.totalorder %s22, 3
      %s974 = scalar_select %p973, %s22, 3
      %p975 = scmp.lt.s32.totalorder %s970, 31
      %s976 = scalar_select %p975, %s970, 31
      %s977 = smul.addr %s974, 32
      %s978 = sadd.s32 %s976, %s977
      %s979 = smul.addr %s972, 128
      %s980 = sadd.s32 %s978, %s979
      %s981 = smul.addr %s980, 8
      %s982 = scalar_lea.vmem %s5, %s981
      // Predicated region
      $region52: #{ss2d_forward.8} parent=39 // pred_check
        %p983 = pneg %p203
      $region53: #{ss2d_forward.8} parent=39 // pred_check_branch
        %985 = sbr.rel (%p983) target = $region55
      $region54: #{ss2d_forward.8} parent=39 // pred_region
        %s986 = smul.u32 32, %s23
      $region55: #{ss2d_forward.8} parent=39 // pred_fallthru
        _
    $region40: #{ss2d_forward.8} parent=5 // pred_fallthru
      _
    %p987 = scmp.le.s32.totalorder 2, %s11
    // Predicated region
    $region56: #{ss2d_forward.8} parent=5 // pred_check
      %p988 = pneg %p987
    $region57: #{ss2d_forward.8} parent=5 // pred_check_branch
      %990 = sbr.rel (%p988) target = $region59
    $region58: #{ss2d_forward.8} parent=5 // pred_region
      %s991 = ssub.s32 %s11, 2
      // Predicated region
      $region60: #{ss2d_forward.8} parent=58 // pred_check
        %p992 = pneg %p209
      $region61: #{ss2d_forward.8} parent=58 // pred_check_branch
        %994 = sbr.rel (%p992) target = $region63
      $region62: #{ss2d_forward.8} parent=58 // pred_region
        %s995 = smul.u32 32, %s26
        %p996 = scmp.lt.s32.totalorder %s24, 1
        %s997 = scalar_select %p996, %s24, 1
        %p998 = scmp.lt.s32.totalorder %s25, 3
        %s999 = scalar_select %p998, %s25, 3
        %p1000 = scmp.lt.s32.totalorder %s995, 31
        %s1001 = scalar_select %p1000, %s995, 31
        %s1002 = smul.addr %s999, 32
        %s1003 = sadd.s32 %s1001, %s1002
        %s1004 = smul.addr %s997, 128
        %s1005 = sadd.s32 %s1003, %s1004
        %s1006 = smul.addr %s1005, 8
        %s1007 = scalar_lea.vmem %s5, %s1006
      $region63: #{ss2d_forward.8} parent=58 // pred_fallthru
        _
    $region59: #{ss2d_forward.8} parent=5 // pred_fallthru
      _
  $region6: #{ss2d_forward.8} parent=0 // loop_footer
    %s15 = sadd.s32 1, %s11
  $region7: #{ss2d_forward.8} parent=0 // loop_footer_branch
    %10 = sbr.rel target = $region3
  $region8: #{ss2d_forward.8} parent=0 // loop_exit
    _

// kernel: ss2d_forward.9
$region0: #{ss2d_forward.9}
  #allocation0 [shape = 'u32[]', space=smem, size = 0x4, offset = 0x4, fixed_abs, tag = 'smem constant byte address 0x4 - core index']
  #allocation1 [shape = 'u32[144,128]{1,0:T(1,128)}', space=vmem, size = 0x12000, scoped, tag = 'internal scratch']
  %s0 = inlined_call_operand.vmem [shape: f32[512,64], index: 0, kind: input, shape index: {}]
  %s1 = inlined_call_operand.vmem [shape: f32[512,64], index: 1, kind: input, shape index: {}]
  %s2 = inlined_call_operand.vmem [shape: f32[1,64], index: 2, kind: input, shape index: {}]
  %s3 = inlined_call_operand.vmem [shape: f32[512,64], index: 3, kind: input, shape index: {}]
  %s4 = inlined_call_operand.vmem [shape: f32[1,64], index: 4, kind: input, shape index: {}]
  %s5 = inlined_call_operand.vmem [shape: f32[1,64], index: 5, kind: input, shape index: {}]
  %s6 = inlined_call_operand.vmem [shape: f32[64,32], index: 6, kind: input, shape index: {}]
  %s7 = inlined_call_operand.hbm [shape: f32[512,32], index: 7, kind: output, shape index: {}]
  %s8 = sld [smem:[#allocation0]]
  $region61: #{ss2d_forward.9} parent=0
    _
  %s10 = ssub.s32 1, %s8
  %s11 = scalar_select 0, %s10, %s8
  $region1: #{ss2d_forward.9} parent=0
    #allocation2 [shape = 'u8[262144]{0}', space=vmem, size = 0x40000, scoped, tag = 'output window, operand 0']
    #allocation3 [shape = 's32[2]{0}', space=sflag, size = 0x8, scoped, tag = 'scoped memory for ss2d_forward.9']
    %12 = vsyncpa [#allocation3], 0
    %s13 = scalar_lea.sflag [#allocation3], 1
    %14 = vsyncpa %s13, 0
    loop: start=0, step=1, limit=4
    $region2: #{ss2d_forward.9} parent=1 // loop_pre_header
      _
    $region3: #{ss2d_forward.9} parent=1 // loop_header
      %s16 = sphi 0, %s20
      %p17 = scmp.ge.s32.totalorder %s16, 4
      %s26 = sphi 0, %s28
      %s29 = sphi 0, %s26
      %s30 = sphi 0, %s29
      %s46 = sphi 0, %s30
      %s52 = sphi 0, %s54
      %s55 = sphi 0, %s52
      %s56 = sphi 0, %s55
      %s72 = sphi 0, %s56
      %s76 = sphi 0, %s76
      %s78 = sphi 0, %s76
      %s79 = sphi 0, %s78
      %s93 = sphi 0, %s79
      %s99 = sphi 0, %s101
      %s102 = sphi 0, %s99
      %s103 = sphi 0, %s102
      %s119 = sphi 0, %s103
      %s123 = sphi 0, %s123
      %s125 = sphi 0, %s123
      %s126 = sphi 0, %s125
      %s140 = sphi 0, %s126
      %s144 = sphi 0, %s144
      %s146 = sphi 0, %s144
      %s147 = sphi 0, %s146
      %s161 = sphi 0, %s147
      %s165 = sphi 0, %s165
      %s167 = sphi 0, %s165
      %s168 = sphi 0, %s167
      %s182 = sphi 0, %s168
      %s188 = sphi 0, %s190
      %s191 = sphi 0, %s188
      %s192 = sphi 0, %s191
      %s208 = sphi 0, %s192
    $region4: #{ss2d_forward.9} parent=1 // loop_header_branch
      %19 = sbr.rel (%p17) target = $region8
    $region5: #{ss2d_forward.9} parent=1 // loop_body
      %s21 = ssub.s32 %s16, 1
      %s22 = ssub.s32 %s16, 2
      %s23 = sadd.s32 %s16, 1
      %s24 = ssub.s32 %s16, %s23
      %p25 = scmp.eq.s32.totalorder %s24, 0
      %s27 = sadd.s32 %s26, 1
      %s28 = scalar_select %p25, %s26, %s27
      %p31 = pneg %p25
      %p32 = scmp.eq.s32.totalorder %s16, 1
      %p33 = por %p31, %p32
      %p34 = scmp.ne.s32.totalorder %s26, %s29
      %p35 = scmp.eq.s32.totalorder %s16, 0
      %p36 = por %p34, %p35
      %p37 = scmp.ne.s32.totalorder %s26, %s29
      %p38 = scmp.eq.s32.totalorder %s21, 1
      %p39 = por %p37, %p38
      %p40 = scmp.ne.s32.totalorder %s29, %s30
      %p41 = scmp.eq.s32.totalorder %s21, 0
      %p42 = por %p40, %p41
      %p43 = scmp.ne.s32.totalorder %s29, %s30
      %p44 = scmp.eq.s32.totalorder %s22, 1
      %p45 = por %p43, %p44
      %p47 = scmp.ne.s32.totalorder %s30, %s46
      %p48 = scmp.eq.s32.totalorder %s22, 0
      %p49 = por %p47, %p48
      %s50 = ssub.s32 %s16, %s23
      %p51 = scmp.eq.s32.totalorder %s50, 0
      %s53 = sadd.s32 %s52, 1
      %s54 = scalar_select %p51, %s52, %s53
      %p57 = pneg %p51
      %p58 = scmp.eq.s32.totalorder %s16, 1
      %p59 = por %p57, %p58
      %p60 = scmp.ne.s32.totalorder %s52, %s55
      %p61 = scmp.eq.s32.totalorder %s16, 0
      %p62 = por %p60, %p61
      %p63 = scmp.ne.s32.totalorder %s52, %s55
      %p64 = scmp.eq.s32.totalorder %s21, 1
      %p65 = por %p63, %p64
      %p66 = scmp.ne.s32.totalorder %s55, %s56
      %p67 = scmp.eq.s32.totalorder %s21, 0
      %p68 = por %p66, %p67
      %p69 = scmp.ne.s32.totalorder %s55, %s56
      %p70 = scmp.eq.s32.totalorder %s22, 1
      %p71 = por %p69, %p70
      %p73 = scmp.ne.s32.totalorder %s56, %s72
      %p74 = scmp.eq.s32.totalorder %s22, 0
      %p75 = por %p73, %p74
      %s77 = sadd.s32 %s76, 1
      %p80 = scmp.eq.s32.totalorder %s16, 1
      %p81 = scmp.ne.s32.totalorder %s76, %s78
      %p82 = scmp.eq.s32.totalorder %s16, 0
      %p83 = por %p81, %p82
      %p84 = scmp.ne.s32.totalorder %s76, %s78
      %p85 = scmp.eq.s32.totalorder %s21, 1
      %p86 = por %p84, %p85
      %p87 = scmp.ne.s32.totalorder %s78, %s79
      %p88 = scmp.eq.s32.totalorder %s21, 0
      %p89 = por %p87, %p88
      %p90 = scmp.ne.s32.totalorder %s78, %s79
      %p91 = scmp.eq.s32.totalorder %s22, 1
      %p92 = por %p90, %p91
      %p94 = scmp.ne.s32.totalorder %s79, %s93
      %p95 = scmp.eq.s32.totalorder %s22, 0
      %p96 = por %p94, %p95
      %s97 = ssub.s32 %s16, %s23
      %p98 = scmp.eq.s32.totalorder %s97, 0
      %s100 = sadd.s32 %s99, 1
      %s101 = scalar_select %p98, %s99, %s100
      %p104 = pneg %p98
      %p105 = scmp.eq.s32.totalorder %s16, 1
      %p106 = por %p104, %p105
      %p107 = scmp.ne.s32.totalorder %s99, %s102
      %p108 = scmp.eq.s32.totalorder %s16, 0
      %p109 = por %p107, %p108
      %p110 = scmp.ne.s32.totalorder %s99, %s102
      %p111 = scmp.eq.s32.totalorder %s21, 1
      %p112 = por %p110, %p111
      %p113 = scmp.ne.s32.totalorder %s102, %s103
      %p114 = scmp.eq.s32.totalorder %s21, 0
      %p115 = por %p113, %p114
      %p116 = scmp.ne.s32.totalorder %s102, %s103
      %p117 = scmp.eq.s32.totalorder %s22, 1
      %p118 = por %p116, %p117
      %p120 = scmp.ne.s32.totalorder %s103, %s119
      %p121 = scmp.eq.s32.totalorder %s22, 0
      %p122 = por %p120, %p121
      %s124 = sadd.s32 %s123, 1
      %p127 = scmp.eq.s32.totalorder %s16, 1
      %p128 = scmp.ne.s32.totalorder %s123, %s125
      %p129 = scmp.eq.s32.totalorder %s16, 0
      %p130 = por %p128, %p129
      %p131 = scmp.ne.s32.totalorder %s123, %s125
      %p132 = scmp.eq.s32.totalorder %s21, 1
      %p133 = por %p131, %p132
      %p134 = scmp.ne.s32.totalorder %s125, %s126
      %p135 = scmp.eq.s32.totalorder %s21, 0
      %p136 = por %p134, %p135
      %p137 = scmp.ne.s32.totalorder %s125, %s126
      %p138 = scmp.eq.s32.totalorder %s22, 1
      %p139 = por %p137, %p138
      %p141 = scmp.ne.s32.totalorder %s126, %s140
      %p142 = scmp.eq.s32.totalorder %s22, 0
      %p143 = por %p141, %p142
      %s145 = sadd.s32 %s144, 1
      %p148 = scmp.eq.s32.totalorder %s16, 1
      %p149 = scmp.ne.s32.totalorder %s144, %s146
      %p150 = scmp.eq.s32.totalorder %s16, 0
      %p151 = por %p149, %p150
      %p152 = scmp.ne.s32.totalorder %s144, %s146
      %p153 = scmp.eq.s32.totalorder %s21, 1
      %p154 = por %p152, %p153
      %p155 = scmp.ne.s32.totalorder %s146, %s147
      %p156 = scmp.eq.s32.totalorder %s21, 0
      %p157 = por %p155, %p156
      %p158 = scmp.ne.s32.totalorder %s146, %s147
      %p159 = scmp.eq.s32.totalorder %s22, 1
      %p160 = por %p158, %p159
      %p162 = scmp.ne.s32.totalorder %s147, %s161
      %p163 = scmp.eq.s32.totalorder %s22, 0
      %p164 = por %p162, %p163
      %s166 = sadd.s32 %s165, 1
      %p169 = scmp.eq.s32.totalorder %s16, 1
      %p170 = scmp.ne.s32.totalorder %s165, %s167
      %p171 = scmp.eq.s32.totalorder %s16, 0
      %p172 = por %p170, %p171
      %p173 = scmp.ne.s32.totalorder %s165, %s167
      %p174 = scmp.eq.s32.totalorder %s21, 1
      %p175 = por %p173, %p174
      %p176 = scmp.ne.s32.totalorder %s167, %s168
      %p177 = scmp.eq.s32.totalorder %s21, 0
      %p178 = por %p176, %p177
      %p179 = scmp.ne.s32.totalorder %s167, %s168
      %p180 = scmp.eq.s32.totalorder %s22, 1
      %p181 = por %p179, %p180
      %p183 = scmp.ne.s32.totalorder %s168, %s182
      %p184 = scmp.eq.s32.totalorder %s22, 0
      %p185 = por %p183, %p184
      %s186 = ssub.s32 %s16, %s23
      %p187 = scmp.eq.s32.totalorder %s186, 0
      %s189 = sadd.s32 %s188, 1
      %s190 = scalar_select %p187, %s188, %s189
      %p193 = pneg %p187
      %p194 = scmp.eq.s32.totalorder %s16, 1
      %p195 = por %p193, %p194
      %p196 = scmp.ne.s32.totalorder %s188, %s191
      %p197 = scmp.eq.s32.totalorder %s16, 0
      %p198 = por %p196, %p197
      %p199 = scmp.ne.s32.totalorder %s188, %s191
      %p200 = scmp.eq.s32.totalorder %s21, 1
      %p201 = por %p199, %p200
      %p202 = scmp.ne.s32.totalorder %s191, %s192
      %p203 = scmp.eq.s32.totalorder %s21, 0
      %p204 = por %p202, %p203
      %p205 = scmp.ne.s32.totalorder %s191, %s192
      %p206 = scmp.eq.s32.totalorder %s22, 1
      %p207 = por %p205, %p206
      %p209 = scmp.ne.s32.totalorder %s192, %s208
      %p210 = scmp.eq.s32.totalorder %s22, 0
      %p211 = por %p209, %p210
      %p212 = scmp.le.s32.totalorder 1, %s16
      %p213 = scmp.lt.s32.totalorder %s16, 3
      %p214 = pnand %p212, %p213
      %p215 = pneg %p214
      // Predicated region
      $region9: #{ss2d_forward.9} parent=5 // pred_check
        _
      $region10: #{ss2d_forward.9} parent=5 // pred_check_branch
        %217 = sbr.rel (%p214) target = $region12
      $region11: #{ss2d_forward.9} parent=5 // pred_region
        %s218 = ssub.s32 %s16, 1
        // Predicated region
        $region13: #{ss2d_forward.9} parent=11 // pred_check
          %p219 = pneg %p89
        $region14: #{ss2d_forward.9} parent=11 // pred_check_branch
          %221 = sbr.rel (%p219) target = $region16
        $region15: #{ss2d_forward.9} parent=11 // pred_region
          _
        $region16: #{ss2d_forward.9} parent=11 // pred_fallthru
          _
        // Predicated region
        $region17: #{ss2d_forward.9} parent=11 // pred_check
          %p222 = pneg %p136
        $region18: #{ss2d_forward.9} parent=11 // pred_check_branch
          %224 = sbr.rel (%p222) target = $region20
        $region19: #{ss2d_forward.9} parent=11 // pred_region
          _
        $region20: #{ss2d_forward.9} parent=11 // pred_fallthru
          _
        // Predicated region
        $region21: #{ss2d_forward.9} parent=11 // pred_check
          %p225 = pneg %p157
        $region22: #{ss2d_forward.9} parent=11 // pred_check_branch
          %227 = sbr.rel (%p225) target = $region24
        $region23: #{ss2d_forward.9} parent=11 // pred_region
          _
        $region24: #{ss2d_forward.9} parent=11 // pred_fallthru
          _
        // Predicated region
        $region25: #{ss2d_forward.9} parent=11 // pred_check
          %p228 = pneg %p178
        $region26: #{ss2d_forward.9} parent=11 // pred_check_branch
          %230 = sbr.rel (%p228) target = $region28
        $region27: #{ss2d_forward.9} parent=11 // pred_region
          _
        $region28: #{ss2d_forward.9} parent=11 // pred_fallthru
          _
      $region12: #{ss2d_forward.9} parent=5 // pred_fallthru
        _
      %p231 = scmp.lt.s32.totalorder %s16, 2
      // Predicated region
      $region29: #{ss2d_forward.9} parent=5 // pred_check
        %p232 = pneg %p231
      $region30: #{ss2d_forward.9} parent=5 // pred_check_branch
        %234 = sbr.rel (%p232) target = $region32
      $region31: #{ss2d_forward.9} parent=5 // pred_region
        // Predicated region
        $region33: #{ss2d_forward.9} parent=31 // pred_check
          %p235 = pneg %p36
        $region34: #{ss2d_forward.9} parent=31 // pred_check_branch
          %237 = sbr.rel (%p235) target = $region36
        $region35: #{ss2d_forward.9} parent=31 // pred_region
          %s238 = smul.u32 32, %s16
          %p239 = scmp.lt.s32.totalorder %s238, 63
          %s240 = scalar_select %p239, %s238, 63
          %s241 = smul.addr %s240, 8
          %s242 = scalar_lea.vmem %s0, %s241
          %s243 = smul.u32 32, %s16
        $region36: #{ss2d_forward.9} parent=31 // pred_fallthru
          _
        // Predicated region
        $region37: #{ss2d_forward.9} parent=31 // pred_check
          %p244 = pneg %p62
        $region38: #{ss2d_forward.9} parent=31 // pred_check_branch
          %246 = sbr.rel (%p244) target = $region40
        $region39: #{ss2d_forward.9} parent=31 // pred_region
          %s247 = smul.u32 32, %s16
          %p248 = scmp.lt.s32.totalorder %s247, 63
          %s249 = scalar_select %p248, %s247, 63
          %s250 = smul.addr %s249, 8
          %s251 = scalar_lea.vmem %s1, %s250
          %s252 = smul.u32 32, %s16
        $region40: #{ss2d_forward.9} parent=31 // pred_fallthru
          _
        // Predicated region
        $region41: #{ss2d_forward.9} parent=31 // pred_check
          %p253 = pneg %p109
        $region42: #{ss2d_forward.9} parent=31 // pred_check_branch
          %255 = sbr.rel (%p253) target = $region44
        $region43: #{ss2d_forward.9} parent=31 // pred_region
          %s256 = smul.u32 32, %s16
          %p257 = scmp.lt.s32.totalorder %s256, 63
          %s258 = scalar_select %p257, %s256, 63
          %s259 = smul.addr %s258, 8
          %s260 = scalar_lea.vmem %s3, %s259
          %s261 = smul.u32 32, %s16
        $region44: #{ss2d_forward.9} parent=31 // pred_fallthru
          _
      $region32: #{ss2d_forward.9} parent=5 // pred_fallthru
        _
      %p262 = scmp.le.s32.totalorder 1, %s16
      %p263 = scmp.lt.s32.totalorder %s16, 3
      %p264 = pnand %p262, %p263
      %p265 = pneg %p264
      // Predicated region
      $region45: #{ss2d_forward.9} parent=5 // pred_check
        _
      $region46: #{ss2d_forward.9} parent=5 // pred_check_branch
        %267 = sbr.rel (%p264) target = $region48
      $region47: #{ss2d_forward.9} parent=5 // pred_region
        %s268 = ssub.s32 %s16, 1
        %s269 = smul.u32 32, %s21
        %p270 = scmp.lt.s32.totalorder %s269, 63
        %s271 = scalar_select %p270, %s269, 63
        %s272 = smul.addr %s271, 8
        %s273 = scalar_lea.vmem %s0, %s272
        %p274 = pneg %p42
        %p275 = pneg %p39
        %s276 = smul.u32 32, %s21
        %p277 = scmp.lt.s32.totalorder %s276, 63
        %s278 = scalar_select %p277, %s276, 63
        %s279 = smul.addr %s278, 8
        %s280 = scalar_lea.vmem %s1, %s279
        %p281 = pneg %p68
        %p282 = pneg %p65
        %p283 = pneg %p89
        %p284 = pneg %p86
        %s285 = smul.u32 32, %s21
        %p286 = scmp.lt.s32.totalorder %s285, 63
        %s287 = scalar_select %p286, %s285, 63
        %s288 = smul.addr %s287, 8
        %s289 = scalar_lea.vmem %s3, %s288
        %p290 = pneg %p115
        %p291 = pneg %p112
        %p292 = pneg %p136
        %p293 = pneg %p133
        %p294 = pneg %p157
        %p295 = pneg %p154
        %p296 = pneg %p178
        %p297 = pneg %p175
        %p298 = pneg %p204
        %p299 = pneg %p201
        %s300 = sand.u32 %s191, 1
        %s301 = scalar_lea.sflag [#allocation3], %s300
        %s302 = sand.u32 %s191, 1
        %s303 = smul.addr %s302, 256
        %s304 = scalar_lea.vmem [#allocation2], %s303
        %s305 = smul.u32 32, %s21
        %p306 = scmp.lt.s32.totalorder %s305, 63
        %s307 = scalar_select %p306, %s305, 63
        %s308 = smul.addr %s307, 8
        %s309 = scalar_lea.vmem %s0, %s308
        %s310 = smul.u32 32, %s21
        %s311 = smul.u32 32, %s21
        %p312 = scmp.lt.s32.totalorder %s311, 63
        %s313 = scalar_select %p312, %s311, 63
        %s314 = smul.addr %s313, 8
        %s315 = scalar_lea.vmem %s1, %s314
        %s316 = smul.u32 32, %s21
        %s317 = smul.u32 32, %s21
        %p318 = scmp.lt.s32.totalorder %s317, 63
        %s319 = scalar_select %p318, %s317, 63
        %s320 = smul.addr %s319, 8
        %s321 = scalar_lea.vmem %s3, %s320
        %s322 = smul.u32 32, %s21
        %s323 = smul.u32 32, %s21
        %v325 = vld [vmem:[%s309] sm:$0xff]
        %v326 = vld [vmem:[%s309 + $0x8] sm:$0xff]
        %v327 = vld [vmem:[%s309 + $0x10] sm:$0xff]
        %v328 = vld [vmem:[%s309 + $0x18] sm:$0xff]
        %v329 = vld [vmem:[%s309 + $0x20] sm:$0xff]
        %v330 = vld [vmem:[%s309 + $0x28] sm:$0xff]
        %v331 = vld [vmem:[%s309 + $0x30] sm:$0xff]
        %v332 = vld [vmem:[%s309 + $0x38] sm:$0xff]
        %v333 = vld [vmem:[%s309 + $0x40] sm:$0xff]
        %v334 = vld [vmem:[%s309 + $0x48] sm:$0xff]
        %v335 = vld [vmem:[%s309 + $0x50] sm:$0xff]
        %v336 = vld [vmem:[%s309 + $0x58] sm:$0xff]
        %v337 = vld [vmem:[%s309 + $0x60] sm:$0xff]
        %v338 = vld [vmem:[%s309 + $0x68] sm:$0xff]
        %v339 = vld [vmem:[%s309 + $0x70] sm:$0xff]
        %v340 = vld [vmem:[%s309 + $0x78] sm:$0xff]
        %v341 = vld [vmem:[%s309 + $0x80] sm:$0xff]
        %v342 = vld [vmem:[%s309 + $0x88] sm:$0xff]
        %v343 = vld [vmem:[%s309 + $0x90] sm:$0xff]
        %v344 = vld [vmem:[%s309 + $0x98] sm:$0xff]
        %v345 = vld [vmem:[%s309 + $0xa0] sm:$0xff]
        %v346 = vld [vmem:[%s309 + $0xa8] sm:$0xff]
        %v347 = vld [vmem:[%s309 + $0xb0] sm:$0xff]
        %v348 = vld [vmem:[%s309 + $0xb8] sm:$0xff]
        %v349 = vld [vmem:[%s309 + $0xc0] sm:$0xff]
        %v350 = vld [vmem:[%s309 + $0xc8] sm:$0xff]
        %v351 = vld [vmem:[%s309 + $0xd0] sm:$0xff]
        %v352 = vld [vmem:[%s309 + $0xd8] sm:$0xff]
        %v353 = vld [vmem:[%s309 + $0xe0] sm:$0xff]
        %v354 = vld [vmem:[%s309 + $0xe8] sm:$0xff]
        %v355 = vld [vmem:[%s309 + $0xf0] sm:$0xff]
        %v356 = vld [vmem:[%s309 + $0xf8] sm:$0xff]
        %v357 = vld [vmem:[%s315] sm:$0xff]
        %v358 = vld [vmem:[%s315 + $0x8] sm:$0xff]
        %v359 = vld [vmem:[%s315 + $0x10] sm:$0xff]
        %v360 = vld [vmem:[%s315 + $0x18] sm:$0xff]
        %v361 = vld [vmem:[%s315 + $0x20] sm:$0xff]
        %v362 = vld [vmem:[%s315 + $0x28] sm:$0xff]
        %v363 = vld [vmem:[%s315 + $0x30] sm:$0xff]
        %v364 = vld [vmem:[%s315 + $0x38] sm:$0xff]
        %v365 = vld [vmem:[%s315 + $0x40] sm:$0xff]
        %v366 = vld [vmem:[%s315 + $0x48] sm:$0xff]
        %v367 = vld [vmem:[%s315 + $0x50] sm:$0xff]
        %v368 = vld [vmem:[%s315 + $0x58] sm:$0xff]
        %v369 = vld [vmem:[%s315 + $0x60] sm:$0xff]
        %v370 = vld [vmem:[%s315 + $0x68] sm:$0xff]
        %v371 = vld [vmem:[%s315 + $0x70] sm:$0xff]
        %v372 = vld [vmem:[%s315 + $0x78] sm:$0xff]
        %v373 = vld [vmem:[%s315 + $0x80] sm:$0xff]
        %v374 = vld [vmem:[%s315 + $0x88] sm:$0xff]
        %v375 = vld [vmem:[%s315 + $0x90] sm:$0xff]
        %v376 = vld [vmem:[%s315 + $0x98] sm:$0xff]
        %v377 = vld [vmem:[%s315 + $0xa0] sm:$0xff]
        %v378 = vld [vmem:[%s315 + $0xa8] sm:$0xff]
        %v379 = vld [vmem:[%s315 + $0xb0] sm:$0xff]
        %v380 = vld [vmem:[%s315 + $0xb8] sm:$0xff]
        %v381 = vld [vmem:[%s315 + $0xc0] sm:$0xff]
        %v382 = vld [vmem:[%s315 + $0xc8] sm:$0xff]
        %v383 = vld [vmem:[%s315 + $0xd0] sm:$0xff]
        %v384 = vld [vmem:[%s315 + $0xd8] sm:$0xff]
        %v385 = vld [vmem:[%s315 + $0xe0] sm:$0xff]
        %v386 = vld [vmem:[%s315 + $0xe8] sm:$0xff]
        %v387 = vld [vmem:[%s315 + $0xf0] sm:$0xff]
        %v388 = vld [vmem:[%s315 + $0xf8] sm:$0xff]
        %v389 = vld [vmem:[%s2] sm:$0x1]
        %v391 = vlaneseq
        %v392 = vshrl.u32 %v391, 7
        %v393 = vsub.s32 0, %v392
        %v394 = vrot.slane %v389, %v393
        %v396 = vmul.f32 %v357, %v394
        %v397 = vmul.f32 %v358, %v394
        %v398 = vmul.f32 %v359, %v394
        %v399 = vmul.f32 %v360, %v394
        %v400 = vmul.f32 %v361, %v394
        %v401 = vmul.f32 %v362, %v394
        %v402 = vmul.f32 %v363, %v394
        %v403 = vmul.f32 %v364, %v394
        %v404 = vmul.f32 %v365, %v394
        %v405 = vmul.f32 %v366, %v394
        %v406 = vmul.f32 %v367, %v394
        %v407 = vmul.f32 %v368, %v394
        %v408 = vmul.f32 %v369, %v394
        %v409 = vmul.f32 %v370, %v394
        %v410 = vmul.f32 %v371, %v394
        %v411 = vmul.f32 %v372, %v394
        %v412 = vmul.f32 %v373, %v394
        %v413 = vmul.f32 %v374, %v394
        %v414 = vmul.f32 %v375, %v394
        %v415 = vmul.f32 %v376, %v394
        %v416 = vmul.f32 %v377, %v394
        %v417 = vmul.f32 %v378, %v394
        %v418 = vmul.f32 %v379, %v394
        %v419 = vmul.f32 %v380, %v394
        %v420 = vmul.f32 %v381, %v394
        %v421 = vmul.f32 %v382, %v394
        %v422 = vmul.f32 %v383, %v394
        %v423 = vmul.f32 %v384, %v394
        %v424 = vmul.f32 %v385, %v394
        %v425 = vmul.f32 %v386, %v394
        %v426 = vmul.f32 %v387, %v394
        %v427 = vmul.f32 %v388, %v394
        %v428 = vadd.f32 %v325, %v396
        %v429 = vadd.f32 %v326, %v397
        %v430 = vadd.f32 %v327, %v398
        %v431 = vadd.f32 %v328, %v399
        %v432 = vadd.f32 %v329, %v400
        %v433 = vadd.f32 %v330, %v401
        %v434 = vadd.f32 %v331, %v402
        %v435 = vadd.f32 %v332, %v403
        %v436 = vadd.f32 %v333, %v404
        %v437 = vadd.f32 %v334, %v405
        %v438 = vadd.f32 %v335, %v406
        %v439 = vadd.f32 %v336, %v407
        %v440 = vadd.f32 %v337, %v408
        %v441 = vadd.f32 %v338, %v409
        %v442 = vadd.f32 %v339, %v410
        %v443 = vadd.f32 %v340, %v411
        %v444 = vadd.f32 %v341, %v412
        %v445 = vadd.f32 %v342, %v413
        %v446 = vadd.f32 %v343, %v414
        %v447 = vadd.f32 %v344, %v415
        %v448 = vadd.f32 %v345, %v416
        %v449 = vadd.f32 %v346, %v417
        %v450 = vadd.f32 %v347, %v418
        %v451 = vadd.f32 %v348, %v419
        %v452 = vadd.f32 %v349, %v420
        %v453 = vadd.f32 %v350, %v421
        %v454 = vadd.f32 %v351, %v422
        %v455 = vadd.f32 %v352, %v423
        %v456 = vadd.f32 %v353, %v424
        %v457 = vadd.f32 %v354, %v425
        %v458 = vadd.f32 %v355, %v426
        %v459 = vadd.f32 %v356, %v427
        %vm460 = vcmask 523264
        %v461 = vsel %vm460, %v428, 0.0
        %462 = vadd.xlane.f32.xlu0 %v461
        %v463 = vpop.xlane.xlu0 %462
        %v464 = vsel %vm460, %v429, 0.0
        %465 = vadd.xlane.f32.xlu0 %v464
        %v466 = vpop.xlane.xlu0 %465
        %v467 = vsel %vm460, %v430, 0.0
        %468 = vadd.xlane.f32.xlu0 %v467
        %v469 = vpop.xlane.xlu0 %468
        %v470 = vsel %vm460, %v431, 0.0
        %471 = vadd.xlane.f32.xlu0 %v470
        %v472 = vpop.xlane.xlu0 %471
        %v473 = vsel %vm460, %v432, 0.0
        %474 = vadd.xlane.f32.xlu0 %v473
        %v475 = vpop.xlane.xlu0 %474
        %v476 = vsel %vm460, %v433, 0.0
        %477 = vadd.xlane.f32.xlu0 %v476
        %v478 = vpop.xlane.xlu0 %477
        %v479 = vsel %vm460, %v434, 0.0
        %480 = vadd.xlane.f32.xlu0 %v479
        %v481 = vpop.xlane.xlu0 %480
        %v482 = vsel %vm460, %v435, 0.0
        %483 = vadd.xlane.f32.xlu0 %v482
        %v484 = vpop.xlane.xlu0 %483
        %v485 = vsel %vm460, %v436, 0.0
        %486 = vadd.xlane.f32.xlu0 %v485
        %v487 = vpop.xlane.xlu0 %486
        %v488 = vsel %vm460, %v437, 0.0
        %489 = vadd.xlane.f32.xlu0 %v488
        %v490 = vpop.xlane.xlu0 %489
        %v491 = vsel %vm460, %v438, 0.0
        %492 = vadd.xlane.f32.xlu0 %v491
        %v493 = vpop.xlane.xlu0 %492
        %v494 = vsel %vm460, %v439, 0.0
        %495 = vadd.xlane.f32.xlu0 %v494
        %v496 = vpop.xlane.xlu0 %495
        %v497 = vsel %vm460, %v440, 0.0
        %498 = vadd.xlane.f32.xlu0 %v497
        %v499 = vpop.xlane.xlu0 %498
        %v500 = vsel %vm460, %v441, 0.0
        %501 = vadd.xlane.f32.xlu0 %v500
        %v502 = vpop.xlane.xlu0 %501
        %v503 = vsel %vm460, %v442, 0.0
        %504 = vadd.xlane.f32.xlu0 %v503
        %v505 = vpop.xlane.xlu0 %504
        %v506 = vsel %vm460, %v443, 0.0
        %507 = vadd.xlane.f32.xlu0 %v506
        %v508 = vpop.xlane.xlu0 %507
        %v509 = vsel %vm460, %v444, 0.0
        %510 = vadd.xlane.f32.xlu0 %v509
        %v511 = vpop.xlane.xlu0 %510
        %v512 = vsel %vm460, %v445, 0.0
        %513 = vadd.xlane.f32.xlu0 %v512
        %v514 = vpop.xlane.xlu0 %513
        %v515 = vsel %vm460, %v446, 0.0
        %516 = vadd.xlane.f32.xlu0 %v515
        %v517 = vpop.xlane.xlu0 %516
        %v518 = vsel %vm460, %v447, 0.0
        %519 = vadd.xlane.f32.xlu0 %v518
        %v520 = vpop.xlane.xlu0 %519
        %v521 = vsel %vm460, %v448, 0.0
        %522 = vadd.xlane.f32.xlu0 %v521
        %v523 = vpop.xlane.xlu0 %522
        %v524 = vsel %vm460, %v449, 0.0
        %525 = vadd.xlane.f32.xlu0 %v524
        %v526 = vpop.xlane.xlu0 %525
        %v527 = vsel %vm460, %v450, 0.0
        %528 = vadd.xlane.f32.xlu0 %v527
        %v529 = vpop.xlane.xlu0 %528
        %v530 = vsel %vm460, %v451, 0.0
        %531 = vadd.xlane.f32.xlu0 %v530
        %v532 = vpop.xlane.xlu0 %531
        %v533 = vsel %vm460, %v452, 0.0
        %534 = vadd.xlane.f32.xlu0 %v533
        %v535 = vpop.xlane.xlu0 %534
        %v536 = vsel %vm460, %v453, 0.0
        %537 = vadd.xlane.f32.xlu0 %v536
        %v538 = vpop.xlane.xlu0 %537
        %v539 = vsel %vm460, %v454, 0.0
        %540 = vadd.xlane.f32.xlu0 %v539
        %v541 = vpop.xlane.xlu0 %540
        %v542 = vsel %vm460, %v455, 0.0
        %543 = vadd.xlane.f32.xlu0 %v542
        %v544 = vpop.xlane.xlu0 %543
        %v545 = vsel %vm460, %v456, 0.0
        %546 = vadd.xlane.f32.xlu0 %v545
        %v547 = vpop.xlane.xlu0 %546
        %v548 = vsel %vm460, %v457, 0.0
        %549 = vadd.xlane.f32.xlu0 %v548
        %v550 = vpop.xlane.xlu0 %549
        %v551 = vsel %vm460, %v458, 0.0
        %552 = vadd.xlane.f32.xlu0 %v551
        %v553 = vpop.xlane.xlu0 %552
        %v554 = vsel %vm460, %v459, 0.0
        %555 = vadd.xlane.f32.xlu0 %v554
        %v556 = vpop.xlane.xlu0 %555
        %v557 = vrcp.pop 64.0
        %v558 = vmul.f32 %v463, %v557
        %v559 = vmul.f32 %v466, %v557
        %v560 = vmul.f32 %v469, %v557
        %v561 = vmul.f32 %v472, %v557
        %v562 = vmul.f32 %v475, %v557
        %v563 = vmul.f32 %v478, %v557
        %v564 = vmul.f32 %v481, %v557
        %v565 = vmul.f32 %v484, %v557
        %v566 = vmul.f32 %v487, %v557
        %v567 = vmul.f32 %v490, %v557
        %v568 = vmul.f32 %v493, %v557
        %v569 = vmul.f32 %v496, %v557
        %v570 = vmul.f32 %v499, %v557
        %v571 = vmul.f32 %v502, %v557
        %v572 = vmul.f32 %v505, %v557
        %v573 = vmul.f32 %v508, %v557
        %v574 = vmul.f32 %v511, %v557
        %v575 = vmul.f32 %v514, %v557
        %v576 = vmul.f32 %v517, %v557
        %v577 = vmul.f32 %v520, %v557
        %v578 = vmul.f32 %v523, %v557
        %v579 = vmul.f32 %v526, %v557
        %v580 = vmul.f32 %v529, %v557
        %v581 = vmul.f32 %v532, %v557
        %v582 = vmul.f32 %v535, %v557
        %v583 = vmul.f32 %v538, %v557
        %v584 = vmul.f32 %v541, %v557
        %v585 = vmul.f32 %v544, %v557
        %v586 = vmul.f32 %v547, %v557
        %v587 = vmul.f32 %v550, %v557
        %v588 = vmul.f32 %v553, %v557
        %v589 = vmul.f32 %v556, %v557
        %v590 = vsub.f32 %v428, %v558
        %v591 = vsub.f32 %v429, %v559
        %v592 = vsub.f32 %v430, %v560
        %v593 = vsub.f32 %v431, %v561
        %v594 = vsub.f32 %v432, %v562
        %v595 = vsub.f32 %v433, %v563
        %v596 = vsub.f32 %v434, %v564
        %v597 = vsub.f32 %v435, %v565
        %v598 = vsub.f32 %v436, %v566
        %v599 = vsub.f32 %v437, %v567
        %v600 = vsub.f32 %v438, %v568
        %v601 = vsub.f32 %v439, %v569
        %v602 = vsub.f32 %v440, %v570
        %v603 = vsub.f32 %v441, %v571
        %v604 = vsub.f32 %v442, %v572
        %v605 = vsub.f32 %v443, %v573
        %v606 = vsub.f32 %v444, %v574
        %v607 = vsub.f32 %v445, %v575
        %v608 = vsub.f32 %v446, %v576
        %v609 = vsub.f32 %v447, %v577
        %v610 = vsub.f32 %v448, %v578
        %v611 = vsub.f32 %v449, %v579
        %v612 = vsub.f32 %v450, %v580
        %v613 = vsub.f32 %v451, %v581
        %v614 = vsub.f32 %v452, %v582
        %v615 = vsub.f32 %v453, %v583
        %v616 = vsub.f32 %v454, %v584
        %v617 = vsub.f32 %v455, %v585
        %v618 = vsub.f32 %v456, %v586
        %v619 = vsub.f32 %v457, %v587
        %v620 = vsub.f32 %v458, %v588
        %v621 = vsub.f32 %v459, %v589
        %v622 = vmul.f32 %v590, %v590
        %v623 = vmul.f32 %v591, %v591
        %v624 = vmul.f32 %v592, %v592
        %v625 = vmul.f32 %v593, %v593
        %v626 = vmul.f32 %v594, %v594
        %v627 = vmul.f32 %v595, %v595
        %v628 = vmul.f32 %v596, %v596
        %v629 = vmul.f32 %v597, %v597
        %v630 = vmul.f32 %v598, %v598
        %v631 = vmul.f32 %v599, %v599
        %v632 = vmul.f32 %v600, %v600
        %v633 = vmul.f32 %v601, %v601
        %v634 = vmul.f32 %v602, %v602
        %v635 = vmul.f32 %v603, %v603
        %v636 = vmul.f32 %v604, %v604
        %v637 = vmul.f32 %v605, %v605
        %v638 = vmul.f32 %v606, %v606
        %v639 = vmul.f32 %v607, %v607
        %v640 = vmul.f32 %v608, %v608
        %v641 = vmul.f32 %v609, %v609
        %v642 = vmul.f32 %v610, %v610
        %v643 = vmul.f32 %v611, %v611
        %v644 = vmul.f32 %v612, %v612
        %v645 = vmul.f32 %v613, %v613
        %v646 = vmul.f32 %v614, %v614
        %v647 = vmul.f32 %v615, %v615
        %v648 = vmul.f32 %v616, %v616
        %v649 = vmul.f32 %v617, %v617
        %v650 = vmul.f32 %v618, %v618
        %v651 = vmul.f32 %v619, %v619
        %v652 = vmul.f32 %v620, %v620
        %v653 = vmul.f32 %v621, %v621
        %v654 = vsel %vm460, %v622, 0.0
        %655 = vadd.xlane.f32.xlu0 %v654
        %v656 = vpop.xlane.xlu0 %655
        %v657 = vsel %vm460, %v623, 0.0
        %658 = vadd.xlane.f32.xlu0 %v657
        %v659 = vpop.xlane.xlu0 %658
        %v660 = vsel %vm460, %v624, 0.0
        %661 = vadd.xlane.f32.xlu0 %v660
        %v662 = vpop.xlane.xlu0 %661
        %v663 = vsel %vm460, %v625, 0.0
        %664 = vadd.xlane.f32.xlu0 %v663
        %v665 = vpop.xlane.xlu0 %664
        %v666 = vsel %vm460, %v626, 0.0
        %667 = vadd.xlane.f32.xlu0 %v666
        %v668 = vpop.xlane.xlu0 %667
        %v669 = vsel %vm460, %v627, 0.0
        %670 = vadd.xlane.f32.xlu0 %v669
        %v671 = vpop.xlane.xlu0 %670
        %v672 = vsel %vm460, %v628, 0.0
        %673 = vadd.xlane.f32.xlu0 %v672
        %v674 = vpop.xlane.xlu0 %673
        %v675 = vsel %vm460, %v629, 0.0
        %676 = vadd.xlane.f32.xlu0 %v675
        %v677 = vpop.xlane.xlu0 %676
        %v678 = vsel %vm460, %v630, 0.0
        %679 = vadd.xlane.f32.xlu0 %v678
        %v680 = vpop.xlane.xlu0 %679
        %v681 = vsel %vm460, %v631, 0.0
        %682 = vadd.xlane.f32.xlu0 %v681
        %v683 = vpop.xlane.xlu0 %682
        %v684 = vsel %vm460, %v632, 0.0
        %685 = vadd.xlane.f32.xlu0 %v684
        %v686 = vpop.xlane.xlu0 %685
        %v687 = vsel %vm460, %v633, 0.0
        %688 = vadd.xlane.f32.xlu0 %v687
        %v689 = vpop.xlane.xlu0 %688
        %v690 = vsel %vm460, %v634, 0.0
        %691 = vadd.xlane.f32.xlu0 %v690
        %v692 = vpop.xlane.xlu0 %691
        %v693 = vsel %vm460, %v635, 0.0
        %694 = vadd.xlane.f32.xlu0 %v693
        %v695 = vpop.xlane.xlu0 %694
        %v696 = vsel %vm460, %v636, 0.0
        %697 = vadd.xlane.f32.xlu0 %v696
        %v698 = vpop.xlane.xlu0 %697
        %v699 = vsel %vm460, %v637, 0.0
        %700 = vadd.xlane.f32.xlu0 %v699
        %v701 = vpop.xlane.xlu0 %700
        %v702 = vsel %vm460, %v638, 0.0
        %703 = vadd.xlane.f32.xlu0 %v702
        %v704 = vpop.xlane.xlu0 %703
        %v705 = vsel %vm460, %v639, 0.0
        %706 = vadd.xlane.f32.xlu0 %v705
        %v707 = vpop.xlane.xlu0 %706
        %v708 = vsel %vm460, %v640, 0.0
        %709 = vadd.xlane.f32.xlu0 %v708
        %v710 = vpop.xlane.xlu0 %709
        %v711 = vsel %vm460, %v641, 0.0
        %712 = vadd.xlane.f32.xlu0 %v711
        %v713 = vpop.xlane.xlu0 %712
        %v714 = vsel %vm460, %v642, 0.0
        %715 = vadd.xlane.f32.xlu0 %v714
        %v716 = vpop.xlane.xlu0 %715
        %v717 = vsel %vm460, %v643, 0.0
        %718 = vadd.xlane.f32.xlu0 %v717
        %v719 = vpop.xlane.xlu0 %718
        %v720 = vsel %vm460, %v644, 0.0
        %721 = vadd.xlane.f32.xlu0 %v720
        %v722 = vpop.xlane.xlu0 %721
        %v723 = vsel %vm460, %v645, 0.0
        %724 = vadd.xlane.f32.xlu0 %v723
        %v725 = vpop.xlane.xlu0 %724
        %v726 = vsel %vm460, %v646, 0.0
        %727 = vadd.xlane.f32.xlu0 %v726
        %v728 = vpop.xlane.xlu0 %727
        %v729 = vsel %vm460, %v647, 0.0
        %730 = vadd.xlane.f32.xlu0 %v729
        %v731 = vpop.xlane.xlu0 %730
        %v732 = vsel %vm460, %v648, 0.0
        %733 = vadd.xlane.f32.xlu0 %v732
        %v734 = vpop.xlane.xlu0 %733
        %v735 = vsel %vm460, %v649, 0.0
        %736 = vadd.xlane.f32.xlu0 %v735
        %v737 = vpop.xlane.xlu0 %736
        %v738 = vsel %vm460, %v650, 0.0
        %739 = vadd.xlane.f32.xlu0 %v738
        %v740 = vpop.xlane.xlu0 %739
        %v741 = vsel %vm460, %v651, 0.0
        %742 = vadd.xlane.f32.xlu0 %v741
        %v743 = vpop.xlane.xlu0 %742
        %v744 = vsel %vm460, %v652, 0.0
        %745 = vadd.xlane.f32.xlu0 %v744
        %v746 = vpop.xlane.xlu0 %745
        %v747 = vsel %vm460, %v653, 0.0
        %748 = vadd.xlane.f32.xlu0 %v747
        %v749 = vpop.xlane.xlu0 %748
        %v750 = vmul.f32 %v656, %v557
        %v751 = vmul.f32 %v659, %v557
        %v752 = vmul.f32 %v662, %v557
        %v753 = vmul.f32 %v665, %v557
        %v754 = vmul.f32 %v668, %v557
        %v755 = vmul.f32 %v671, %v557
        %v756 = vmul.f32 %v674, %v557
        %v757 = vmul.f32 %v677, %v557
        %v758 = vmul.f32 %v680, %v557
        %v759 = vmul.f32 %v683, %v557
        %v760 = vmul.f32 %v686, %v557
        %v761 = vmul.f32 %v689, %v557
        %v762 = vmul.f32 %v692, %v557
        %v763 = vmul.f32 %v695, %v557
        %v764 = vmul.f32 %v698, %v557
        %v765 = vmul.f32 %v701, %v557
        %v766 = vmul.f32 %v704, %v557
        %v767 = vmul.f32 %v707, %v557
        %v768 = vmul.f32 %v710, %v557
        %v769 = vmul.f32 %v713, %v557
        %v770 = vmul.f32 %v716, %v557
        %v771 = vmul.f32 %v719, %v557
        %v772 = vmul.f32 %v722, %v557
        %v773 = vmul.f32 %v725, %v557
        %v774 = vmul.f32 %v728, %v557
        %v775 = vmul.f32 %v731, %v557
        %v776 = vmul.f32 %v734, %v557
        %v777 = vmul.f32 %v737, %v557
        %v778 = vmul.f32 %v740, %v557
        %v779 = vmul.f32 %v743, %v557
        %v780 = vmul.f32 %v746, %v557
        %v781 = vmul.f32 %v749, %v557
        %v782 = vadd.f32 %v750, 1e-05
        %v783 = vadd.f32 %v751, 1e-05
        %v784 = vadd.f32 %v752, 1e-05
        %v785 = vadd.f32 %v753, 1e-05
        %v786 = vadd.f32 %v754, 1e-05
        %v787 = vadd.f32 %v755, 1e-05
        %v788 = vadd.f32 %v756, 1e-05
        %v789 = vadd.f32 %v757, 1e-05
        %v790 = vadd.f32 %v758, 1e-05
        %v791 = vadd.f32 %v759, 1e-05
        %v792 = vadd.f32 %v760, 1e-05
        %v793 = vadd.f32 %v761, 1e-05
        %v794 = vadd.f32 %v762, 1e-05
        %v795 = vadd.f32 %v763, 1e-05
        %v796 = vadd.f32 %v764, 1e-05
        %v797 = vadd.f32 %v765, 1e-05
        %v798 = vadd.f32 %v766, 1e-05
        %v799 = vadd.f32 %v767, 1e-05
        %v800 = vadd.f32 %v768, 1e-05
        %v801 = vadd.f32 %v769, 1e-05
        %v802 = vadd.f32 %v770, 1e-05
        %v803 = vadd.f32 %v771, 1e-05
        %v804 = vadd.f32 %v772, 1e-05
        %v805 = vadd.f32 %v773, 1e-05
        %v806 = vadd.f32 %v774, 1e-05
        %v807 = vadd.f32 %v775, 1e-05
        %v808 = vadd.f32 %v776, 1e-05
        %v809 = vadd.f32 %v777, 1e-05
        %v810 = vadd.f32 %v778, 1e-05
        %v811 = vadd.f32 %v779, 1e-05
        %v812 = vadd.f32 %v780, 1e-05
        %v813 = vadd.f32 %v781, 1e-05
        %v814 = vrsqrt.pop %v782
        %v815 = vrsqrt.pop %v783
        %v816 = vrsqrt.pop %v784
        %v817 = vrsqrt.pop %v785
        %v818 = vrsqrt.pop %v786
        %v819 = vrsqrt.pop %v787
        %v820 = vrsqrt.pop %v788
        %v821 = vrsqrt.pop %v789
        %v822 = vrsqrt.pop %v790
        %v823 = vrsqrt.pop %v791
        %v824 = vrsqrt.pop %v792
        %v825 = vrsqrt.pop %v793
        %v826 = vrsqrt.pop %v794
        %v827 = vrsqrt.pop %v795
        %v828 = vrsqrt.pop %v796
        %v829 = vrsqrt.pop %v797
        %v830 = vrsqrt.pop %v798
        %v831 = vrsqrt.pop %v799
        %v832 = vrsqrt.pop %v800
        %v833 = vrsqrt.pop %v801
        %v834 = vrsqrt.pop %v802
        %v835 = vrsqrt.pop %v803
        %v836 = vrsqrt.pop %v804
        %v837 = vrsqrt.pop %v805
        %v838 = vrsqrt.pop %v806
        %v839 = vrsqrt.pop %v807
        %v840 = vrsqrt.pop %v808
        %v841 = vrsqrt.pop %v809
        %v842 = vrsqrt.pop %v810
        %v843 = vrsqrt.pop %v811
        %v844 = vrsqrt.pop %v812
        %v845 = vrsqrt.pop %v813
        %v846 = vmul.f32 %v590, %v814
        %v847 = vmul.f32 %v591, %v815
        %v848 = vmul.f32 %v592, %v816
        %v849 = vmul.f32 %v593, %v817
        %v850 = vmul.f32 %v594, %v818
        %v851 = vmul.f32 %v595, %v819
        %v852 = vmul.f32 %v596, %v820
        %v853 = vmul.f32 %v597, %v821
        %v854 = vmul.f32 %v598, %v822
        %v855 = vmul.f32 %v599, %v823
        %v856 = vmul.f32 %v600, %v824
        %v857 = vmul.f32 %v601, %v825
        %v858 = vmul.f32 %v602, %v826
        %v859 = vmul.f32 %v603, %v827
        %v860 = vmul.f32 %v604, %v828
        %v861 = vmul.f32 %v605, %v829
        %v862 = vmul.f32 %v606, %v830
        %v863 = vmul.f32 %v607, %v831
        %v864 = vmul.f32 %v608, %v832
        %v865 = vmul.f32 %v609, %v833
        %v866 = vmul.f32 %v610, %v834
        %v867 = vmul.f32 %v611, %v835
        %v868 = vmul.f32 %v612, %v836
        %v869 = vmul.f32 %v613, %v837
        %v870 = vmul.f32 %v614, %v838
        %v871 = vmul.f32 %v615, %v839
        %v872 = vmul.f32 %v616, %v840
        %v873 = vmul.f32 %v617, %v841
        %v874 = vmul.f32 %v618, %v842
        %v875 = vmul.f32 %v619, %v843
        %v876 = vmul.f32 %v620, %v844
        %v877 = vmul.f32 %v621, %v845
        %v878 = vld [vmem:[%s4] sm:$0x1]
        %v880 = vlaneseq
        %v881 = vshrl.u32 %v880, 7
        %v882 = vsub.s32 0, %v881
        %v883 = vrot.slane %v878, %v882
        %v885 = vmul.f32 %v846, %v883
        %v886 = vmul.f32 %v847, %v883
        %v887 = vmul.f32 %v848, %v883
        %v888 = vmul.f32 %v849, %v883
        %v889 = vmul.f32 %v850, %v883
        %v890 = vmul.f32 %v851, %v883
        %v891 = vmul.f32 %v852, %v883
        %v892 = vmul.f32 %v853, %v883
        %v893 = vmul.f32 %v854, %v883
        %v894 = vmul.f32 %v855, %v883
        %v895 = vmul.f32 %v856, %v883
        %v896 = vmul.f32 %v857, %v883
        %v897 = vmul.f32 %v858, %v883
        %v898 = vmul.f32 %v859, %v883
        %v899 = vmul.f32 %v860, %v883
        %v900 = vmul.f32 %v861, %v883
        %v901 = vmul.f32 %v862, %v883
        %v902 = vmul.f32 %v863, %v883
        %v903 = vmul.f32 %v864, %v883
        %v904 = vmul.f32 %v865, %v883
        %v905 = vmul.f32 %v866, %v883
        %v906 = vmul.f32 %v867, %v883
        %v907 = vmul.f32 %v868, %v883
        %v908 = vmul.f32 %v869, %v883
        %v909 = vmul.f32 %v870, %v883
        %v910 = vmul.f32 %v871, %v883
        %v911 = vmul.f32 %v872, %v883
        %v912 = vmul.f32 %v873, %v883
        %v913 = vmul.f32 %v874, %v883
        %v914 = vmul.f32 %v875, %v883
        %v915 = vmul.f32 %v876, %v883
        %v916 = vmul.f32 %v877, %v883
        %v917 = vld [vmem:[%s5] sm:$0x1]
        %v919 = vlaneseq
        %v920 = vshrl.u32 %v919, 7
        %v921 = vsub.s32 0, %v920
        %v922 = vrot.slane %v917, %v921
        %v924 = vadd.f32 %v885, %v922
        %v925 = vadd.f32 %v886, %v922
        %v926 = vadd.f32 %v887, %v922
        %v927 = vadd.f32 %v888, %v922
        %v928 = vadd.f32 %v889, %v922
        %v929 = vadd.f32 %v890, %v922
        %v930 = vadd.f32 %v891, %v922
        %v931 = vadd.f32 %v892, %v922
        %v932 = vadd.f32 %v893, %v922
        %v933 = vadd.f32 %v894, %v922
        %v934 = vadd.f32 %v895, %v922
        %v935 = vadd.f32 %v896, %v922
        %v936 = vadd.f32 %v897, %v922
        %v937 = vadd.f32 %v898, %v922
        %v938 = vadd.f32 %v899, %v922
        %v939 = vadd.f32 %v900, %v922
        %v940 = vadd.f32 %v901, %v922
        %v941 = vadd.f32 %v902, %v922
        %v942 = vadd.f32 %v903, %v922
        %v943 = vadd.f32 %v904, %v922
        %v944 = vadd.f32 %v905, %v922
        %v945 = vadd.f32 %v906, %v922
        %v946 = vadd.f32 %v907, %v922
        %v947 = vadd.f32 %v908, %v922
        %v948 = vadd.f32 %v909, %v922
        %v949 = vadd.f32 %v910, %v922
        %v950 = vadd.f32 %v911, %v922
        %v951 = vadd.f32 %v912, %v922
        %v952 = vadd.f32 %v913, %v922
        %v953 = vadd.f32 %v914, %v922
        %v954 = vadd.f32 %v915, %v922
        %v955 = vadd.f32 %v916, %v922
        %v956 = vld [vmem:[%s321] sm:$0xff]
        %v957 = vld [vmem:[%s321 + $0x8] sm:$0xff]
        %v958 = vld [vmem:[%s321 + $0x10] sm:$0xff]
        %v959 = vld [vmem:[%s321 + $0x18] sm:$0xff]
        %v960 = vld [vmem:[%s321 + $0x20] sm:$0xff]
        %v961 = vld [vmem:[%s321 + $0x28] sm:$0xff]
        %v962 = vld [vmem:[%s321 + $0x30] sm:$0xff]
        %v963 = vld [vmem:[%s321 + $0x38] sm:$0xff]
        %v964 = vld [vmem:[%s321 + $0x40] sm:$0xff]
        %v965 = vld [vmem:[%s321 + $0x48] sm:$0xff]
        %v966 = vld [vmem:[%s321 + $0x50] sm:$0xff]
        %v967 = vld [vmem:[%s321 + $0x58] sm:$0xff]
        %v968 = vld [vmem:[%s321 + $0x60] sm:$0xff]
        %v969 = vld [vmem:[%s321 + $0x68] sm:$0xff]
        %v970 = vld [vmem:[%s321 + $0x70] sm:$0xff]
        %v971 = vld [vmem:[%s321 + $0x78] sm:$0xff]
        %v972 = vld [vmem:[%s321 + $0x80] sm:$0xff]
        %v973 = vld [vmem:[%s321 + $0x88] sm:$0xff]
        %v974 = vld [vmem:[%s321 + $0x90] sm:$0xff]
        %v975 = vld [vmem:[%s321 + $0x98] sm:$0xff]
        %v976 = vld [vmem:[%s321 + $0xa0] sm:$0xff]
        %v977 = vld [vmem:[%s321 + $0xa8] sm:$0xff]
        %v978 = vld [vmem:[%s321 + $0xb0] sm:$0xff]
        %v979 = vld [vmem:[%s321 + $0xb8] sm:$0xff]
        %v980 = vld [vmem:[%s321 + $0xc0] sm:$0xff]
        %v981 = vld [vmem:[%s321 + $0xc8] sm:$0xff]
        %v982 = vld [vmem:[%s321 + $0xd0] sm:$0xff]
        %v983 = vld [vmem:[%s321 + $0xd8] sm:$0xff]
        %v984 = vld [vmem:[%s321 + $0xe0] sm:$0xff]
        %v985 = vld [vmem:[%s321 + $0xe8] sm:$0xff]
        %v986 = vld [vmem:[%s321 + $0xf0] sm:$0xff]
        %v987 = vld [vmem:[%s321 + $0xf8] sm:$0xff]
        %v988 = vxor.u32 %v956, 2147483648
        %v989 = vxor.u32 %v957, 2147483648
        %v990 = vxor.u32 %v958, 2147483648
        %v991 = vxor.u32 %v959, 2147483648
        %v992 = vxor.u32 %v960, 2147483648
        %v993 = vxor.u32 %v961, 2147483648
        %v994 = vxor.u32 %v962, 2147483648
        %v995 = vxor.u32 %v963, 2147483648
        %v996 = vxor.u32 %v964, 2147483648
        %v997 = vxor.u32 %v965, 2147483648
        %v998 = vxor.u32 %v966, 2147483648
        %v999 = vxor.u32 %v967, 2147483648
        %v1000 = vxor.u32 %v968, 2147483648
        %v1001 = vxor.u32 %v969, 2147483648
        %v1002 = vxor.u32 %v970, 2147483648
        %v1003 = vxor.u32 %v971, 2147483648
        %v1004 = vxor.u32 %v972, 2147483648
        %v1005 = vxor.u32 %v973, 2147483648
        %v1006 = vxor.u32 %v974, 2147483648
        %v1007 = vxor.u32 %v975, 2147483648
        %v1008 = vxor.u32 %v976, 2147483648
        %v1009 = vxor.u32 %v977, 2147483648
        %v1010 = vxor.u32 %v978, 2147483648
        %v1011 = vxor.u32 %v979, 2147483648
        %v1012 = vxor.u32 %v980, 2147483648
        %v1013 = vxor.u32 %v981, 2147483648
        %v1014 = vxor.u32 %v982, 2147483648
        %v1015 = vxor.u32 %v983, 2147483648
        %v1016 = vxor.u32 %v984, 2147483648
        %v1017 = vxor.u32 %v985, 2147483648
        %v1018 = vxor.u32 %v986, 2147483648
        %v1019 = vxor.u32 %v987, 2147483648
        %v1020 = vmul.f32 %v988, 1.442695
        %v1021 = vpow.pop %v1020
        %v1022 = vmul.f32 %v989, 1.442695
        %v1023 = vpow.pop %v1022
        %v1024 = vmul.f32 %v990, 1.442695
        %v1025 = vpow.pop %v1024
        %v1026 = vmul.f32 %v991, 1.442695
        %v1027 = vpow.pop %v1026
        %v1028 = vmul.f32 %v992, 1.442695
        %v1029 = vpow.pop %v1028
        %v1030 = vmul.f32 %v993, 1.442695
        %v1031 = vpow.pop %v1030
        %v1032 = vmul.f32 %v994, 1.442695
        %v1033 = vpow.pop %v1032
        %v1034 = vmul.f32 %v995, 1.442695
        %v1035 = vpow.pop %v1034
        %v1036 = vmul.f32 %v996, 1.442695
        %v1037 = vpow.pop %v1036
        %v1038 = vmul.f32 %v997, 1.442695
        %v1039 = vpow.pop %v1038
        %v1040 = vmul.f32 %v998, 1.442695
        %v1041 = vpow.pop %v1040
        %v1042 = vmul.f32 %v999, 1.442695
        %v1043 = vpow.pop %v1042
        %v1044 = vmul.f32 %v1000, 1.442695
        %v1045 = vpow.pop %v1044
        %v1046 = vmul.f32 %v1001, 1.442695
        %v1047 = vpow.pop %v1046
        %v1048 = vmul.f32 %v1002, 1.442695
        %v1049 = vpow.pop %v1048
        %v1050 = vmul.f32 %v1003, 1.442695
        %v1051 = vpow.pop %v1050
        %v1052 = vmul.f32 %v1004, 1.442695
        %v1053 = vpow.pop %v1052
        %v1054 = vmul.f32 %v1005, 1.442695
        %v1055 = vpow.pop %v1054
        %v1056 = vmul.f32 %v1006, 1.442695
        %v1057 = vpow.pop %v1056
        %v1058 = vmul.f32 %v1007, 1.442695
        %v1059 = vpow.pop %v1058
        %v1060 = vmul.f32 %v1008, 1.442695
        %v1061 = vpow.pop %v1060
        %v1062 = vmul.f32 %v1009, 1.442695
        %v1063 = vpow.pop %v1062
        %v1064 = vmul.f32 %v1010, 1.442695
        %v1065 = vpow.pop %v1064
        %v1066 = vmul.f32 %v1011, 1.442695
        %v1067 = vpow.pop %v1066
        %v1068 = vmul.f32 %v1012, 1.442695
        %v1069 = vpow.pop %v1068
        %v1070 = vmul.f32 %v1013, 1.442695
        %v1071 = vpow.pop %v1070
        %v1072 = vmul.f32 %v1014, 1.442695
        %v1073 = vpow.pop %v1072
        %v1074 = vmul.f32 %v1015, 1.442695
        %v1075 = vpow.pop %v1074
        %v1076 = vmul.f32 %v1016, 1.442695
        %v1077 = vpow.pop %v1076
        %v1078 = vmul.f32 %v1017, 1.442695
        %v1079 = vpow.pop %v1078
        %v1080 = vmul.f32 %v1018, 1.442695
        %v1081 = vpow.pop %v1080
        %v1082 = vmul.f32 %v1019, 1.442695
        %v1083 = vpow.pop %v1082
        %v1084 = vadd.f32 %v1021, 1.0
        %v1085 = vadd.f32 %v1023, 1.0
        %v1086 = vadd.f32 %v1025, 1.0
        %v1087 = vadd.f32 %v1027, 1.0
        %v1088 = vadd.f32 %v1029, 1.0
        %v1089 = vadd.f32 %v1031, 1.0
        %v1090 = vadd.f32 %v1033, 1.0
        %v1091 = vadd.f32 %v1035, 1.0
        %v1092 = vadd.f32 %v1037, 1.0
        %v1093 = vadd.f32 %v1039, 1.0
        %v1094 = vadd.f32 %v1041, 1.0
        %v1095 = vadd.f32 %v1043, 1.0
        %v1096 = vadd.f32 %v1045, 1.0
        %v1097 = vadd.f32 %v1047, 1.0
        %v1098 = vadd.f32 %v1049, 1.0
        %v1099 = vadd.f32 %v1051, 1.0
        %v1100 = vadd.f32 %v1053, 1.0
        %v1101 = vadd.f32 %v1055, 1.0
        %v1102 = vadd.f32 %v1057, 1.0
        %v1103 = vadd.f32 %v1059, 1.0
        %v1104 = vadd.f32 %v1061, 1.0
        %v1105 = vadd.f32 %v1063, 1.0
        %v1106 = vadd.f32 %v1065, 1.0
        %v1107 = vadd.f32 %v1067, 1.0
        %v1108 = vadd.f32 %v1069, 1.0
        %v1109 = vadd.f32 %v1071, 1.0
        %v1110 = vadd.f32 %v1073, 1.0
        %v1111 = vadd.f32 %v1075, 1.0
        %v1112 = vadd.f32 %v1077, 1.0
        %v1113 = vadd.f32 %v1079, 1.0
        %v1114 = vadd.f32 %v1081, 1.0
        %v1115 = vadd.f32 %v1083, 1.0
        %v1116 = vrcp.pop %v1084
        %v1117 = vmul.f32 1.0, %v1116
        %v1118 = vrcp.pop %v1085
        %v1119 = vmul.f32 1.0, %v1118
        %v1120 = vrcp.pop %v1086
        %v1121 = vmul.f32 1.0, %v1120
        %v1122 = vrcp.pop %v1087
        %v1123 = vmul.f32 1.0, %v1122
        %v1124 = vrcp.pop %v1088
        %v1125 = vmul.f32 1.0, %v1124
        %v1126 = vrcp.pop %v1089
        %v1127 = vmul.f32 1.0, %v1126
        %v1128 = vrcp.pop %v1090
        %v1129 = vmul.f32 1.0, %v1128
        %v1130 = vrcp.pop %v1091
        %v1131 = vmul.f32 1.0, %v1130
        %v1132 = vrcp.pop %v1092
        %v1133 = vmul.f32 1.0, %v1132
        %v1134 = vrcp.pop %v1093
        %v1135 = vmul.f32 1.0, %v1134
        %v1136 = vrcp.pop %v1094
        %v1137 = vmul.f32 1.0, %v1136
        %v1138 = vrcp.pop %v1095
        %v1139 = vmul.f32 1.0, %v1138
        %v1140 = vrcp.pop %v1096
        %v1141 = vmul.f32 1.0, %v1140
        %v1142 = vrcp.pop %v1097
        %v1143 = vmul.f32 1.0, %v1142
        %v1144 = vrcp.pop %v1098
        %v1145 = vmul.f32 1.0, %v1144
        %v1146 = vrcp.pop %v1099
        %v1147 = vmul.f32 1.0, %v1146
        %v1148 = vrcp.pop %v1100
        %v1149 = vmul.f32 1.0, %v1148
        %v1150 = vrcp.pop %v1101
        %v1151 = vmul.f32 1.0, %v1150
        %v1152 = vrcp.pop %v1102
        %v1153 = vmul.f32 1.0, %v1152
        %v1154 = vrcp.pop %v1103
        %v1155 = vmul.f32 1.0, %v1154
        %v1156 = vrcp.pop %v1104
        %v1157 = vmul.f32 1.0, %v1156
        %v1158 = vrcp.pop %v1105
        %v1159 = vmul.f32 1.0, %v1158
        %v1160 = vrcp.pop %v1106
        %v1161 = vmul.f32 1.0, %v1160
        %v1162 = vrcp.pop %v1107
        %v1163 = vmul.f32 1.0, %v1162
        %v1164 = vrcp.pop %v1108
        %v1165 = vmul.f32 1.0, %v1164
        %v1166 = vrcp.pop %v1109
        %v1167 = vmul.f32 1.0, %v1166
        %v1168 = vrcp.pop %v1110
        %v1169 = vmul.f32 1.0, %v1168
        %v1170 = vrcp.pop %v1111
        %v1171 = vmul.f32 1.0, %v1170
        %v1172 = vrcp.pop %v1112
        %v1173 = vmul.f32 1.0, %v1172
        %v1174 = vrcp.pop %v1113
        %v1175 = vmul.f32 1.0, %v1174
        %v1176 = vrcp.pop %v1114
        %v1177 = vmul.f32 1.0, %v1176
        %v1178 = vrcp.pop %v1115
        %v1179 = vmul.f32 1.0, %v1178
        %v1180 = vmul.f32 %v956, %v1117
        %v1181 = vmul.f32 %v957, %v1119
        %v1182 = vmul.f32 %v958, %v1121
        %v1183 = vmul.f32 %v959, %v1123
        %v1184 = vmul.f32 %v960, %v1125
        %v1185 = vmul.f32 %v961, %v1127
        %v1186 = vmul.f32 %v962, %v1129
        %v1187 = vmul.f32 %v963, %v1131
        %v1188 = vmul.f32 %v964, %v1133
        %v1189 = vmul.f32 %v965, %v1135
        %v1190 = vmul.f32 %v966, %v1137
        %v1191 = vmul.f32 %v967, %v1139
        %v1192 = vmul.f32 %v968, %v1141
        %v1193 = vmul.f32 %v969, %v1143
        %v1194 = vmul.f32 %v970, %v1145
        %v1195 = vmul.f32 %v971, %v1147
        %v1196 = vmul.f32 %v972, %v1149
        %v1197 = vmul.f32 %v973, %v1151
        %v1198 = vmul.f32 %v974, %v1153
        %v1199 = vmul.f32 %v975, %v1155
        %v1200 = vmul.f32 %v976, %v1157
        %v1201 = vmul.f32 %v977, %v1159
        %v1202 = vmul.f32 %v978, %v1161
        %v1203 = vmul.f32 %v979, %v1163
        %v1204 = vmul.f32 %v980, %v1165
        %v1205 = vmul.f32 %v981, %v1167
        %v1206 = vmul.f32 %v982, %v1169
        %v1207 = vmul.f32 %v983, %v1171
        %v1208 = vmul.f32 %v984, %v1173
        %v1209 = vmul.f32 %v985, %v1175
        %v1210 = vmul.f32 %v986, %v1177
        %v1211 = vmul.f32 %v987, %v1179
        %v1212 = vmul.f32 %v924, %v1180
        %v1213 = vmul.f32 %v925, %v1181
        %v1214 = vmul.f32 %v926, %v1182
        %v1215 = vmul.f32 %v927, %v1183
        %v1216 = vmul.f32 %v928, %v1184
        %v1217 = vmul.f32 %v929, %v1185
        %v1218 = vmul.f32 %v930, %v1186
        %v1219 = vmul.f32 %v931, %v1187
        %v1220 = vmul.f32 %v932, %v1188
        %v1221 = vmul.f32 %v933, %v1189
        %v1222 = vmul.f32 %v934, %v1190
        %v1223 = vmul.f32 %v935, %v1191
        %v1224 = vmul.f32 %v936, %v1192
        %v1225 = vmul.f32 %v937, %v1193
        %v1226 = vmul.f32 %v938, %v1194
        %v1227 = vmul.f32 %v939, %v1195
        %v1228 = vmul.f32 %v940, %v1196
        %v1229 = vmul.f32 %v941, %v1197
        %v1230 = vmul.f32 %v942, %v1198
        %v1231 = vmul.f32 %v943, %v1199
        %v1232 = vmul.f32 %v944, %v1200
        %v1233 = vmul.f32 %v945, %v1201
        %v1234 = vmul.f32 %v946, %v1202
        %v1235 = vmul.f32 %v947, %v1203
        %v1236 = vmul.f32 %v948, %v1204
        %v1237 = vmul.f32 %v949, %v1205
        %v1238 = vmul.f32 %v950, %v1206
        %v1239 = vmul.f32 %v951, %v1207
        %v1240 = vmul.f32 %v952, %v1208
        %v1241 = vmul.f32 %v953, %v1209
        %v1242 = vmul.f32 %v954, %v1210
        %v1243 = vmul.f32 %v955, %v1211
        %v1244 = vpack.c.bf16 %v1213, %v1212
        %v1245 = vpack.c.bf16 %v1215, %v1214
        %v1246 = vpack.c.bf16 %v1217, %v1216
        %v1247 = vpack.c.bf16 %v1219, %v1218
        %v1248 = vpack.c.bf16 %v1221, %v1220
        %v1249 = vpack.c.bf16 %v1223, %v1222
        %v1250 = vpack.c.bf16 %v1225, %v1224
        %v1251 = vpack.c.bf16 %v1227, %v1226
        %v1252 = vpack.c.bf16 %v1229, %v1228
        %v1253 = vpack.c.bf16 %v1231, %v1230
        %v1254 = vpack.c.bf16 %v1233, %v1232
        %v1255 = vpack.c.bf16 %v1235, %v1234
        %v1256 = vpack.c.bf16 %v1237, %v1236
        %v1257 = vpack.c.bf16 %v1239, %v1238
        %v1258 = vpack.c.bf16 %v1241, %v1240
        %v1259 = vpack.c.bf16 %v1243, %v1242
        %v1260 = vld [vmem:[%s6] sm:$0xff]
        %v1261 = vld [vmem:[%s6 + $0x8] sm:$0xff]
        %v1262 = vld [vmem:[%s6 + $0x10] sm:$0xff]
        %v1263 = vld [vmem:[%s6 + $0x18] sm:$0xff]
        %v1264 = vld [vmem:[%s6 + $0x20] sm:$0xff]
        %v1265 = vld [vmem:[%s6 + $0x28] sm:$0xff]
        %v1266 = vld [vmem:[%s6 + $0x30] sm:$0xff]
        %v1267 = vld [vmem:[%s6 + $0x38] sm:$0xff]
        %v1268 = vpack.c.bf16 %v1261, %v1260
        %v1269 = vpack.c.bf16 %v1263, %v1262
        %v1270 = vpack.c.bf16 %v1265, %v1264
        %v1271 = vpack.c.bf16 %v1267, %v1266
        %v1273 = vsel %vm460, %v1244, 0
        %v1276 = vsel %vm460, %v1245, 0
        %v1279 = vsel %vm460, %v1246, 0
        %v1282 = vsel %vm460, %v1247, 0
        %v1285 = vsel %vm460, %v1248, 0
        %v1288 = vsel %vm460, %v1249, 0
        %v1291 = vsel %vm460, %v1250, 0
        %v1294 = vsel %vm460, %v1251, 0
        %v1297 = vsel %vm460, %v1252, 0
        %v1300 = vsel %vm460, %v1253, 0
        %v1303 = vsel %vm460, %v1254, 0
        %v1306 = vsel %vm460, %v1255, 0
        %v1309 = vsel %vm460, %v1256, 0
        %v1312 = vsel %vm460, %v1257, 0
        %v1315 = vsel %vm460, %v1258, 0
        %v1318 = vsel %vm460, %v1259, 0
        %1320 = vmatprep.subr.bf16.mxu0 0
        %1321 = vmatpush1.bf16.msra.mxu0 0
        %1322 = vmatprep.subr.bf16.mxu0 0
        %1323 = vmatpush1.bf16.msra.mxu0 0
        %1324 = vmatprep.subr.bf16.mxu0 0
        %1325 = vmatpush1.bf16.msra.mxu0 0
        %1326 = vmatprep.subr.bf16.mxu0 0
        %1327 = vmatpush1.bf16.msra.mxu0 0
        %1328 = vmatprep.subr.bf16.mxu0 0
        %1329 = vmatpush1.bf16.msra.mxu0 %v1271
        %1330 = vmatprep.subr.bf16.mxu0 0
        %1331 = vmatpush1.bf16.msra.mxu0 %v1270
        %1332 = vmatprep.subr.bf16.mxu0 0
        %1333 = vmatpush1.bf16.msra.mxu0 %v1269
        %1334 = vmatprep.subr.bf16.mxu0 0
        %1335 = vmatpush1.bf16.msra.mxu0 %v1268
        %1336 = vmatprep.subr.bf16.mxu0 0
        %1337 = vmatpush2.bf16.msra.mxu0 0
        %1338 = vmatprep.subr.bf16.mxu0 0
        %1339 = vmatpush2.bf16.msra.mxu0 0
        %1340 = vmatprep.subr.bf16.mxu0 0
        %1341 = vmatpush2.bf16.msra.mxu0 0
        %1342 = vmatprep.subr.bf16.mxu0 0
        %1343 = vmatpush2.bf16.msra.mxu0 0
        %1344 = vmatprep.subr.bf16.mxu0 0
        %1345 = vmatpush2.bf16.msra.mxu0 0
        %1346 = vmatprep.subr.bf16.mxu0 0
        %1347 = vmatpush2.bf16.msra.mxu0 0
        %1348 = vmatprep.subr.bf16.mxu0 0
        %1349 = vmatpush2.bf16.msra.mxu0 0
        %1350 = vmatprep.subr.bf16.mxu0 0
        %1351 = vmatpush2.bf16.msra.mxu0 0
        %1352 = vmatprep.mubr.bf16.mxu0 0
        %1353 = vmatmul.mubr.bf16.gmra.mxu0 %v1273
        %v1354 = vpop.f32.mrf.mxu0
        %v1355 = vadd.f32 0.0, %v1354
        %v1356 = vpop.f32.mrf.mxu0
        %v1357 = vpop.f32.mrf.mxu0
        %v1358 = vadd.f32 0.0, %v1357
        %v1359 = vpop.f32.mrf.mxu0
        %1360 = vmatprep.mubr.bf16.mxu0 0
        %1361 = vmatmul.mubr.bf16.gmra.mxu0 %v1276
        %v1362 = vpop.f32.mrf.mxu0
        %v1363 = vadd.f32 0.0, %v1362
        %v1364 = vpop.f32.mrf.mxu0
        %v1365 = vpop.f32.mrf.mxu0
        %v1366 = vadd.f32 0.0, %v1365
        %v1367 = vpop.f32.mrf.mxu0
        %1368 = vmatprep.mubr.bf16.mxu0 0
        %1369 = vmatmul.mubr.bf16.gmra.mxu0 %v1279
        %v1370 = vpop.f32.mrf.mxu0
        %v1371 = vadd.f32 0.0, %v1370
        %v1372 = vpop.f32.mrf.mxu0
        %v1373 = vpop.f32.mrf.mxu0
        %v1374 = vadd.f32 0.0, %v1373
        %v1375 = vpop.f32.mrf.mxu0
        %1376 = vmatprep.mubr.bf16.mxu0 0
        %1377 = vmatmul.mubr.bf16.gmra.mxu0 %v1282
        %v1378 = vpop.f32.mrf.mxu0
        %v1379 = vadd.f32 0.0, %v1378
        %v1380 = vpop.f32.mrf.mxu0
        %v1381 = vpop.f32.mrf.mxu0
        %v1382 = vadd.f32 0.0, %v1381
        %v1383 = vpop.f32.mrf.mxu0
        %1384 = vmatprep.mubr.bf16.mxu0 0
        %1385 = vmatmul.mubr.bf16.gmra.mxu0 %v1285
        %v1386 = vpop.f32.mrf.mxu0
        %v1387 = vadd.f32 0.0, %v1386
        %v1388 = vpop.f32.mrf.mxu0
        %v1389 = vpop.f32.mrf.mxu0
        %v1390 = vadd.f32 0.0, %v1389
        %v1391 = vpop.f32.mrf.mxu0
        %1392 = vmatprep.mubr.bf16.mxu0 0
        %1393 = vmatmul.mubr.bf16.gmra.mxu0 %v1288
        %v1394 = vpop.f32.mrf.mxu0
        %v1395 = vadd.f32 0.0, %v1394
        %v1396 = vpop.f32.mrf.mxu0
        %v1397 = vpop.f32.mrf.mxu0
        %v1398 = vadd.f32 0.0, %v1397
        %v1399 = vpop.f32.mrf.mxu0
        %1400 = vmatprep.mubr.bf16.mxu0 0
        %1401 = vmatmul.mubr.bf16.gmra.mxu0 %v1291
        %v1402 = vpop.f32.mrf.mxu0
        %v1403 = vadd.f32 0.0, %v1402
        %v1404 = vpop.f32.mrf.mxu0
        %v1405 = vpop.f32.mrf.mxu0
        %v1406 = vadd.f32 0.0, %v1405
        %v1407 = vpop.f32.mrf.mxu0
        %1408 = vmatprep.mubr.bf16.mxu0 0
        %1409 = vmatmul.mubr.bf16.gmra.mxu0 %v1294
        %v1410 = vpop.f32.mrf.mxu0
        %v1411 = vadd.f32 0.0, %v1410
        %v1412 = vpop.f32.mrf.mxu0
        %v1413 = vpop.f32.mrf.mxu0
        %v1414 = vadd.f32 0.0, %v1413
        %v1415 = vpop.f32.mrf.mxu0
        %1416 = vmatprep.mubr.bf16.mxu0 0
        %1417 = vmatmul.mubr.bf16.gmra.mxu0 %v1297
        %v1418 = vpop.f32.mrf.mxu0
        %v1419 = vadd.f32 0.0, %v1418
        %v1420 = vpop.f32.mrf.mxu0
        %v1421 = vpop.f32.mrf.mxu0
        %v1422 = vadd.f32 0.0, %v1421
        %v1423 = vpop.f32.mrf.mxu0
        %1424 = vmatprep.mubr.bf16.mxu0 0
        %1425 = vmatmul.mubr.bf16.gmra.mxu0 %v1300
        %v1426 = vpop.f32.mrf.mxu0
        %v1427 = vadd.f32 0.0, %v1426
        %v1428 = vpop.f32.mrf.mxu0
        %v1429 = vpop.f32.mrf.mxu0
        %v1430 = vadd.f32 0.0, %v1429
        %v1431 = vpop.f32.mrf.mxu0
        %1432 = vmatprep.mubr.bf16.mxu0 0
        %1433 = vmatmul.mubr.bf16.gmra.mxu0 %v1303
        %v1434 = vpop.f32.mrf.mxu0
        %v1435 = vadd.f32 0.0, %v1434
        %v1436 = vpop.f32.mrf.mxu0
        %v1437 = vpop.f32.mrf.mxu0
        %v1438 = vadd.f32 0.0, %v1437
        %v1439 = vpop.f32.mrf.mxu0
        %1440 = vmatprep.mubr.bf16.mxu0 0
        %1441 = vmatmul.mubr.bf16.gmra.mxu0 %v1306
        %v1442 = vpop.f32.mrf.mxu0
        %v1443 = vadd.f32 0.0, %v1442
        %v1444 = vpop.f32.mrf.mxu0
        %v1445 = vpop.f32.mrf.mxu0
        %v1446 = vadd.f32 0.0, %v1445
        %v1447 = vpop.f32.mrf.mxu0
        %1448 = vmatprep.mubr.bf16.mxu0 0
        %1449 = vmatmul.mubr.bf16.gmra.mxu0 %v1309
        %v1450 = vpop.f32.mrf.mxu0
        %v1451 = vadd.f32 0.0, %v1450
        %v1452 = vpop.f32.mrf.mxu0
        %v1453 = vpop.f32.mrf.mxu0
        %v1454 = vadd.f32 0.0, %v1453
        %v1455 = vpop.f32.mrf.mxu0
        %1456 = vmatprep.mubr.bf16.mxu0 0
        %1457 = vmatmul.mubr.bf16.gmra.mxu0 %v1312
        %v1458 = vpop.f32.mrf.mxu0
        %v1459 = vadd.f32 0.0, %v1458
        %v1460 = vpop.f32.mrf.mxu0
        %v1461 = vpop.f32.mrf.mxu0
        %v1462 = vadd.f32 0.0, %v1461
        %v1463 = vpop.f32.mrf.mxu0
        %1464 = vmatprep.mubr.bf16.mxu0 0
        %1465 = vmatmul.mubr.bf16.gmra.mxu0 %v1315
        %v1466 = vpop.f32.mrf.mxu0
        %v1467 = vadd.f32 0.0, %v1466
        %v1468 = vpop.f32.mrf.mxu0
        %v1469 = vpop.f32.mrf.mxu0
        %v1470 = vadd.f32 0.0, %v1469
        %v1471 = vpop.f32.mrf.mxu0
        %1472 = vmatprep.mubr.bf16.mxu0 0
        %1473 = vmatmul.mubr.bf16.gmra.mxu0 %v1318
        %v1474 = vpop.f32.mrf.mxu0
        %v1475 = vadd.f32 0.0, %v1474
        %v1476 = vpop.f32.mrf.mxu0
        %v1477 = vpop.f32.mrf.mxu0
        %v1478 = vadd.f32 0.0, %v1477
        %v1479 = vpop.f32.mrf.mxu0
        %1480 = vdwg.mxu0
        %vm1481 = vcmask 261120
        %1482 = vst.msk [vmem:[%s304] sm:$0xff] %vm1481, %v1355
        %1483 = vst.msk [vmem:[%s304 + $0x8] sm:$0xff] %vm1481, %v1358
        %1484 = vst.msk [vmem:[%s304 + $0x10] sm:$0xff] %vm1481, %v1363
        %1485 = vst.msk [vmem:[%s304 + $0x18] sm:$0xff] %vm1481, %v1366
        %1486 = vst.msk [vmem:[%s304 + $0x20] sm:$0xff] %vm1481, %v1371
        %1487 = vst.msk [vmem:[%s304 + $0x28] sm:$0xff] %vm1481, %v1374
        %1488 = vst.msk [vmem:[%s304 + $0x30] sm:$0xff] %vm1481, %v1379
        %1489 = vst.msk [vmem:[%s304 + $0x38] sm:$0xff] %vm1481, %v1382
        %1490 = vst.msk [vmem:[%s304 + $0x40] sm:$0xff] %vm1481, %v1387
        %1491 = vst.msk [vmem:[%s304 + $0x48] sm:$0xff] %vm1481, %v1390
        %1492 = vst.msk [vmem:[%s304 + $0x50] sm:$0xff] %vm1481, %v1395
        %1493 = vst.msk [vmem:[%s304 + $0x58] sm:$0xff] %vm1481, %v1398
        %1494 = vst.msk [vmem:[%s304 + $0x60] sm:$0xff] %vm1481, %v1403
        %1495 = vst.msk [vmem:[%s304 + $0x68] sm:$0xff] %vm1481, %v1406
        %1496 = vst.msk [vmem:[%s304 + $0x70] sm:$0xff] %vm1481, %v1411
        %1497 = vst.msk [vmem:[%s304 + $0x78] sm:$0xff] %vm1481, %v1414
        %1498 = vst.msk [vmem:[%s304 + $0x80] sm:$0xff] %vm1481, %v1419
        %1499 = vst.msk [vmem:[%s304 + $0x88] sm:$0xff] %vm1481, %v1422
        %1500 = vst.msk [vmem:[%s304 + $0x90] sm:$0xff] %vm1481, %v1427
        %1501 = vst.msk [vmem:[%s304 + $0x98] sm:$0xff] %vm1481, %v1430
        %1502 = vst.msk [vmem:[%s304 + $0xa0] sm:$0xff] %vm1481, %v1435
        %1503 = vst.msk [vmem:[%s304 + $0xa8] sm:$0xff] %vm1481, %v1438
        %1504 = vst.msk [vmem:[%s304 + $0xb0] sm:$0xff] %vm1481, %v1443
        %1505 = vst.msk [vmem:[%s304 + $0xb8] sm:$0xff] %vm1481, %v1446
        %1506 = vst.msk [vmem:[%s304 + $0xc0] sm:$0xff] %vm1481, %v1451
        %1507 = vst.msk [vmem:[%s304 + $0xc8] sm:$0xff] %vm1481, %v1454
        %1508 = vst.msk [vmem:[%s304 + $0xd0] sm:$0xff] %vm1481, %v1459
        %1509 = vst.msk [vmem:[%s304 + $0xd8] sm:$0xff] %vm1481, %v1462
        %1510 = vst.msk [vmem:[%s304 + $0xe0] sm:$0xff] %vm1481, %v1467
        %1511 = vst.msk [vmem:[%s304 + $0xe8] sm:$0xff] %vm1481, %v1470
        %1512 = vst.msk [vmem:[%s304 + $0xf0] sm:$0xff] %vm1481, %v1475
        %1513 = vst.msk [vmem:[%s304 + $0xf8] sm:$0xff] %vm1481, %v1478
        %s1514 = sand.u32 %s191, 1
        %s1515 = scalar_lea.sflag [#allocation3], %s1514
        %s1516 = sand.u32 %s191, 1
        %s1517 = smul.addr %s1516, 256
        %s1518 = scalar_lea.vmem [#allocation2], %s1517
        // Predicated region
        $region49: #{ss2d_forward.9} parent=47 // pred_check
          %p1519 = pneg %p201
        $region50: #{ss2d_forward.9} parent=47 // pred_check_branch
          %1521 = sbr.rel (%p1519) target = $region52
        $region51: #{ss2d_forward.9} parent=47 // pred_region
          %s1522 = smul.u32 32, %s21
          %s1524 = ssub.s32 4096, 4096
          %1525 = vsyncadd %s1515, %s1524
          %s1526 = smul.addr %s1522, 128
          %s1527 = scalar_lea.hbm %s7, %s1526
          %s1528 = sshll.u32 %s1518, 4
          %s1529 = int_to_ptr.vmem [resolvable:$true] %s1528
          %1534 = dma.vmem_to_hbm [thread:$0]  %s1529, 4096, %s1527, %s1515, 128, 128, 8
        $region52: #{ss2d_forward.9} parent=47 // pred_fallthru
          _
      $region48: #{ss2d_forward.9} parent=5 // pred_fallthru
        _
      %p1535 = scmp.le.s32.totalorder 2, %s16
      // Predicated region
      $region53: #{ss2d_forward.9} parent=5 // pred_check
        %p1536 = pneg %p1535
      $region54: #{ss2d_forward.9} parent=5 // pred_check_branch
        %1538 = sbr.rel (%p1536) target = $region56
      $region55: #{ss2d_forward.9} parent=5 // pred_region
        %s1539 = ssub.s32 %s16, 2
        // Predicated region
        $region57: #{ss2d_forward.9} parent=55 // pred_check
          %p1540 = pneg %p207
        $region58: #{ss2d_forward.9} parent=55 // pred_check_branch
          %1542 = sbr.rel (%p1540) target = $region60
        $region59: #{ss2d_forward.9} parent=55 // pred_region
          %s1543 = sand.u32 %s192, 1
          %s1544 = scalar_lea.sflag [#allocation3], %s1543
          %s1545 = sand.u32 %s192, 1
          %s1546 = smul.addr %s1545, 256
          %s1547 = scalar_lea.vmem [#allocation2], %s1546
          %1548 = dma.done %s1544, 4096
        $region60: #{ss2d_forward.9} parent=55 // pred_fallthru
          _
      $region56: #{ss2d_forward.9} parent=5 // pred_fallthru
        _
    $region6: #{ss2d_forward.9} parent=1 // loop_footer
      %s20 = sadd.s32 1, %s16
    $region7: #{ss2d_forward.9} parent=1 // loop_footer_branch
      %15 = sbr.rel target = $region3
    $region8: #{ss2d_forward.9} parent=1 // loop_exit
      _
    %1549 = vsyncpa [#allocation3], 1
    %s1550 = scalar_lea.sflag [#allocation3], 1
    %1551 = vsyncpa %s1550, 1

</llo_original>
